<compile_context>
chip_gen: v5e
topology: v5e:2x2
jax: 0.10.0
libtpu: 0.0.40
codegen_flags: <defaults>
</compile_context>

<pallas_src>
import jax
import jax.numpy as jnp
from jax import lax
from jax.experimental import pallas as pl
from jax.experimental.pallas import tpu as pltpu

SN_EPS = 1e-4        # spectral_norm(..., eps=0.0001)
LRELU_SLOPE = 0.2    # nn.LeakyReLU(0.2)
K = 3                # conv kernel size


def _spectral_norm_weight(weight2d, u):
    """One power-iteration spectral normalization (PyTorch spectral_norm training forward).

    weight2d: (Cout, Cin*K*K), u: (Cout,).  Returns (normalized weight2d, updated u).
    """
    v = weight2d.T @ u
    v = v / jnp.maximum(jnp.linalg.norm(v), SN_EPS)
    u_new = weight2d @ v
    u_new = u_new / jnp.maximum(jnp.linalg.norm(u_new), SN_EPS)
    sigma = jnp.dot(u_new, weight2d @ v)
    return weight2d / sigma, u_new


def _upblock_kernel(x_ref, w_ref, o_ref, pad_ref):
    # x_ref:   (Cin, H2, W2)  nearest-upsampled pre-activation for one batch item (VMEM)
    # w_ref:   (Cout*Cin*K*K,) spectrally-normalized conv weights, flat, in SMEM
    # o_ref:   (Cout, H2, W2) output tile (VMEM)
    # pad_ref: (Cin, H2+2, W2+2) VMEM scratch for the zero-padded activation
    cin, h2, w2 = x_ref.shape
    cout = o_ref.shape[0]

    # LeakyReLU(0.2).  (LeakyReLU commutes with nearest upsampling, so applying it after the
    # wrapper's upsample is exactly equivalent to the module's lrelu -> upsample order.)
    x = x_ref[...]
    a = jnp.where(x > 0, x, LRELU_SLOPE * x)

    # Zero-pad by 1 on each spatial side into VMEM scratch (lrelu(0) == 0, borders stay 0).
    pad_ref[...] = jnp.zeros_like(pad_ref)
    pad_ref[:, 1:h2 + 1, 1:w2 + 1] = a

    # 3x3 cross-correlation, stride 1, no bias.  Each shifted window is loaded once and
    # reused across all output channels; weights are SMEM scalars broadcast on the VPU.
    accs = [jnp.zeros((h2, w2), jnp.float32) for _ in range(cout)]
    for ci in range(cin):
        for kr in range(K):
            for kc in range(K):
                window = pad_ref[ci, kr:kr + h2, kc:kc + w2]          # (H2, W2)
                for co in range(cout):
                    w = w_ref[((co * cin + ci) * K + kr) * K + kc]    # scalar from SMEM
                    accs[co] = accs[co] + w * window

    for co in range(cout):
        o_ref[co, :, :] = accs[co].astype(o_ref.dtype)


@jax.jit
def upblock_forward(x, weight, u):
    """
    x:      [B, Cin, H, W] float32 (NCHW)
    weight: [Cout, Cin, 3, 3] float32 (SN_Conv2d weight, pre-normalization)
    u:      [Cout] float32 (spectral-norm power-iteration vector)
    returns (y [B, Cout, 2H, 2W] float32, u_new [Cout] float32)
    """
    B, Cin, H, W = x.shape
    Cout = weight.shape[0]
    H2, W2 = 2 * H, 2 * W

    # --- tiny glue in plain JAX (hoisted out of the kernel) ---
    w2d = weight.reshape(Cout, Cin * K * K)
    w_sn2d, u_new = _spectral_norm_weight(w2d, u)
    w_flat = w_sn2d.reshape(-1)                                   # (Cout*Cin*9,)

    # Nearest 2x upsample in NCHW (no layout transposes).
    xu = jnp.repeat(jnp.repeat(x, 2, axis=2), 2, axis=3)          # (B, Cin, H2, W2)

    out = pl.pallas_call(
        _upblock_kernel,
        out_shape=jax.ShapeDtypeStruct((B, Cout, H2, W2), x.dtype),
        grid_spec=pltpu.PrefetchScalarGridSpec(
            num_scalar_prefetch=0,
            grid=(B,),
            in_specs=[
                pl.BlockSpec((None, Cin, H2, W2), lambda b: (b, 0, 0, 0)),
                pl.BlockSpec(memory_space=pltpu.MemorySpace.SMEM),
            ],
            out_specs=pl.BlockSpec((None, Cout, H2, W2), lambda b: (b, 0, 0, 0)),
            scratch_shapes=[pltpu.VMEM((Cin, H2 + 2, W2 + 2), jnp.float32)],
        ),
        compiler_params=pltpu.CompilerParams(
            dimension_semantics=("parallel",)),
    )(xu, w_flat)

    return out, u_new


def _upblock_reference(x, weight, u):
    """Pure-JAX reference matching the PyTorch module's forward."""
    B, Cin, H, W = x.shape
    Cout = weight.shape[0]
    a = jnp.where(x > 0, x, LRELU_SLOPE * x)
    au = jnp.repeat(jnp.repeat(a, 2, axis=2), 2, axis=3)
    w_sn2d, u_new = _spectral_norm_weight(weight.reshape(Cout, -1), u)
    w_sn = w_sn2d.reshape(Cout, Cin, K, K)
    y = lax.conv_general_dilated(
        au, w_sn, window_strides=(1, 1), padding=((1, 1), (1, 1)),
        dimension_numbers=("NCHW", "OIHW", "NCHW"))
    return y, u_new


if __name__ == "__main__":
    # Small shapes consistent with the module: SimDec_UpBlock(in_channels=4, out_channels=8).
    B, Cin, Cout, H, W = 2, 4, 8, 16, 16

    key = jax.random.PRNGKey(0)
    kx, kw, ku = jax.random.split(key, 3)

    x = jax.random.normal(kx, (B, Cin, H, W), dtype=jnp.float32)
    weight = jax.random.normal(kw, (Cout, Cin, K, K), dtype=jnp.float32) * 0.1
    u = jax.random.normal(ku, (Cout,), dtype=jnp.float32)
    u = u / jnp.maximum(jnp.linalg.norm(u), SN_EPS)

    out, u_new = upblock_forward(x, weight, u)
    out = jax.block_until_ready(out)

    ref, u_ref = _upblock_reference(x, weight, u)
    assert out.shape == (B, Cout, 2 * H, 2 * W)
    assert jnp.allclose(out, ref, atol=1e-4, rtol=1e-4)
    assert jnp.allclose(u_new, u_ref, atol=1e-5, rtol=1e-5)

    print("KERNEL_OK")
</pallas_src>

<mosaic_0001>
module attributes {stable_mosaic.version = 11 : i64} {
  func.func @_upblock_kernel(%arg0: i32, %arg1: memref<1x4x32x32xf32, #tpu.memory_space<vmem>>, %arg2: memref<288xf32, #tpu.memory_space<smem>>, %arg3: memref<1x8x32x32xf32, #tpu.memory_space<vmem>>, %arg4: memref<4x34x34xf32, #tpu.memory_space<vmem>>) attributes {dimension_semantics = [#tpu.dimension_semantics<parallel>], iteration_bounds = array<i64: 2>, scalar_prefetch = 0 : i64, scratch_operands = 1 : i64, tpu.core_type = #tpu.core_type<tc>, window_params = [{transform_indices = @transform_0, window_bounds = array<i64: 1, 4, 32, 32>}, {transform_indices = @transform_1, window_bounds = array<i64: 288>}, {transform_indices = @transform_2, window_bounds = array<i64: 1, 8, 32, 32>}]} {
    %c0 = arith.constant 0 : index
    %c0_0 = arith.constant 0 : index
    %c0_1 = arith.constant 0 : index
    %c0_2 = arith.constant 0 : index
    %0 = vector.load %arg1[%c0, %c0_0, %c0_1, %c0_2] : memref<1x4x32x32xf32, #tpu.memory_space<vmem>>, vector<1x4x32x32xf32>
    %1 = vector.shape_cast %0 : vector<1x4x32x32xf32> to vector<4x32x32xf32>
    %cst = arith.constant 0.000000e+00 : f32
    %2 = vector.broadcast %cst : f32 to vector<4x32x32xf32>
    %3 = arith.cmpf ogt, %1, %2 : vector<4x32x32xf32>
    %cst_3 = arith.constant 2.000000e-01 : f32
    %4 = vector.broadcast %cst_3 : f32 to vector<4x32x32xf32>
    %5 = arith.mulf %4, %1 : vector<4x32x32xf32>
    %6 = arith.select %3, %1, %5 : vector<4x32x32xi1>, vector<4x32x32xf32>
    %cst_4 = arith.constant 0.000000e+00 : f32
    %7 = vector.broadcast %cst_4 : f32 to vector<4x34x34xf32>
    %c0_5 = arith.constant 0 : index
    %c0_6 = arith.constant 0 : index
    %c0_7 = arith.constant 0 : index
    %8 = vector.load %arg4[%c0_5, %c0_6, %c0_7] : memref<4x34x34xf32, #tpu.memory_space<vmem>>, vector<4x34x34xf32>
    tpu.vector_store %arg4[%c0_5, %c0_6, %c0_7], %7 {strides = array<i32>} : memref<4x34x34xf32, #tpu.memory_space<vmem>>, vector<4x34x34xf32>,
    %c0_8 = arith.constant 0 : index
    %c1 = arith.constant 1 : index
    %c1_9 = arith.constant 1 : index
    %9 = vector.load %arg4[%c0_8, %c1, %c1_9] : memref<4x34x34xf32, #tpu.memory_space<vmem>>, vector<4x32x32xf32>
    tpu.vector_store %arg4[%c0_8, %c1, %c1_9], %6 {strides = array<i32>} : memref<4x34x34xf32, #tpu.memory_space<vmem>>, vector<4x32x32xf32>,
    %cst_10 = arith.constant 0.000000e+00 : f32
    %10 = vector.broadcast %cst_10 : f32 to vector<32x32xf32>
    %cst_11 = arith.constant 0.000000e+00 : f32
    %11 = vector.broadcast %cst_11 : f32 to vector<32x32xf32>
    %cst_12 = arith.constant 0.000000e+00 : f32
    %12 = vector.broadcast %cst_12 : f32 to vector<32x32xf32>
    %cst_13 = arith.constant 0.000000e+00 : f32
    %13 = vector.broadcast %cst_13 : f32 to vector<32x32xf32>
    %cst_14 = arith.constant 0.000000e+00 : f32
    %14 = vector.broadcast %cst_14 : f32 to vector<32x32xf32>
    %cst_15 = arith.constant 0.000000e+00 : f32
    %15 = vector.broadcast %cst_15 : f32 to vector<32x32xf32>
    %cst_16 = arith.constant 0.000000e+00 : f32
    %16 = vector.broadcast %cst_16 : f32 to vector<32x32xf32>
    %cst_17 = arith.constant 0.000000e+00 : f32
    %17 = vector.broadcast %cst_17 : f32 to vector<32x32xf32>
    %c0_18 = arith.constant 0 : index
    %c0_19 = arith.constant 0 : index
    %c0_20 = arith.constant 0 : index
    %18 = vector.load %arg4[%c0_18, %c0_19, %c0_20] : memref<4x34x34xf32, #tpu.memory_space<vmem>>, vector<1x32x32xf32>
    %19 = vector.shape_cast %18 : vector<1x32x32xf32> to vector<32x32xf32>
    %c0_21 = arith.constant 0 : index
    %20 = memref.load %arg2[%c0_21] : memref<288xf32, #tpu.memory_space<smem>>
    %21 = vector.broadcast %20 : f32 to vector<32x32xf32>
    %22 = arith.mulf %21, %19 : vector<32x32xf32>
    %23 = arith.addf %10, %22 : vector<32x32xf32>
    %c36 = arith.constant 36 : index
    %24 = memref.load %arg2[%c36] : memref<288xf32, #tpu.memory_space<smem>>
    %25 = vector.broadcast %24 : f32 to vector<32x32xf32>
    %26 = arith.mulf %25, %19 : vector<32x32xf32>
    %27 = arith.addf %11, %26 : vector<32x32xf32>
    %c72 = arith.constant 72 : index
    %28 = memref.load %arg2[%c72] : memref<288xf32, #tpu.memory_space<smem>>
    %29 = vector.broadcast %28 : f32 to vector<32x32xf32>
    %30 = arith.mulf %29, %19 : vector<32x32xf32>
    %31 = arith.addf %12, %30 : vector<32x32xf32>
    %c108 = arith.constant 108 : index
    %32 = memref.load %arg2[%c108] : memref<288xf32, #tpu.memory_space<smem>>
    %33 = vector.broadcast %32 : f32 to vector<32x32xf32>
    %34 = arith.mulf %33, %19 : vector<32x32xf32>
    %35 = arith.addf %13, %34 : vector<32x32xf32>
    %c144 = arith.constant 144 : index
    %36 = memref.load %arg2[%c144] : memref<288xf32, #tpu.memory_space<smem>>
    %37 = vector.broadcast %36 : f32 to vector<32x32xf32>
    %38 = arith.mulf %37, %19 : vector<32x32xf32>
    %39 = arith.addf %14, %38 : vector<32x32xf32>
    %c180 = arith.constant 180 : index
    %40 = memref.load %arg2[%c180] : memref<288xf32, #tpu.memory_space<smem>>
    %41 = vector.broadcast %40 : f32 to vector<32x32xf32>
    %42 = arith.mulf %41, %19 : vector<32x32xf32>
    %43 = arith.addf %15, %42 : vector<32x32xf32>
    %c216 = arith.constant 216 : index
    %44 = memref.load %arg2[%c216] : memref<288xf32, #tpu.memory_space<smem>>
    %45 = vector.broadcast %44 : f32 to vector<32x32xf32>
    %46 = arith.mulf %45, %19 : vector<32x32xf32>
    %47 = arith.addf %16, %46 : vector<32x32xf32>
    %c252 = arith.constant 252 : index
    %48 = memref.load %arg2[%c252] : memref<288xf32, #tpu.memory_space<smem>>
    %49 = vector.broadcast %48 : f32 to vector<32x32xf32>
    %50 = arith.mulf %49, %19 : vector<32x32xf32>
    %51 = arith.addf %17, %50 : vector<32x32xf32>
    %c0_22 = arith.constant 0 : index
    %c0_23 = arith.constant 0 : index
    %c1_24 = arith.constant 1 : index
    %52 = vector.load %arg4[%c0_22, %c0_23, %c1_24] : memref<4x34x34xf32, #tpu.memory_space<vmem>>, vector<1x32x32xf32>
    %53 = vector.shape_cast %52 : vector<1x32x32xf32> to vector<32x32xf32>
    %c1_25 = arith.constant 1 : index
    %54 = memref.load %arg2[%c1_25] : memref<288xf32, #tpu.memory_space<smem>>
    %55 = vector.broadcast %54 : f32 to vector<32x32xf32>
    %56 = arith.mulf %55, %53 : vector<32x32xf32>
    %57 = arith.addf %23, %56 : vector<32x32xf32>
    %c37 = arith.constant 37 : index
    %58 = memref.load %arg2[%c37] : memref<288xf32, #tpu.memory_space<smem>>
    %59 = vector.broadcast %58 : f32 to vector<32x32xf32>
    %60 = arith.mulf %59, %53 : vector<32x32xf32>
    %61 = arith.addf %27, %60 : vector<32x32xf32>
    %c73 = arith.constant 73 : index
    %62 = memref.load %arg2[%c73] : memref<288xf32, #tpu.memory_space<smem>>
    %63 = vector.broadcast %62 : f32 to vector<32x32xf32>
    %64 = arith.mulf %63, %53 : vector<32x32xf32>
    %65 = arith.addf %31, %64 : vector<32x32xf32>
    %c109 = arith.constant 109 : index
    %66 = memref.load %arg2[%c109] : memref<288xf32, #tpu.memory_space<smem>>
    %67 = vector.broadcast %66 : f32 to vector<32x32xf32>
    %68 = arith.mulf %67, %53 : vector<32x32xf32>
    %69 = arith.addf %35, %68 : vector<32x32xf32>
    %c145 = arith.constant 145 : index
    %70 = memref.load %arg2[%c145] : memref<288xf32, #tpu.memory_space<smem>>
    %71 = vector.broadcast %70 : f32 to vector<32x32xf32>
    %72 = arith.mulf %71, %53 : vector<32x32xf32>
    %73 = arith.addf %39, %72 : vector<32x32xf32>
    %c181 = arith.constant 181 : index
    %74 = memref.load %arg2[%c181] : memref<288xf32, #tpu.memory_space<smem>>
    %75 = vector.broadcast %74 : f32 to vector<32x32xf32>
    %76 = arith.mulf %75, %53 : vector<32x32xf32>
    %77 = arith.addf %43, %76 : vector<32x32xf32>
    %c217 = arith.constant 217 : index
    %78 = memref.load %arg2[%c217] : memref<288xf32, #tpu.memory_space<smem>>
    %79 = vector.broadcast %78 : f32 to vector<32x32xf32>
    %80 = arith.mulf %79, %53 : vector<32x32xf32>
    %81 = arith.addf %47, %80 : vector<32x32xf32>
    %c253 = arith.constant 253 : index
    %82 = memref.load %arg2[%c253] : memref<288xf32, #tpu.memory_space<smem>>
    %83 = vector.broadcast %82 : f32 to vector<32x32xf32>
    %84 = arith.mulf %83, %53 : vector<32x32xf32>
    %85 = arith.addf %51, %84 : vector<32x32xf32>
    %c0_26 = arith.constant 0 : index
    %c0_27 = arith.constant 0 : index
    %c2 = arith.constant 2 : index
    %86 = vector.load %arg4[%c0_26, %c0_27, %c2] : memref<4x34x34xf32, #tpu.memory_space<vmem>>, vector<1x32x32xf32>
    %87 = vector.shape_cast %86 : vector<1x32x32xf32> to vector<32x32xf32>
    %c2_28 = arith.constant 2 : index
    %88 = memref.load %arg2[%c2_28] : memref<288xf32, #tpu.memory_space<smem>>
    %89 = vector.broadcast %88 : f32 to vector<32x32xf32>
    %90 = arith.mulf %89, %87 : vector<32x32xf32>
    %91 = arith.addf %57, %90 : vector<32x32xf32>
    %c38 = arith.constant 38 : index
    %92 = memref.load %arg2[%c38] : memref<288xf32, #tpu.memory_space<smem>>
    %93 = vector.broadcast %92 : f32 to vector<32x32xf32>
    %94 = arith.mulf %93, %87 : vector<32x32xf32>
    %95 = arith.addf %61, %94 : vector<32x32xf32>
    %c74 = arith.constant 74 : index
    %96 = memref.load %arg2[%c74] : memref<288xf32, #tpu.memory_space<smem>>
    %97 = vector.broadcast %96 : f32 to vector<32x32xf32>
    %98 = arith.mulf %97, %87 : vector<32x32xf32>
    %99 = arith.addf %65, %98 : vector<32x32xf32>
    %c110 = arith.constant 110 : index
    %100 = memref.load %arg2[%c110] : memref<288xf32, #tpu.memory_space<smem>>
    %101 = vector.broadcast %100 : f32 to vector<32x32xf32>
    %102 = arith.mulf %101, %87 : vector<32x32xf32>
    %103 = arith.addf %69, %102 : vector<32x32xf32>
    %c146 = arith.constant 146 : index
    %104 = memref.load %arg2[%c146] : memref<288xf32, #tpu.memory_space<smem>>
    %105 = vector.broadcast %104 : f32 to vector<32x32xf32>
    %106 = arith.mulf %105, %87 : vector<32x32xf32>
    %107 = arith.addf %73, %106 : vector<32x32xf32>
    %c182 = arith.constant 182 : index
    %108 = memref.load %arg2[%c182] : memref<288xf32, #tpu.memory_space<smem>>
    %109 = vector.broadcast %108 : f32 to vector<32x32xf32>
    %110 = arith.mulf %109, %87 : vector<32x32xf32>
    %111 = arith.addf %77, %110 : vector<32x32xf32>
    %c218 = arith.constant 218 : index
    %112 = memref.load %arg2[%c218] : memref<288xf32, #tpu.memory_space<smem>>
    %113 = vector.broadcast %112 : f32 to vector<32x32xf32>
    %114 = arith.mulf %113, %87 : vector<32x32xf32>
    %115 = arith.addf %81, %114 : vector<32x32xf32>
    %c254 = arith.constant 254 : index
    %116 = memref.load %arg2[%c254] : memref<288xf32, #tpu.memory_space<smem>>
    %117 = vector.broadcast %116 : f32 to vector<32x32xf32>
    %118 = arith.mulf %117, %87 : vector<32x32xf32>
    %119 = arith.addf %85, %118 : vector<32x32xf32>
    %c0_29 = arith.constant 0 : index
    %c1_30 = arith.constant 1 : index
    %c0_31 = arith.constant 0 : index
    %120 = vector.load %arg4[%c0_29, %c1_30, %c0_31] : memref<4x34x34xf32, #tpu.memory_space<vmem>>, vector<1x32x32xf32>
    %121 = vector.shape_cast %120 : vector<1x32x32xf32> to vector<32x32xf32>
    %c3 = arith.constant 3 : index
    %122 = memref.load %arg2[%c3] : memref<288xf32, #tpu.memory_space<smem>>
    %123 = vector.broadcast %122 : f32 to vector<32x32xf32>
    %124 = arith.mulf %123, %121 : vector<32x32xf32>
    %125 = arith.addf %91, %124 : vector<32x32xf32>
    %c39 = arith.constant 39 : index
    %126 = memref.load %arg2[%c39] : memref<288xf32, #tpu.memory_space<smem>>
    %127 = vector.broadcast %126 : f32 to vector<32x32xf32>
    %128 = arith.mulf %127, %121 : vector<32x32xf32>
    %129 = arith.addf %95, %128 : vector<32x32xf32>
    %c75 = arith.constant 75 : index
    %130 = memref.load %arg2[%c75] : memref<288xf32, #tpu.memory_space<smem>>
    %131 = vector.broadcast %130 : f32 to vector<32x32xf32>
    %132 = arith.mulf %131, %121 : vector<32x32xf32>
    %133 = arith.addf %99, %132 : vector<32x32xf32>
    %c111 = arith.constant 111 : index
    %134 = memref.load %arg2[%c111] : memref<288xf32, #tpu.memory_space<smem>>
    %135 = vector.broadcast %134 : f32 to vector<32x32xf32>
    %136 = arith.mulf %135, %121 : vector<32x32xf32>
    %137 = arith.addf %103, %136 : vector<32x32xf32>
    %c147 = arith.constant 147 : index
    %138 = memref.load %arg2[%c147] : memref<288xf32, #tpu.memory_space<smem>>
    %139 = vector.broadcast %138 : f32 to vector<32x32xf32>
    %140 = arith.mulf %139, %121 : vector<32x32xf32>
    %141 = arith.addf %107, %140 : vector<32x32xf32>
    %c183 = arith.constant 183 : index
    %142 = memref.load %arg2[%c183] : memref<288xf32, #tpu.memory_space<smem>>
    %143 = vector.broadcast %142 : f32 to vector<32x32xf32>
    %144 = arith.mulf %143, %121 : vector<32x32xf32>
    %145 = arith.addf %111, %144 : vector<32x32xf32>
    %c219 = arith.constant 219 : index
    %146 = memref.load %arg2[%c219] : memref<288xf32, #tpu.memory_space<smem>>
    %147 = vector.broadcast %146 : f32 to vector<32x32xf32>
    %148 = arith.mulf %147, %121 : vector<32x32xf32>
    %149 = arith.addf %115, %148 : vector<32x32xf32>
    %c255 = arith.constant 255 : index
    %150 = memref.load %arg2[%c255] : memref<288xf32, #tpu.memory_space<smem>>
    %151 = vector.broadcast %150 : f32 to vector<32x32xf32>
    %152 = arith.mulf %151, %121 : vector<32x32xf32>
    %153 = arith.addf %119, %152 : vector<32x32xf32>
    %c0_32 = arith.constant 0 : index
    %c1_33 = arith.constant 1 : index
    %c1_34 = arith.constant 1 : index
    %154 = vector.load %arg4[%c0_32, %c1_33, %c1_34] : memref<4x34x34xf32, #tpu.memory_space<vmem>>, vector<1x32x32xf32>
    %155 = vector.shape_cast %154 : vector<1x32x32xf32> to vector<32x32xf32>
    %c4 = arith.constant 4 : index
    %156 = memref.load %arg2[%c4] : memref<288xf32, #tpu.memory_space<smem>>
    %157 = vector.broadcast %156 : f32 to vector<32x32xf32>
    %158 = arith.mulf %157, %155 : vector<32x32xf32>
    %159 = arith.addf %125, %158 : vector<32x32xf32>
    %c40 = arith.constant 40 : index
    %160 = memref.load %arg2[%c40] : memref<288xf32, #tpu.memory_space<smem>>
    %161 = vector.broadcast %160 : f32 to vector<32x32xf32>
    %162 = arith.mulf %161, %155 : vector<32x32xf32>
    %163 = arith.addf %129, %162 : vector<32x32xf32>
    %c76 = arith.constant 76 : index
    %164 = memref.load %arg2[%c76] : memref<288xf32, #tpu.memory_space<smem>>
    %165 = vector.broadcast %164 : f32 to vector<32x32xf32>
    %166 = arith.mulf %165, %155 : vector<32x32xf32>
    %167 = arith.addf %133, %166 : vector<32x32xf32>
    %c112 = arith.constant 112 : index
    %168 = memref.load %arg2[%c112] : memref<288xf32, #tpu.memory_space<smem>>
    %169 = vector.broadcast %168 : f32 to vector<32x32xf32>
    %170 = arith.mulf %169, %155 : vector<32x32xf32>
    %171 = arith.addf %137, %170 : vector<32x32xf32>
    %c148 = arith.constant 148 : index
    %172 = memref.load %arg2[%c148] : memref<288xf32, #tpu.memory_space<smem>>
    %173 = vector.broadcast %172 : f32 to vector<32x32xf32>
    %174 = arith.mulf %173, %155 : vector<32x32xf32>
    %175 = arith.addf %141, %174 : vector<32x32xf32>
    %c184 = arith.constant 184 : index
    %176 = memref.load %arg2[%c184] : memref<288xf32, #tpu.memory_space<smem>>
    %177 = vector.broadcast %176 : f32 to vector<32x32xf32>
    %178 = arith.mulf %177, %155 : vector<32x32xf32>
    %179 = arith.addf %145, %178 : vector<32x32xf32>
    %c220 = arith.constant 220 : index
    %180 = memref.load %arg2[%c220] : memref<288xf32, #tpu.memory_space<smem>>
    %181 = vector.broadcast %180 : f32 to vector<32x32xf32>
    %182 = arith.mulf %181, %155 : vector<32x32xf32>
    %183 = arith.addf %149, %182 : vector<32x32xf32>
    %c256 = arith.constant 256 : index
    %184 = memref.load %arg2[%c256] : memref<288xf32, #tpu.memory_space<smem>>
    %185 = vector.broadcast %184 : f32 to vector<32x32xf32>
    %186 = arith.mulf %185, %155 : vector<32x32xf32>
    %187 = arith.addf %153, %186 : vector<32x32xf32>
    %c0_35 = arith.constant 0 : index
    %c1_36 = arith.constant 1 : index
    %c2_37 = arith.constant 2 : index
    %188 = vector.load %arg4[%c0_35, %c1_36, %c2_37] : memref<4x34x34xf32, #tpu.memory_space<vmem>>, vector<1x32x32xf32>
    %189 = vector.shape_cast %188 : vector<1x32x32xf32> to vector<32x32xf32>
    %c5 = arith.constant 5 : index
    %190 = memref.load %arg2[%c5] : memref<288xf32, #tpu.memory_space<smem>>
    %191 = vector.broadcast %190 : f32 to vector<32x32xf32>
    %192 = arith.mulf %191, %189 : vector<32x32xf32>
    %193 = arith.addf %159, %192 : vector<32x32xf32>
    %c41 = arith.constant 41 : index
    %194 = memref.load %arg2[%c41] : memref<288xf32, #tpu.memory_space<smem>>
    %195 = vector.broadcast %194 : f32 to vector<32x32xf32>
    %196 = arith.mulf %195, %189 : vector<32x32xf32>
    %197 = arith.addf %163, %196 : vector<32x32xf32>
    %c77 = arith.constant 77 : index
    %198 = memref.load %arg2[%c77] : memref<288xf32, #tpu.memory_space<smem>>
    %199 = vector.broadcast %198 : f32 to vector<32x32xf32>
    %200 = arith.mulf %199, %189 : vector<32x32xf32>
    %201 = arith.addf %167, %200 : vector<32x32xf32>
    %c113 = arith.constant 113 : index
    %202 = memref.load %arg2[%c113] : memref<288xf32, #tpu.memory_space<smem>>
    %203 = vector.broadcast %202 : f32 to vector<32x32xf32>
    %204 = arith.mulf %203, %189 : vector<32x32xf32>
    %205 = arith.addf %171, %204 : vector<32x32xf32>
    %c149 = arith.constant 149 : index
    %206 = memref.load %arg2[%c149] : memref<288xf32, #tpu.memory_space<smem>>
    %207 = vector.broadcast %206 : f32 to vector<32x32xf32>
    %208 = arith.mulf %207, %189 : vector<32x32xf32>
    %209 = arith.addf %175, %208 : vector<32x32xf32>
    %c185 = arith.constant 185 : index
    %210 = memref.load %arg2[%c185] : memref<288xf32, #tpu.memory_space<smem>>
    %211 = vector.broadcast %210 : f32 to vector<32x32xf32>
    %212 = arith.mulf %211, %189 : vector<32x32xf32>
    %213 = arith.addf %179, %212 : vector<32x32xf32>
    %c221 = arith.constant 221 : index
    %214 = memref.load %arg2[%c221] : memref<288xf32, #tpu.memory_space<smem>>
    %215 = vector.broadcast %214 : f32 to vector<32x32xf32>
    %216 = arith.mulf %215, %189 : vector<32x32xf32>
    %217 = arith.addf %183, %216 : vector<32x32xf32>
    %c257 = arith.constant 257 : index
    %218 = memref.load %arg2[%c257] : memref<288xf32, #tpu.memory_space<smem>>
    %219 = vector.broadcast %218 : f32 to vector<32x32xf32>
    %220 = arith.mulf %219, %189 : vector<32x32xf32>
    %221 = arith.addf %187, %220 : vector<32x32xf32>
    %c0_38 = arith.constant 0 : index
    %c2_39 = arith.constant 2 : index
    %c0_40 = arith.constant 0 : index
    %222 = vector.load %arg4[%c0_38, %c2_39, %c0_40] : memref<4x34x34xf32, #tpu.memory_space<vmem>>, vector<1x32x32xf32>
    %223 = vector.shape_cast %222 : vector<1x32x32xf32> to vector<32x32xf32>
    %c6 = arith.constant 6 : index
    %224 = memref.load %arg2[%c6] : memref<288xf32, #tpu.memory_space<smem>>
    %225 = vector.broadcast %224 : f32 to vector<32x32xf32>
    %226 = arith.mulf %225, %223 : vector<32x32xf32>
    %227 = arith.addf %193, %226 : vector<32x32xf32>
    %c42 = arith.constant 42 : index
    %228 = memref.load %arg2[%c42] : memref<288xf32, #tpu.memory_space<smem>>
    %229 = vector.broadcast %228 : f32 to vector<32x32xf32>
    %230 = arith.mulf %229, %223 : vector<32x32xf32>
    %231 = arith.addf %197, %230 : vector<32x32xf32>
    %c78 = arith.constant 78 : index
    %232 = memref.load %arg2[%c78] : memref<288xf32, #tpu.memory_space<smem>>
    %233 = vector.broadcast %232 : f32 to vector<32x32xf32>
    %234 = arith.mulf %233, %223 : vector<32x32xf32>
    %235 = arith.addf %201, %234 : vector<32x32xf32>
    %c114 = arith.constant 114 : index
    %236 = memref.load %arg2[%c114] : memref<288xf32, #tpu.memory_space<smem>>
    %237 = vector.broadcast %236 : f32 to vector<32x32xf32>
    %238 = arith.mulf %237, %223 : vector<32x32xf32>
    %239 = arith.addf %205, %238 : vector<32x32xf32>
    %c150 = arith.constant 150 : index
    %240 = memref.load %arg2[%c150] : memref<288xf32, #tpu.memory_space<smem>>
    %241 = vector.broadcast %240 : f32 to vector<32x32xf32>
    %242 = arith.mulf %241, %223 : vector<32x32xf32>
    %243 = arith.addf %209, %242 : vector<32x32xf32>
    %c186 = arith.constant 186 : index
    %244 = memref.load %arg2[%c186] : memref<288xf32, #tpu.memory_space<smem>>
    %245 = vector.broadcast %244 : f32 to vector<32x32xf32>
    %246 = arith.mulf %245, %223 : vector<32x32xf32>
    %247 = arith.addf %213, %246 : vector<32x32xf32>
    %c222 = arith.constant 222 : index
    %248 = memref.load %arg2[%c222] : memref<288xf32, #tpu.memory_space<smem>>
    %249 = vector.broadcast %248 : f32 to vector<32x32xf32>
    %250 = arith.mulf %249, %223 : vector<32x32xf32>
    %251 = arith.addf %217, %250 : vector<32x32xf32>
    %c258 = arith.constant 258 : index
    %252 = memref.load %arg2[%c258] : memref<288xf32, #tpu.memory_space<smem>>
    %253 = vector.broadcast %252 : f32 to vector<32x32xf32>
    %254 = arith.mulf %253, %223 : vector<32x32xf32>
    %255 = arith.addf %221, %254 : vector<32x32xf32>
    %c0_41 = arith.constant 0 : index
    %c2_42 = arith.constant 2 : index
    %c1_43 = arith.constant 1 : index
    %256 = vector.load %arg4[%c0_41, %c2_42, %c1_43] : memref<4x34x34xf32, #tpu.memory_space<vmem>>, vector<1x32x32xf32>
    %257 = vector.shape_cast %256 : vector<1x32x32xf32> to vector<32x32xf32>
    %c7 = arith.constant 7 : index
    %258 = memref.load %arg2[%c7] : memref<288xf32, #tpu.memory_space<smem>>
    %259 = vector.broadcast %258 : f32 to vector<32x32xf32>
    %260 = arith.mulf %259, %257 : vector<32x32xf32>
    %261 = arith.addf %227, %260 : vector<32x32xf32>
    %c43 = arith.constant 43 : index
    %262 = memref.load %arg2[%c43] : memref<288xf32, #tpu.memory_space<smem>>
    %263 = vector.broadcast %262 : f32 to vector<32x32xf32>
    %264 = arith.mulf %263, %257 : vector<32x32xf32>
    %265 = arith.addf %231, %264 : vector<32x32xf32>
    %c79 = arith.constant 79 : index
    %266 = memref.load %arg2[%c79] : memref<288xf32, #tpu.memory_space<smem>>
    %267 = vector.broadcast %266 : f32 to vector<32x32xf32>
    %268 = arith.mulf %267, %257 : vector<32x32xf32>
    %269 = arith.addf %235, %268 : vector<32x32xf32>
    %c115 = arith.constant 115 : index
    %270 = memref.load %arg2[%c115] : memref<288xf32, #tpu.memory_space<smem>>
    %271 = vector.broadcast %270 : f32 to vector<32x32xf32>
    %272 = arith.mulf %271, %257 : vector<32x32xf32>
    %273 = arith.addf %239, %272 : vector<32x32xf32>
    %c151 = arith.constant 151 : index
    %274 = memref.load %arg2[%c151] : memref<288xf32, #tpu.memory_space<smem>>
    %275 = vector.broadcast %274 : f32 to vector<32x32xf32>
    %276 = arith.mulf %275, %257 : vector<32x32xf32>
    %277 = arith.addf %243, %276 : vector<32x32xf32>
    %c187 = arith.constant 187 : index
    %278 = memref.load %arg2[%c187] : memref<288xf32, #tpu.memory_space<smem>>
    %279 = vector.broadcast %278 : f32 to vector<32x32xf32>
    %280 = arith.mulf %279, %257 : vector<32x32xf32>
    %281 = arith.addf %247, %280 : vector<32x32xf32>
    %c223 = arith.constant 223 : index
    %282 = memref.load %arg2[%c223] : memref<288xf32, #tpu.memory_space<smem>>
    %283 = vector.broadcast %282 : f32 to vector<32x32xf32>
    %284 = arith.mulf %283, %257 : vector<32x32xf32>
    %285 = arith.addf %251, %284 : vector<32x32xf32>
    %c259 = arith.constant 259 : index
    %286 = memref.load %arg2[%c259] : memref<288xf32, #tpu.memory_space<smem>>
    %287 = vector.broadcast %286 : f32 to vector<32x32xf32>
    %288 = arith.mulf %287, %257 : vector<32x32xf32>
    %289 = arith.addf %255, %288 : vector<32x32xf32>
    %c0_44 = arith.constant 0 : index
    %c2_45 = arith.constant 2 : index
    %c2_46 = arith.constant 2 : index
    %290 = vector.load %arg4[%c0_44, %c2_45, %c2_46] : memref<4x34x34xf32, #tpu.memory_space<vmem>>, vector<1x32x32xf32>
    %291 = vector.shape_cast %290 : vector<1x32x32xf32> to vector<32x32xf32>
    %c8 = arith.constant 8 : index
    %292 = memref.load %arg2[%c8] : memref<288xf32, #tpu.memory_space<smem>>
    %293 = vector.broadcast %292 : f32 to vector<32x32xf32>
    %294 = arith.mulf %293, %291 : vector<32x32xf32>
    %295 = arith.addf %261, %294 : vector<32x32xf32>
    %c44 = arith.constant 44 : index
    %296 = memref.load %arg2[%c44] : memref<288xf32, #tpu.memory_space<smem>>
    %297 = vector.broadcast %296 : f32 to vector<32x32xf32>
    %298 = arith.mulf %297, %291 : vector<32x32xf32>
    %299 = arith.addf %265, %298 : vector<32x32xf32>
    %c80 = arith.constant 80 : index
    %300 = memref.load %arg2[%c80] : memref<288xf32, #tpu.memory_space<smem>>
    %301 = vector.broadcast %300 : f32 to vector<32x32xf32>
    %302 = arith.mulf %301, %291 : vector<32x32xf32>
    %303 = arith.addf %269, %302 : vector<32x32xf32>
    %c116 = arith.constant 116 : index
    %304 = memref.load %arg2[%c116] : memref<288xf32, #tpu.memory_space<smem>>
    %305 = vector.broadcast %304 : f32 to vector<32x32xf32>
    %306 = arith.mulf %305, %291 : vector<32x32xf32>
    %307 = arith.addf %273, %306 : vector<32x32xf32>
    %c152 = arith.constant 152 : index
    %308 = memref.load %arg2[%c152] : memref<288xf32, #tpu.memory_space<smem>>
    %309 = vector.broadcast %308 : f32 to vector<32x32xf32>
    %310 = arith.mulf %309, %291 : vector<32x32xf32>
    %311 = arith.addf %277, %310 : vector<32x32xf32>
    %c188 = arith.constant 188 : index
    %312 = memref.load %arg2[%c188] : memref<288xf32, #tpu.memory_space<smem>>
    %313 = vector.broadcast %312 : f32 to vector<32x32xf32>
    %314 = arith.mulf %313, %291 : vector<32x32xf32>
    %315 = arith.addf %281, %314 : vector<32x32xf32>
    %c224 = arith.constant 224 : index
    %316 = memref.load %arg2[%c224] : memref<288xf32, #tpu.memory_space<smem>>
    %317 = vector.broadcast %316 : f32 to vector<32x32xf32>
    %318 = arith.mulf %317, %291 : vector<32x32xf32>
    %319 = arith.addf %285, %318 : vector<32x32xf32>
    %c260 = arith.constant 260 : index
    %320 = memref.load %arg2[%c260] : memref<288xf32, #tpu.memory_space<smem>>
    %321 = vector.broadcast %320 : f32 to vector<32x32xf32>
    %322 = arith.mulf %321, %291 : vector<32x32xf32>
    %323 = arith.addf %289, %322 : vector<32x32xf32>
    %c1_47 = arith.constant 1 : index
    %c0_48 = arith.constant 0 : index
    %c0_49 = arith.constant 0 : index
    %324 = vector.load %arg4[%c1_47, %c0_48, %c0_49] : memref<4x34x34xf32, #tpu.memory_space<vmem>>, vector<1x32x32xf32>
    %325 = vector.shape_cast %324 : vector<1x32x32xf32> to vector<32x32xf32>
    %c9 = arith.constant 9 : index
    %326 = memref.load %arg2[%c9] : memref<288xf32, #tpu.memory_space<smem>>
    %327 = vector.broadcast %326 : f32 to vector<32x32xf32>
    %328 = arith.mulf %327, %325 : vector<32x32xf32>
    %329 = arith.addf %295, %328 : vector<32x32xf32>
    %c45 = arith.constant 45 : index
    %330 = memref.load %arg2[%c45] : memref<288xf32, #tpu.memory_space<smem>>
    %331 = vector.broadcast %330 : f32 to vector<32x32xf32>
    %332 = arith.mulf %331, %325 : vector<32x32xf32>
    %333 = arith.addf %299, %332 : vector<32x32xf32>
    %c81 = arith.constant 81 : index
    %334 = memref.load %arg2[%c81] : memref<288xf32, #tpu.memory_space<smem>>
    %335 = vector.broadcast %334 : f32 to vector<32x32xf32>
    %336 = arith.mulf %335, %325 : vector<32x32xf32>
    %337 = arith.addf %303, %336 : vector<32x32xf32>
    %c117 = arith.constant 117 : index
    %338 = memref.load %arg2[%c117] : memref<288xf32, #tpu.memory_space<smem>>
    %339 = vector.broadcast %338 : f32 to vector<32x32xf32>
    %340 = arith.mulf %339, %325 : vector<32x32xf32>
    %341 = arith.addf %307, %340 : vector<32x32xf32>
    %c153 = arith.constant 153 : index
    %342 = memref.load %arg2[%c153] : memref<288xf32, #tpu.memory_space<smem>>
    %343 = vector.broadcast %342 : f32 to vector<32x32xf32>
    %344 = arith.mulf %343, %325 : vector<32x32xf32>
    %345 = arith.addf %311, %344 : vector<32x32xf32>
    %c189 = arith.constant 189 : index
    %346 = memref.load %arg2[%c189] : memref<288xf32, #tpu.memory_space<smem>>
    %347 = vector.broadcast %346 : f32 to vector<32x32xf32>
    %348 = arith.mulf %347, %325 : vector<32x32xf32>
    %349 = arith.addf %315, %348 : vector<32x32xf32>
    %c225 = arith.constant 225 : index
    %350 = memref.load %arg2[%c225] : memref<288xf32, #tpu.memory_space<smem>>
    %351 = vector.broadcast %350 : f32 to vector<32x32xf32>
    %352 = arith.mulf %351, %325 : vector<32x32xf32>
    %353 = arith.addf %319, %352 : vector<32x32xf32>
    %c261 = arith.constant 261 : index
    %354 = memref.load %arg2[%c261] : memref<288xf32, #tpu.memory_space<smem>>
    %355 = vector.broadcast %354 : f32 to vector<32x32xf32>
    %356 = arith.mulf %355, %325 : vector<32x32xf32>
    %357 = arith.addf %323, %356 : vector<32x32xf32>
    %c1_50 = arith.constant 1 : index
    %c0_51 = arith.constant 0 : index
    %c1_52 = arith.constant 1 : index
    %358 = vector.load %arg4[%c1_50, %c0_51, %c1_52] : memref<4x34x34xf32, #tpu.memory_space<vmem>>, vector<1x32x32xf32>
    %359 = vector.shape_cast %358 : vector<1x32x32xf32> to vector<32x32xf32>
    %c10 = arith.constant 10 : index
    %360 = memref.load %arg2[%c10] : memref<288xf32, #tpu.memory_space<smem>>
    %361 = vector.broadcast %360 : f32 to vector<32x32xf32>
    %362 = arith.mulf %361, %359 : vector<32x32xf32>
    %363 = arith.addf %329, %362 : vector<32x32xf32>
    %c46 = arith.constant 46 : index
    %364 = memref.load %arg2[%c46] : memref<288xf32, #tpu.memory_space<smem>>
    %365 = vector.broadcast %364 : f32 to vector<32x32xf32>
    %366 = arith.mulf %365, %359 : vector<32x32xf32>
    %367 = arith.addf %333, %366 : vector<32x32xf32>
    %c82 = arith.constant 82 : index
    %368 = memref.load %arg2[%c82] : memref<288xf32, #tpu.memory_space<smem>>
    %369 = vector.broadcast %368 : f32 to vector<32x32xf32>
    %370 = arith.mulf %369, %359 : vector<32x32xf32>
    %371 = arith.addf %337, %370 : vector<32x32xf32>
    %c118 = arith.constant 118 : index
    %372 = memref.load %arg2[%c118] : memref<288xf32, #tpu.memory_space<smem>>
    %373 = vector.broadcast %372 : f32 to vector<32x32xf32>
    %374 = arith.mulf %373, %359 : vector<32x32xf32>
    %375 = arith.addf %341, %374 : vector<32x32xf32>
    %c154 = arith.constant 154 : index
    %376 = memref.load %arg2[%c154] : memref<288xf32, #tpu.memory_space<smem>>
    %377 = vector.broadcast %376 : f32 to vector<32x32xf32>
    %378 = arith.mulf %377, %359 : vector<32x32xf32>
    %379 = arith.addf %345, %378 : vector<32x32xf32>
    %c190 = arith.constant 190 : index
    %380 = memref.load %arg2[%c190] : memref<288xf32, #tpu.memory_space<smem>>
    %381 = vector.broadcast %380 : f32 to vector<32x32xf32>
    %382 = arith.mulf %381, %359 : vector<32x32xf32>
    %383 = arith.addf %349, %382 : vector<32x32xf32>
    %c226 = arith.constant 226 : index
    %384 = memref.load %arg2[%c226] : memref<288xf32, #tpu.memory_space<smem>>
    %385 = vector.broadcast %384 : f32 to vector<32x32xf32>
    %386 = arith.mulf %385, %359 : vector<32x32xf32>
    %387 = arith.addf %353, %386 : vector<32x32xf32>
    %c262 = arith.constant 262 : index
    %388 = memref.load %arg2[%c262] : memref<288xf32, #tpu.memory_space<smem>>
    %389 = vector.broadcast %388 : f32 to vector<32x32xf32>
    %390 = arith.mulf %389, %359 : vector<32x32xf32>
    %391 = arith.addf %357, %390 : vector<32x32xf32>
    %c1_53 = arith.constant 1 : index
    %c0_54 = arith.constant 0 : index
    %c2_55 = arith.constant 2 : index
    %392 = vector.load %arg4[%c1_53, %c0_54, %c2_55] : memref<4x34x34xf32, #tpu.memory_space<vmem>>, vector<1x32x32xf32>
    %393 = vector.shape_cast %392 : vector<1x32x32xf32> to vector<32x32xf32>
    %c11 = arith.constant 11 : index
    %394 = memref.load %arg2[%c11] : memref<288xf32, #tpu.memory_space<smem>>
    %395 = vector.broadcast %394 : f32 to vector<32x32xf32>
    %396 = arith.mulf %395, %393 : vector<32x32xf32>
    %397 = arith.addf %363, %396 : vector<32x32xf32>
    %c47 = arith.constant 47 : index
    %398 = memref.load %arg2[%c47] : memref<288xf32, #tpu.memory_space<smem>>
    %399 = vector.broadcast %398 : f32 to vector<32x32xf32>
    %400 = arith.mulf %399, %393 : vector<32x32xf32>
    %401 = arith.addf %367, %400 : vector<32x32xf32>
    %c83 = arith.constant 83 : index
    %402 = memref.load %arg2[%c83] : memref<288xf32, #tpu.memory_space<smem>>
    %403 = vector.broadcast %402 : f32 to vector<32x32xf32>
    %404 = arith.mulf %403, %393 : vector<32x32xf32>
    %405 = arith.addf %371, %404 : vector<32x32xf32>
    %c119 = arith.constant 119 : index
    %406 = memref.load %arg2[%c119] : memref<288xf32, #tpu.memory_space<smem>>
    %407 = vector.broadcast %406 : f32 to vector<32x32xf32>
    %408 = arith.mulf %407, %393 : vector<32x32xf32>
    %409 = arith.addf %375, %408 : vector<32x32xf32>
    %c155 = arith.constant 155 : index
    %410 = memref.load %arg2[%c155] : memref<288xf32, #tpu.memory_space<smem>>
    %411 = vector.broadcast %410 : f32 to vector<32x32xf32>
    %412 = arith.mulf %411, %393 : vector<32x32xf32>
    %413 = arith.addf %379, %412 : vector<32x32xf32>
    %c191 = arith.constant 191 : index
    %414 = memref.load %arg2[%c191] : memref<288xf32, #tpu.memory_space<smem>>
    %415 = vector.broadcast %414 : f32 to vector<32x32xf32>
    %416 = arith.mulf %415, %393 : vector<32x32xf32>
    %417 = arith.addf %383, %416 : vector<32x32xf32>
    %c227 = arith.constant 227 : index
    %418 = memref.load %arg2[%c227] : memref<288xf32, #tpu.memory_space<smem>>
    %419 = vector.broadcast %418 : f32 to vector<32x32xf32>
    %420 = arith.mulf %419, %393 : vector<32x32xf32>
    %421 = arith.addf %387, %420 : vector<32x32xf32>
    %c263 = arith.constant 263 : index
    %422 = memref.load %arg2[%c263] : memref<288xf32, #tpu.memory_space<smem>>
    %423 = vector.broadcast %422 : f32 to vector<32x32xf32>
    %424 = arith.mulf %423, %393 : vector<32x32xf32>
    %425 = arith.addf %391, %424 : vector<32x32xf32>
    %c1_56 = arith.constant 1 : index
    %c1_57 = arith.constant 1 : index
    %c0_58 = arith.constant 0 : index
    %426 = vector.load %arg4[%c1_56, %c1_57, %c0_58] : memref<4x34x34xf32, #tpu.memory_space<vmem>>, vector<1x32x32xf32>
    %427 = vector.shape_cast %426 : vector<1x32x32xf32> to vector<32x32xf32>
    %c12 = arith.constant 12 : index
    %428 = memref.load %arg2[%c12] : memref<288xf32, #tpu.memory_space<smem>>
    %429 = vector.broadcast %428 : f32 to vector<32x32xf32>
    %430 = arith.mulf %429, %427 : vector<32x32xf32>
    %431 = arith.addf %397, %430 : vector<32x32xf32>
    %c48 = arith.constant 48 : index
    %432 = memref.load %arg2[%c48] : memref<288xf32, #tpu.memory_space<smem>>
    %433 = vector.broadcast %432 : f32 to vector<32x32xf32>
    %434 = arith.mulf %433, %427 : vector<32x32xf32>
    %435 = arith.addf %401, %434 : vector<32x32xf32>
    %c84 = arith.constant 84 : index
    %436 = memref.load %arg2[%c84] : memref<288xf32, #tpu.memory_space<smem>>
    %437 = vector.broadcast %436 : f32 to vector<32x32xf32>
    %438 = arith.mulf %437, %427 : vector<32x32xf32>
    %439 = arith.addf %405, %438 : vector<32x32xf32>
    %c120 = arith.constant 120 : index
    %440 = memref.load %arg2[%c120] : memref<288xf32, #tpu.memory_space<smem>>
    %441 = vector.broadcast %440 : f32 to vector<32x32xf32>
    %442 = arith.mulf %441, %427 : vector<32x32xf32>
    %443 = arith.addf %409, %442 : vector<32x32xf32>
    %c156 = arith.constant 156 : index
    %444 = memref.load %arg2[%c156] : memref<288xf32, #tpu.memory_space<smem>>
    %445 = vector.broadcast %444 : f32 to vector<32x32xf32>
    %446 = arith.mulf %445, %427 : vector<32x32xf32>
    %447 = arith.addf %413, %446 : vector<32x32xf32>
    %c192 = arith.constant 192 : index
    %448 = memref.load %arg2[%c192] : memref<288xf32, #tpu.memory_space<smem>>
    %449 = vector.broadcast %448 : f32 to vector<32x32xf32>
    %450 = arith.mulf %449, %427 : vector<32x32xf32>
    %451 = arith.addf %417, %450 : vector<32x32xf32>
    %c228 = arith.constant 228 : index
    %452 = memref.load %arg2[%c228] : memref<288xf32, #tpu.memory_space<smem>>
    %453 = vector.broadcast %452 : f32 to vector<32x32xf32>
    %454 = arith.mulf %453, %427 : vector<32x32xf32>
    %455 = arith.addf %421, %454 : vector<32x32xf32>
    %c264 = arith.constant 264 : index
    %456 = memref.load %arg2[%c264] : memref<288xf32, #tpu.memory_space<smem>>
    %457 = vector.broadcast %456 : f32 to vector<32x32xf32>
    %458 = arith.mulf %457, %427 : vector<32x32xf32>
    %459 = arith.addf %425, %458 : vector<32x32xf32>
    %c1_59 = arith.constant 1 : index
    %c1_60 = arith.constant 1 : index
    %c1_61 = arith.constant 1 : index
    %460 = vector.load %arg4[%c1_59, %c1_60, %c1_61] : memref<4x34x34xf32, #tpu.memory_space<vmem>>, vector<1x32x32xf32>
    %461 = vector.shape_cast %460 : vector<1x32x32xf32> to vector<32x32xf32>
    %c13 = arith.constant 13 : index
    %462 = memref.load %arg2[%c13] : memref<288xf32, #tpu.memory_space<smem>>
    %463 = vector.broadcast %462 : f32 to vector<32x32xf32>
    %464 = arith.mulf %463, %461 : vector<32x32xf32>
    %465 = arith.addf %431, %464 : vector<32x32xf32>
    %c49 = arith.constant 49 : index
    %466 = memref.load %arg2[%c49] : memref<288xf32, #tpu.memory_space<smem>>
    %467 = vector.broadcast %466 : f32 to vector<32x32xf32>
    %468 = arith.mulf %467, %461 : vector<32x32xf32>
    %469 = arith.addf %435, %468 : vector<32x32xf32>
    %c85 = arith.constant 85 : index
    %470 = memref.load %arg2[%c85] : memref<288xf32, #tpu.memory_space<smem>>
    %471 = vector.broadcast %470 : f32 to vector<32x32xf32>
    %472 = arith.mulf %471, %461 : vector<32x32xf32>
    %473 = arith.addf %439, %472 : vector<32x32xf32>
    %c121 = arith.constant 121 : index
    %474 = memref.load %arg2[%c121] : memref<288xf32, #tpu.memory_space<smem>>
    %475 = vector.broadcast %474 : f32 to vector<32x32xf32>
    %476 = arith.mulf %475, %461 : vector<32x32xf32>
    %477 = arith.addf %443, %476 : vector<32x32xf32>
    %c157 = arith.constant 157 : index
    %478 = memref.load %arg2[%c157] : memref<288xf32, #tpu.memory_space<smem>>
    %479 = vector.broadcast %478 : f32 to vector<32x32xf32>
    %480 = arith.mulf %479, %461 : vector<32x32xf32>
    %481 = arith.addf %447, %480 : vector<32x32xf32>
    %c193 = arith.constant 193 : index
    %482 = memref.load %arg2[%c193] : memref<288xf32, #tpu.memory_space<smem>>
    %483 = vector.broadcast %482 : f32 to vector<32x32xf32>
    %484 = arith.mulf %483, %461 : vector<32x32xf32>
    %485 = arith.addf %451, %484 : vector<32x32xf32>
    %c229 = arith.constant 229 : index
    %486 = memref.load %arg2[%c229] : memref<288xf32, #tpu.memory_space<smem>>
    %487 = vector.broadcast %486 : f32 to vector<32x32xf32>
    %488 = arith.mulf %487, %461 : vector<32x32xf32>
    %489 = arith.addf %455, %488 : vector<32x32xf32>
    %c265 = arith.constant 265 : index
    %490 = memref.load %arg2[%c265] : memref<288xf32, #tpu.memory_space<smem>>
    %491 = vector.broadcast %490 : f32 to vector<32x32xf32>
    %492 = arith.mulf %491, %461 : vector<32x32xf32>
    %493 = arith.addf %459, %492 : vector<32x32xf32>
    %c1_62 = arith.constant 1 : index
    %c1_63 = arith.constant 1 : index
    %c2_64 = arith.constant 2 : index
    %494 = vector.load %arg4[%c1_62, %c1_63, %c2_64] : memref<4x34x34xf32, #tpu.memory_space<vmem>>, vector<1x32x32xf32>
    %495 = vector.shape_cast %494 : vector<1x32x32xf32> to vector<32x32xf32>
    %c14 = arith.constant 14 : index
    %496 = memref.load %arg2[%c14] : memref<288xf32, #tpu.memory_space<smem>>
    %497 = vector.broadcast %496 : f32 to vector<32x32xf32>
    %498 = arith.mulf %497, %495 : vector<32x32xf32>
    %499 = arith.addf %465, %498 : vector<32x32xf32>
    %c50 = arith.constant 50 : index
    %500 = memref.load %arg2[%c50] : memref<288xf32, #tpu.memory_space<smem>>
    %501 = vector.broadcast %500 : f32 to vector<32x32xf32>
    %502 = arith.mulf %501, %495 : vector<32x32xf32>
    %503 = arith.addf %469, %502 : vector<32x32xf32>
    %c86 = arith.constant 86 : index
    %504 = memref.load %arg2[%c86] : memref<288xf32, #tpu.memory_space<smem>>
    %505 = vector.broadcast %504 : f32 to vector<32x32xf32>
    %506 = arith.mulf %505, %495 : vector<32x32xf32>
    %507 = arith.addf %473, %506 : vector<32x32xf32>
    %c122 = arith.constant 122 : index
    %508 = memref.load %arg2[%c122] : memref<288xf32, #tpu.memory_space<smem>>
    %509 = vector.broadcast %508 : f32 to vector<32x32xf32>
    %510 = arith.mulf %509, %495 : vector<32x32xf32>
    %511 = arith.addf %477, %510 : vector<32x32xf32>
    %c158 = arith.constant 158 : index
    %512 = memref.load %arg2[%c158] : memref<288xf32, #tpu.memory_space<smem>>
    %513 = vector.broadcast %512 : f32 to vector<32x32xf32>
    %514 = arith.mulf %513, %495 : vector<32x32xf32>
    %515 = arith.addf %481, %514 : vector<32x32xf32>
    %c194 = arith.constant 194 : index
    %516 = memref.load %arg2[%c194] : memref<288xf32, #tpu.memory_space<smem>>
    %517 = vector.broadcast %516 : f32 to vector<32x32xf32>
    %518 = arith.mulf %517, %495 : vector<32x32xf32>
    %519 = arith.addf %485, %518 : vector<32x32xf32>
    %c230 = arith.constant 230 : index
    %520 = memref.load %arg2[%c230] : memref<288xf32, #tpu.memory_space<smem>>
    %521 = vector.broadcast %520 : f32 to vector<32x32xf32>
    %522 = arith.mulf %521, %495 : vector<32x32xf32>
    %523 = arith.addf %489, %522 : vector<32x32xf32>
    %c266 = arith.constant 266 : index
    %524 = memref.load %arg2[%c266] : memref<288xf32, #tpu.memory_space<smem>>
    %525 = vector.broadcast %524 : f32 to vector<32x32xf32>
    %526 = arith.mulf %525, %495 : vector<32x32xf32>
    %527 = arith.addf %493, %526 : vector<32x32xf32>
    %c1_65 = arith.constant 1 : index
    %c2_66 = arith.constant 2 : index
    %c0_67 = arith.constant 0 : index
    %528 = vector.load %arg4[%c1_65, %c2_66, %c0_67] : memref<4x34x34xf32, #tpu.memory_space<vmem>>, vector<1x32x32xf32>
    %529 = vector.shape_cast %528 : vector<1x32x32xf32> to vector<32x32xf32>
    %c15 = arith.constant 15 : index
    %530 = memref.load %arg2[%c15] : memref<288xf32, #tpu.memory_space<smem>>
    %531 = vector.broadcast %530 : f32 to vector<32x32xf32>
    %532 = arith.mulf %531, %529 : vector<32x32xf32>
    %533 = arith.addf %499, %532 : vector<32x32xf32>
    %c51 = arith.constant 51 : index
    %534 = memref.load %arg2[%c51] : memref<288xf32, #tpu.memory_space<smem>>
    %535 = vector.broadcast %534 : f32 to vector<32x32xf32>
    %536 = arith.mulf %535, %529 : vector<32x32xf32>
    %537 = arith.addf %503, %536 : vector<32x32xf32>
    %c87 = arith.constant 87 : index
    %538 = memref.load %arg2[%c87] : memref<288xf32, #tpu.memory_space<smem>>
    %539 = vector.broadcast %538 : f32 to vector<32x32xf32>
    %540 = arith.mulf %539, %529 : vector<32x32xf32>
    %541 = arith.addf %507, %540 : vector<32x32xf32>
    %c123 = arith.constant 123 : index
    %542 = memref.load %arg2[%c123] : memref<288xf32, #tpu.memory_space<smem>>
    %543 = vector.broadcast %542 : f32 to vector<32x32xf32>
    %544 = arith.mulf %543, %529 : vector<32x32xf32>
    %545 = arith.addf %511, %544 : vector<32x32xf32>
    %c159 = arith.constant 159 : index
    %546 = memref.load %arg2[%c159] : memref<288xf32, #tpu.memory_space<smem>>
    %547 = vector.broadcast %546 : f32 to vector<32x32xf32>
    %548 = arith.mulf %547, %529 : vector<32x32xf32>
    %549 = arith.addf %515, %548 : vector<32x32xf32>
    %c195 = arith.constant 195 : index
    %550 = memref.load %arg2[%c195] : memref<288xf32, #tpu.memory_space<smem>>
    %551 = vector.broadcast %550 : f32 to vector<32x32xf32>
    %552 = arith.mulf %551, %529 : vector<32x32xf32>
    %553 = arith.addf %519, %552 : vector<32x32xf32>
    %c231 = arith.constant 231 : index
    %554 = memref.load %arg2[%c231] : memref<288xf32, #tpu.memory_space<smem>>
    %555 = vector.broadcast %554 : f32 to vector<32x32xf32>
    %556 = arith.mulf %555, %529 : vector<32x32xf32>
    %557 = arith.addf %523, %556 : vector<32x32xf32>
    %c267 = arith.constant 267 : index
    %558 = memref.load %arg2[%c267] : memref<288xf32, #tpu.memory_space<smem>>
    %559 = vector.broadcast %558 : f32 to vector<32x32xf32>
    %560 = arith.mulf %559, %529 : vector<32x32xf32>
    %561 = arith.addf %527, %560 : vector<32x32xf32>
    %c1_68 = arith.constant 1 : index
    %c2_69 = arith.constant 2 : index
    %c1_70 = arith.constant 1 : index
    %562 = vector.load %arg4[%c1_68, %c2_69, %c1_70] : memref<4x34x34xf32, #tpu.memory_space<vmem>>, vector<1x32x32xf32>
    %563 = vector.shape_cast %562 : vector<1x32x32xf32> to vector<32x32xf32>
    %c16 = arith.constant 16 : index
    %564 = memref.load %arg2[%c16] : memref<288xf32, #tpu.memory_space<smem>>
    %565 = vector.broadcast %564 : f32 to vector<32x32xf32>
    %566 = arith.mulf %565, %563 : vector<32x32xf32>
    %567 = arith.addf %533, %566 : vector<32x32xf32>
    %c52 = arith.constant 52 : index
    %568 = memref.load %arg2[%c52] : memref<288xf32, #tpu.memory_space<smem>>
    %569 = vector.broadcast %568 : f32 to vector<32x32xf32>
    %570 = arith.mulf %569, %563 : vector<32x32xf32>
    %571 = arith.addf %537, %570 : vector<32x32xf32>
    %c88 = arith.constant 88 : index
    %572 = memref.load %arg2[%c88] : memref<288xf32, #tpu.memory_space<smem>>
    %573 = vector.broadcast %572 : f32 to vector<32x32xf32>
    %574 = arith.mulf %573, %563 : vector<32x32xf32>
    %575 = arith.addf %541, %574 : vector<32x32xf32>
    %c124 = arith.constant 124 : index
    %576 = memref.load %arg2[%c124] : memref<288xf32, #tpu.memory_space<smem>>
    %577 = vector.broadcast %576 : f32 to vector<32x32xf32>
    %578 = arith.mulf %577, %563 : vector<32x32xf32>
    %579 = arith.addf %545, %578 : vector<32x32xf32>
    %c160 = arith.constant 160 : index
    %580 = memref.load %arg2[%c160] : memref<288xf32, #tpu.memory_space<smem>>
    %581 = vector.broadcast %580 : f32 to vector<32x32xf32>
    %582 = arith.mulf %581, %563 : vector<32x32xf32>
    %583 = arith.addf %549, %582 : vector<32x32xf32>
    %c196 = arith.constant 196 : index
    %584 = memref.load %arg2[%c196] : memref<288xf32, #tpu.memory_space<smem>>
    %585 = vector.broadcast %584 : f32 to vector<32x32xf32>
    %586 = arith.mulf %585, %563 : vector<32x32xf32>
    %587 = arith.addf %553, %586 : vector<32x32xf32>
    %c232 = arith.constant 232 : index
    %588 = memref.load %arg2[%c232] : memref<288xf32, #tpu.memory_space<smem>>
    %589 = vector.broadcast %588 : f32 to vector<32x32xf32>
    %590 = arith.mulf %589, %563 : vector<32x32xf32>
    %591 = arith.addf %557, %590 : vector<32x32xf32>
    %c268 = arith.constant 268 : index
    %592 = memref.load %arg2[%c268] : memref<288xf32, #tpu.memory_space<smem>>
    %593 = vector.broadcast %592 : f32 to vector<32x32xf32>
    %594 = arith.mulf %593, %563 : vector<32x32xf32>
    %595 = arith.addf %561, %594 : vector<32x32xf32>
    %c1_71 = arith.constant 1 : index
    %c2_72 = arith.constant 2 : index
    %c2_73 = arith.constant 2 : index
    %596 = vector.load %arg4[%c1_71, %c2_72, %c2_73] : memref<4x34x34xf32, #tpu.memory_space<vmem>>, vector<1x32x32xf32>
    %597 = vector.shape_cast %596 : vector<1x32x32xf32> to vector<32x32xf32>
    %c17 = arith.constant 17 : index
    %598 = memref.load %arg2[%c17] : memref<288xf32, #tpu.memory_space<smem>>
    %599 = vector.broadcast %598 : f32 to vector<32x32xf32>
    %600 = arith.mulf %599, %597 : vector<32x32xf32>
    %601 = arith.addf %567, %600 : vector<32x32xf32>
    %c53 = arith.constant 53 : index
    %602 = memref.load %arg2[%c53] : memref<288xf32, #tpu.memory_space<smem>>
    %603 = vector.broadcast %602 : f32 to vector<32x32xf32>
    %604 = arith.mulf %603, %597 : vector<32x32xf32>
    %605 = arith.addf %571, %604 : vector<32x32xf32>
    %c89 = arith.constant 89 : index
    %606 = memref.load %arg2[%c89] : memref<288xf32, #tpu.memory_space<smem>>
    %607 = vector.broadcast %606 : f32 to vector<32x32xf32>
    %608 = arith.mulf %607, %597 : vector<32x32xf32>
    %609 = arith.addf %575, %608 : vector<32x32xf32>
    %c125 = arith.constant 125 : index
    %610 = memref.load %arg2[%c125] : memref<288xf32, #tpu.memory_space<smem>>
    %611 = vector.broadcast %610 : f32 to vector<32x32xf32>
    %612 = arith.mulf %611, %597 : vector<32x32xf32>
    %613 = arith.addf %579, %612 : vector<32x32xf32>
    %c161 = arith.constant 161 : index
    %614 = memref.load %arg2[%c161] : memref<288xf32, #tpu.memory_space<smem>>
    %615 = vector.broadcast %614 : f32 to vector<32x32xf32>
    %616 = arith.mulf %615, %597 : vector<32x32xf32>
    %617 = arith.addf %583, %616 : vector<32x32xf32>
    %c197 = arith.constant 197 : index
    %618 = memref.load %arg2[%c197] : memref<288xf32, #tpu.memory_space<smem>>
    %619 = vector.broadcast %618 : f32 to vector<32x32xf32>
    %620 = arith.mulf %619, %597 : vector<32x32xf32>
    %621 = arith.addf %587, %620 : vector<32x32xf32>
    %c233 = arith.constant 233 : index
    %622 = memref.load %arg2[%c233] : memref<288xf32, #tpu.memory_space<smem>>
    %623 = vector.broadcast %622 : f32 to vector<32x32xf32>
    %624 = arith.mulf %623, %597 : vector<32x32xf32>
    %625 = arith.addf %591, %624 : vector<32x32xf32>
    %c269 = arith.constant 269 : index
    %626 = memref.load %arg2[%c269] : memref<288xf32, #tpu.memory_space<smem>>
    %627 = vector.broadcast %626 : f32 to vector<32x32xf32>
    %628 = arith.mulf %627, %597 : vector<32x32xf32>
    %629 = arith.addf %595, %628 : vector<32x32xf32>
    %c2_74 = arith.constant 2 : index
    %c0_75 = arith.constant 0 : index
    %c0_76 = arith.constant 0 : index
    %630 = vector.load %arg4[%c2_74, %c0_75, %c0_76] : memref<4x34x34xf32, #tpu.memory_space<vmem>>, vector<1x32x32xf32>
    %631 = vector.shape_cast %630 : vector<1x32x32xf32> to vector<32x32xf32>
    %c18 = arith.constant 18 : index
    %632 = memref.load %arg2[%c18] : memref<288xf32, #tpu.memory_space<smem>>
    %633 = vector.broadcast %632 : f32 to vector<32x32xf32>
    %634 = arith.mulf %633, %631 : vector<32x32xf32>
    %635 = arith.addf %601, %634 : vector<32x32xf32>
    %c54 = arith.constant 54 : index
    %636 = memref.load %arg2[%c54] : memref<288xf32, #tpu.memory_space<smem>>
    %637 = vector.broadcast %636 : f32 to vector<32x32xf32>
    %638 = arith.mulf %637, %631 : vector<32x32xf32>
    %639 = arith.addf %605, %638 : vector<32x32xf32>
    %c90 = arith.constant 90 : index
    %640 = memref.load %arg2[%c90] : memref<288xf32, #tpu.memory_space<smem>>
    %641 = vector.broadcast %640 : f32 to vector<32x32xf32>
    %642 = arith.mulf %641, %631 : vector<32x32xf32>
    %643 = arith.addf %609, %642 : vector<32x32xf32>
    %c126 = arith.constant 126 : index
    %644 = memref.load %arg2[%c126] : memref<288xf32, #tpu.memory_space<smem>>
    %645 = vector.broadcast %644 : f32 to vector<32x32xf32>
    %646 = arith.mulf %645, %631 : vector<32x32xf32>
    %647 = arith.addf %613, %646 : vector<32x32xf32>
    %c162 = arith.constant 162 : index
    %648 = memref.load %arg2[%c162] : memref<288xf32, #tpu.memory_space<smem>>
    %649 = vector.broadcast %648 : f32 to vector<32x32xf32>
    %650 = arith.mulf %649, %631 : vector<32x32xf32>
    %651 = arith.addf %617, %650 : vector<32x32xf32>
    %c198 = arith.constant 198 : index
    %652 = memref.load %arg2[%c198] : memref<288xf32, #tpu.memory_space<smem>>
    %653 = vector.broadcast %652 : f32 to vector<32x32xf32>
    %654 = arith.mulf %653, %631 : vector<32x32xf32>
    %655 = arith.addf %621, %654 : vector<32x32xf32>
    %c234 = arith.constant 234 : index
    %656 = memref.load %arg2[%c234] : memref<288xf32, #tpu.memory_space<smem>>
    %657 = vector.broadcast %656 : f32 to vector<32x32xf32>
    %658 = arith.mulf %657, %631 : vector<32x32xf32>
    %659 = arith.addf %625, %658 : vector<32x32xf32>
    %c270 = arith.constant 270 : index
    %660 = memref.load %arg2[%c270] : memref<288xf32, #tpu.memory_space<smem>>
    %661 = vector.broadcast %660 : f32 to vector<32x32xf32>
    %662 = arith.mulf %661, %631 : vector<32x32xf32>
    %663 = arith.addf %629, %662 : vector<32x32xf32>
    %c2_77 = arith.constant 2 : index
    %c0_78 = arith.constant 0 : index
    %c1_79 = arith.constant 1 : index
    %664 = vector.load %arg4[%c2_77, %c0_78, %c1_79] : memref<4x34x34xf32, #tpu.memory_space<vmem>>, vector<1x32x32xf32>
    %665 = vector.shape_cast %664 : vector<1x32x32xf32> to vector<32x32xf32>
    %c19 = arith.constant 19 : index
    %666 = memref.load %arg2[%c19] : memref<288xf32, #tpu.memory_space<smem>>
    %667 = vector.broadcast %666 : f32 to vector<32x32xf32>
    %668 = arith.mulf %667, %665 : vector<32x32xf32>
    %669 = arith.addf %635, %668 : vector<32x32xf32>
    %c55 = arith.constant 55 : index
    %670 = memref.load %arg2[%c55] : memref<288xf32, #tpu.memory_space<smem>>
    %671 = vector.broadcast %670 : f32 to vector<32x32xf32>
    %672 = arith.mulf %671, %665 : vector<32x32xf32>
    %673 = arith.addf %639, %672 : vector<32x32xf32>
    %c91 = arith.constant 91 : index
    %674 = memref.load %arg2[%c91] : memref<288xf32, #tpu.memory_space<smem>>
    %675 = vector.broadcast %674 : f32 to vector<32x32xf32>
    %676 = arith.mulf %675, %665 : vector<32x32xf32>
    %677 = arith.addf %643, %676 : vector<32x32xf32>
    %c127 = arith.constant 127 : index
    %678 = memref.load %arg2[%c127] : memref<288xf32, #tpu.memory_space<smem>>
    %679 = vector.broadcast %678 : f32 to vector<32x32xf32>
    %680 = arith.mulf %679, %665 : vector<32x32xf32>
    %681 = arith.addf %647, %680 : vector<32x32xf32>
    %c163 = arith.constant 163 : index
    %682 = memref.load %arg2[%c163] : memref<288xf32, #tpu.memory_space<smem>>
    %683 = vector.broadcast %682 : f32 to vector<32x32xf32>
    %684 = arith.mulf %683, %665 : vector<32x32xf32>
    %685 = arith.addf %651, %684 : vector<32x32xf32>
    %c199 = arith.constant 199 : index
    %686 = memref.load %arg2[%c199] : memref<288xf32, #tpu.memory_space<smem>>
    %687 = vector.broadcast %686 : f32 to vector<32x32xf32>
    %688 = arith.mulf %687, %665 : vector<32x32xf32>
    %689 = arith.addf %655, %688 : vector<32x32xf32>
    %c235 = arith.constant 235 : index
    %690 = memref.load %arg2[%c235] : memref<288xf32, #tpu.memory_space<smem>>
    %691 = vector.broadcast %690 : f32 to vector<32x32xf32>
    %692 = arith.mulf %691, %665 : vector<32x32xf32>
    %693 = arith.addf %659, %692 : vector<32x32xf32>
    %c271 = arith.constant 271 : index
    %694 = memref.load %arg2[%c271] : memref<288xf32, #tpu.memory_space<smem>>
    %695 = vector.broadcast %694 : f32 to vector<32x32xf32>
    %696 = arith.mulf %695, %665 : vector<32x32xf32>
    %697 = arith.addf %663, %696 : vector<32x32xf32>
    %c2_80 = arith.constant 2 : index
    %c0_81 = arith.constant 0 : index
    %c2_82 = arith.constant 2 : index
    %698 = vector.load %arg4[%c2_80, %c0_81, %c2_82] : memref<4x34x34xf32, #tpu.memory_space<vmem>>, vector<1x32x32xf32>
    %699 = vector.shape_cast %698 : vector<1x32x32xf32> to vector<32x32xf32>
    %c20 = arith.constant 20 : index
    %700 = memref.load %arg2[%c20] : memref<288xf32, #tpu.memory_space<smem>>
    %701 = vector.broadcast %700 : f32 to vector<32x32xf32>
    %702 = arith.mulf %701, %699 : vector<32x32xf32>
    %703 = arith.addf %669, %702 : vector<32x32xf32>
    %c56 = arith.constant 56 : index
    %704 = memref.load %arg2[%c56] : memref<288xf32, #tpu.memory_space<smem>>
    %705 = vector.broadcast %704 : f32 to vector<32x32xf32>
    %706 = arith.mulf %705, %699 : vector<32x32xf32>
    %707 = arith.addf %673, %706 : vector<32x32xf32>
    %c92 = arith.constant 92 : index
    %708 = memref.load %arg2[%c92] : memref<288xf32, #tpu.memory_space<smem>>
    %709 = vector.broadcast %708 : f32 to vector<32x32xf32>
    %710 = arith.mulf %709, %699 : vector<32x32xf32>
    %711 = arith.addf %677, %710 : vector<32x32xf32>
    %c128 = arith.constant 128 : index
    %712 = memref.load %arg2[%c128] : memref<288xf32, #tpu.memory_space<smem>>
    %713 = vector.broadcast %712 : f32 to vector<32x32xf32>
    %714 = arith.mulf %713, %699 : vector<32x32xf32>
    %715 = arith.addf %681, %714 : vector<32x32xf32>
    %c164 = arith.constant 164 : index
    %716 = memref.load %arg2[%c164] : memref<288xf32, #tpu.memory_space<smem>>
    %717 = vector.broadcast %716 : f32 to vector<32x32xf32>
    %718 = arith.mulf %717, %699 : vector<32x32xf32>
    %719 = arith.addf %685, %718 : vector<32x32xf32>
    %c200 = arith.constant 200 : index
    %720 = memref.load %arg2[%c200] : memref<288xf32, #tpu.memory_space<smem>>
    %721 = vector.broadcast %720 : f32 to vector<32x32xf32>
    %722 = arith.mulf %721, %699 : vector<32x32xf32>
    %723 = arith.addf %689, %722 : vector<32x32xf32>
    %c236 = arith.constant 236 : index
    %724 = memref.load %arg2[%c236] : memref<288xf32, #tpu.memory_space<smem>>
    %725 = vector.broadcast %724 : f32 to vector<32x32xf32>
    %726 = arith.mulf %725, %699 : vector<32x32xf32>
    %727 = arith.addf %693, %726 : vector<32x32xf32>
    %c272 = arith.constant 272 : index
    %728 = memref.load %arg2[%c272] : memref<288xf32, #tpu.memory_space<smem>>
    %729 = vector.broadcast %728 : f32 to vector<32x32xf32>
    %730 = arith.mulf %729, %699 : vector<32x32xf32>
    %731 = arith.addf %697, %730 : vector<32x32xf32>
    %c2_83 = arith.constant 2 : index
    %c1_84 = arith.constant 1 : index
    %c0_85 = arith.constant 0 : index
    %732 = vector.load %arg4[%c2_83, %c1_84, %c0_85] : memref<4x34x34xf32, #tpu.memory_space<vmem>>, vector<1x32x32xf32>
    %733 = vector.shape_cast %732 : vector<1x32x32xf32> to vector<32x32xf32>
    %c21 = arith.constant 21 : index
    %734 = memref.load %arg2[%c21] : memref<288xf32, #tpu.memory_space<smem>>
    %735 = vector.broadcast %734 : f32 to vector<32x32xf32>
    %736 = arith.mulf %735, %733 : vector<32x32xf32>
    %737 = arith.addf %703, %736 : vector<32x32xf32>
    %c57 = arith.constant 57 : index
    %738 = memref.load %arg2[%c57] : memref<288xf32, #tpu.memory_space<smem>>
    %739 = vector.broadcast %738 : f32 to vector<32x32xf32>
    %740 = arith.mulf %739, %733 : vector<32x32xf32>
    %741 = arith.addf %707, %740 : vector<32x32xf32>
    %c93 = arith.constant 93 : index
    %742 = memref.load %arg2[%c93] : memref<288xf32, #tpu.memory_space<smem>>
    %743 = vector.broadcast %742 : f32 to vector<32x32xf32>
    %744 = arith.mulf %743, %733 : vector<32x32xf32>
    %745 = arith.addf %711, %744 : vector<32x32xf32>
    %c129 = arith.constant 129 : index
    %746 = memref.load %arg2[%c129] : memref<288xf32, #tpu.memory_space<smem>>
    %747 = vector.broadcast %746 : f32 to vector<32x32xf32>
    %748 = arith.mulf %747, %733 : vector<32x32xf32>
    %749 = arith.addf %715, %748 : vector<32x32xf32>
    %c165 = arith.constant 165 : index
    %750 = memref.load %arg2[%c165] : memref<288xf32, #tpu.memory_space<smem>>
    %751 = vector.broadcast %750 : f32 to vector<32x32xf32>
    %752 = arith.mulf %751, %733 : vector<32x32xf32>
    %753 = arith.addf %719, %752 : vector<32x32xf32>
    %c201 = arith.constant 201 : index
    %754 = memref.load %arg2[%c201] : memref<288xf32, #tpu.memory_space<smem>>
    %755 = vector.broadcast %754 : f32 to vector<32x32xf32>
    %756 = arith.mulf %755, %733 : vector<32x32xf32>
    %757 = arith.addf %723, %756 : vector<32x32xf32>
    %c237 = arith.constant 237 : index
    %758 = memref.load %arg2[%c237] : memref<288xf32, #tpu.memory_space<smem>>
    %759 = vector.broadcast %758 : f32 to vector<32x32xf32>
    %760 = arith.mulf %759, %733 : vector<32x32xf32>
    %761 = arith.addf %727, %760 : vector<32x32xf32>
    %c273 = arith.constant 273 : index
    %762 = memref.load %arg2[%c273] : memref<288xf32, #tpu.memory_space<smem>>
    %763 = vector.broadcast %762 : f32 to vector<32x32xf32>
    %764 = arith.mulf %763, %733 : vector<32x32xf32>
    %765 = arith.addf %731, %764 : vector<32x32xf32>
    %c2_86 = arith.constant 2 : index
    %c1_87 = arith.constant 1 : index
    %c1_88 = arith.constant 1 : index
    %766 = vector.load %arg4[%c2_86, %c1_87, %c1_88] : memref<4x34x34xf32, #tpu.memory_space<vmem>>, vector<1x32x32xf32>
    %767 = vector.shape_cast %766 : vector<1x32x32xf32> to vector<32x32xf32>
    %c22 = arith.constant 22 : index
    %768 = memref.load %arg2[%c22] : memref<288xf32, #tpu.memory_space<smem>>
    %769 = vector.broadcast %768 : f32 to vector<32x32xf32>
    %770 = arith.mulf %769, %767 : vector<32x32xf32>
    %771 = arith.addf %737, %770 : vector<32x32xf32>
    %c58 = arith.constant 58 : index
    %772 = memref.load %arg2[%c58] : memref<288xf32, #tpu.memory_space<smem>>
    %773 = vector.broadcast %772 : f32 to vector<32x32xf32>
    %774 = arith.mulf %773, %767 : vector<32x32xf32>
    %775 = arith.addf %741, %774 : vector<32x32xf32>
    %c94 = arith.constant 94 : index
    %776 = memref.load %arg2[%c94] : memref<288xf32, #tpu.memory_space<smem>>
    %777 = vector.broadcast %776 : f32 to vector<32x32xf32>
    %778 = arith.mulf %777, %767 : vector<32x32xf32>
    %779 = arith.addf %745, %778 : vector<32x32xf32>
    %c130 = arith.constant 130 : index
    %780 = memref.load %arg2[%c130] : memref<288xf32, #tpu.memory_space<smem>>
    %781 = vector.broadcast %780 : f32 to vector<32x32xf32>
    %782 = arith.mulf %781, %767 : vector<32x32xf32>
    %783 = arith.addf %749, %782 : vector<32x32xf32>
    %c166 = arith.constant 166 : index
    %784 = memref.load %arg2[%c166] : memref<288xf32, #tpu.memory_space<smem>>
    %785 = vector.broadcast %784 : f32 to vector<32x32xf32>
    %786 = arith.mulf %785, %767 : vector<32x32xf32>
    %787 = arith.addf %753, %786 : vector<32x32xf32>
    %c202 = arith.constant 202 : index
    %788 = memref.load %arg2[%c202] : memref<288xf32, #tpu.memory_space<smem>>
    %789 = vector.broadcast %788 : f32 to vector<32x32xf32>
    %790 = arith.mulf %789, %767 : vector<32x32xf32>
    %791 = arith.addf %757, %790 : vector<32x32xf32>
    %c238 = arith.constant 238 : index
    %792 = memref.load %arg2[%c238] : memref<288xf32, #tpu.memory_space<smem>>
    %793 = vector.broadcast %792 : f32 to vector<32x32xf32>
    %794 = arith.mulf %793, %767 : vector<32x32xf32>
    %795 = arith.addf %761, %794 : vector<32x32xf32>
    %c274 = arith.constant 274 : index
    %796 = memref.load %arg2[%c274] : memref<288xf32, #tpu.memory_space<smem>>
    %797 = vector.broadcast %796 : f32 to vector<32x32xf32>
    %798 = arith.mulf %797, %767 : vector<32x32xf32>
    %799 = arith.addf %765, %798 : vector<32x32xf32>
    %c2_89 = arith.constant 2 : index
    %c1_90 = arith.constant 1 : index
    %c2_91 = arith.constant 2 : index
    %800 = vector.load %arg4[%c2_89, %c1_90, %c2_91] : memref<4x34x34xf32, #tpu.memory_space<vmem>>, vector<1x32x32xf32>
    %801 = vector.shape_cast %800 : vector<1x32x32xf32> to vector<32x32xf32>
    %c23 = arith.constant 23 : index
    %802 = memref.load %arg2[%c23] : memref<288xf32, #tpu.memory_space<smem>>
    %803 = vector.broadcast %802 : f32 to vector<32x32xf32>
    %804 = arith.mulf %803, %801 : vector<32x32xf32>
    %805 = arith.addf %771, %804 : vector<32x32xf32>
    %c59 = arith.constant 59 : index
    %806 = memref.load %arg2[%c59] : memref<288xf32, #tpu.memory_space<smem>>
    %807 = vector.broadcast %806 : f32 to vector<32x32xf32>
    %808 = arith.mulf %807, %801 : vector<32x32xf32>
    %809 = arith.addf %775, %808 : vector<32x32xf32>
    %c95 = arith.constant 95 : index
    %810 = memref.load %arg2[%c95] : memref<288xf32, #tpu.memory_space<smem>>
    %811 = vector.broadcast %810 : f32 to vector<32x32xf32>
    %812 = arith.mulf %811, %801 : vector<32x32xf32>
    %813 = arith.addf %779, %812 : vector<32x32xf32>
    %c131 = arith.constant 131 : index
    %814 = memref.load %arg2[%c131] : memref<288xf32, #tpu.memory_space<smem>>
    %815 = vector.broadcast %814 : f32 to vector<32x32xf32>
    %816 = arith.mulf %815, %801 : vector<32x32xf32>
    %817 = arith.addf %783, %816 : vector<32x32xf32>
    %c167 = arith.constant 167 : index
    %818 = memref.load %arg2[%c167] : memref<288xf32, #tpu.memory_space<smem>>
    %819 = vector.broadcast %818 : f32 to vector<32x32xf32>
    %820 = arith.mulf %819, %801 : vector<32x32xf32>
    %821 = arith.addf %787, %820 : vector<32x32xf32>
    %c203 = arith.constant 203 : index
    %822 = memref.load %arg2[%c203] : memref<288xf32, #tpu.memory_space<smem>>
    %823 = vector.broadcast %822 : f32 to vector<32x32xf32>
    %824 = arith.mulf %823, %801 : vector<32x32xf32>
    %825 = arith.addf %791, %824 : vector<32x32xf32>
    %c239 = arith.constant 239 : index
    %826 = memref.load %arg2[%c239] : memref<288xf32, #tpu.memory_space<smem>>
    %827 = vector.broadcast %826 : f32 to vector<32x32xf32>
    %828 = arith.mulf %827, %801 : vector<32x32xf32>
    %829 = arith.addf %795, %828 : vector<32x32xf32>
    %c275 = arith.constant 275 : index
    %830 = memref.load %arg2[%c275] : memref<288xf32, #tpu.memory_space<smem>>
    %831 = vector.broadcast %830 : f32 to vector<32x32xf32>
    %832 = arith.mulf %831, %801 : vector<32x32xf32>
    %833 = arith.addf %799, %832 : vector<32x32xf32>
    %c2_92 = arith.constant 2 : index
    %c2_93 = arith.constant 2 : index
    %c0_94 = arith.constant 0 : index
    %834 = vector.load %arg4[%c2_92, %c2_93, %c0_94] : memref<4x34x34xf32, #tpu.memory_space<vmem>>, vector<1x32x32xf32>
    %835 = vector.shape_cast %834 : vector<1x32x32xf32> to vector<32x32xf32>
    %c24 = arith.constant 24 : index
    %836 = memref.load %arg2[%c24] : memref<288xf32, #tpu.memory_space<smem>>
    %837 = vector.broadcast %836 : f32 to vector<32x32xf32>
    %838 = arith.mulf %837, %835 : vector<32x32xf32>
    %839 = arith.addf %805, %838 : vector<32x32xf32>
    %c60 = arith.constant 60 : index
    %840 = memref.load %arg2[%c60] : memref<288xf32, #tpu.memory_space<smem>>
    %841 = vector.broadcast %840 : f32 to vector<32x32xf32>
    %842 = arith.mulf %841, %835 : vector<32x32xf32>
    %843 = arith.addf %809, %842 : vector<32x32xf32>
    %c96 = arith.constant 96 : index
    %844 = memref.load %arg2[%c96] : memref<288xf32, #tpu.memory_space<smem>>
    %845 = vector.broadcast %844 : f32 to vector<32x32xf32>
    %846 = arith.mulf %845, %835 : vector<32x32xf32>
    %847 = arith.addf %813, %846 : vector<32x32xf32>
    %c132 = arith.constant 132 : index
    %848 = memref.load %arg2[%c132] : memref<288xf32, #tpu.memory_space<smem>>
    %849 = vector.broadcast %848 : f32 to vector<32x32xf32>
    %850 = arith.mulf %849, %835 : vector<32x32xf32>
    %851 = arith.addf %817, %850 : vector<32x32xf32>
    %c168 = arith.constant 168 : index
    %852 = memref.load %arg2[%c168] : memref<288xf32, #tpu.memory_space<smem>>
    %853 = vector.broadcast %852 : f32 to vector<32x32xf32>
    %854 = arith.mulf %853, %835 : vector<32x32xf32>
    %855 = arith.addf %821, %854 : vector<32x32xf32>
    %c204 = arith.constant 204 : index
    %856 = memref.load %arg2[%c204] : memref<288xf32, #tpu.memory_space<smem>>
    %857 = vector.broadcast %856 : f32 to vector<32x32xf32>
    %858 = arith.mulf %857, %835 : vector<32x32xf32>
    %859 = arith.addf %825, %858 : vector<32x32xf32>
    %c240 = arith.constant 240 : index
    %860 = memref.load %arg2[%c240] : memref<288xf32, #tpu.memory_space<smem>>
    %861 = vector.broadcast %860 : f32 to vector<32x32xf32>
    %862 = arith.mulf %861, %835 : vector<32x32xf32>
    %863 = arith.addf %829, %862 : vector<32x32xf32>
    %c276 = arith.constant 276 : index
    %864 = memref.load %arg2[%c276] : memref<288xf32, #tpu.memory_space<smem>>
    %865 = vector.broadcast %864 : f32 to vector<32x32xf32>
    %866 = arith.mulf %865, %835 : vector<32x32xf32>
    %867 = arith.addf %833, %866 : vector<32x32xf32>
    %c2_95 = arith.constant 2 : index
    %c2_96 = arith.constant 2 : index
    %c1_97 = arith.constant 1 : index
    %868 = vector.load %arg4[%c2_95, %c2_96, %c1_97] : memref<4x34x34xf32, #tpu.memory_space<vmem>>, vector<1x32x32xf32>
    %869 = vector.shape_cast %868 : vector<1x32x32xf32> to vector<32x32xf32>
    %c25 = arith.constant 25 : index
    %870 = memref.load %arg2[%c25] : memref<288xf32, #tpu.memory_space<smem>>
    %871 = vector.broadcast %870 : f32 to vector<32x32xf32>
    %872 = arith.mulf %871, %869 : vector<32x32xf32>
    %873 = arith.addf %839, %872 : vector<32x32xf32>
    %c61 = arith.constant 61 : index
    %874 = memref.load %arg2[%c61] : memref<288xf32, #tpu.memory_space<smem>>
    %875 = vector.broadcast %874 : f32 to vector<32x32xf32>
    %876 = arith.mulf %875, %869 : vector<32x32xf32>
    %877 = arith.addf %843, %876 : vector<32x32xf32>
    %c97 = arith.constant 97 : index
    %878 = memref.load %arg2[%c97] : memref<288xf32, #tpu.memory_space<smem>>
    %879 = vector.broadcast %878 : f32 to vector<32x32xf32>
    %880 = arith.mulf %879, %869 : vector<32x32xf32>
    %881 = arith.addf %847, %880 : vector<32x32xf32>
    %c133 = arith.constant 133 : index
    %882 = memref.load %arg2[%c133] : memref<288xf32, #tpu.memory_space<smem>>
    %883 = vector.broadcast %882 : f32 to vector<32x32xf32>
    %884 = arith.mulf %883, %869 : vector<32x32xf32>
    %885 = arith.addf %851, %884 : vector<32x32xf32>
    %c169 = arith.constant 169 : index
    %886 = memref.load %arg2[%c169] : memref<288xf32, #tpu.memory_space<smem>>
    %887 = vector.broadcast %886 : f32 to vector<32x32xf32>
    %888 = arith.mulf %887, %869 : vector<32x32xf32>
    %889 = arith.addf %855, %888 : vector<32x32xf32>
    %c205 = arith.constant 205 : index
    %890 = memref.load %arg2[%c205] : memref<288xf32, #tpu.memory_space<smem>>
    %891 = vector.broadcast %890 : f32 to vector<32x32xf32>
    %892 = arith.mulf %891, %869 : vector<32x32xf32>
    %893 = arith.addf %859, %892 : vector<32x32xf32>
    %c241 = arith.constant 241 : index
    %894 = memref.load %arg2[%c241] : memref<288xf32, #tpu.memory_space<smem>>
    %895 = vector.broadcast %894 : f32 to vector<32x32xf32>
    %896 = arith.mulf %895, %869 : vector<32x32xf32>
    %897 = arith.addf %863, %896 : vector<32x32xf32>
    %c277 = arith.constant 277 : index
    %898 = memref.load %arg2[%c277] : memref<288xf32, #tpu.memory_space<smem>>
    %899 = vector.broadcast %898 : f32 to vector<32x32xf32>
    %900 = arith.mulf %899, %869 : vector<32x32xf32>
    %901 = arith.addf %867, %900 : vector<32x32xf32>
    %c2_98 = arith.constant 2 : index
    %c2_99 = arith.constant 2 : index
    %c2_100 = arith.constant 2 : index
    %902 = vector.load %arg4[%c2_98, %c2_99, %c2_100] : memref<4x34x34xf32, #tpu.memory_space<vmem>>, vector<1x32x32xf32>
    %903 = vector.shape_cast %902 : vector<1x32x32xf32> to vector<32x32xf32>
    %c26 = arith.constant 26 : index
    %904 = memref.load %arg2[%c26] : memref<288xf32, #tpu.memory_space<smem>>
    %905 = vector.broadcast %904 : f32 to vector<32x32xf32>
    %906 = arith.mulf %905, %903 : vector<32x32xf32>
    %907 = arith.addf %873, %906 : vector<32x32xf32>
    %c62 = arith.constant 62 : index
    %908 = memref.load %arg2[%c62] : memref<288xf32, #tpu.memory_space<smem>>
    %909 = vector.broadcast %908 : f32 to vector<32x32xf32>
    %910 = arith.mulf %909, %903 : vector<32x32xf32>
    %911 = arith.addf %877, %910 : vector<32x32xf32>
    %c98 = arith.constant 98 : index
    %912 = memref.load %arg2[%c98] : memref<288xf32, #tpu.memory_space<smem>>
    %913 = vector.broadcast %912 : f32 to vector<32x32xf32>
    %914 = arith.mulf %913, %903 : vector<32x32xf32>
    %915 = arith.addf %881, %914 : vector<32x32xf32>
    %c134 = arith.constant 134 : index
    %916 = memref.load %arg2[%c134] : memref<288xf32, #tpu.memory_space<smem>>
    %917 = vector.broadcast %916 : f32 to vector<32x32xf32>
    %918 = arith.mulf %917, %903 : vector<32x32xf32>
    %919 = arith.addf %885, %918 : vector<32x32xf32>
    %c170 = arith.constant 170 : index
    %920 = memref.load %arg2[%c170] : memref<288xf32, #tpu.memory_space<smem>>
    %921 = vector.broadcast %920 : f32 to vector<32x32xf32>
    %922 = arith.mulf %921, %903 : vector<32x32xf32>
    %923 = arith.addf %889, %922 : vector<32x32xf32>
    %c206 = arith.constant 206 : index
    %924 = memref.load %arg2[%c206] : memref<288xf32, #tpu.memory_space<smem>>
    %925 = vector.broadcast %924 : f32 to vector<32x32xf32>
    %926 = arith.mulf %925, %903 : vector<32x32xf32>
    %927 = arith.addf %893, %926 : vector<32x32xf32>
    %c242 = arith.constant 242 : index
    %928 = memref.load %arg2[%c242] : memref<288xf32, #tpu.memory_space<smem>>
    %929 = vector.broadcast %928 : f32 to vector<32x32xf32>
    %930 = arith.mulf %929, %903 : vector<32x32xf32>
    %931 = arith.addf %897, %930 : vector<32x32xf32>
    %c278 = arith.constant 278 : index
    %932 = memref.load %arg2[%c278] : memref<288xf32, #tpu.memory_space<smem>>
    %933 = vector.broadcast %932 : f32 to vector<32x32xf32>
    %934 = arith.mulf %933, %903 : vector<32x32xf32>
    %935 = arith.addf %901, %934 : vector<32x32xf32>
    %c3_101 = arith.constant 3 : index
    %c0_102 = arith.constant 0 : index
    %c0_103 = arith.constant 0 : index
    %936 = vector.load %arg4[%c3_101, %c0_102, %c0_103] : memref<4x34x34xf32, #tpu.memory_space<vmem>>, vector<1x32x32xf32>
    %937 = vector.shape_cast %936 : vector<1x32x32xf32> to vector<32x32xf32>
    %c27 = arith.constant 27 : index
    %938 = memref.load %arg2[%c27] : memref<288xf32, #tpu.memory_space<smem>>
    %939 = vector.broadcast %938 : f32 to vector<32x32xf32>
    %940 = arith.mulf %939, %937 : vector<32x32xf32>
    %941 = arith.addf %907, %940 : vector<32x32xf32>
    %c63 = arith.constant 63 : index
    %942 = memref.load %arg2[%c63] : memref<288xf32, #tpu.memory_space<smem>>
    %943 = vector.broadcast %942 : f32 to vector<32x32xf32>
    %944 = arith.mulf %943, %937 : vector<32x32xf32>
    %945 = arith.addf %911, %944 : vector<32x32xf32>
    %c99 = arith.constant 99 : index
    %946 = memref.load %arg2[%c99] : memref<288xf32, #tpu.memory_space<smem>>
    %947 = vector.broadcast %946 : f32 to vector<32x32xf32>
    %948 = arith.mulf %947, %937 : vector<32x32xf32>
    %949 = arith.addf %915, %948 : vector<32x32xf32>
    %c135 = arith.constant 135 : index
    %950 = memref.load %arg2[%c135] : memref<288xf32, #tpu.memory_space<smem>>
    %951 = vector.broadcast %950 : f32 to vector<32x32xf32>
    %952 = arith.mulf %951, %937 : vector<32x32xf32>
    %953 = arith.addf %919, %952 : vector<32x32xf32>
    %c171 = arith.constant 171 : index
    %954 = memref.load %arg2[%c171] : memref<288xf32, #tpu.memory_space<smem>>
    %955 = vector.broadcast %954 : f32 to vector<32x32xf32>
    %956 = arith.mulf %955, %937 : vector<32x32xf32>
    %957 = arith.addf %923, %956 : vector<32x32xf32>
    %c207 = arith.constant 207 : index
    %958 = memref.load %arg2[%c207] : memref<288xf32, #tpu.memory_space<smem>>
    %959 = vector.broadcast %958 : f32 to vector<32x32xf32>
    %960 = arith.mulf %959, %937 : vector<32x32xf32>
    %961 = arith.addf %927, %960 : vector<32x32xf32>
    %c243 = arith.constant 243 : index
    %962 = memref.load %arg2[%c243] : memref<288xf32, #tpu.memory_space<smem>>
    %963 = vector.broadcast %962 : f32 to vector<32x32xf32>
    %964 = arith.mulf %963, %937 : vector<32x32xf32>
    %965 = arith.addf %931, %964 : vector<32x32xf32>
    %c279 = arith.constant 279 : index
    %966 = memref.load %arg2[%c279] : memref<288xf32, #tpu.memory_space<smem>>
    %967 = vector.broadcast %966 : f32 to vector<32x32xf32>
    %968 = arith.mulf %967, %937 : vector<32x32xf32>
    %969 = arith.addf %935, %968 : vector<32x32xf32>
    %c3_104 = arith.constant 3 : index
    %c0_105 = arith.constant 0 : index
    %c1_106 = arith.constant 1 : index
    %970 = vector.load %arg4[%c3_104, %c0_105, %c1_106] : memref<4x34x34xf32, #tpu.memory_space<vmem>>, vector<1x32x32xf32>
    %971 = vector.shape_cast %970 : vector<1x32x32xf32> to vector<32x32xf32>
    %c28 = arith.constant 28 : index
    %972 = memref.load %arg2[%c28] : memref<288xf32, #tpu.memory_space<smem>>
    %973 = vector.broadcast %972 : f32 to vector<32x32xf32>
    %974 = arith.mulf %973, %971 : vector<32x32xf32>
    %975 = arith.addf %941, %974 : vector<32x32xf32>
    %c64 = arith.constant 64 : index
    %976 = memref.load %arg2[%c64] : memref<288xf32, #tpu.memory_space<smem>>
    %977 = vector.broadcast %976 : f32 to vector<32x32xf32>
    %978 = arith.mulf %977, %971 : vector<32x32xf32>
    %979 = arith.addf %945, %978 : vector<32x32xf32>
    %c100 = arith.constant 100 : index
    %980 = memref.load %arg2[%c100] : memref<288xf32, #tpu.memory_space<smem>>
    %981 = vector.broadcast %980 : f32 to vector<32x32xf32>
    %982 = arith.mulf %981, %971 : vector<32x32xf32>
    %983 = arith.addf %949, %982 : vector<32x32xf32>
    %c136 = arith.constant 136 : index
    %984 = memref.load %arg2[%c136] : memref<288xf32, #tpu.memory_space<smem>>
    %985 = vector.broadcast %984 : f32 to vector<32x32xf32>
    %986 = arith.mulf %985, %971 : vector<32x32xf32>
    %987 = arith.addf %953, %986 : vector<32x32xf32>
    %c172 = arith.constant 172 : index
    %988 = memref.load %arg2[%c172] : memref<288xf32, #tpu.memory_space<smem>>
    %989 = vector.broadcast %988 : f32 to vector<32x32xf32>
    %990 = arith.mulf %989, %971 : vector<32x32xf32>
    %991 = arith.addf %957, %990 : vector<32x32xf32>
    %c208 = arith.constant 208 : index
    %992 = memref.load %arg2[%c208] : memref<288xf32, #tpu.memory_space<smem>>
    %993 = vector.broadcast %992 : f32 to vector<32x32xf32>
    %994 = arith.mulf %993, %971 : vector<32x32xf32>
    %995 = arith.addf %961, %994 : vector<32x32xf32>
    %c244 = arith.constant 244 : index
    %996 = memref.load %arg2[%c244] : memref<288xf32, #tpu.memory_space<smem>>
    %997 = vector.broadcast %996 : f32 to vector<32x32xf32>
    %998 = arith.mulf %997, %971 : vector<32x32xf32>
    %999 = arith.addf %965, %998 : vector<32x32xf32>
    %c280 = arith.constant 280 : index
    %1000 = memref.load %arg2[%c280] : memref<288xf32, #tpu.memory_space<smem>>
    %1001 = vector.broadcast %1000 : f32 to vector<32x32xf32>
    %1002 = arith.mulf %1001, %971 : vector<32x32xf32>
    %1003 = arith.addf %969, %1002 : vector<32x32xf32>
    %c3_107 = arith.constant 3 : index
    %c0_108 = arith.constant 0 : index
    %c2_109 = arith.constant 2 : index
    %1004 = vector.load %arg4[%c3_107, %c0_108, %c2_109] : memref<4x34x34xf32, #tpu.memory_space<vmem>>, vector<1x32x32xf32>
    %1005 = vector.shape_cast %1004 : vector<1x32x32xf32> to vector<32x32xf32>
    %c29 = arith.constant 29 : index
    %1006 = memref.load %arg2[%c29] : memref<288xf32, #tpu.memory_space<smem>>
    %1007 = vector.broadcast %1006 : f32 to vector<32x32xf32>
    %1008 = arith.mulf %1007, %1005 : vector<32x32xf32>
    %1009 = arith.addf %975, %1008 : vector<32x32xf32>
    %c65 = arith.constant 65 : index
    %1010 = memref.load %arg2[%c65] : memref<288xf32, #tpu.memory_space<smem>>
    %1011 = vector.broadcast %1010 : f32 to vector<32x32xf32>
    %1012 = arith.mulf %1011, %1005 : vector<32x32xf32>
    %1013 = arith.addf %979, %1012 : vector<32x32xf32>
    %c101 = arith.constant 101 : index
    %1014 = memref.load %arg2[%c101] : memref<288xf32, #tpu.memory_space<smem>>
    %1015 = vector.broadcast %1014 : f32 to vector<32x32xf32>
    %1016 = arith.mulf %1015, %1005 : vector<32x32xf32>
    %1017 = arith.addf %983, %1016 : vector<32x32xf32>
    %c137 = arith.constant 137 : index
    %1018 = memref.load %arg2[%c137] : memref<288xf32, #tpu.memory_space<smem>>
    %1019 = vector.broadcast %1018 : f32 to vector<32x32xf32>
    %1020 = arith.mulf %1019, %1005 : vector<32x32xf32>
    %1021 = arith.addf %987, %1020 : vector<32x32xf32>
    %c173 = arith.constant 173 : index
    %1022 = memref.load %arg2[%c173] : memref<288xf32, #tpu.memory_space<smem>>
    %1023 = vector.broadcast %1022 : f32 to vector<32x32xf32>
    %1024 = arith.mulf %1023, %1005 : vector<32x32xf32>
    %1025 = arith.addf %991, %1024 : vector<32x32xf32>
    %c209 = arith.constant 209 : index
    %1026 = memref.load %arg2[%c209] : memref<288xf32, #tpu.memory_space<smem>>
    %1027 = vector.broadcast %1026 : f32 to vector<32x32xf32>
    %1028 = arith.mulf %1027, %1005 : vector<32x32xf32>
    %1029 = arith.addf %995, %1028 : vector<32x32xf32>
    %c245 = arith.constant 245 : index
    %1030 = memref.load %arg2[%c245] : memref<288xf32, #tpu.memory_space<smem>>
    %1031 = vector.broadcast %1030 : f32 to vector<32x32xf32>
    %1032 = arith.mulf %1031, %1005 : vector<32x32xf32>
    %1033 = arith.addf %999, %1032 : vector<32x32xf32>
    %c281 = arith.constant 281 : index
    %1034 = memref.load %arg2[%c281] : memref<288xf32, #tpu.memory_space<smem>>
    %1035 = vector.broadcast %1034 : f32 to vector<32x32xf32>
    %1036 = arith.mulf %1035, %1005 : vector<32x32xf32>
    %1037 = arith.addf %1003, %1036 : vector<32x32xf32>
    %c3_110 = arith.constant 3 : index
    %c1_111 = arith.constant 1 : index
    %c0_112 = arith.constant 0 : index
    %1038 = vector.load %arg4[%c3_110, %c1_111, %c0_112] : memref<4x34x34xf32, #tpu.memory_space<vmem>>, vector<1x32x32xf32>
    %1039 = vector.shape_cast %1038 : vector<1x32x32xf32> to vector<32x32xf32>
    %c30 = arith.constant 30 : index
    %1040 = memref.load %arg2[%c30] : memref<288xf32, #tpu.memory_space<smem>>
    %1041 = vector.broadcast %1040 : f32 to vector<32x32xf32>
    %1042 = arith.mulf %1041, %1039 : vector<32x32xf32>
    %1043 = arith.addf %1009, %1042 : vector<32x32xf32>
    %c66 = arith.constant 66 : index
    %1044 = memref.load %arg2[%c66] : memref<288xf32, #tpu.memory_space<smem>>
    %1045 = vector.broadcast %1044 : f32 to vector<32x32xf32>
    %1046 = arith.mulf %1045, %1039 : vector<32x32xf32>
    %1047 = arith.addf %1013, %1046 : vector<32x32xf32>
    %c102 = arith.constant 102 : index
    %1048 = memref.load %arg2[%c102] : memref<288xf32, #tpu.memory_space<smem>>
    %1049 = vector.broadcast %1048 : f32 to vector<32x32xf32>
    %1050 = arith.mulf %1049, %1039 : vector<32x32xf32>
    %1051 = arith.addf %1017, %1050 : vector<32x32xf32>
    %c138 = arith.constant 138 : index
    %1052 = memref.load %arg2[%c138] : memref<288xf32, #tpu.memory_space<smem>>
    %1053 = vector.broadcast %1052 : f32 to vector<32x32xf32>
    %1054 = arith.mulf %1053, %1039 : vector<32x32xf32>
    %1055 = arith.addf %1021, %1054 : vector<32x32xf32>
    %c174 = arith.constant 174 : index
    %1056 = memref.load %arg2[%c174] : memref<288xf32, #tpu.memory_space<smem>>
    %1057 = vector.broadcast %1056 : f32 to vector<32x32xf32>
    %1058 = arith.mulf %1057, %1039 : vector<32x32xf32>
    %1059 = arith.addf %1025, %1058 : vector<32x32xf32>
    %c210 = arith.constant 210 : index
    %1060 = memref.load %arg2[%c210] : memref<288xf32, #tpu.memory_space<smem>>
    %1061 = vector.broadcast %1060 : f32 to vector<32x32xf32>
    %1062 = arith.mulf %1061, %1039 : vector<32x32xf32>
    %1063 = arith.addf %1029, %1062 : vector<32x32xf32>
    %c246 = arith.constant 246 : index
    %1064 = memref.load %arg2[%c246] : memref<288xf32, #tpu.memory_space<smem>>
    %1065 = vector.broadcast %1064 : f32 to vector<32x32xf32>
    %1066 = arith.mulf %1065, %1039 : vector<32x32xf32>
    %1067 = arith.addf %1033, %1066 : vector<32x32xf32>
    %c282 = arith.constant 282 : index
    %1068 = memref.load %arg2[%c282] : memref<288xf32, #tpu.memory_space<smem>>
    %1069 = vector.broadcast %1068 : f32 to vector<32x32xf32>
    %1070 = arith.mulf %1069, %1039 : vector<32x32xf32>
    %1071 = arith.addf %1037, %1070 : vector<32x32xf32>
    %c3_113 = arith.constant 3 : index
    %c1_114 = arith.constant 1 : index
    %c1_115 = arith.constant 1 : index
    %1072 = vector.load %arg4[%c3_113, %c1_114, %c1_115] : memref<4x34x34xf32, #tpu.memory_space<vmem>>, vector<1x32x32xf32>
    %1073 = vector.shape_cast %1072 : vector<1x32x32xf32> to vector<32x32xf32>
    %c31 = arith.constant 31 : index
    %1074 = memref.load %arg2[%c31] : memref<288xf32, #tpu.memory_space<smem>>
    %1075 = vector.broadcast %1074 : f32 to vector<32x32xf32>
    %1076 = arith.mulf %1075, %1073 : vector<32x32xf32>
    %1077 = arith.addf %1043, %1076 : vector<32x32xf32>
    %c67 = arith.constant 67 : index
    %1078 = memref.load %arg2[%c67] : memref<288xf32, #tpu.memory_space<smem>>
    %1079 = vector.broadcast %1078 : f32 to vector<32x32xf32>
    %1080 = arith.mulf %1079, %1073 : vector<32x32xf32>
    %1081 = arith.addf %1047, %1080 : vector<32x32xf32>
    %c103 = arith.constant 103 : index
    %1082 = memref.load %arg2[%c103] : memref<288xf32, #tpu.memory_space<smem>>
    %1083 = vector.broadcast %1082 : f32 to vector<32x32xf32>
    %1084 = arith.mulf %1083, %1073 : vector<32x32xf32>
    %1085 = arith.addf %1051, %1084 : vector<32x32xf32>
    %c139 = arith.constant 139 : index
    %1086 = memref.load %arg2[%c139] : memref<288xf32, #tpu.memory_space<smem>>
    %1087 = vector.broadcast %1086 : f32 to vector<32x32xf32>
    %1088 = arith.mulf %1087, %1073 : vector<32x32xf32>
    %1089 = arith.addf %1055, %1088 : vector<32x32xf32>
    %c175 = arith.constant 175 : index
    %1090 = memref.load %arg2[%c175] : memref<288xf32, #tpu.memory_space<smem>>
    %1091 = vector.broadcast %1090 : f32 to vector<32x32xf32>
    %1092 = arith.mulf %1091, %1073 : vector<32x32xf32>
    %1093 = arith.addf %1059, %1092 : vector<32x32xf32>
    %c211 = arith.constant 211 : index
    %1094 = memref.load %arg2[%c211] : memref<288xf32, #tpu.memory_space<smem>>
    %1095 = vector.broadcast %1094 : f32 to vector<32x32xf32>
    %1096 = arith.mulf %1095, %1073 : vector<32x32xf32>
    %1097 = arith.addf %1063, %1096 : vector<32x32xf32>
    %c247 = arith.constant 247 : index
    %1098 = memref.load %arg2[%c247] : memref<288xf32, #tpu.memory_space<smem>>
    %1099 = vector.broadcast %1098 : f32 to vector<32x32xf32>
    %1100 = arith.mulf %1099, %1073 : vector<32x32xf32>
    %1101 = arith.addf %1067, %1100 : vector<32x32xf32>
    %c283 = arith.constant 283 : index
    %1102 = memref.load %arg2[%c283] : memref<288xf32, #tpu.memory_space<smem>>
    %1103 = vector.broadcast %1102 : f32 to vector<32x32xf32>
    %1104 = arith.mulf %1103, %1073 : vector<32x32xf32>
    %1105 = arith.addf %1071, %1104 : vector<32x32xf32>
    %c3_116 = arith.constant 3 : index
    %c1_117 = arith.constant 1 : index
    %c2_118 = arith.constant 2 : index
    %1106 = vector.load %arg4[%c3_116, %c1_117, %c2_118] : memref<4x34x34xf32, #tpu.memory_space<vmem>>, vector<1x32x32xf32>
    %1107 = vector.shape_cast %1106 : vector<1x32x32xf32> to vector<32x32xf32>
    %c32 = arith.constant 32 : index
    %1108 = memref.load %arg2[%c32] : memref<288xf32, #tpu.memory_space<smem>>
    %1109 = vector.broadcast %1108 : f32 to vector<32x32xf32>
    %1110 = arith.mulf %1109, %1107 : vector<32x32xf32>
    %1111 = arith.addf %1077, %1110 : vector<32x32xf32>
    %c68 = arith.constant 68 : index
    %1112 = memref.load %arg2[%c68] : memref<288xf32, #tpu.memory_space<smem>>
    %1113 = vector.broadcast %1112 : f32 to vector<32x32xf32>
    %1114 = arith.mulf %1113, %1107 : vector<32x32xf32>
    %1115 = arith.addf %1081, %1114 : vector<32x32xf32>
    %c104 = arith.constant 104 : index
    %1116 = memref.load %arg2[%c104] : memref<288xf32, #tpu.memory_space<smem>>
    %1117 = vector.broadcast %1116 : f32 to vector<32x32xf32>
    %1118 = arith.mulf %1117, %1107 : vector<32x32xf32>
    %1119 = arith.addf %1085, %1118 : vector<32x32xf32>
    %c140 = arith.constant 140 : index
    %1120 = memref.load %arg2[%c140] : memref<288xf32, #tpu.memory_space<smem>>
    %1121 = vector.broadcast %1120 : f32 to vector<32x32xf32>
    %1122 = arith.mulf %1121, %1107 : vector<32x32xf32>
    %1123 = arith.addf %1089, %1122 : vector<32x32xf32>
    %c176 = arith.constant 176 : index
    %1124 = memref.load %arg2[%c176] : memref<288xf32, #tpu.memory_space<smem>>
    %1125 = vector.broadcast %1124 : f32 to vector<32x32xf32>
    %1126 = arith.mulf %1125, %1107 : vector<32x32xf32>
    %1127 = arith.addf %1093, %1126 : vector<32x32xf32>
    %c212 = arith.constant 212 : index
    %1128 = memref.load %arg2[%c212] : memref<288xf32, #tpu.memory_space<smem>>
    %1129 = vector.broadcast %1128 : f32 to vector<32x32xf32>
    %1130 = arith.mulf %1129, %1107 : vector<32x32xf32>
    %1131 = arith.addf %1097, %1130 : vector<32x32xf32>
    %c248 = arith.constant 248 : index
    %1132 = memref.load %arg2[%c248] : memref<288xf32, #tpu.memory_space<smem>>
    %1133 = vector.broadcast %1132 : f32 to vector<32x32xf32>
    %1134 = arith.mulf %1133, %1107 : vector<32x32xf32>
    %1135 = arith.addf %1101, %1134 : vector<32x32xf32>
    %c284 = arith.constant 284 : index
    %1136 = memref.load %arg2[%c284] : memref<288xf32, #tpu.memory_space<smem>>
    %1137 = vector.broadcast %1136 : f32 to vector<32x32xf32>
    %1138 = arith.mulf %1137, %1107 : vector<32x32xf32>
    %1139 = arith.addf %1105, %1138 : vector<32x32xf32>
    %c3_119 = arith.constant 3 : index
    %c2_120 = arith.constant 2 : index
    %c0_121 = arith.constant 0 : index
    %1140 = vector.load %arg4[%c3_119, %c2_120, %c0_121] : memref<4x34x34xf32, #tpu.memory_space<vmem>>, vector<1x32x32xf32>
    %1141 = vector.shape_cast %1140 : vector<1x32x32xf32> to vector<32x32xf32>
    %c33 = arith.constant 33 : index
    %1142 = memref.load %arg2[%c33] : memref<288xf32, #tpu.memory_space<smem>>
    %1143 = vector.broadcast %1142 : f32 to vector<32x32xf32>
    %1144 = arith.mulf %1143, %1141 : vector<32x32xf32>
    %1145 = arith.addf %1111, %1144 : vector<32x32xf32>
    %c69 = arith.constant 69 : index
    %1146 = memref.load %arg2[%c69] : memref<288xf32, #tpu.memory_space<smem>>
    %1147 = vector.broadcast %1146 : f32 to vector<32x32xf32>
    %1148 = arith.mulf %1147, %1141 : vector<32x32xf32>
    %1149 = arith.addf %1115, %1148 : vector<32x32xf32>
    %c105 = arith.constant 105 : index
    %1150 = memref.load %arg2[%c105] : memref<288xf32, #tpu.memory_space<smem>>
    %1151 = vector.broadcast %1150 : f32 to vector<32x32xf32>
    %1152 = arith.mulf %1151, %1141 : vector<32x32xf32>
    %1153 = arith.addf %1119, %1152 : vector<32x32xf32>
    %c141 = arith.constant 141 : index
    %1154 = memref.load %arg2[%c141] : memref<288xf32, #tpu.memory_space<smem>>
    %1155 = vector.broadcast %1154 : f32 to vector<32x32xf32>
    %1156 = arith.mulf %1155, %1141 : vector<32x32xf32>
    %1157 = arith.addf %1123, %1156 : vector<32x32xf32>
    %c177 = arith.constant 177 : index
    %1158 = memref.load %arg2[%c177] : memref<288xf32, #tpu.memory_space<smem>>
    %1159 = vector.broadcast %1158 : f32 to vector<32x32xf32>
    %1160 = arith.mulf %1159, %1141 : vector<32x32xf32>
    %1161 = arith.addf %1127, %1160 : vector<32x32xf32>
    %c213 = arith.constant 213 : index
    %1162 = memref.load %arg2[%c213] : memref<288xf32, #tpu.memory_space<smem>>
    %1163 = vector.broadcast %1162 : f32 to vector<32x32xf32>
    %1164 = arith.mulf %1163, %1141 : vector<32x32xf32>
    %1165 = arith.addf %1131, %1164 : vector<32x32xf32>
    %c249 = arith.constant 249 : index
    %1166 = memref.load %arg2[%c249] : memref<288xf32, #tpu.memory_space<smem>>
    %1167 = vector.broadcast %1166 : f32 to vector<32x32xf32>
    %1168 = arith.mulf %1167, %1141 : vector<32x32xf32>
    %1169 = arith.addf %1135, %1168 : vector<32x32xf32>
    %c285 = arith.constant 285 : index
    %1170 = memref.load %arg2[%c285] : memref<288xf32, #tpu.memory_space<smem>>
    %1171 = vector.broadcast %1170 : f32 to vector<32x32xf32>
    %1172 = arith.mulf %1171, %1141 : vector<32x32xf32>
    %1173 = arith.addf %1139, %1172 : vector<32x32xf32>
    %c3_122 = arith.constant 3 : index
    %c2_123 = arith.constant 2 : index
    %c1_124 = arith.constant 1 : index
    %1174 = vector.load %arg4[%c3_122, %c2_123, %c1_124] : memref<4x34x34xf32, #tpu.memory_space<vmem>>, vector<1x32x32xf32>
    %1175 = vector.shape_cast %1174 : vector<1x32x32xf32> to vector<32x32xf32>
    %c34 = arith.constant 34 : index
    %1176 = memref.load %arg2[%c34] : memref<288xf32, #tpu.memory_space<smem>>
    %1177 = vector.broadcast %1176 : f32 to vector<32x32xf32>
    %1178 = arith.mulf %1177, %1175 : vector<32x32xf32>
    %1179 = arith.addf %1145, %1178 : vector<32x32xf32>
    %c70 = arith.constant 70 : index
    %1180 = memref.load %arg2[%c70] : memref<288xf32, #tpu.memory_space<smem>>
    %1181 = vector.broadcast %1180 : f32 to vector<32x32xf32>
    %1182 = arith.mulf %1181, %1175 : vector<32x32xf32>
    %1183 = arith.addf %1149, %1182 : vector<32x32xf32>
    %c106 = arith.constant 106 : index
    %1184 = memref.load %arg2[%c106] : memref<288xf32, #tpu.memory_space<smem>>
    %1185 = vector.broadcast %1184 : f32 to vector<32x32xf32>
    %1186 = arith.mulf %1185, %1175 : vector<32x32xf32>
    %1187 = arith.addf %1153, %1186 : vector<32x32xf32>
    %c142 = arith.constant 142 : index
    %1188 = memref.load %arg2[%c142] : memref<288xf32, #tpu.memory_space<smem>>
    %1189 = vector.broadcast %1188 : f32 to vector<32x32xf32>
    %1190 = arith.mulf %1189, %1175 : vector<32x32xf32>
    %1191 = arith.addf %1157, %1190 : vector<32x32xf32>
    %c178 = arith.constant 178 : index
    %1192 = memref.load %arg2[%c178] : memref<288xf32, #tpu.memory_space<smem>>
    %1193 = vector.broadcast %1192 : f32 to vector<32x32xf32>
    %1194 = arith.mulf %1193, %1175 : vector<32x32xf32>
    %1195 = arith.addf %1161, %1194 : vector<32x32xf32>
    %c214 = arith.constant 214 : index
    %1196 = memref.load %arg2[%c214] : memref<288xf32, #tpu.memory_space<smem>>
    %1197 = vector.broadcast %1196 : f32 to vector<32x32xf32>
    %1198 = arith.mulf %1197, %1175 : vector<32x32xf32>
    %1199 = arith.addf %1165, %1198 : vector<32x32xf32>
    %c250 = arith.constant 250 : index
    %1200 = memref.load %arg2[%c250] : memref<288xf32, #tpu.memory_space<smem>>
    %1201 = vector.broadcast %1200 : f32 to vector<32x32xf32>
    %1202 = arith.mulf %1201, %1175 : vector<32x32xf32>
    %1203 = arith.addf %1169, %1202 : vector<32x32xf32>
    %c286 = arith.constant 286 : index
    %1204 = memref.load %arg2[%c286] : memref<288xf32, #tpu.memory_space<smem>>
    %1205 = vector.broadcast %1204 : f32 to vector<32x32xf32>
    %1206 = arith.mulf %1205, %1175 : vector<32x32xf32>
    %1207 = arith.addf %1173, %1206 : vector<32x32xf32>
    %c3_125 = arith.constant 3 : index
    %c2_126 = arith.constant 2 : index
    %c2_127 = arith.constant 2 : index
    %1208 = vector.load %arg4[%c3_125, %c2_126, %c2_127] : memref<4x34x34xf32, #tpu.memory_space<vmem>>, vector<1x32x32xf32>
    %1209 = vector.shape_cast %1208 : vector<1x32x32xf32> to vector<32x32xf32>
    %c35 = arith.constant 35 : index
    %1210 = memref.load %arg2[%c35] : memref<288xf32, #tpu.memory_space<smem>>
    %1211 = vector.broadcast %1210 : f32 to vector<32x32xf32>
    %1212 = arith.mulf %1211, %1209 : vector<32x32xf32>
    %1213 = arith.addf %1179, %1212 : vector<32x32xf32>
    %c71 = arith.constant 71 : index
    %1214 = memref.load %arg2[%c71] : memref<288xf32, #tpu.memory_space<smem>>
    %1215 = vector.broadcast %1214 : f32 to vector<32x32xf32>
    %1216 = arith.mulf %1215, %1209 : vector<32x32xf32>
    %1217 = arith.addf %1183, %1216 : vector<32x32xf32>
    %c107 = arith.constant 107 : index
    %1218 = memref.load %arg2[%c107] : memref<288xf32, #tpu.memory_space<smem>>
    %1219 = vector.broadcast %1218 : f32 to vector<32x32xf32>
    %1220 = arith.mulf %1219, %1209 : vector<32x32xf32>
    %1221 = arith.addf %1187, %1220 : vector<32x32xf32>
    %c143 = arith.constant 143 : index
    %1222 = memref.load %arg2[%c143] : memref<288xf32, #tpu.memory_space<smem>>
    %1223 = vector.broadcast %1222 : f32 to vector<32x32xf32>
    %1224 = arith.mulf %1223, %1209 : vector<32x32xf32>
    %1225 = arith.addf %1191, %1224 : vector<32x32xf32>
    %c179 = arith.constant 179 : index
    %1226 = memref.load %arg2[%c179] : memref<288xf32, #tpu.memory_space<smem>>
    %1227 = vector.broadcast %1226 : f32 to vector<32x32xf32>
    %1228 = arith.mulf %1227, %1209 : vector<32x32xf32>
    %1229 = arith.addf %1195, %1228 : vector<32x32xf32>
    %c215 = arith.constant 215 : index
    %1230 = memref.load %arg2[%c215] : memref<288xf32, #tpu.memory_space<smem>>
    %1231 = vector.broadcast %1230 : f32 to vector<32x32xf32>
    %1232 = arith.mulf %1231, %1209 : vector<32x32xf32>
    %1233 = arith.addf %1199, %1232 : vector<32x32xf32>
    %c251 = arith.constant 251 : index
    %1234 = memref.load %arg2[%c251] : memref<288xf32, #tpu.memory_space<smem>>
    %1235 = vector.broadcast %1234 : f32 to vector<32x32xf32>
    %1236 = arith.mulf %1235, %1209 : vector<32x32xf32>
    %1237 = arith.addf %1203, %1236 : vector<32x32xf32>
    %c287 = arith.constant 287 : index
    %1238 = memref.load %arg2[%c287] : memref<288xf32, #tpu.memory_space<smem>>
    %1239 = vector.broadcast %1238 : f32 to vector<32x32xf32>
    %1240 = arith.mulf %1239, %1209 : vector<32x32xf32>
    %1241 = arith.addf %1207, %1240 : vector<32x32xf32>
    %c0_128 = arith.constant 0 : index
    %c0_129 = arith.constant 0 : index
    %c0_130 = arith.constant 0 : index
    %c0_131 = arith.constant 0 : index
    %1242 = vector.load %arg3[%c0_128, %c0_129, %c0_130, %c0_131] : memref<1x8x32x32xf32, #tpu.memory_space<vmem>>, vector<1x1x32x32xf32>
    %1243 = vector.shape_cast %1242 : vector<1x1x32x32xf32> to vector<32x32xf32>
    %1244 = vector.shape_cast %1213 : vector<32x32xf32> to vector<1x1x32x32xf32>
    tpu.vector_store %arg3[%c0_128, %c0_129, %c0_130, %c0_131], %1244 {strides = array<i32>} : memref<1x8x32x32xf32, #tpu.memory_space<vmem>>, vector<1x1x32x32xf32>,
    %c0_132 = arith.constant 0 : index
    %c1_133 = arith.constant 1 : index
    %c0_134 = arith.constant 0 : index
    %c0_135 = arith.constant 0 : index
    %1245 = vector.load %arg3[%c0_132, %c1_133, %c0_134, %c0_135] : memref<1x8x32x32xf32, #tpu.memory_space<vmem>>, vector<1x1x32x32xf32>
    %1246 = vector.shape_cast %1245 : vector<1x1x32x32xf32> to vector<32x32xf32>
    %1247 = vector.shape_cast %1217 : vector<32x32xf32> to vector<1x1x32x32xf32>
    tpu.vector_store %arg3[%c0_132, %c1_133, %c0_134, %c0_135], %1247 {strides = array<i32>} : memref<1x8x32x32xf32, #tpu.memory_space<vmem>>, vector<1x1x32x32xf32>,
    %c0_136 = arith.constant 0 : index
    %c2_137 = arith.constant 2 : index
    %c0_138 = arith.constant 0 : index
    %c0_139 = arith.constant 0 : index
    %1248 = vector.load %arg3[%c0_136, %c2_137, %c0_138, %c0_139] : memref<1x8x32x32xf32, #tpu.memory_space<vmem>>, vector<1x1x32x32xf32>
    %1249 = vector.shape_cast %1248 : vector<1x1x32x32xf32> to vector<32x32xf32>
    %1250 = vector.shape_cast %1221 : vector<32x32xf32> to vector<1x1x32x32xf32>
    tpu.vector_store %arg3[%c0_136, %c2_137, %c0_138, %c0_139], %1250 {strides = array<i32>} : memref<1x8x32x32xf32, #tpu.memory_space<vmem>>, vector<1x1x32x32xf32>,
    %c0_140 = arith.constant 0 : index
    %c3_141 = arith.constant 3 : index
    %c0_142 = arith.constant 0 : index
    %c0_143 = arith.constant 0 : index
    %1251 = vector.load %arg3[%c0_140, %c3_141, %c0_142, %c0_143] : memref<1x8x32x32xf32, #tpu.memory_space<vmem>>, vector<1x1x32x32xf32>
    %1252 = vector.shape_cast %1251 : vector<1x1x32x32xf32> to vector<32x32xf32>
    %1253 = vector.shape_cast %1225 : vector<32x32xf32> to vector<1x1x32x32xf32>
    tpu.vector_store %arg3[%c0_140, %c3_141, %c0_142, %c0_143], %1253 {strides = array<i32>} : memref<1x8x32x32xf32, #tpu.memory_space<vmem>>, vector<1x1x32x32xf32>,
    %c0_144 = arith.constant 0 : index
    %c4_145 = arith.constant 4 : index
    %c0_146 = arith.constant 0 : index
    %c0_147 = arith.constant 0 : index
    %1254 = vector.load %arg3[%c0_144, %c4_145, %c0_146, %c0_147] : memref<1x8x32x32xf32, #tpu.memory_space<vmem>>, vector<1x1x32x32xf32>
    %1255 = vector.shape_cast %1254 : vector<1x1x32x32xf32> to vector<32x32xf32>
    %1256 = vector.shape_cast %1229 : vector<32x32xf32> to vector<1x1x32x32xf32>
    tpu.vector_store %arg3[%c0_144, %c4_145, %c0_146, %c0_147], %1256 {strides = array<i32>} : memref<1x8x32x32xf32, #tpu.memory_space<vmem>>, vector<1x1x32x32xf32>,
    %c0_148 = arith.constant 0 : index
    %c5_149 = arith.constant 5 : index
    %c0_150 = arith.constant 0 : index
    %c0_151 = arith.constant 0 : index
    %1257 = vector.load %arg3[%c0_148, %c5_149, %c0_150, %c0_151] : memref<1x8x32x32xf32, #tpu.memory_space<vmem>>, vector<1x1x32x32xf32>
    %1258 = vector.shape_cast %1257 : vector<1x1x32x32xf32> to vector<32x32xf32>
    %1259 = vector.shape_cast %1233 : vector<32x32xf32> to vector<1x1x32x32xf32>
    tpu.vector_store %arg3[%c0_148, %c5_149, %c0_150, %c0_151], %1259 {strides = array<i32>} : memref<1x8x32x32xf32, #tpu.memory_space<vmem>>, vector<1x1x32x32xf32>,
    %c0_152 = arith.constant 0 : index
    %c6_153 = arith.constant 6 : index
    %c0_154 = arith.constant 0 : index
    %c0_155 = arith.constant 0 : index
    %1260 = vector.load %arg3[%c0_152, %c6_153, %c0_154, %c0_155] : memref<1x8x32x32xf32, #tpu.memory_space<vmem>>, vector<1x1x32x32xf32>
    %1261 = vector.shape_cast %1260 : vector<1x1x32x32xf32> to vector<32x32xf32>
    %1262 = vector.shape_cast %1237 : vector<32x32xf32> to vector<1x1x32x32xf32>
    tpu.vector_store %arg3[%c0_152, %c6_153, %c0_154, %c0_155], %1262 {strides = array<i32>} : memref<1x8x32x32xf32, #tpu.memory_space<vmem>>, vector<1x1x32x32xf32>,
    %c0_156 = arith.constant 0 : index
    %c7_157 = arith.constant 7 : index
    %c0_158 = arith.constant 0 : index
    %c0_159 = arith.constant 0 : index
    %1263 = vector.load %arg3[%c0_156, %c7_157, %c0_158, %c0_159] : memref<1x8x32x32xf32, #tpu.memory_space<vmem>>, vector<1x1x32x32xf32>
    %1264 = vector.shape_cast %1263 : vector<1x1x32x32xf32> to vector<32x32xf32>
    %1265 = vector.shape_cast %1241 : vector<32x32xf32> to vector<1x1x32x32xf32>
    tpu.vector_store %arg3[%c0_156, %c7_157, %c0_158, %c0_159], %1265 {strides = array<i32>} : memref<1x8x32x32xf32, #tpu.memory_space<vmem>>, vector<1x1x32x32xf32>,
    return
  }
  func.func @transform_0(%arg0: i32) -> (i32, i32, i32, i32) {
    %c0_i32 = arith.constant 0 : i32
    %c0_i32_0 = arith.constant 0 : i32
    %c0_i32_1 = arith.constant 0 : i32
    %c0_i32_2 = arith.constant 0 : i32
    return %arg0, %c0_i32, %c0_i32_0, %c0_i32_1 : i32, i32, i32, i32
  }
  func.func @transform_1(%arg0: i32) -> i32 {
    %c0_i32 = arith.constant 0 : i32
    %c0_i32_0 = arith.constant 0 : i32
    return %c0_i32 : i32
  }
  func.func @transform_2(%arg0: i32) -> (i32, i32, i32, i32) {
    %c0_i32 = arith.constant 0 : i32
    %c0_i32_0 = arith.constant 0 : i32
    %c0_i32_1 = arith.constant 0 : i32
    %c0_i32_2 = arith.constant 0 : i32
    return %arg0, %c0_i32, %c0_i32_0, %c0_i32_1 : i32, i32, i32, i32
  }
}

</mosaic_0001>

<llo_original>
// kernel: upblock_forward.1
$region0: #{upblock_forward.1}
  #allocation0 [shape = 'u32[]', space=smem, size = 0x4, offset = 0x4, fixed_abs, tag = 'smem constant byte address 0x4 - core index']
  #allocation1 [shape = 'u32[72,128]{1,0:T(1,128)}', space=vmem, size = 0x9000, scoped, tag = 'internal scratch']
  #allocation2 [shape = 'f32[4,34,34]{2,1,0:T(8,128)}', space=vmem, size = 0x14000, scoped, tag = 'scratch operand']
  %s0 = inlined_call_operand.vmem [shape: f32[2,4,32,32], index: 0, kind: input, shape index: {}]
  %s1 = inlined_call_operand.vmem [shape: f32[288], index: 1, kind: input, shape index: {}]
  %s2 = inlined_call_operand.hbm [shape: f32[2,8,32,32], index: 2, kind: output, shape index: {}]
  %s3 = sld [smem:[#allocation0]]
  $region45: #{upblock_forward.1} parent=0
    _
  %s5 = ssub.s32 1, %s3
  %s6 = scalar_select 0, %s5, %s3
  $region1: #{upblock_forward.1} parent=0
    #allocation3 [shape = 'u8[1536]{0}', space=smem, size = 0x600, scoped, tag = 'input window, operand 1, single buffered']
    #allocation4 [shape = 's32[2]{0}', space=sflag, size = 0x8, scoped, tag = 'scoped memory for upblock_forward.1']
    #allocation5 [shape = 's32[2]{0}', space=sflag, size = 0x8, scoped, tag = 'scoped memory for upblock_forward.1']
    #allocation6 [shape = 'u8[262144]{0}', space=vmem, size = 0x40000, scoped, tag = 'output window, operand 0']
    %7 = vsyncpa [#allocation5], 0
    %8 = vsyncpa [#allocation4], 0
    %s9 = scalar_lea.sflag [#allocation4], 1
    %10 = vsyncpa %s9, 0
    loop: start=0, step=1, limit=4
    $region2: #{upblock_forward.1} parent=1 // loop_pre_header
      _
    $region3: #{upblock_forward.1} parent=1 // loop_header
      %s12 = sphi 0, %s16
      %p13 = scmp.ge.s32.totalorder %s12, 4
      %s22 = sphi 0, %s24
      %s25 = sphi 0, %s22
      %s26 = sphi 0, %s25
      %s42 = sphi 0, %s26
      %s46 = sphi 0, %s46
      %s48 = sphi 0, %s46
      %s49 = sphi 0, %s48
      %s63 = sphi 0, %s49
      %s69 = sphi 0, %s71
      %s72 = sphi 0, %s69
      %s73 = sphi 0, %s72
      %s89 = sphi 0, %s73
    $region4: #{upblock_forward.1} parent=1 // loop_header_branch
      %15 = sbr.rel (%p13) target = $region8
    $region5: #{upblock_forward.1} parent=1 // loop_body
      %s17 = ssub.s32 %s12, 1
      %s18 = ssub.s32 %s12, 2
      %s19 = sadd.s32 %s12, 1
      %s20 = ssub.s32 %s12, %s19
      %p21 = scmp.eq.s32.totalorder %s20, 0
      %s23 = sadd.s32 %s22, 1
      %s24 = scalar_select %p21, %s22, %s23
      %p27 = pneg %p21
      %p28 = scmp.eq.s32.totalorder %s12, 1
      %p29 = por %p27, %p28
      %p30 = scmp.ne.s32.totalorder %s22, %s25
      %p31 = scmp.eq.s32.totalorder %s12, 0
      %p32 = por %p30, %p31
      %p33 = scmp.ne.s32.totalorder %s22, %s25
      %p34 = scmp.eq.s32.totalorder %s17, 1
      %p35 = por %p33, %p34
      %p36 = scmp.ne.s32.totalorder %s25, %s26
      %p37 = scmp.eq.s32.totalorder %s17, 0
      %p38 = por %p36, %p37
      %p39 = scmp.ne.s32.totalorder %s25, %s26
      %p40 = scmp.eq.s32.totalorder %s18, 1
      %p41 = por %p39, %p40
      %p43 = scmp.ne.s32.totalorder %s26, %s42
      %p44 = scmp.eq.s32.totalorder %s18, 0
      %p45 = por %p43, %p44
      %s47 = sadd.s32 %s46, 1
      %p50 = scmp.eq.s32.totalorder %s12, 1
      %p51 = scmp.ne.s32.totalorder %s46, %s48
      %p52 = scmp.eq.s32.totalorder %s12, 0
      %p53 = por %p51, %p52
      %p54 = scmp.ne.s32.totalorder %s46, %s48
      %p55 = scmp.eq.s32.totalorder %s17, 1
      %p56 = por %p54, %p55
      %p57 = scmp.ne.s32.totalorder %s48, %s49
      %p58 = scmp.eq.s32.totalorder %s17, 0
      %p59 = por %p57, %p58
      %p60 = scmp.ne.s32.totalorder %s48, %s49
      %p61 = scmp.eq.s32.totalorder %s18, 1
      %p62 = por %p60, %p61
      %p64 = scmp.ne.s32.totalorder %s49, %s63
      %p65 = scmp.eq.s32.totalorder %s18, 0
      %p66 = por %p64, %p65
      %s67 = ssub.s32 %s12, %s19
      %p68 = scmp.eq.s32.totalorder %s67, 0
      %s70 = sadd.s32 %s69, 1
      %s71 = scalar_select %p68, %s69, %s70
      %p74 = pneg %p68
      %p75 = scmp.eq.s32.totalorder %s12, 1
      %p76 = por %p74, %p75
      %p77 = scmp.ne.s32.totalorder %s69, %s72
      %p78 = scmp.eq.s32.totalorder %s12, 0
      %p79 = por %p77, %p78
      %p80 = scmp.ne.s32.totalorder %s69, %s72
      %p81 = scmp.eq.s32.totalorder %s17, 1
      %p82 = por %p80, %p81
      %p83 = scmp.ne.s32.totalorder %s72, %s73
      %p84 = scmp.eq.s32.totalorder %s17, 0
      %p85 = por %p83, %p84
      %p86 = scmp.ne.s32.totalorder %s72, %s73
      %p87 = scmp.eq.s32.totalorder %s18, 1
      %p88 = por %p86, %p87
      %p90 = scmp.ne.s32.totalorder %s73, %s89
      %p91 = scmp.eq.s32.totalorder %s18, 0
      %p92 = por %p90, %p91
      %p93 = scmp.le.s32.totalorder 1, %s12
      %p94 = scmp.lt.s32.totalorder %s12, 3
      %p95 = pnand %p93, %p94
      %p96 = pneg %p95
      // Predicated region
      $region9: #{upblock_forward.1} parent=5 // pred_check
        _
      $region10: #{upblock_forward.1} parent=5 // pred_check_branch
        %98 = sbr.rel (%p95) target = $region12
      $region11: #{upblock_forward.1} parent=5 // pred_region
        %s99 = ssub.s32 %s12, 1
        // Predicated region
        $region13: #{upblock_forward.1} parent=11 // pred_check
          %p100 = pneg %p59
        $region14: #{upblock_forward.1} parent=11 // pred_check_branch
          %102 = sbr.rel (%p100) target = $region16
        $region15: #{upblock_forward.1} parent=11 // pred_region
          %104 = vsyncadd [#allocation5], 0
          %s106 = sshll.u32 %s1, 4
          %s107 = int_to_ptr.vmem [resolvable:$true] %s106
          %109 = dma.vmem_to_smem %s107, 48, [#allocation3], [#allocation5]
        $region16: #{upblock_forward.1} parent=11 // pred_fallthru
          _
      $region12: #{upblock_forward.1} parent=5 // pred_fallthru
        _
      %p110 = scmp.lt.s32.totalorder %s12, 2
      // Predicated region
      $region17: #{upblock_forward.1} parent=5 // pred_check
        %p111 = pneg %p110
      $region18: #{upblock_forward.1} parent=5 // pred_check_branch
        %113 = sbr.rel (%p111) target = $region20
      $region19: #{upblock_forward.1} parent=5 // pred_region
        // Predicated region
        $region21: #{upblock_forward.1} parent=19 // pred_check
          %p114 = pneg %p32
        $region22: #{upblock_forward.1} parent=19 // pred_check_branch
          %116 = sbr.rel (%p114) target = $region24
        $region23: #{upblock_forward.1} parent=19 // pred_region
          %p117 = scmp.lt.s32.totalorder %s12, 1
          %s118 = scalar_select %p117, %s12, 1
          %s119 = smul.addr %s118, 16
          %s120 = smul.addr %s119, 8
          %s121 = scalar_lea.vmem %s0, %s120
        $region24: #{upblock_forward.1} parent=19 // pred_fallthru
          _
      $region20: #{upblock_forward.1} parent=5 // pred_fallthru
        _
      %p122 = scmp.le.s32.totalorder 1, %s12
      %p123 = scmp.lt.s32.totalorder %s12, 3
      %p124 = pnand %p122, %p123
      %p125 = pneg %p124
      // Predicated region
      $region25: #{upblock_forward.1} parent=5 // pred_check
        _
      $region26: #{upblock_forward.1} parent=5 // pred_check_branch
        %127 = sbr.rel (%p124) target = $region28
      $region27: #{upblock_forward.1} parent=5 // pred_region
        %s128 = ssub.s32 %s12, 1
        // Predicated region
        $region29: #{upblock_forward.1} parent=27 // pred_check
          %p129 = pneg %p59
        $region30: #{upblock_forward.1} parent=27 // pred_check_branch
          %131 = sbr.rel (%p129) target = $region32
        $region31: #{upblock_forward.1} parent=27 // pred_region
          %133 = dma.done [#allocation5], 48
        $region32: #{upblock_forward.1} parent=27 // pred_fallthru
          _
        %134 = sfence
        %p135 = scmp.lt.s32.totalorder %s17, 1
        %s136 = scalar_select %p135, %s17, 1
        %s137 = smul.addr %s136, 16
        %s138 = smul.addr %s137, 8
        %s139 = scalar_lea.vmem %s0, %s138
        %p140 = pneg %p38
        %p141 = pneg %p35
        %p142 = pneg %p59
        %p143 = pneg %p56
        %p144 = pneg %p85
        %p145 = pneg %p82
        %s146 = sand.u32 %s72, 1
        %s147 = scalar_lea.sflag [#allocation4], %s146
        %s148 = sand.u32 %s72, 1
        %s149 = smul.addr %s148, 256
        %s150 = scalar_lea.vmem [#allocation6], %s149
        %p151 = scmp.lt.s32.totalorder %s17, 1
        %s152 = scalar_select %p151, %s17, 1
        %s153 = smul.addr %s152, 16
        %s154 = smul.addr %s153, 8
        %s155 = scalar_lea.vmem %s0, %s154
        %v156 = vld [vmem:[%s155] sm:$0xff]
        %v157 = vld [vmem:[%s155 + $0x8] sm:$0xff]
        %v158 = vld [vmem:[%s155 + $0x10] sm:$0xff]
        %v159 = vld [vmem:[%s155 + $0x18] sm:$0xff]
        %v160 = vld [vmem:[%s155 + $0x20] sm:$0xff]
        %v161 = vld [vmem:[%s155 + $0x28] sm:$0xff]
        %v162 = vld [vmem:[%s155 + $0x30] sm:$0xff]
        %v163 = vld [vmem:[%s155 + $0x38] sm:$0xff]
        %v164 = vld [vmem:[%s155 + $0x40] sm:$0xff]
        %v165 = vld [vmem:[%s155 + $0x48] sm:$0xff]
        %v166 = vld [vmem:[%s155 + $0x50] sm:$0xff]
        %v167 = vld [vmem:[%s155 + $0x58] sm:$0xff]
        %v168 = vld [vmem:[%s155 + $0x60] sm:$0xff]
        %v169 = vld [vmem:[%s155 + $0x68] sm:$0xff]
        %v170 = vld [vmem:[%s155 + $0x70] sm:$0xff]
        %v171 = vld [vmem:[%s155 + $0x78] sm:$0xff]
        %vm172 = vcmp.gt.f32.partialorder %v156, 0.0
        %vm173 = vcmp.gt.f32.partialorder %v157, 0.0
        %vm174 = vcmp.gt.f32.partialorder %v158, 0.0
        %vm175 = vcmp.gt.f32.partialorder %v159, 0.0
        %vm176 = vcmp.gt.f32.partialorder %v160, 0.0
        %vm177 = vcmp.gt.f32.partialorder %v161, 0.0
        %vm178 = vcmp.gt.f32.partialorder %v162, 0.0
        %vm179 = vcmp.gt.f32.partialorder %v163, 0.0
        %vm180 = vcmp.gt.f32.partialorder %v164, 0.0
        %vm181 = vcmp.gt.f32.partialorder %v165, 0.0
        %vm182 = vcmp.gt.f32.partialorder %v166, 0.0
        %vm183 = vcmp.gt.f32.partialorder %v167, 0.0
        %vm184 = vcmp.gt.f32.partialorder %v168, 0.0
        %vm185 = vcmp.gt.f32.partialorder %v169, 0.0
        %vm186 = vcmp.gt.f32.partialorder %v170, 0.0
        %vm187 = vcmp.gt.f32.partialorder %v171, 0.0
        %v188 = vmul.f32 %v156, 0.2
        %v189 = vmul.f32 %v157, 0.2
        %v190 = vmul.f32 %v158, 0.2
        %v191 = vmul.f32 %v159, 0.2
        %v192 = vmul.f32 %v160, 0.2
        %v193 = vmul.f32 %v161, 0.2
        %v194 = vmul.f32 %v162, 0.2
        %v195 = vmul.f32 %v163, 0.2
        %v196 = vmul.f32 %v164, 0.2
        %v197 = vmul.f32 %v165, 0.2
        %v198 = vmul.f32 %v166, 0.2
        %v199 = vmul.f32 %v167, 0.2
        %v200 = vmul.f32 %v168, 0.2
        %v201 = vmul.f32 %v169, 0.2
        %v202 = vmul.f32 %v170, 0.2
        %v203 = vmul.f32 %v171, 0.2
        %v204 = vsel %vm172, %v156, %v188
        %v205 = vsel %vm173, %v157, %v189
        %v206 = vsel %vm174, %v158, %v190
        %v207 = vsel %vm175, %v159, %v191
        %v208 = vsel %vm176, %v160, %v192
        %v209 = vsel %vm177, %v161, %v193
        %v210 = vsel %vm178, %v162, %v194
        %v211 = vsel %vm179, %v163, %v195
        %v212 = vsel %vm180, %v164, %v196
        %v213 = vsel %vm181, %v165, %v197
        %v214 = vsel %vm182, %v166, %v198
        %v215 = vsel %vm183, %v167, %v199
        %v216 = vsel %vm184, %v168, %v200
        %v217 = vsel %vm185, %v169, %v201
        %v218 = vsel %vm186, %v170, %v202
        %v219 = vsel %vm187, %v171, %v203
        %vm220 = vcmask 277504
        %221 = vst.msk [vmem:[#allocation2] sm:$0xff] %vm220, 0.0
        %222 = vst.msk [vmem:[#allocation2 + $0x8] sm:$0xff] %vm220, 0.0
        %223 = vst.msk [vmem:[#allocation2 + $0x10] sm:$0xff] %vm220, 0.0
        %224 = vst.msk [vmem:[#allocation2 + $0x18] sm:$0xff] %vm220, 0.0
        %vm225 = vcmask 271360
        %226 = vst.msk [vmem:[#allocation2 + $0x20] sm:$0x3] %vm225, 0.0
        %227 = vst.msk [vmem:[#allocation2 + $0x28] sm:$0xff] %vm220, 0.0
        %228 = vst.msk [vmem:[#allocation2 + $0x30] sm:$0xff] %vm220, 0.0
        %229 = vst.msk [vmem:[#allocation2 + $0x38] sm:$0xff] %vm220, 0.0
        %230 = vst.msk [vmem:[#allocation2 + $0x40] sm:$0xff] %vm220, 0.0
        %231 = vst.msk [vmem:[#allocation2 + $0x48] sm:$0x3] %vm225, 0.0
        %232 = vst.msk [vmem:[#allocation2 + $0x50] sm:$0xff] %vm220, 0.0
        %233 = vst.msk [vmem:[#allocation2 + $0x58] sm:$0xff] %vm220, 0.0
        %234 = vst.msk [vmem:[#allocation2 + $0x60] sm:$0xff] %vm220, 0.0
        %235 = vst.msk [vmem:[#allocation2 + $0x68] sm:$0xff] %vm220, 0.0
        %236 = vst.msk [vmem:[#allocation2 + $0x70] sm:$0x3] %vm225, 0.0
        %237 = vst.msk [vmem:[#allocation2 + $0x78] sm:$0xff] %vm220, 0.0
        %238 = vst.msk [vmem:[#allocation2 + $0x80] sm:$0xff] %vm220, 0.0
        %239 = vst.msk [vmem:[#allocation2 + $0x88] sm:$0xff] %vm220, 0.0
        %240 = vst.msk [vmem:[#allocation2 + $0x90] sm:$0xff] %vm220, 0.0
        %241 = vst.msk [vmem:[#allocation2 + $0x98] sm:$0x3] %vm225, 0.0
        %258 = vrot.lane.b32.xlu0 %v204, 1
        %v259 = vpop.permute.xlu0 %258
        %260 = vrot.lane.b32.xlu0 %v205, 1
        %v261 = vpop.permute.xlu0 %260
        %262 = vrot.lane.b32.xlu0 %v206, 1
        %v263 = vpop.permute.xlu0 %262
        %264 = vrot.lane.b32.xlu0 %v207, 1
        %v265 = vpop.permute.xlu0 %264
        %266 = vrot.lane.b32.xlu0 %v208, 1
        %v267 = vpop.permute.xlu0 %266
        %268 = vrot.lane.b32.xlu0 %v209, 1
        %v269 = vpop.permute.xlu0 %268
        %270 = vrot.lane.b32.xlu0 %v210, 1
        %v271 = vpop.permute.xlu0 %270
        %272 = vrot.lane.b32.xlu0 %v211, 1
        %v273 = vpop.permute.xlu0 %272
        %274 = vrot.lane.b32.xlu0 %v212, 1
        %v275 = vpop.permute.xlu0 %274
        %276 = vrot.lane.b32.xlu0 %v213, 1
        %v277 = vpop.permute.xlu0 %276
        %278 = vrot.lane.b32.xlu0 %v214, 1
        %v279 = vpop.permute.xlu0 %278
        %280 = vrot.lane.b32.xlu0 %v215, 1
        %v281 = vpop.permute.xlu0 %280
        %282 = vrot.lane.b32.xlu0 %v216, 1
        %v283 = vpop.permute.xlu0 %282
        %284 = vrot.lane.b32.xlu0 %v217, 1
        %v285 = vpop.permute.xlu0 %284
        %286 = vrot.lane.b32.xlu0 %v218, 1
        %v287 = vpop.permute.xlu0 %286
        %288 = vrot.lane.b32.xlu0 %v219, 1
        %v289 = vpop.permute.xlu0 %288
        %vm306 = vcmask 269320
        %307 = vst.msk [vmem:[#allocation2 + $0x1] sm:$0xff] %vm306, %v259
        %308 = vst.msk [vmem:[#allocation2 + $0x9] sm:$0xff] %vm306, %v261
        %309 = vst.msk [vmem:[#allocation2 + $0x11] sm:$0xff] %vm306, %v263
        %310 = vst.msk [vmem:[#allocation2 + $0x19] sm:$0xff] %vm306, %v265
        %311 = vst.msk [vmem:[#allocation2 + $0x29] sm:$0xff] %vm306, %v267
        %312 = vst.msk [vmem:[#allocation2 + $0x31] sm:$0xff] %vm306, %v269
        %313 = vst.msk [vmem:[#allocation2 + $0x39] sm:$0xff] %vm306, %v271
        %314 = vst.msk [vmem:[#allocation2 + $0x41] sm:$0xff] %vm306, %v273
        %315 = vst.msk [vmem:[#allocation2 + $0x51] sm:$0xff] %vm306, %v275
        %316 = vst.msk [vmem:[#allocation2 + $0x59] sm:$0xff] %vm306, %v277
        %317 = vst.msk [vmem:[#allocation2 + $0x61] sm:$0xff] %vm306, %v279
        %318 = vst.msk [vmem:[#allocation2 + $0x69] sm:$0xff] %vm306, %v281
        %319 = vst.msk [vmem:[#allocation2 + $0x79] sm:$0xff] %vm306, %v283
        %320 = vst.msk [vmem:[#allocation2 + $0x81] sm:$0xff] %vm306, %v285
        %321 = vst.msk [vmem:[#allocation2 + $0x89] sm:$0xff] %vm306, %v287
        %322 = vst.msk [vmem:[#allocation2 + $0x91] sm:$0xff] %vm306, %v289
        %v323 = vld [vmem:[#allocation2] sm:$0xff]
        %v324 = vld [vmem:[#allocation2 + $0x8] sm:$0xff]
        %v325 = vld [vmem:[#allocation2 + $0x10] sm:$0xff]
        %v326 = vld [vmem:[#allocation2 + $0x18] sm:$0xff]
        %s327 = sld [smem:[#allocation3]]
        %v328 = vstv %s327
        %v329 = vmul.f32 %v328, %v323
        %v330 = vmul.f32 %v328, %v324
        %v331 = vmul.f32 %v328, %v325
        %v332 = vmul.f32 %v328, %v326
        %v333 = vadd.f32 %v329, 0.0
        %v334 = vadd.f32 %v330, 0.0
        %v335 = vadd.f32 %v331, 0.0
        %v336 = vadd.f32 %v332, 0.0
        %s337 = sld [smem:[#allocation3 + $0x24]]
        %v338 = vstv %s337
        %v339 = vmul.f32 %v338, %v323
        %v340 = vmul.f32 %v338, %v324
        %v341 = vmul.f32 %v338, %v325
        %v342 = vmul.f32 %v338, %v326
        %v343 = vadd.f32 %v339, 0.0
        %v344 = vadd.f32 %v340, 0.0
        %v345 = vadd.f32 %v341, 0.0
        %v346 = vadd.f32 %v342, 0.0
        %s347 = sld [smem:[#allocation3 + $0x48]]
        %v348 = vstv %s347
        %v349 = vmul.f32 %v348, %v323
        %v350 = vmul.f32 %v348, %v324
        %v351 = vmul.f32 %v348, %v325
        %v352 = vmul.f32 %v348, %v326
        %v353 = vadd.f32 %v349, 0.0
        %v354 = vadd.f32 %v350, 0.0
        %v355 = vadd.f32 %v351, 0.0
        %v356 = vadd.f32 %v352, 0.0
        %s357 = sld [smem:[#allocation3 + $0x6c]]
        %v358 = vstv %s357
        %v359 = vmul.f32 %v358, %v323
        %v360 = vmul.f32 %v358, %v324
        %v361 = vmul.f32 %v358, %v325
        %v362 = vmul.f32 %v358, %v326
        %v363 = vadd.f32 %v359, 0.0
        %v364 = vadd.f32 %v360, 0.0
        %v365 = vadd.f32 %v361, 0.0
        %v366 = vadd.f32 %v362, 0.0
        %s367 = sld [smem:[#allocation3 + $0x90]]
        %v368 = vstv %s367
        %v369 = vmul.f32 %v368, %v323
        %v370 = vmul.f32 %v368, %v324
        %v371 = vmul.f32 %v368, %v325
        %v372 = vmul.f32 %v368, %v326
        %v373 = vadd.f32 %v369, 0.0
        %v374 = vadd.f32 %v370, 0.0
        %v375 = vadd.f32 %v371, 0.0
        %v376 = vadd.f32 %v372, 0.0
        %s377 = sld [smem:[#allocation3 + $0xb4]]
        %v378 = vstv %s377
        %v379 = vmul.f32 %v378, %v323
        %v380 = vmul.f32 %v378, %v324
        %v381 = vmul.f32 %v378, %v325
        %v382 = vmul.f32 %v378, %v326
        %v383 = vadd.f32 %v379, 0.0
        %v384 = vadd.f32 %v380, 0.0
        %v385 = vadd.f32 %v381, 0.0
        %v386 = vadd.f32 %v382, 0.0
        %s387 = sld [smem:[#allocation3 + $0xd8]]
        %v388 = vstv %s387
        %v389 = vmul.f32 %v388, %v323
        %v390 = vmul.f32 %v388, %v324
        %v391 = vmul.f32 %v388, %v325
        %v392 = vmul.f32 %v388, %v326
        %v393 = vadd.f32 %v389, 0.0
        %v394 = vadd.f32 %v390, 0.0
        %v395 = vadd.f32 %v391, 0.0
        %v396 = vadd.f32 %v392, 0.0
        %s397 = sld [smem:[#allocation3 + $0xfc]]
        %v398 = vstv %s397
        %v399 = vmul.f32 %v398, %v323
        %v400 = vmul.f32 %v398, %v324
        %v401 = vmul.f32 %v398, %v325
        %v402 = vmul.f32 %v398, %v326
        %v403 = vadd.f32 %v399, 0.0
        %v404 = vadd.f32 %v400, 0.0
        %v405 = vadd.f32 %v401, 0.0
        %v406 = vadd.f32 %v402, 0.0
        %s407 = sld [smem:[#allocation3 + $0x1]]
        %v408 = vstv %s407
        %v409 = vmul.f32 %v408, %v323
        %v410 = vmul.f32 %v408, %v324
        %v411 = vmul.f32 %v408, %v325
        %v412 = vmul.f32 %v408, %v326
        %417 = vrot.lane.b32.xlu0 %v409, 127
        %v418 = vpop.permute.xlu0 %417
        %419 = vrot.lane.b32.xlu0 %v410, 127
        %v420 = vpop.permute.xlu0 %419
        %421 = vrot.lane.b32.xlu0 %v411, 127
        %v422 = vpop.permute.xlu0 %421
        %423 = vrot.lane.b32.xlu0 %v412, 127
        %v424 = vpop.permute.xlu0 %423
        %v429 = vadd.f32 %v333, %v418
        %v430 = vadd.f32 %v334, %v420
        %v431 = vadd.f32 %v335, %v422
        %v432 = vadd.f32 %v336, %v424
        %s433 = sld [smem:[#allocation3 + $0x25]]
        %v434 = vstv %s433
        %v435 = vmul.f32 %v434, %v323
        %v436 = vmul.f32 %v434, %v324
        %v437 = vmul.f32 %v434, %v325
        %v438 = vmul.f32 %v434, %v326
        %443 = vrot.lane.b32.xlu0 %v435, 127
        %v444 = vpop.permute.xlu0 %443
        %445 = vrot.lane.b32.xlu0 %v436, 127
        %v446 = vpop.permute.xlu0 %445
        %447 = vrot.lane.b32.xlu0 %v437, 127
        %v448 = vpop.permute.xlu0 %447
        %449 = vrot.lane.b32.xlu0 %v438, 127
        %v450 = vpop.permute.xlu0 %449
        %v455 = vadd.f32 %v343, %v444
        %v456 = vadd.f32 %v344, %v446
        %v457 = vadd.f32 %v345, %v448
        %v458 = vadd.f32 %v346, %v450
        %s459 = sld [smem:[#allocation3 + $0x49]]
        %v460 = vstv %s459
        %v461 = vmul.f32 %v460, %v323
        %v462 = vmul.f32 %v460, %v324
        %v463 = vmul.f32 %v460, %v325
        %v464 = vmul.f32 %v460, %v326
        %469 = vrot.lane.b32.xlu0 %v461, 127
        %v470 = vpop.permute.xlu0 %469
        %471 = vrot.lane.b32.xlu0 %v462, 127
        %v472 = vpop.permute.xlu0 %471
        %473 = vrot.lane.b32.xlu0 %v463, 127
        %v474 = vpop.permute.xlu0 %473
        %475 = vrot.lane.b32.xlu0 %v464, 127
        %v476 = vpop.permute.xlu0 %475
        %v481 = vadd.f32 %v353, %v470
        %v482 = vadd.f32 %v354, %v472
        %v483 = vadd.f32 %v355, %v474
        %v484 = vadd.f32 %v356, %v476
        %s485 = sld [smem:[#allocation3 + $0x6d]]
        %v486 = vstv %s485
        %v487 = vmul.f32 %v486, %v323
        %v488 = vmul.f32 %v486, %v324
        %v489 = vmul.f32 %v486, %v325
        %v490 = vmul.f32 %v486, %v326
        %495 = vrot.lane.b32.xlu0 %v487, 127
        %v496 = vpop.permute.xlu0 %495
        %497 = vrot.lane.b32.xlu0 %v488, 127
        %v498 = vpop.permute.xlu0 %497
        %499 = vrot.lane.b32.xlu0 %v489, 127
        %v500 = vpop.permute.xlu0 %499
        %501 = vrot.lane.b32.xlu0 %v490, 127
        %v502 = vpop.permute.xlu0 %501
        %v507 = vadd.f32 %v363, %v496
        %v508 = vadd.f32 %v364, %v498
        %v509 = vadd.f32 %v365, %v500
        %v510 = vadd.f32 %v366, %v502
        %s511 = sld [smem:[#allocation3 + $0x91]]
        %v512 = vstv %s511
        %v513 = vmul.f32 %v512, %v323
        %v514 = vmul.f32 %v512, %v324
        %v515 = vmul.f32 %v512, %v325
        %v516 = vmul.f32 %v512, %v326
        %521 = vrot.lane.b32.xlu0 %v513, 127
        %v522 = vpop.permute.xlu0 %521
        %523 = vrot.lane.b32.xlu0 %v514, 127
        %v524 = vpop.permute.xlu0 %523
        %525 = vrot.lane.b32.xlu0 %v515, 127
        %v526 = vpop.permute.xlu0 %525
        %527 = vrot.lane.b32.xlu0 %v516, 127
        %v528 = vpop.permute.xlu0 %527
        %v533 = vadd.f32 %v373, %v522
        %v534 = vadd.f32 %v374, %v524
        %v535 = vadd.f32 %v375, %v526
        %v536 = vadd.f32 %v376, %v528
        %s537 = sld [smem:[#allocation3 + $0xb5]]
        %v538 = vstv %s537
        %v539 = vmul.f32 %v538, %v323
        %v540 = vmul.f32 %v538, %v324
        %v541 = vmul.f32 %v538, %v325
        %v542 = vmul.f32 %v538, %v326
        %547 = vrot.lane.b32.xlu0 %v539, 127
        %v548 = vpop.permute.xlu0 %547
        %549 = vrot.lane.b32.xlu0 %v540, 127
        %v550 = vpop.permute.xlu0 %549
        %551 = vrot.lane.b32.xlu0 %v541, 127
        %v552 = vpop.permute.xlu0 %551
        %553 = vrot.lane.b32.xlu0 %v542, 127
        %v554 = vpop.permute.xlu0 %553
        %v559 = vadd.f32 %v383, %v548
        %v560 = vadd.f32 %v384, %v550
        %v561 = vadd.f32 %v385, %v552
        %v562 = vadd.f32 %v386, %v554
        %s563 = sld [smem:[#allocation3 + $0xd9]]
        %v564 = vstv %s563
        %v565 = vmul.f32 %v564, %v323
        %v566 = vmul.f32 %v564, %v324
        %v567 = vmul.f32 %v564, %v325
        %v568 = vmul.f32 %v564, %v326
        %573 = vrot.lane.b32.xlu0 %v565, 127
        %v574 = vpop.permute.xlu0 %573
        %575 = vrot.lane.b32.xlu0 %v566, 127
        %v576 = vpop.permute.xlu0 %575
        %577 = vrot.lane.b32.xlu0 %v567, 127
        %v578 = vpop.permute.xlu0 %577
        %579 = vrot.lane.b32.xlu0 %v568, 127
        %v580 = vpop.permute.xlu0 %579
        %v585 = vadd.f32 %v393, %v574
        %v586 = vadd.f32 %v394, %v576
        %v587 = vadd.f32 %v395, %v578
        %v588 = vadd.f32 %v396, %v580
        %s589 = sld [smem:[#allocation3 + $0xfd]]
        %v590 = vstv %s589
        %v591 = vmul.f32 %v590, %v323
        %v592 = vmul.f32 %v590, %v324
        %v593 = vmul.f32 %v590, %v325
        %v594 = vmul.f32 %v590, %v326
        %599 = vrot.lane.b32.xlu0 %v591, 127
        %v600 = vpop.permute.xlu0 %599
        %601 = vrot.lane.b32.xlu0 %v592, 127
        %v602 = vpop.permute.xlu0 %601
        %603 = vrot.lane.b32.xlu0 %v593, 127
        %v604 = vpop.permute.xlu0 %603
        %605 = vrot.lane.b32.xlu0 %v594, 127
        %v606 = vpop.permute.xlu0 %605
        %v611 = vadd.f32 %v403, %v600
        %v612 = vadd.f32 %v404, %v602
        %v613 = vadd.f32 %v405, %v604
        %v614 = vadd.f32 %v406, %v606
        %s615 = sld [smem:[#allocation3 + $0x2]]
        %v616 = vstv %s615
        %v617 = vmul.f32 %v616, %v323
        %v618 = vmul.f32 %v616, %v324
        %v619 = vmul.f32 %v616, %v325
        %v620 = vmul.f32 %v616, %v326
        %625 = vrot.lane.b32.xlu0 %v617, 126
        %v626 = vpop.permute.xlu0 %625
        %627 = vrot.lane.b32.xlu0 %v618, 126
        %v628 = vpop.permute.xlu0 %627
        %629 = vrot.lane.b32.xlu0 %v619, 126
        %v630 = vpop.permute.xlu0 %629
        %631 = vrot.lane.b32.xlu0 %v620, 126
        %v632 = vpop.permute.xlu0 %631
        %v637 = vadd.f32 %v429, %v626
        %v638 = vadd.f32 %v430, %v628
        %v639 = vadd.f32 %v431, %v630
        %v640 = vadd.f32 %v432, %v632
        %s641 = sld [smem:[#allocation3 + $0x26]]
        %v642 = vstv %s641
        %v643 = vmul.f32 %v642, %v323
        %v644 = vmul.f32 %v642, %v324
        %v645 = vmul.f32 %v642, %v325
        %v646 = vmul.f32 %v642, %v326
        %651 = vrot.lane.b32.xlu0 %v643, 126
        %v652 = vpop.permute.xlu0 %651
        %653 = vrot.lane.b32.xlu0 %v644, 126
        %v654 = vpop.permute.xlu0 %653
        %655 = vrot.lane.b32.xlu0 %v645, 126
        %v656 = vpop.permute.xlu0 %655
        %657 = vrot.lane.b32.xlu0 %v646, 126
        %v658 = vpop.permute.xlu0 %657
        %v663 = vadd.f32 %v455, %v652
        %v664 = vadd.f32 %v456, %v654
        %v665 = vadd.f32 %v457, %v656
        %v666 = vadd.f32 %v458, %v658
        %s667 = sld [smem:[#allocation3 + $0x4a]]
        %v668 = vstv %s667
        %v669 = vmul.f32 %v668, %v323
        %v670 = vmul.f32 %v668, %v324
        %v671 = vmul.f32 %v668, %v325
        %v672 = vmul.f32 %v668, %v326
        %677 = vrot.lane.b32.xlu0 %v669, 126
        %v678 = vpop.permute.xlu0 %677
        %679 = vrot.lane.b32.xlu0 %v670, 126
        %v680 = vpop.permute.xlu0 %679
        %681 = vrot.lane.b32.xlu0 %v671, 126
        %v682 = vpop.permute.xlu0 %681
        %683 = vrot.lane.b32.xlu0 %v672, 126
        %v684 = vpop.permute.xlu0 %683
        %v689 = vadd.f32 %v481, %v678
        %v690 = vadd.f32 %v482, %v680
        %v691 = vadd.f32 %v483, %v682
        %v692 = vadd.f32 %v484, %v684
        %s693 = sld [smem:[#allocation3 + $0x6e]]
        %v694 = vstv %s693
        %v695 = vmul.f32 %v694, %v323
        %v696 = vmul.f32 %v694, %v324
        %v697 = vmul.f32 %v694, %v325
        %v698 = vmul.f32 %v694, %v326
        %703 = vrot.lane.b32.xlu0 %v695, 126
        %v704 = vpop.permute.xlu0 %703
        %705 = vrot.lane.b32.xlu0 %v696, 126
        %v706 = vpop.permute.xlu0 %705
        %707 = vrot.lane.b32.xlu0 %v697, 126
        %v708 = vpop.permute.xlu0 %707
        %709 = vrot.lane.b32.xlu0 %v698, 126
        %v710 = vpop.permute.xlu0 %709
        %v715 = vadd.f32 %v507, %v704
        %v716 = vadd.f32 %v508, %v706
        %v717 = vadd.f32 %v509, %v708
        %v718 = vadd.f32 %v510, %v710
        %s719 = sld [smem:[#allocation3 + $0x92]]
        %v720 = vstv %s719
        %v721 = vmul.f32 %v720, %v323
        %v722 = vmul.f32 %v720, %v324
        %v723 = vmul.f32 %v720, %v325
        %v724 = vmul.f32 %v720, %v326
        %729 = vrot.lane.b32.xlu0 %v721, 126
        %v730 = vpop.permute.xlu0 %729
        %731 = vrot.lane.b32.xlu0 %v722, 126
        %v732 = vpop.permute.xlu0 %731
        %733 = vrot.lane.b32.xlu0 %v723, 126
        %v734 = vpop.permute.xlu0 %733
        %735 = vrot.lane.b32.xlu0 %v724, 126
        %v736 = vpop.permute.xlu0 %735
        %v741 = vadd.f32 %v533, %v730
        %v742 = vadd.f32 %v534, %v732
        %v743 = vadd.f32 %v535, %v734
        %v744 = vadd.f32 %v536, %v736
        %s745 = sld [smem:[#allocation3 + $0xb6]]
        %v746 = vstv %s745
        %v747 = vmul.f32 %v746, %v323
        %v748 = vmul.f32 %v746, %v324
        %v749 = vmul.f32 %v746, %v325
        %v750 = vmul.f32 %v746, %v326
        %755 = vrot.lane.b32.xlu0 %v747, 126
        %v756 = vpop.permute.xlu0 %755
        %757 = vrot.lane.b32.xlu0 %v748, 126
        %v758 = vpop.permute.xlu0 %757
        %759 = vrot.lane.b32.xlu0 %v749, 126
        %v760 = vpop.permute.xlu0 %759
        %761 = vrot.lane.b32.xlu0 %v750, 126
        %v762 = vpop.permute.xlu0 %761
        %v767 = vadd.f32 %v559, %v756
        %v768 = vadd.f32 %v560, %v758
        %v769 = vadd.f32 %v561, %v760
        %v770 = vadd.f32 %v562, %v762
        %s771 = sld [smem:[#allocation3 + $0xda]]
        %v772 = vstv %s771
        %v773 = vmul.f32 %v772, %v323
        %v774 = vmul.f32 %v772, %v324
        %v775 = vmul.f32 %v772, %v325
        %v776 = vmul.f32 %v772, %v326
        %781 = vrot.lane.b32.xlu0 %v773, 126
        %v782 = vpop.permute.xlu0 %781
        %783 = vrot.lane.b32.xlu0 %v774, 126
        %v784 = vpop.permute.xlu0 %783
        %785 = vrot.lane.b32.xlu0 %v775, 126
        %v786 = vpop.permute.xlu0 %785
        %787 = vrot.lane.b32.xlu0 %v776, 126
        %v788 = vpop.permute.xlu0 %787
        %v793 = vadd.f32 %v585, %v782
        %v794 = vadd.f32 %v586, %v784
        %v795 = vadd.f32 %v587, %v786
        %v796 = vadd.f32 %v588, %v788
        %s797 = sld [smem:[#allocation3 + $0xfe]]
        %v798 = vstv %s797
        %v799 = vmul.f32 %v798, %v323
        %v800 = vmul.f32 %v798, %v324
        %v801 = vmul.f32 %v798, %v325
        %v802 = vmul.f32 %v798, %v326
        %807 = vrot.lane.b32.xlu0 %v799, 126
        %v808 = vpop.permute.xlu0 %807
        %809 = vrot.lane.b32.xlu0 %v800, 126
        %v810 = vpop.permute.xlu0 %809
        %811 = vrot.lane.b32.xlu0 %v801, 126
        %v812 = vpop.permute.xlu0 %811
        %813 = vrot.lane.b32.xlu0 %v802, 126
        %v814 = vpop.permute.xlu0 %813
        %v819 = vadd.f32 %v611, %v808
        %v820 = vadd.f32 %v612, %v810
        %v821 = vadd.f32 %v613, %v812
        %v822 = vadd.f32 %v614, %v814
        %v823 = vld [vmem:[#allocation2 + $0x1] sm:$0xff]
        %v824 = vld [vmem:[#allocation2 + $0x9] sm:$0xff]
        %v825 = vld [vmem:[#allocation2 + $0x11] sm:$0xff]
        %v826 = vld [vmem:[#allocation2 + $0x19] sm:$0xff]
        %s827 = sld [smem:[#allocation3 + $0x3]]
        %v828 = vstv %s827
        %v829 = vmul.f32 %v828, %v823
        %v830 = vmul.f32 %v828, %v824
        %v831 = vmul.f32 %v828, %v825
        %v832 = vmul.f32 %v828, %v826
        %v833 = vadd.f32 %v637, %v829
        %v834 = vadd.f32 %v638, %v830
        %v835 = vadd.f32 %v639, %v831
        %v836 = vadd.f32 %v640, %v832
        %s837 = sld [smem:[#allocation3 + $0x27]]
        %v838 = vstv %s837
        %v839 = vmul.f32 %v838, %v823
        %v840 = vmul.f32 %v838, %v824
        %v841 = vmul.f32 %v838, %v825
        %v842 = vmul.f32 %v838, %v826
        %v843 = vadd.f32 %v663, %v839
        %v844 = vadd.f32 %v664, %v840
        %v845 = vadd.f32 %v665, %v841
        %v846 = vadd.f32 %v666, %v842
        %s847 = sld [smem:[#allocation3 + $0x4b]]
        %v848 = vstv %s847
        %v849 = vmul.f32 %v848, %v823
        %v850 = vmul.f32 %v848, %v824
        %v851 = vmul.f32 %v848, %v825
        %v852 = vmul.f32 %v848, %v826
        %v853 = vadd.f32 %v689, %v849
        %v854 = vadd.f32 %v690, %v850
        %v855 = vadd.f32 %v691, %v851
        %v856 = vadd.f32 %v692, %v852
        %s857 = sld [smem:[#allocation3 + $0x6f]]
        %v858 = vstv %s857
        %v859 = vmul.f32 %v858, %v823
        %v860 = vmul.f32 %v858, %v824
        %v861 = vmul.f32 %v858, %v825
        %v862 = vmul.f32 %v858, %v826
        %v863 = vadd.f32 %v715, %v859
        %v864 = vadd.f32 %v716, %v860
        %v865 = vadd.f32 %v717, %v861
        %v866 = vadd.f32 %v718, %v862
        %s867 = sld [smem:[#allocation3 + $0x93]]
        %v868 = vstv %s867
        %v869 = vmul.f32 %v868, %v823
        %v870 = vmul.f32 %v868, %v824
        %v871 = vmul.f32 %v868, %v825
        %v872 = vmul.f32 %v868, %v826
        %v873 = vadd.f32 %v741, %v869
        %v874 = vadd.f32 %v742, %v870
        %v875 = vadd.f32 %v743, %v871
        %v876 = vadd.f32 %v744, %v872
        %s877 = sld [smem:[#allocation3 + $0xb7]]
        %v878 = vstv %s877
        %v879 = vmul.f32 %v878, %v823
        %v880 = vmul.f32 %v878, %v824
        %v881 = vmul.f32 %v878, %v825
        %v882 = vmul.f32 %v878, %v826
        %v883 = vadd.f32 %v767, %v879
        %v884 = vadd.f32 %v768, %v880
        %v885 = vadd.f32 %v769, %v881
        %v886 = vadd.f32 %v770, %v882
        %s887 = sld [smem:[#allocation3 + $0xdb]]
        %v888 = vstv %s887
        %v889 = vmul.f32 %v888, %v823
        %v890 = vmul.f32 %v888, %v824
        %v891 = vmul.f32 %v888, %v825
        %v892 = vmul.f32 %v888, %v826
        %v893 = vadd.f32 %v793, %v889
        %v894 = vadd.f32 %v794, %v890
        %v895 = vadd.f32 %v795, %v891
        %v896 = vadd.f32 %v796, %v892
        %s897 = sld [smem:[#allocation3 + $0xff]]
        %v898 = vstv %s897
        %v899 = vmul.f32 %v898, %v823
        %v900 = vmul.f32 %v898, %v824
        %v901 = vmul.f32 %v898, %v825
        %v902 = vmul.f32 %v898, %v826
        %v903 = vadd.f32 %v819, %v899
        %v904 = vadd.f32 %v820, %v900
        %v905 = vadd.f32 %v821, %v901
        %v906 = vadd.f32 %v822, %v902
        %s907 = sld [smem:[#allocation3 + $0x4]]
        %v908 = vstv %s907
        %v909 = vmul.f32 %v908, %v823
        %v910 = vmul.f32 %v908, %v824
        %v911 = vmul.f32 %v908, %v825
        %v912 = vmul.f32 %v908, %v826
        %917 = vrot.lane.b32.xlu0 %v909, 127
        %v918 = vpop.permute.xlu0 %917
        %919 = vrot.lane.b32.xlu0 %v910, 127
        %v920 = vpop.permute.xlu0 %919
        %921 = vrot.lane.b32.xlu0 %v911, 127
        %v922 = vpop.permute.xlu0 %921
        %923 = vrot.lane.b32.xlu0 %v912, 127
        %v924 = vpop.permute.xlu0 %923
        %v929 = vadd.f32 %v833, %v918
        %v930 = vadd.f32 %v834, %v920
        %v931 = vadd.f32 %v835, %v922
        %v932 = vadd.f32 %v836, %v924
        %s933 = sld [smem:[#allocation3 + $0x28]]
        %v934 = vstv %s933
        %v935 = vmul.f32 %v934, %v823
        %v936 = vmul.f32 %v934, %v824
        %v937 = vmul.f32 %v934, %v825
        %v938 = vmul.f32 %v934, %v826
        %943 = vrot.lane.b32.xlu0 %v935, 127
        %v944 = vpop.permute.xlu0 %943
        %945 = vrot.lane.b32.xlu0 %v936, 127
        %v946 = vpop.permute.xlu0 %945
        %947 = vrot.lane.b32.xlu0 %v937, 127
        %v948 = vpop.permute.xlu0 %947
        %949 = vrot.lane.b32.xlu0 %v938, 127
        %v950 = vpop.permute.xlu0 %949
        %v955 = vadd.f32 %v843, %v944
        %v956 = vadd.f32 %v844, %v946
        %v957 = vadd.f32 %v845, %v948
        %v958 = vadd.f32 %v846, %v950
        %s959 = sld [smem:[#allocation3 + $0x4c]]
        %v960 = vstv %s959
        %v961 = vmul.f32 %v960, %v823
        %v962 = vmul.f32 %v960, %v824
        %v963 = vmul.f32 %v960, %v825
        %v964 = vmul.f32 %v960, %v826
        %969 = vrot.lane.b32.xlu0 %v961, 127
        %v970 = vpop.permute.xlu0 %969
        %971 = vrot.lane.b32.xlu0 %v962, 127
        %v972 = vpop.permute.xlu0 %971
        %973 = vrot.lane.b32.xlu0 %v963, 127
        %v974 = vpop.permute.xlu0 %973
        %975 = vrot.lane.b32.xlu0 %v964, 127
        %v976 = vpop.permute.xlu0 %975
        %v981 = vadd.f32 %v853, %v970
        %v982 = vadd.f32 %v854, %v972
        %v983 = vadd.f32 %v855, %v974
        %v984 = vadd.f32 %v856, %v976
        %s985 = sld [smem:[#allocation3 + $0x70]]
        %v986 = vstv %s985
        %v987 = vmul.f32 %v986, %v823
        %v988 = vmul.f32 %v986, %v824
        %v989 = vmul.f32 %v986, %v825
        %v990 = vmul.f32 %v986, %v826
        %995 = vrot.lane.b32.xlu0 %v987, 127
        %v996 = vpop.permute.xlu0 %995
        %997 = vrot.lane.b32.xlu0 %v988, 127
        %v998 = vpop.permute.xlu0 %997
        %999 = vrot.lane.b32.xlu0 %v989, 127
        %v1000 = vpop.permute.xlu0 %999
        %1001 = vrot.lane.b32.xlu0 %v990, 127
        %v1002 = vpop.permute.xlu0 %1001
        %v1007 = vadd.f32 %v863, %v996
        %v1008 = vadd.f32 %v864, %v998
        %v1009 = vadd.f32 %v865, %v1000
        %v1010 = vadd.f32 %v866, %v1002
        %s1011 = sld [smem:[#allocation3 + $0x94]]
        %v1012 = vstv %s1011
        %v1013 = vmul.f32 %v1012, %v823
        %v1014 = vmul.f32 %v1012, %v824
        %v1015 = vmul.f32 %v1012, %v825
        %v1016 = vmul.f32 %v1012, %v826
        %1021 = vrot.lane.b32.xlu0 %v1013, 127
        %v1022 = vpop.permute.xlu0 %1021
        %1023 = vrot.lane.b32.xlu0 %v1014, 127
        %v1024 = vpop.permute.xlu0 %1023
        %1025 = vrot.lane.b32.xlu0 %v1015, 127
        %v1026 = vpop.permute.xlu0 %1025
        %1027 = vrot.lane.b32.xlu0 %v1016, 127
        %v1028 = vpop.permute.xlu0 %1027
        %v1033 = vadd.f32 %v873, %v1022
        %v1034 = vadd.f32 %v874, %v1024
        %v1035 = vadd.f32 %v875, %v1026
        %v1036 = vadd.f32 %v876, %v1028
        %s1037 = sld [smem:[#allocation3 + $0xb8]]
        %v1038 = vstv %s1037
        %v1039 = vmul.f32 %v1038, %v823
        %v1040 = vmul.f32 %v1038, %v824
        %v1041 = vmul.f32 %v1038, %v825
        %v1042 = vmul.f32 %v1038, %v826
        %1047 = vrot.lane.b32.xlu0 %v1039, 127
        %v1048 = vpop.permute.xlu0 %1047
        %1049 = vrot.lane.b32.xlu0 %v1040, 127
        %v1050 = vpop.permute.xlu0 %1049
        %1051 = vrot.lane.b32.xlu0 %v1041, 127
        %v1052 = vpop.permute.xlu0 %1051
        %1053 = vrot.lane.b32.xlu0 %v1042, 127
        %v1054 = vpop.permute.xlu0 %1053
        %v1059 = vadd.f32 %v883, %v1048
        %v1060 = vadd.f32 %v884, %v1050
        %v1061 = vadd.f32 %v885, %v1052
        %v1062 = vadd.f32 %v886, %v1054
        %s1063 = sld [smem:[#allocation3 + $0xdc]]
        %v1064 = vstv %s1063
        %v1065 = vmul.f32 %v1064, %v823
        %v1066 = vmul.f32 %v1064, %v824
        %v1067 = vmul.f32 %v1064, %v825
        %v1068 = vmul.f32 %v1064, %v826
        %1073 = vrot.lane.b32.xlu0 %v1065, 127
        %v1074 = vpop.permute.xlu0 %1073
        %1075 = vrot.lane.b32.xlu0 %v1066, 127
        %v1076 = vpop.permute.xlu0 %1075
        %1077 = vrot.lane.b32.xlu0 %v1067, 127
        %v1078 = vpop.permute.xlu0 %1077
        %1079 = vrot.lane.b32.xlu0 %v1068, 127
        %v1080 = vpop.permute.xlu0 %1079
        %v1085 = vadd.f32 %v893, %v1074
        %v1086 = vadd.f32 %v894, %v1076
        %v1087 = vadd.f32 %v895, %v1078
        %v1088 = vadd.f32 %v896, %v1080
        %s1089 = sld [smem:[#allocation3 + $0x100]]
        %v1090 = vstv %s1089
        %v1091 = vmul.f32 %v1090, %v823
        %v1092 = vmul.f32 %v1090, %v824
        %v1093 = vmul.f32 %v1090, %v825
        %v1094 = vmul.f32 %v1090, %v826
        %1099 = vrot.lane.b32.xlu0 %v1091, 127
        %v1100 = vpop.permute.xlu0 %1099
        %1101 = vrot.lane.b32.xlu0 %v1092, 127
        %v1102 = vpop.permute.xlu0 %1101
        %1103 = vrot.lane.b32.xlu0 %v1093, 127
        %v1104 = vpop.permute.xlu0 %1103
        %1105 = vrot.lane.b32.xlu0 %v1094, 127
        %v1106 = vpop.permute.xlu0 %1105
        %v1111 = vadd.f32 %v903, %v1100
        %v1112 = vadd.f32 %v904, %v1102
        %v1113 = vadd.f32 %v905, %v1104
        %v1114 = vadd.f32 %v906, %v1106
        %s1115 = sld [smem:[#allocation3 + $0x5]]
        %v1116 = vstv %s1115
        %v1117 = vmul.f32 %v1116, %v823
        %v1118 = vmul.f32 %v1116, %v824
        %v1119 = vmul.f32 %v1116, %v825
        %v1120 = vmul.f32 %v1116, %v826
        %1125 = vrot.lane.b32.xlu0 %v1117, 126
        %v1126 = vpop.permute.xlu0 %1125
        %1127 = vrot.lane.b32.xlu0 %v1118, 126
        %v1128 = vpop.permute.xlu0 %1127
        %1129 = vrot.lane.b32.xlu0 %v1119, 126
        %v1130 = vpop.permute.xlu0 %1129
        %1131 = vrot.lane.b32.xlu0 %v1120, 126
        %v1132 = vpop.permute.xlu0 %1131
        %v1137 = vadd.f32 %v929, %v1126
        %v1138 = vadd.f32 %v930, %v1128
        %v1139 = vadd.f32 %v931, %v1130
        %v1140 = vadd.f32 %v932, %v1132
        %s1141 = sld [smem:[#allocation3 + $0x29]]
        %v1142 = vstv %s1141
        %v1143 = vmul.f32 %v1142, %v823
        %v1144 = vmul.f32 %v1142, %v824
        %v1145 = vmul.f32 %v1142, %v825
        %v1146 = vmul.f32 %v1142, %v826
        %1151 = vrot.lane.b32.xlu0 %v1143, 126
        %v1152 = vpop.permute.xlu0 %1151
        %1153 = vrot.lane.b32.xlu0 %v1144, 126
        %v1154 = vpop.permute.xlu0 %1153
        %1155 = vrot.lane.b32.xlu0 %v1145, 126
        %v1156 = vpop.permute.xlu0 %1155
        %1157 = vrot.lane.b32.xlu0 %v1146, 126
        %v1158 = vpop.permute.xlu0 %1157
        %v1163 = vadd.f32 %v955, %v1152
        %v1164 = vadd.f32 %v956, %v1154
        %v1165 = vadd.f32 %v957, %v1156
        %v1166 = vadd.f32 %v958, %v1158
        %s1167 = sld [smem:[#allocation3 + $0x4d]]
        %v1168 = vstv %s1167
        %v1169 = vmul.f32 %v1168, %v823
        %v1170 = vmul.f32 %v1168, %v824
        %v1171 = vmul.f32 %v1168, %v825
        %v1172 = vmul.f32 %v1168, %v826
        %1177 = vrot.lane.b32.xlu0 %v1169, 126
        %v1178 = vpop.permute.xlu0 %1177
        %1179 = vrot.lane.b32.xlu0 %v1170, 126
        %v1180 = vpop.permute.xlu0 %1179
        %1181 = vrot.lane.b32.xlu0 %v1171, 126
        %v1182 = vpop.permute.xlu0 %1181
        %1183 = vrot.lane.b32.xlu0 %v1172, 126
        %v1184 = vpop.permute.xlu0 %1183
        %v1189 = vadd.f32 %v981, %v1178
        %v1190 = vadd.f32 %v982, %v1180
        %v1191 = vadd.f32 %v983, %v1182
        %v1192 = vadd.f32 %v984, %v1184
        %s1193 = sld [smem:[#allocation3 + $0x71]]
        %v1194 = vstv %s1193
        %v1195 = vmul.f32 %v1194, %v823
        %v1196 = vmul.f32 %v1194, %v824
        %v1197 = vmul.f32 %v1194, %v825
        %v1198 = vmul.f32 %v1194, %v826
        %1203 = vrot.lane.b32.xlu0 %v1195, 126
        %v1204 = vpop.permute.xlu0 %1203
        %1205 = vrot.lane.b32.xlu0 %v1196, 126
        %v1206 = vpop.permute.xlu0 %1205
        %1207 = vrot.lane.b32.xlu0 %v1197, 126
        %v1208 = vpop.permute.xlu0 %1207
        %1209 = vrot.lane.b32.xlu0 %v1198, 126
        %v1210 = vpop.permute.xlu0 %1209
        %v1215 = vadd.f32 %v1007, %v1204
        %v1216 = vadd.f32 %v1008, %v1206
        %v1217 = vadd.f32 %v1009, %v1208
        %v1218 = vadd.f32 %v1010, %v1210
        %s1219 = sld [smem:[#allocation3 + $0x95]]
        %v1220 = vstv %s1219
        %v1221 = vmul.f32 %v1220, %v823
        %v1222 = vmul.f32 %v1220, %v824
        %v1223 = vmul.f32 %v1220, %v825
        %v1224 = vmul.f32 %v1220, %v826
        %1229 = vrot.lane.b32.xlu0 %v1221, 126
        %v1230 = vpop.permute.xlu0 %1229
        %1231 = vrot.lane.b32.xlu0 %v1222, 126
        %v1232 = vpop.permute.xlu0 %1231
        %1233 = vrot.lane.b32.xlu0 %v1223, 126
        %v1234 = vpop.permute.xlu0 %1233
        %1235 = vrot.lane.b32.xlu0 %v1224, 126
        %v1236 = vpop.permute.xlu0 %1235
        %v1241 = vadd.f32 %v1033, %v1230
        %v1242 = vadd.f32 %v1034, %v1232
        %v1243 = vadd.f32 %v1035, %v1234
        %v1244 = vadd.f32 %v1036, %v1236
        %s1245 = sld [smem:[#allocation3 + $0xb9]]
        %v1246 = vstv %s1245
        %v1247 = vmul.f32 %v1246, %v823
        %v1248 = vmul.f32 %v1246, %v824
        %v1249 = vmul.f32 %v1246, %v825
        %v1250 = vmul.f32 %v1246, %v826
        %1255 = vrot.lane.b32.xlu0 %v1247, 126
        %v1256 = vpop.permute.xlu0 %1255
        %1257 = vrot.lane.b32.xlu0 %v1248, 126
        %v1258 = vpop.permute.xlu0 %1257
        %1259 = vrot.lane.b32.xlu0 %v1249, 126
        %v1260 = vpop.permute.xlu0 %1259
        %1261 = vrot.lane.b32.xlu0 %v1250, 126
        %v1262 = vpop.permute.xlu0 %1261
        %v1267 = vadd.f32 %v1059, %v1256
        %v1268 = vadd.f32 %v1060, %v1258
        %v1269 = vadd.f32 %v1061, %v1260
        %v1270 = vadd.f32 %v1062, %v1262
        %s1271 = sld [smem:[#allocation3 + $0xdd]]
        %v1272 = vstv %s1271
        %v1273 = vmul.f32 %v1272, %v823
        %v1274 = vmul.f32 %v1272, %v824
        %v1275 = vmul.f32 %v1272, %v825
        %v1276 = vmul.f32 %v1272, %v826
        %1281 = vrot.lane.b32.xlu0 %v1273, 126
        %v1282 = vpop.permute.xlu0 %1281
        %1283 = vrot.lane.b32.xlu0 %v1274, 126
        %v1284 = vpop.permute.xlu0 %1283
        %1285 = vrot.lane.b32.xlu0 %v1275, 126
        %v1286 = vpop.permute.xlu0 %1285
        %1287 = vrot.lane.b32.xlu0 %v1276, 126
        %v1288 = vpop.permute.xlu0 %1287
        %v1293 = vadd.f32 %v1085, %v1282
        %v1294 = vadd.f32 %v1086, %v1284
        %v1295 = vadd.f32 %v1087, %v1286
        %v1296 = vadd.f32 %v1088, %v1288
        %s1297 = sld [smem:[#allocation3 + $0x101]]
        %v1298 = vstv %s1297
        %v1299 = vmul.f32 %v1298, %v823
        %v1300 = vmul.f32 %v1298, %v824
        %v1301 = vmul.f32 %v1298, %v825
        %v1302 = vmul.f32 %v1298, %v826
        %1307 = vrot.lane.b32.xlu0 %v1299, 126
        %v1308 = vpop.permute.xlu0 %1307
        %1309 = vrot.lane.b32.xlu0 %v1300, 126
        %v1310 = vpop.permute.xlu0 %1309
        %1311 = vrot.lane.b32.xlu0 %v1301, 126
        %v1312 = vpop.permute.xlu0 %1311
        %1313 = vrot.lane.b32.xlu0 %v1302, 126
        %v1314 = vpop.permute.xlu0 %1313
        %v1319 = vadd.f32 %v1111, %v1308
        %v1320 = vadd.f32 %v1112, %v1310
        %v1321 = vadd.f32 %v1113, %v1312
        %v1322 = vadd.f32 %v1114, %v1314
        %v1323 = vld [vmem:[#allocation2 + $0x2] sm:$0xff]
        %v1324 = vld [vmem:[#allocation2 + $0xa] sm:$0xff]
        %v1325 = vld [vmem:[#allocation2 + $0x12] sm:$0xff]
        %v1326 = vld [vmem:[#allocation2 + $0x1a] sm:$0xff]
        %s1327 = sld [smem:[#allocation3 + $0x6]]
        %v1328 = vstv %s1327
        %v1329 = vmul.f32 %v1328, %v1323
        %v1330 = vmul.f32 %v1328, %v1324
        %v1331 = vmul.f32 %v1328, %v1325
        %v1332 = vmul.f32 %v1328, %v1326
        %v1333 = vadd.f32 %v1137, %v1329
        %v1334 = vadd.f32 %v1138, %v1330
        %v1335 = vadd.f32 %v1139, %v1331
        %v1336 = vadd.f32 %v1140, %v1332
        %s1337 = sld [smem:[#allocation3 + $0x2a]]
        %v1338 = vstv %s1337
        %v1339 = vmul.f32 %v1338, %v1323
        %v1340 = vmul.f32 %v1338, %v1324
        %v1341 = vmul.f32 %v1338, %v1325
        %v1342 = vmul.f32 %v1338, %v1326
        %v1343 = vadd.f32 %v1163, %v1339
        %v1344 = vadd.f32 %v1164, %v1340
        %v1345 = vadd.f32 %v1165, %v1341
        %v1346 = vadd.f32 %v1166, %v1342
        %s1347 = sld [smem:[#allocation3 + $0x4e]]
        %v1348 = vstv %s1347
        %v1349 = vmul.f32 %v1348, %v1323
        %v1350 = vmul.f32 %v1348, %v1324
        %v1351 = vmul.f32 %v1348, %v1325
        %v1352 = vmul.f32 %v1348, %v1326
        %v1353 = vadd.f32 %v1189, %v1349
        %v1354 = vadd.f32 %v1190, %v1350
        %v1355 = vadd.f32 %v1191, %v1351
        %v1356 = vadd.f32 %v1192, %v1352
        %s1357 = sld [smem:[#allocation3 + $0x72]]
        %v1358 = vstv %s1357
        %v1359 = vmul.f32 %v1358, %v1323
        %v1360 = vmul.f32 %v1358, %v1324
        %v1361 = vmul.f32 %v1358, %v1325
        %v1362 = vmul.f32 %v1358, %v1326
        %v1363 = vadd.f32 %v1215, %v1359
        %v1364 = vadd.f32 %v1216, %v1360
        %v1365 = vadd.f32 %v1217, %v1361
        %v1366 = vadd.f32 %v1218, %v1362
        %s1367 = sld [smem:[#allocation3 + $0x96]]
        %v1368 = vstv %s1367
        %v1369 = vmul.f32 %v1368, %v1323
        %v1370 = vmul.f32 %v1368, %v1324
        %v1371 = vmul.f32 %v1368, %v1325
        %v1372 = vmul.f32 %v1368, %v1326
        %v1373 = vadd.f32 %v1241, %v1369
        %v1374 = vadd.f32 %v1242, %v1370
        %v1375 = vadd.f32 %v1243, %v1371
        %v1376 = vadd.f32 %v1244, %v1372
        %s1377 = sld [smem:[#allocation3 + $0xba]]
        %v1378 = vstv %s1377
        %v1379 = vmul.f32 %v1378, %v1323
        %v1380 = vmul.f32 %v1378, %v1324
        %v1381 = vmul.f32 %v1378, %v1325
        %v1382 = vmul.f32 %v1378, %v1326
        %v1383 = vadd.f32 %v1267, %v1379
        %v1384 = vadd.f32 %v1268, %v1380
        %v1385 = vadd.f32 %v1269, %v1381
        %v1386 = vadd.f32 %v1270, %v1382
        %s1387 = sld [smem:[#allocation3 + $0xde]]
        %v1388 = vstv %s1387
        %v1389 = vmul.f32 %v1388, %v1323
        %v1390 = vmul.f32 %v1388, %v1324
        %v1391 = vmul.f32 %v1388, %v1325
        %v1392 = vmul.f32 %v1388, %v1326
        %v1393 = vadd.f32 %v1293, %v1389
        %v1394 = vadd.f32 %v1294, %v1390
        %v1395 = vadd.f32 %v1295, %v1391
        %v1396 = vadd.f32 %v1296, %v1392
        %s1397 = sld [smem:[#allocation3 + $0x102]]
        %v1398 = vstv %s1397
        %v1399 = vmul.f32 %v1398, %v1323
        %v1400 = vmul.f32 %v1398, %v1324
        %v1401 = vmul.f32 %v1398, %v1325
        %v1402 = vmul.f32 %v1398, %v1326
        %v1403 = vadd.f32 %v1319, %v1399
        %v1404 = vadd.f32 %v1320, %v1400
        %v1405 = vadd.f32 %v1321, %v1401
        %v1406 = vadd.f32 %v1322, %v1402
        %s1407 = sld [smem:[#allocation3 + $0x7]]
        %v1408 = vstv %s1407
        %v1409 = vmul.f32 %v1408, %v1323
        %v1410 = vmul.f32 %v1408, %v1324
        %v1411 = vmul.f32 %v1408, %v1325
        %v1412 = vmul.f32 %v1408, %v1326
        %1417 = vrot.lane.b32.xlu0 %v1409, 127
        %v1418 = vpop.permute.xlu0 %1417
        %1419 = vrot.lane.b32.xlu0 %v1410, 127
        %v1420 = vpop.permute.xlu0 %1419
        %1421 = vrot.lane.b32.xlu0 %v1411, 127
        %v1422 = vpop.permute.xlu0 %1421
        %1423 = vrot.lane.b32.xlu0 %v1412, 127
        %v1424 = vpop.permute.xlu0 %1423
        %v1429 = vadd.f32 %v1333, %v1418
        %v1430 = vadd.f32 %v1334, %v1420
        %v1431 = vadd.f32 %v1335, %v1422
        %v1432 = vadd.f32 %v1336, %v1424
        %s1433 = sld [smem:[#allocation3 + $0x2b]]
        %v1434 = vstv %s1433
        %v1435 = vmul.f32 %v1434, %v1323
        %v1436 = vmul.f32 %v1434, %v1324
        %v1437 = vmul.f32 %v1434, %v1325
        %v1438 = vmul.f32 %v1434, %v1326
        %1443 = vrot.lane.b32.xlu0 %v1435, 127
        %v1444 = vpop.permute.xlu0 %1443
        %1445 = vrot.lane.b32.xlu0 %v1436, 127
        %v1446 = vpop.permute.xlu0 %1445
        %1447 = vrot.lane.b32.xlu0 %v1437, 127
        %v1448 = vpop.permute.xlu0 %1447
        %1449 = vrot.lane.b32.xlu0 %v1438, 127
        %v1450 = vpop.permute.xlu0 %1449
        %v1455 = vadd.f32 %v1343, %v1444
        %v1456 = vadd.f32 %v1344, %v1446
        %v1457 = vadd.f32 %v1345, %v1448
        %v1458 = vadd.f32 %v1346, %v1450
        %s1459 = sld [smem:[#allocation3 + $0x4f]]
        %v1460 = vstv %s1459
        %v1461 = vmul.f32 %v1460, %v1323
        %v1462 = vmul.f32 %v1460, %v1324
        %v1463 = vmul.f32 %v1460, %v1325
        %v1464 = vmul.f32 %v1460, %v1326
        %1469 = vrot.lane.b32.xlu0 %v1461, 127
        %v1470 = vpop.permute.xlu0 %1469
        %1471 = vrot.lane.b32.xlu0 %v1462, 127
        %v1472 = vpop.permute.xlu0 %1471
        %1473 = vrot.lane.b32.xlu0 %v1463, 127
        %v1474 = vpop.permute.xlu0 %1473
        %1475 = vrot.lane.b32.xlu0 %v1464, 127
        %v1476 = vpop.permute.xlu0 %1475
        %v1481 = vadd.f32 %v1353, %v1470
        %v1482 = vadd.f32 %v1354, %v1472
        %v1483 = vadd.f32 %v1355, %v1474
        %v1484 = vadd.f32 %v1356, %v1476
        %s1485 = sld [smem:[#allocation3 + $0x73]]
        %v1486 = vstv %s1485
        %v1487 = vmul.f32 %v1486, %v1323
        %v1488 = vmul.f32 %v1486, %v1324
        %v1489 = vmul.f32 %v1486, %v1325
        %v1490 = vmul.f32 %v1486, %v1326
        %1495 = vrot.lane.b32.xlu0 %v1487, 127
        %v1496 = vpop.permute.xlu0 %1495
        %1497 = vrot.lane.b32.xlu0 %v1488, 127
        %v1498 = vpop.permute.xlu0 %1497
        %1499 = vrot.lane.b32.xlu0 %v1489, 127
        %v1500 = vpop.permute.xlu0 %1499
        %1501 = vrot.lane.b32.xlu0 %v1490, 127
        %v1502 = vpop.permute.xlu0 %1501
        %v1507 = vadd.f32 %v1363, %v1496
        %v1508 = vadd.f32 %v1364, %v1498
        %v1509 = vadd.f32 %v1365, %v1500
        %v1510 = vadd.f32 %v1366, %v1502
        %s1511 = sld [smem:[#allocation3 + $0x97]]
        %v1512 = vstv %s1511
        %v1513 = vmul.f32 %v1512, %v1323
        %v1514 = vmul.f32 %v1512, %v1324
        %v1515 = vmul.f32 %v1512, %v1325
        %v1516 = vmul.f32 %v1512, %v1326
        %1521 = vrot.lane.b32.xlu0 %v1513, 127
        %v1522 = vpop.permute.xlu0 %1521
        %1523 = vrot.lane.b32.xlu0 %v1514, 127
        %v1524 = vpop.permute.xlu0 %1523
        %1525 = vrot.lane.b32.xlu0 %v1515, 127
        %v1526 = vpop.permute.xlu0 %1525
        %1527 = vrot.lane.b32.xlu0 %v1516, 127
        %v1528 = vpop.permute.xlu0 %1527
        %v1533 = vadd.f32 %v1373, %v1522
        %v1534 = vadd.f32 %v1374, %v1524
        %v1535 = vadd.f32 %v1375, %v1526
        %v1536 = vadd.f32 %v1376, %v1528
        %s1537 = sld [smem:[#allocation3 + $0xbb]]
        %v1538 = vstv %s1537
        %v1539 = vmul.f32 %v1538, %v1323
        %v1540 = vmul.f32 %v1538, %v1324
        %v1541 = vmul.f32 %v1538, %v1325
        %v1542 = vmul.f32 %v1538, %v1326
        %1547 = vrot.lane.b32.xlu0 %v1539, 127
        %v1548 = vpop.permute.xlu0 %1547
        %1549 = vrot.lane.b32.xlu0 %v1540, 127
        %v1550 = vpop.permute.xlu0 %1549
        %1551 = vrot.lane.b32.xlu0 %v1541, 127
        %v1552 = vpop.permute.xlu0 %1551
        %1553 = vrot.lane.b32.xlu0 %v1542, 127
        %v1554 = vpop.permute.xlu0 %1553
        %v1559 = vadd.f32 %v1383, %v1548
        %v1560 = vadd.f32 %v1384, %v1550
        %v1561 = vadd.f32 %v1385, %v1552
        %v1562 = vadd.f32 %v1386, %v1554
        %s1563 = sld [smem:[#allocation3 + $0xdf]]
        %v1564 = vstv %s1563
        %v1565 = vmul.f32 %v1564, %v1323
        %v1566 = vmul.f32 %v1564, %v1324
        %v1567 = vmul.f32 %v1564, %v1325
        %v1568 = vmul.f32 %v1564, %v1326
        %1573 = vrot.lane.b32.xlu0 %v1565, 127
        %v1574 = vpop.permute.xlu0 %1573
        %1575 = vrot.lane.b32.xlu0 %v1566, 127
        %v1576 = vpop.permute.xlu0 %1575
        %1577 = vrot.lane.b32.xlu0 %v1567, 127
        %v1578 = vpop.permute.xlu0 %1577
        %1579 = vrot.lane.b32.xlu0 %v1568, 127
        %v1580 = vpop.permute.xlu0 %1579
        %v1585 = vadd.f32 %v1393, %v1574
        %v1586 = vadd.f32 %v1394, %v1576
        %v1587 = vadd.f32 %v1395, %v1578
        %v1588 = vadd.f32 %v1396, %v1580
        %s1589 = sld [smem:[#allocation3 + $0x103]]
        %v1590 = vstv %s1589
        %v1591 = vmul.f32 %v1590, %v1323
        %v1592 = vmul.f32 %v1590, %v1324
        %v1593 = vmul.f32 %v1590, %v1325
        %v1594 = vmul.f32 %v1590, %v1326
        %1599 = vrot.lane.b32.xlu0 %v1591, 127
        %v1600 = vpop.permute.xlu0 %1599
        %1601 = vrot.lane.b32.xlu0 %v1592, 127
        %v1602 = vpop.permute.xlu0 %1601
        %1603 = vrot.lane.b32.xlu0 %v1593, 127
        %v1604 = vpop.permute.xlu0 %1603
        %1605 = vrot.lane.b32.xlu0 %v1594, 127
        %v1606 = vpop.permute.xlu0 %1605
        %v1611 = vadd.f32 %v1403, %v1600
        %v1612 = vadd.f32 %v1404, %v1602
        %v1613 = vadd.f32 %v1405, %v1604
        %v1614 = vadd.f32 %v1406, %v1606
        %s1615 = sld [smem:[#allocation3 + $0x8]]
        %v1616 = vstv %s1615
        %v1617 = vmul.f32 %v1616, %v1323
        %v1618 = vmul.f32 %v1616, %v1324
        %v1619 = vmul.f32 %v1616, %v1325
        %v1620 = vmul.f32 %v1616, %v1326
        %1625 = vrot.lane.b32.xlu0 %v1617, 126
        %v1626 = vpop.permute.xlu0 %1625
        %1627 = vrot.lane.b32.xlu0 %v1618, 126
        %v1628 = vpop.permute.xlu0 %1627
        %1629 = vrot.lane.b32.xlu0 %v1619, 126
        %v1630 = vpop.permute.xlu0 %1629
        %1631 = vrot.lane.b32.xlu0 %v1620, 126
        %v1632 = vpop.permute.xlu0 %1631
        %v1637 = vadd.f32 %v1429, %v1626
        %v1638 = vadd.f32 %v1430, %v1628
        %v1639 = vadd.f32 %v1431, %v1630
        %v1640 = vadd.f32 %v1432, %v1632
        %s1641 = sld [smem:[#allocation3 + $0x2c]]
        %v1642 = vstv %s1641
        %v1643 = vmul.f32 %v1642, %v1323
        %v1644 = vmul.f32 %v1642, %v1324
        %v1645 = vmul.f32 %v1642, %v1325
        %v1646 = vmul.f32 %v1642, %v1326
        %1651 = vrot.lane.b32.xlu0 %v1643, 126
        %v1652 = vpop.permute.xlu0 %1651
        %1653 = vrot.lane.b32.xlu0 %v1644, 126
        %v1654 = vpop.permute.xlu0 %1653
        %1655 = vrot.lane.b32.xlu0 %v1645, 126
        %v1656 = vpop.permute.xlu0 %1655
        %1657 = vrot.lane.b32.xlu0 %v1646, 126
        %v1658 = vpop.permute.xlu0 %1657
        %v1663 = vadd.f32 %v1455, %v1652
        %v1664 = vadd.f32 %v1456, %v1654
        %v1665 = vadd.f32 %v1457, %v1656
        %v1666 = vadd.f32 %v1458, %v1658
        %s1667 = sld [smem:[#allocation3 + $0x50]]
        %v1668 = vstv %s1667
        %v1669 = vmul.f32 %v1668, %v1323
        %v1670 = vmul.f32 %v1668, %v1324
        %v1671 = vmul.f32 %v1668, %v1325
        %v1672 = vmul.f32 %v1668, %v1326
        %1677 = vrot.lane.b32.xlu0 %v1669, 126
        %v1678 = vpop.permute.xlu0 %1677
        %1679 = vrot.lane.b32.xlu0 %v1670, 126
        %v1680 = vpop.permute.xlu0 %1679
        %1681 = vrot.lane.b32.xlu0 %v1671, 126
        %v1682 = vpop.permute.xlu0 %1681
        %1683 = vrot.lane.b32.xlu0 %v1672, 126
        %v1684 = vpop.permute.xlu0 %1683
        %v1689 = vadd.f32 %v1481, %v1678
        %v1690 = vadd.f32 %v1482, %v1680
        %v1691 = vadd.f32 %v1483, %v1682
        %v1692 = vadd.f32 %v1484, %v1684
        %s1693 = sld [smem:[#allocation3 + $0x74]]
        %v1694 = vstv %s1693
        %v1695 = vmul.f32 %v1694, %v1323
        %v1696 = vmul.f32 %v1694, %v1324
        %v1697 = vmul.f32 %v1694, %v1325
        %v1698 = vmul.f32 %v1694, %v1326
        %1703 = vrot.lane.b32.xlu0 %v1695, 126
        %v1704 = vpop.permute.xlu0 %1703
        %1705 = vrot.lane.b32.xlu0 %v1696, 126
        %v1706 = vpop.permute.xlu0 %1705
        %1707 = vrot.lane.b32.xlu0 %v1697, 126
        %v1708 = vpop.permute.xlu0 %1707
        %1709 = vrot.lane.b32.xlu0 %v1698, 126
        %v1710 = vpop.permute.xlu0 %1709
        %v1715 = vadd.f32 %v1507, %v1704
        %v1716 = vadd.f32 %v1508, %v1706
        %v1717 = vadd.f32 %v1509, %v1708
        %v1718 = vadd.f32 %v1510, %v1710
        %s1719 = sld [smem:[#allocation3 + $0x98]]
        %v1720 = vstv %s1719
        %v1721 = vmul.f32 %v1720, %v1323
        %v1722 = vmul.f32 %v1720, %v1324
        %v1723 = vmul.f32 %v1720, %v1325
        %v1724 = vmul.f32 %v1720, %v1326
        %1729 = vrot.lane.b32.xlu0 %v1721, 126
        %v1730 = vpop.permute.xlu0 %1729
        %1731 = vrot.lane.b32.xlu0 %v1722, 126
        %v1732 = vpop.permute.xlu0 %1731
        %1733 = vrot.lane.b32.xlu0 %v1723, 126
        %v1734 = vpop.permute.xlu0 %1733
        %1735 = vrot.lane.b32.xlu0 %v1724, 126
        %v1736 = vpop.permute.xlu0 %1735
        %v1741 = vadd.f32 %v1533, %v1730
        %v1742 = vadd.f32 %v1534, %v1732
        %v1743 = vadd.f32 %v1535, %v1734
        %v1744 = vadd.f32 %v1536, %v1736
        %s1745 = sld [smem:[#allocation3 + $0xbc]]
        %v1746 = vstv %s1745
        %v1747 = vmul.f32 %v1746, %v1323
        %v1748 = vmul.f32 %v1746, %v1324
        %v1749 = vmul.f32 %v1746, %v1325
        %v1750 = vmul.f32 %v1746, %v1326
        %1755 = vrot.lane.b32.xlu0 %v1747, 126
        %v1756 = vpop.permute.xlu0 %1755
        %1757 = vrot.lane.b32.xlu0 %v1748, 126
        %v1758 = vpop.permute.xlu0 %1757
        %1759 = vrot.lane.b32.xlu0 %v1749, 126
        %v1760 = vpop.permute.xlu0 %1759
        %1761 = vrot.lane.b32.xlu0 %v1750, 126
        %v1762 = vpop.permute.xlu0 %1761
        %v1767 = vadd.f32 %v1559, %v1756
        %v1768 = vadd.f32 %v1560, %v1758
        %v1769 = vadd.f32 %v1561, %v1760
        %v1770 = vadd.f32 %v1562, %v1762
        %s1771 = sld [smem:[#allocation3 + $0xe0]]
        %v1772 = vstv %s1771
        %v1773 = vmul.f32 %v1772, %v1323
        %v1774 = vmul.f32 %v1772, %v1324
        %v1775 = vmul.f32 %v1772, %v1325
        %v1776 = vmul.f32 %v1772, %v1326
        %1781 = vrot.lane.b32.xlu0 %v1773, 126
        %v1782 = vpop.permute.xlu0 %1781
        %1783 = vrot.lane.b32.xlu0 %v1774, 126
        %v1784 = vpop.permute.xlu0 %1783
        %1785 = vrot.lane.b32.xlu0 %v1775, 126
        %v1786 = vpop.permute.xlu0 %1785
        %1787 = vrot.lane.b32.xlu0 %v1776, 126
        %v1788 = vpop.permute.xlu0 %1787
        %v1793 = vadd.f32 %v1585, %v1782
        %v1794 = vadd.f32 %v1586, %v1784
        %v1795 = vadd.f32 %v1587, %v1786
        %v1796 = vadd.f32 %v1588, %v1788
        %s1797 = sld [smem:[#allocation3 + $0x104]]
        %v1798 = vstv %s1797
        %v1799 = vmul.f32 %v1798, %v1323
        %v1800 = vmul.f32 %v1798, %v1324
        %v1801 = vmul.f32 %v1798, %v1325
        %v1802 = vmul.f32 %v1798, %v1326
        %1807 = vrot.lane.b32.xlu0 %v1799, 126
        %v1808 = vpop.permute.xlu0 %1807
        %1809 = vrot.lane.b32.xlu0 %v1800, 126
        %v1810 = vpop.permute.xlu0 %1809
        %1811 = vrot.lane.b32.xlu0 %v1801, 126
        %v1812 = vpop.permute.xlu0 %1811
        %1813 = vrot.lane.b32.xlu0 %v1802, 126
        %v1814 = vpop.permute.xlu0 %1813
        %v1819 = vadd.f32 %v1611, %v1808
        %v1820 = vadd.f32 %v1612, %v1810
        %v1821 = vadd.f32 %v1613, %v1812
        %v1822 = vadd.f32 %v1614, %v1814
        %s1823 = scalar_lea.vmem [#allocation2], 40
        %v1824 = vld [vmem:[%s1823] sm:$0xff]
        %v1825 = vld [vmem:[%s1823 + $0x8] sm:$0xff]
        %v1826 = vld [vmem:[%s1823 + $0x10] sm:$0xff]
        %v1827 = vld [vmem:[%s1823 + $0x18] sm:$0xff]
        %s1828 = sld [smem:[#allocation3 + $0x9]]
        %v1829 = vstv %s1828
        %v1830 = vmul.f32 %v1829, %v1824
        %v1831 = vmul.f32 %v1829, %v1825
        %v1832 = vmul.f32 %v1829, %v1826
        %v1833 = vmul.f32 %v1829, %v1827
        %v1834 = vadd.f32 %v1637, %v1830
        %v1835 = vadd.f32 %v1638, %v1831
        %v1836 = vadd.f32 %v1639, %v1832
        %v1837 = vadd.f32 %v1640, %v1833
        %s1838 = sld [smem:[#allocation3 + $0x2d]]
        %v1839 = vstv %s1838
        %v1840 = vmul.f32 %v1839, %v1824
        %v1841 = vmul.f32 %v1839, %v1825
        %v1842 = vmul.f32 %v1839, %v1826
        %v1843 = vmul.f32 %v1839, %v1827
        %v1844 = vadd.f32 %v1663, %v1840
        %v1845 = vadd.f32 %v1664, %v1841
        %v1846 = vadd.f32 %v1665, %v1842
        %v1847 = vadd.f32 %v1666, %v1843
        %s1848 = sld [smem:[#allocation3 + $0x51]]
        %v1849 = vstv %s1848
        %v1850 = vmul.f32 %v1849, %v1824
        %v1851 = vmul.f32 %v1849, %v1825
        %v1852 = vmul.f32 %v1849, %v1826
        %v1853 = vmul.f32 %v1849, %v1827
        %v1854 = vadd.f32 %v1689, %v1850
        %v1855 = vadd.f32 %v1690, %v1851
        %v1856 = vadd.f32 %v1691, %v1852
        %v1857 = vadd.f32 %v1692, %v1853
        %s1858 = sld [smem:[#allocation3 + $0x75]]
        %v1859 = vstv %s1858
        %v1860 = vmul.f32 %v1859, %v1824
        %v1861 = vmul.f32 %v1859, %v1825
        %v1862 = vmul.f32 %v1859, %v1826
        %v1863 = vmul.f32 %v1859, %v1827
        %v1864 = vadd.f32 %v1715, %v1860
        %v1865 = vadd.f32 %v1716, %v1861
        %v1866 = vadd.f32 %v1717, %v1862
        %v1867 = vadd.f32 %v1718, %v1863
        %s1868 = sld [smem:[#allocation3 + $0x99]]
        %v1869 = vstv %s1868
        %v1870 = vmul.f32 %v1869, %v1824
        %v1871 = vmul.f32 %v1869, %v1825
        %v1872 = vmul.f32 %v1869, %v1826
        %v1873 = vmul.f32 %v1869, %v1827
        %v1874 = vadd.f32 %v1741, %v1870
        %v1875 = vadd.f32 %v1742, %v1871
        %v1876 = vadd.f32 %v1743, %v1872
        %v1877 = vadd.f32 %v1744, %v1873
        %s1878 = sld [smem:[#allocation3 + $0xbd]]
        %v1879 = vstv %s1878
        %v1880 = vmul.f32 %v1879, %v1824
        %v1881 = vmul.f32 %v1879, %v1825
        %v1882 = vmul.f32 %v1879, %v1826
        %v1883 = vmul.f32 %v1879, %v1827
        %v1884 = vadd.f32 %v1767, %v1880
        %v1885 = vadd.f32 %v1768, %v1881
        %v1886 = vadd.f32 %v1769, %v1882
        %v1887 = vadd.f32 %v1770, %v1883
        %s1888 = sld [smem:[#allocation3 + $0xe1]]
        %v1889 = vstv %s1888
        %v1890 = vmul.f32 %v1889, %v1824
        %v1891 = vmul.f32 %v1889, %v1825
        %v1892 = vmul.f32 %v1889, %v1826
        %v1893 = vmul.f32 %v1889, %v1827
        %v1894 = vadd.f32 %v1793, %v1890
        %v1895 = vadd.f32 %v1794, %v1891
        %v1896 = vadd.f32 %v1795, %v1892
        %v1897 = vadd.f32 %v1796, %v1893
        %s1898 = sld [smem:[#allocation3 + $0x105]]
        %v1899 = vstv %s1898
        %v1900 = vmul.f32 %v1899, %v1824
        %v1901 = vmul.f32 %v1899, %v1825
        %v1902 = vmul.f32 %v1899, %v1826
        %v1903 = vmul.f32 %v1899, %v1827
        %v1904 = vadd.f32 %v1819, %v1900
        %v1905 = vadd.f32 %v1820, %v1901
        %v1906 = vadd.f32 %v1821, %v1902
        %v1907 = vadd.f32 %v1822, %v1903
        %s1908 = sld [smem:[#allocation3 + $0xa]]
        %v1909 = vstv %s1908
        %v1910 = vmul.f32 %v1909, %v1824
        %v1911 = vmul.f32 %v1909, %v1825
        %v1912 = vmul.f32 %v1909, %v1826
        %v1913 = vmul.f32 %v1909, %v1827
        %1918 = vrot.lane.b32.xlu0 %v1910, 127
        %v1919 = vpop.permute.xlu0 %1918
        %1920 = vrot.lane.b32.xlu0 %v1911, 127
        %v1921 = vpop.permute.xlu0 %1920
        %1922 = vrot.lane.b32.xlu0 %v1912, 127
        %v1923 = vpop.permute.xlu0 %1922
        %1924 = vrot.lane.b32.xlu0 %v1913, 127
        %v1925 = vpop.permute.xlu0 %1924
        %v1930 = vadd.f32 %v1834, %v1919
        %v1931 = vadd.f32 %v1835, %v1921
        %v1932 = vadd.f32 %v1836, %v1923
        %v1933 = vadd.f32 %v1837, %v1925
        %s1934 = sld [smem:[#allocation3 + $0x2e]]
        %v1935 = vstv %s1934
        %v1936 = vmul.f32 %v1935, %v1824
        %v1937 = vmul.f32 %v1935, %v1825
        %v1938 = vmul.f32 %v1935, %v1826
        %v1939 = vmul.f32 %v1935, %v1827
        %1944 = vrot.lane.b32.xlu0 %v1936, 127
        %v1945 = vpop.permute.xlu0 %1944
        %1946 = vrot.lane.b32.xlu0 %v1937, 127
        %v1947 = vpop.permute.xlu0 %1946
        %1948 = vrot.lane.b32.xlu0 %v1938, 127
        %v1949 = vpop.permute.xlu0 %1948
        %1950 = vrot.lane.b32.xlu0 %v1939, 127
        %v1951 = vpop.permute.xlu0 %1950
        %v1956 = vadd.f32 %v1844, %v1945
        %v1957 = vadd.f32 %v1845, %v1947
        %v1958 = vadd.f32 %v1846, %v1949
        %v1959 = vadd.f32 %v1847, %v1951
        %s1960 = sld [smem:[#allocation3 + $0x52]]
        %v1961 = vstv %s1960
        %v1962 = vmul.f32 %v1961, %v1824
        %v1963 = vmul.f32 %v1961, %v1825
        %v1964 = vmul.f32 %v1961, %v1826
        %v1965 = vmul.f32 %v1961, %v1827
        %1970 = vrot.lane.b32.xlu0 %v1962, 127
        %v1971 = vpop.permute.xlu0 %1970
        %1972 = vrot.lane.b32.xlu0 %v1963, 127
        %v1973 = vpop.permute.xlu0 %1972
        %1974 = vrot.lane.b32.xlu0 %v1964, 127
        %v1975 = vpop.permute.xlu0 %1974
        %1976 = vrot.lane.b32.xlu0 %v1965, 127
        %v1977 = vpop.permute.xlu0 %1976
        %v1982 = vadd.f32 %v1854, %v1971
        %v1983 = vadd.f32 %v1855, %v1973
        %v1984 = vadd.f32 %v1856, %v1975
        %v1985 = vadd.f32 %v1857, %v1977
        %s1986 = sld [smem:[#allocation3 + $0x76]]
        %v1987 = vstv %s1986
        %v1988 = vmul.f32 %v1987, %v1824
        %v1989 = vmul.f32 %v1987, %v1825
        %v1990 = vmul.f32 %v1987, %v1826
        %v1991 = vmul.f32 %v1987, %v1827
        %1996 = vrot.lane.b32.xlu0 %v1988, 127
        %v1997 = vpop.permute.xlu0 %1996
        %1998 = vrot.lane.b32.xlu0 %v1989, 127
        %v1999 = vpop.permute.xlu0 %1998
        %2000 = vrot.lane.b32.xlu0 %v1990, 127
        %v2001 = vpop.permute.xlu0 %2000
        %2002 = vrot.lane.b32.xlu0 %v1991, 127
        %v2003 = vpop.permute.xlu0 %2002
        %v2008 = vadd.f32 %v1864, %v1997
        %v2009 = vadd.f32 %v1865, %v1999
        %v2010 = vadd.f32 %v1866, %v2001
        %v2011 = vadd.f32 %v1867, %v2003
        %s2012 = sld [smem:[#allocation3 + $0x9a]]
        %v2013 = vstv %s2012
        %v2014 = vmul.f32 %v2013, %v1824
        %v2015 = vmul.f32 %v2013, %v1825
        %v2016 = vmul.f32 %v2013, %v1826
        %v2017 = vmul.f32 %v2013, %v1827
        %2022 = vrot.lane.b32.xlu0 %v2014, 127
        %v2023 = vpop.permute.xlu0 %2022
        %2024 = vrot.lane.b32.xlu0 %v2015, 127
        %v2025 = vpop.permute.xlu0 %2024
        %2026 = vrot.lane.b32.xlu0 %v2016, 127
        %v2027 = vpop.permute.xlu0 %2026
        %2028 = vrot.lane.b32.xlu0 %v2017, 127
        %v2029 = vpop.permute.xlu0 %2028
        %v2034 = vadd.f32 %v1874, %v2023
        %v2035 = vadd.f32 %v1875, %v2025
        %v2036 = vadd.f32 %v1876, %v2027
        %v2037 = vadd.f32 %v1877, %v2029
        %s2038 = sld [smem:[#allocation3 + $0xbe]]
        %v2039 = vstv %s2038
        %v2040 = vmul.f32 %v2039, %v1824
        %v2041 = vmul.f32 %v2039, %v1825
        %v2042 = vmul.f32 %v2039, %v1826
        %v2043 = vmul.f32 %v2039, %v1827
        %2048 = vrot.lane.b32.xlu0 %v2040, 127
        %v2049 = vpop.permute.xlu0 %2048
        %2050 = vrot.lane.b32.xlu0 %v2041, 127
        %v2051 = vpop.permute.xlu0 %2050
        %2052 = vrot.lane.b32.xlu0 %v2042, 127
        %v2053 = vpop.permute.xlu0 %2052
        %2054 = vrot.lane.b32.xlu0 %v2043, 127
        %v2055 = vpop.permute.xlu0 %2054
        %v2060 = vadd.f32 %v1884, %v2049
        %v2061 = vadd.f32 %v1885, %v2051
        %v2062 = vadd.f32 %v1886, %v2053
        %v2063 = vadd.f32 %v1887, %v2055
        %s2064 = sld [smem:[#allocation3 + $0xe2]]
        %v2065 = vstv %s2064
        %v2066 = vmul.f32 %v2065, %v1824
        %v2067 = vmul.f32 %v2065, %v1825
        %v2068 = vmul.f32 %v2065, %v1826
        %v2069 = vmul.f32 %v2065, %v1827
        %2074 = vrot.lane.b32.xlu0 %v2066, 127
        %v2075 = vpop.permute.xlu0 %2074
        %2076 = vrot.lane.b32.xlu0 %v2067, 127
        %v2077 = vpop.permute.xlu0 %2076
        %2078 = vrot.lane.b32.xlu0 %v2068, 127
        %v2079 = vpop.permute.xlu0 %2078
        %2080 = vrot.lane.b32.xlu0 %v2069, 127
        %v2081 = vpop.permute.xlu0 %2080
        %v2086 = vadd.f32 %v1894, %v2075
        %v2087 = vadd.f32 %v1895, %v2077
        %v2088 = vadd.f32 %v1896, %v2079
        %v2089 = vadd.f32 %v1897, %v2081
        %s2090 = sld [smem:[#allocation3 + $0x106]]
        %v2091 = vstv %s2090
        %v2092 = vmul.f32 %v2091, %v1824
        %v2093 = vmul.f32 %v2091, %v1825
        %v2094 = vmul.f32 %v2091, %v1826
        %v2095 = vmul.f32 %v2091, %v1827
        %2100 = vrot.lane.b32.xlu0 %v2092, 127
        %v2101 = vpop.permute.xlu0 %2100
        %2102 = vrot.lane.b32.xlu0 %v2093, 127
        %v2103 = vpop.permute.xlu0 %2102
        %2104 = vrot.lane.b32.xlu0 %v2094, 127
        %v2105 = vpop.permute.xlu0 %2104
        %2106 = vrot.lane.b32.xlu0 %v2095, 127
        %v2107 = vpop.permute.xlu0 %2106
        %v2112 = vadd.f32 %v1904, %v2101
        %v2113 = vadd.f32 %v1905, %v2103
        %v2114 = vadd.f32 %v1906, %v2105
        %v2115 = vadd.f32 %v1907, %v2107
        %s2116 = sld [smem:[#allocation3 + $0xb]]
        %v2117 = vstv %s2116
        %v2118 = vmul.f32 %v2117, %v1824
        %v2119 = vmul.f32 %v2117, %v1825
        %v2120 = vmul.f32 %v2117, %v1826
        %v2121 = vmul.f32 %v2117, %v1827
        %2126 = vrot.lane.b32.xlu0 %v2118, 126
        %v2127 = vpop.permute.xlu0 %2126
        %2128 = vrot.lane.b32.xlu0 %v2119, 126
        %v2129 = vpop.permute.xlu0 %2128
        %2130 = vrot.lane.b32.xlu0 %v2120, 126
        %v2131 = vpop.permute.xlu0 %2130
        %2132 = vrot.lane.b32.xlu0 %v2121, 126
        %v2133 = vpop.permute.xlu0 %2132
        %v2138 = vadd.f32 %v1930, %v2127
        %v2139 = vadd.f32 %v1931, %v2129
        %v2140 = vadd.f32 %v1932, %v2131
        %v2141 = vadd.f32 %v1933, %v2133
        %s2142 = sld [smem:[#allocation3 + $0x2f]]
        %v2143 = vstv %s2142
        %v2144 = vmul.f32 %v2143, %v1824
        %v2145 = vmul.f32 %v2143, %v1825
        %v2146 = vmul.f32 %v2143, %v1826
        %v2147 = vmul.f32 %v2143, %v1827
        %2152 = vrot.lane.b32.xlu0 %v2144, 126
        %v2153 = vpop.permute.xlu0 %2152
        %2154 = vrot.lane.b32.xlu0 %v2145, 126
        %v2155 = vpop.permute.xlu0 %2154
        %2156 = vrot.lane.b32.xlu0 %v2146, 126
        %v2157 = vpop.permute.xlu0 %2156
        %2158 = vrot.lane.b32.xlu0 %v2147, 126
        %v2159 = vpop.permute.xlu0 %2158
        %v2164 = vadd.f32 %v1956, %v2153
        %v2165 = vadd.f32 %v1957, %v2155
        %v2166 = vadd.f32 %v1958, %v2157
        %v2167 = vadd.f32 %v1959, %v2159
        %s2168 = sld [smem:[#allocation3 + $0x53]]
        %v2169 = vstv %s2168
        %v2170 = vmul.f32 %v2169, %v1824
        %v2171 = vmul.f32 %v2169, %v1825
        %v2172 = vmul.f32 %v2169, %v1826
        %v2173 = vmul.f32 %v2169, %v1827
        %2178 = vrot.lane.b32.xlu0 %v2170, 126
        %v2179 = vpop.permute.xlu0 %2178
        %2180 = vrot.lane.b32.xlu0 %v2171, 126
        %v2181 = vpop.permute.xlu0 %2180
        %2182 = vrot.lane.b32.xlu0 %v2172, 126
        %v2183 = vpop.permute.xlu0 %2182
        %2184 = vrot.lane.b32.xlu0 %v2173, 126
        %v2185 = vpop.permute.xlu0 %2184
        %v2190 = vadd.f32 %v1982, %v2179
        %v2191 = vadd.f32 %v1983, %v2181
        %v2192 = vadd.f32 %v1984, %v2183
        %v2193 = vadd.f32 %v1985, %v2185
        %s2194 = sld [smem:[#allocation3 + $0x77]]
        %v2195 = vstv %s2194
        %v2196 = vmul.f32 %v2195, %v1824
        %v2197 = vmul.f32 %v2195, %v1825
        %v2198 = vmul.f32 %v2195, %v1826
        %v2199 = vmul.f32 %v2195, %v1827
        %2204 = vrot.lane.b32.xlu0 %v2196, 126
        %v2205 = vpop.permute.xlu0 %2204
        %2206 = vrot.lane.b32.xlu0 %v2197, 126
        %v2207 = vpop.permute.xlu0 %2206
        %2208 = vrot.lane.b32.xlu0 %v2198, 126
        %v2209 = vpop.permute.xlu0 %2208
        %2210 = vrot.lane.b32.xlu0 %v2199, 126
        %v2211 = vpop.permute.xlu0 %2210
        %v2216 = vadd.f32 %v2008, %v2205
        %v2217 = vadd.f32 %v2009, %v2207
        %v2218 = vadd.f32 %v2010, %v2209
        %v2219 = vadd.f32 %v2011, %v2211
        %s2220 = sld [smem:[#allocation3 + $0x9b]]
        %v2221 = vstv %s2220
        %v2222 = vmul.f32 %v2221, %v1824
        %v2223 = vmul.f32 %v2221, %v1825
        %v2224 = vmul.f32 %v2221, %v1826
        %v2225 = vmul.f32 %v2221, %v1827
        %2230 = vrot.lane.b32.xlu0 %v2222, 126
        %v2231 = vpop.permute.xlu0 %2230
        %2232 = vrot.lane.b32.xlu0 %v2223, 126
        %v2233 = vpop.permute.xlu0 %2232
        %2234 = vrot.lane.b32.xlu0 %v2224, 126
        %v2235 = vpop.permute.xlu0 %2234
        %2236 = vrot.lane.b32.xlu0 %v2225, 126
        %v2237 = vpop.permute.xlu0 %2236
        %v2242 = vadd.f32 %v2034, %v2231
        %v2243 = vadd.f32 %v2035, %v2233
        %v2244 = vadd.f32 %v2036, %v2235
        %v2245 = vadd.f32 %v2037, %v2237
        %s2246 = sld [smem:[#allocation3 + $0xbf]]
        %v2247 = vstv %s2246
        %v2248 = vmul.f32 %v2247, %v1824
        %v2249 = vmul.f32 %v2247, %v1825
        %v2250 = vmul.f32 %v2247, %v1826
        %v2251 = vmul.f32 %v2247, %v1827
        %2256 = vrot.lane.b32.xlu0 %v2248, 126
        %v2257 = vpop.permute.xlu0 %2256
        %2258 = vrot.lane.b32.xlu0 %v2249, 126
        %v2259 = vpop.permute.xlu0 %2258
        %2260 = vrot.lane.b32.xlu0 %v2250, 126
        %v2261 = vpop.permute.xlu0 %2260
        %2262 = vrot.lane.b32.xlu0 %v2251, 126
        %v2263 = vpop.permute.xlu0 %2262
        %v2268 = vadd.f32 %v2060, %v2257
        %v2269 = vadd.f32 %v2061, %v2259
        %v2270 = vadd.f32 %v2062, %v2261
        %v2271 = vadd.f32 %v2063, %v2263
        %s2272 = sld [smem:[#allocation3 + $0xe3]]
        %v2273 = vstv %s2272
        %v2274 = vmul.f32 %v2273, %v1824
        %v2275 = vmul.f32 %v2273, %v1825
        %v2276 = vmul.f32 %v2273, %v1826
        %v2277 = vmul.f32 %v2273, %v1827
        %2282 = vrot.lane.b32.xlu0 %v2274, 126
        %v2283 = vpop.permute.xlu0 %2282
        %2284 = vrot.lane.b32.xlu0 %v2275, 126
        %v2285 = vpop.permute.xlu0 %2284
        %2286 = vrot.lane.b32.xlu0 %v2276, 126
        %v2287 = vpop.permute.xlu0 %2286
        %2288 = vrot.lane.b32.xlu0 %v2277, 126
        %v2289 = vpop.permute.xlu0 %2288
        %v2294 = vadd.f32 %v2086, %v2283
        %v2295 = vadd.f32 %v2087, %v2285
        %v2296 = vadd.f32 %v2088, %v2287
        %v2297 = vadd.f32 %v2089, %v2289
        %s2298 = sld [smem:[#allocation3 + $0x107]]
        %v2299 = vstv %s2298
        %v2300 = vmul.f32 %v2299, %v1824
        %v2301 = vmul.f32 %v2299, %v1825
        %v2302 = vmul.f32 %v2299, %v1826
        %v2303 = vmul.f32 %v2299, %v1827
        %2308 = vrot.lane.b32.xlu0 %v2300, 126
        %v2309 = vpop.permute.xlu0 %2308
        %2310 = vrot.lane.b32.xlu0 %v2301, 126
        %v2311 = vpop.permute.xlu0 %2310
        %2312 = vrot.lane.b32.xlu0 %v2302, 126
        %v2313 = vpop.permute.xlu0 %2312
        %2314 = vrot.lane.b32.xlu0 %v2303, 126
        %v2315 = vpop.permute.xlu0 %2314
        %v2320 = vadd.f32 %v2112, %v2309
        %v2321 = vadd.f32 %v2113, %v2311
        %v2322 = vadd.f32 %v2114, %v2313
        %v2323 = vadd.f32 %v2115, %v2315
        %v2324 = vld [vmem:[%s1823 + $0x1] sm:$0xff]
        %v2325 = vld [vmem:[%s1823 + $0x9] sm:$0xff]
        %v2326 = vld [vmem:[%s1823 + $0x11] sm:$0xff]
        %v2327 = vld [vmem:[%s1823 + $0x19] sm:$0xff]
        %s2328 = sld [smem:[#allocation3 + $0xc]]
        %v2329 = vstv %s2328
        %v2330 = vmul.f32 %v2329, %v2324
        %v2331 = vmul.f32 %v2329, %v2325
        %v2332 = vmul.f32 %v2329, %v2326
        %v2333 = vmul.f32 %v2329, %v2327
        %v2334 = vadd.f32 %v2138, %v2330
        %v2335 = vadd.f32 %v2139, %v2331
        %v2336 = vadd.f32 %v2140, %v2332
        %v2337 = vadd.f32 %v2141, %v2333
        %s2338 = sld [smem:[#allocation3 + $0x30]]
        %v2339 = vstv %s2338
        %v2340 = vmul.f32 %v2339, %v2324
        %v2341 = vmul.f32 %v2339, %v2325
        %v2342 = vmul.f32 %v2339, %v2326
        %v2343 = vmul.f32 %v2339, %v2327
        %v2344 = vadd.f32 %v2164, %v2340
        %v2345 = vadd.f32 %v2165, %v2341
        %v2346 = vadd.f32 %v2166, %v2342
        %v2347 = vadd.f32 %v2167, %v2343
        %s2348 = sld [smem:[#allocation3 + $0x54]]
        %v2349 = vstv %s2348
        %v2350 = vmul.f32 %v2349, %v2324
        %v2351 = vmul.f32 %v2349, %v2325
        %v2352 = vmul.f32 %v2349, %v2326
        %v2353 = vmul.f32 %v2349, %v2327
        %v2354 = vadd.f32 %v2190, %v2350
        %v2355 = vadd.f32 %v2191, %v2351
        %v2356 = vadd.f32 %v2192, %v2352
        %v2357 = vadd.f32 %v2193, %v2353
        %s2358 = sld [smem:[#allocation3 + $0x78]]
        %v2359 = vstv %s2358
        %v2360 = vmul.f32 %v2359, %v2324
        %v2361 = vmul.f32 %v2359, %v2325
        %v2362 = vmul.f32 %v2359, %v2326
        %v2363 = vmul.f32 %v2359, %v2327
        %v2364 = vadd.f32 %v2216, %v2360
        %v2365 = vadd.f32 %v2217, %v2361
        %v2366 = vadd.f32 %v2218, %v2362
        %v2367 = vadd.f32 %v2219, %v2363
        %s2368 = sld [smem:[#allocation3 + $0x9c]]
        %v2369 = vstv %s2368
        %v2370 = vmul.f32 %v2369, %v2324
        %v2371 = vmul.f32 %v2369, %v2325
        %v2372 = vmul.f32 %v2369, %v2326
        %v2373 = vmul.f32 %v2369, %v2327
        %v2374 = vadd.f32 %v2242, %v2370
        %v2375 = vadd.f32 %v2243, %v2371
        %v2376 = vadd.f32 %v2244, %v2372
        %v2377 = vadd.f32 %v2245, %v2373
        %s2378 = sld [smem:[#allocation3 + $0xc0]]
        %v2379 = vstv %s2378
        %v2380 = vmul.f32 %v2379, %v2324
        %v2381 = vmul.f32 %v2379, %v2325
        %v2382 = vmul.f32 %v2379, %v2326
        %v2383 = vmul.f32 %v2379, %v2327
        %v2384 = vadd.f32 %v2268, %v2380
        %v2385 = vadd.f32 %v2269, %v2381
        %v2386 = vadd.f32 %v2270, %v2382
        %v2387 = vadd.f32 %v2271, %v2383
        %s2388 = sld [smem:[#allocation3 + $0xe4]]
        %v2389 = vstv %s2388
        %v2390 = vmul.f32 %v2389, %v2324
        %v2391 = vmul.f32 %v2389, %v2325
        %v2392 = vmul.f32 %v2389, %v2326
        %v2393 = vmul.f32 %v2389, %v2327
        %v2394 = vadd.f32 %v2294, %v2390
        %v2395 = vadd.f32 %v2295, %v2391
        %v2396 = vadd.f32 %v2296, %v2392
        %v2397 = vadd.f32 %v2297, %v2393
        %s2398 = sld [smem:[#allocation3 + $0x108]]
        %v2399 = vstv %s2398
        %v2400 = vmul.f32 %v2399, %v2324
        %v2401 = vmul.f32 %v2399, %v2325
        %v2402 = vmul.f32 %v2399, %v2326
        %v2403 = vmul.f32 %v2399, %v2327
        %v2404 = vadd.f32 %v2320, %v2400
        %v2405 = vadd.f32 %v2321, %v2401
        %v2406 = vadd.f32 %v2322, %v2402
        %v2407 = vadd.f32 %v2323, %v2403
        %s2408 = sld [smem:[#allocation3 + $0xd]]
        %v2409 = vstv %s2408
        %v2410 = vmul.f32 %v2409, %v2324
        %v2411 = vmul.f32 %v2409, %v2325
        %v2412 = vmul.f32 %v2409, %v2326
        %v2413 = vmul.f32 %v2409, %v2327
        %2418 = vrot.lane.b32.xlu0 %v2410, 127
        %v2419 = vpop.permute.xlu0 %2418
        %2420 = vrot.lane.b32.xlu0 %v2411, 127
        %v2421 = vpop.permute.xlu0 %2420
        %2422 = vrot.lane.b32.xlu0 %v2412, 127
        %v2423 = vpop.permute.xlu0 %2422
        %2424 = vrot.lane.b32.xlu0 %v2413, 127
        %v2425 = vpop.permute.xlu0 %2424
        %v2430 = vadd.f32 %v2334, %v2419
        %v2431 = vadd.f32 %v2335, %v2421
        %v2432 = vadd.f32 %v2336, %v2423
        %v2433 = vadd.f32 %v2337, %v2425
        %s2434 = sld [smem:[#allocation3 + $0x31]]
        %v2435 = vstv %s2434
        %v2436 = vmul.f32 %v2435, %v2324
        %v2437 = vmul.f32 %v2435, %v2325
        %v2438 = vmul.f32 %v2435, %v2326
        %v2439 = vmul.f32 %v2435, %v2327
        %2444 = vrot.lane.b32.xlu0 %v2436, 127
        %v2445 = vpop.permute.xlu0 %2444
        %2446 = vrot.lane.b32.xlu0 %v2437, 127
        %v2447 = vpop.permute.xlu0 %2446
        %2448 = vrot.lane.b32.xlu0 %v2438, 127
        %v2449 = vpop.permute.xlu0 %2448
        %2450 = vrot.lane.b32.xlu0 %v2439, 127
        %v2451 = vpop.permute.xlu0 %2450
        %v2456 = vadd.f32 %v2344, %v2445
        %v2457 = vadd.f32 %v2345, %v2447
        %v2458 = vadd.f32 %v2346, %v2449
        %v2459 = vadd.f32 %v2347, %v2451
        %s2460 = sld [smem:[#allocation3 + $0x55]]
        %v2461 = vstv %s2460
        %v2462 = vmul.f32 %v2461, %v2324
        %v2463 = vmul.f32 %v2461, %v2325
        %v2464 = vmul.f32 %v2461, %v2326
        %v2465 = vmul.f32 %v2461, %v2327
        %2470 = vrot.lane.b32.xlu0 %v2462, 127
        %v2471 = vpop.permute.xlu0 %2470
        %2472 = vrot.lane.b32.xlu0 %v2463, 127
        %v2473 = vpop.permute.xlu0 %2472
        %2474 = vrot.lane.b32.xlu0 %v2464, 127
        %v2475 = vpop.permute.xlu0 %2474
        %2476 = vrot.lane.b32.xlu0 %v2465, 127
        %v2477 = vpop.permute.xlu0 %2476
        %v2482 = vadd.f32 %v2354, %v2471
        %v2483 = vadd.f32 %v2355, %v2473
        %v2484 = vadd.f32 %v2356, %v2475
        %v2485 = vadd.f32 %v2357, %v2477
        %s2486 = sld [smem:[#allocation3 + $0x79]]
        %v2487 = vstv %s2486
        %v2488 = vmul.f32 %v2487, %v2324
        %v2489 = vmul.f32 %v2487, %v2325
        %v2490 = vmul.f32 %v2487, %v2326
        %v2491 = vmul.f32 %v2487, %v2327
        %2496 = vrot.lane.b32.xlu0 %v2488, 127
        %v2497 = vpop.permute.xlu0 %2496
        %2498 = vrot.lane.b32.xlu0 %v2489, 127
        %v2499 = vpop.permute.xlu0 %2498
        %2500 = vrot.lane.b32.xlu0 %v2490, 127
        %v2501 = vpop.permute.xlu0 %2500
        %2502 = vrot.lane.b32.xlu0 %v2491, 127
        %v2503 = vpop.permute.xlu0 %2502
        %v2508 = vadd.f32 %v2364, %v2497
        %v2509 = vadd.f32 %v2365, %v2499
        %v2510 = vadd.f32 %v2366, %v2501
        %v2511 = vadd.f32 %v2367, %v2503
        %s2512 = sld [smem:[#allocation3 + $0x9d]]
        %v2513 = vstv %s2512
        %v2514 = vmul.f32 %v2513, %v2324
        %v2515 = vmul.f32 %v2513, %v2325
        %v2516 = vmul.f32 %v2513, %v2326
        %v2517 = vmul.f32 %v2513, %v2327
        %2522 = vrot.lane.b32.xlu0 %v2514, 127
        %v2523 = vpop.permute.xlu0 %2522
        %2524 = vrot.lane.b32.xlu0 %v2515, 127
        %v2525 = vpop.permute.xlu0 %2524
        %2526 = vrot.lane.b32.xlu0 %v2516, 127
        %v2527 = vpop.permute.xlu0 %2526
        %2528 = vrot.lane.b32.xlu0 %v2517, 127
        %v2529 = vpop.permute.xlu0 %2528
        %v2534 = vadd.f32 %v2374, %v2523
        %v2535 = vadd.f32 %v2375, %v2525
        %v2536 = vadd.f32 %v2376, %v2527
        %v2537 = vadd.f32 %v2377, %v2529
        %s2538 = sld [smem:[#allocation3 + $0xc1]]
        %v2539 = vstv %s2538
        %v2540 = vmul.f32 %v2539, %v2324
        %v2541 = vmul.f32 %v2539, %v2325
        %v2542 = vmul.f32 %v2539, %v2326
        %v2543 = vmul.f32 %v2539, %v2327
        %2548 = vrot.lane.b32.xlu0 %v2540, 127
        %v2549 = vpop.permute.xlu0 %2548
        %2550 = vrot.lane.b32.xlu0 %v2541, 127
        %v2551 = vpop.permute.xlu0 %2550
        %2552 = vrot.lane.b32.xlu0 %v2542, 127
        %v2553 = vpop.permute.xlu0 %2552
        %2554 = vrot.lane.b32.xlu0 %v2543, 127
        %v2555 = vpop.permute.xlu0 %2554
        %v2560 = vadd.f32 %v2384, %v2549
        %v2561 = vadd.f32 %v2385, %v2551
        %v2562 = vadd.f32 %v2386, %v2553
        %v2563 = vadd.f32 %v2387, %v2555
        %s2564 = sld [smem:[#allocation3 + $0xe5]]
        %v2565 = vstv %s2564
        %v2566 = vmul.f32 %v2565, %v2324
        %v2567 = vmul.f32 %v2565, %v2325
        %v2568 = vmul.f32 %v2565, %v2326
        %v2569 = vmul.f32 %v2565, %v2327
        %2574 = vrot.lane.b32.xlu0 %v2566, 127
        %v2575 = vpop.permute.xlu0 %2574
        %2576 = vrot.lane.b32.xlu0 %v2567, 127
        %v2577 = vpop.permute.xlu0 %2576
        %2578 = vrot.lane.b32.xlu0 %v2568, 127
        %v2579 = vpop.permute.xlu0 %2578
        %2580 = vrot.lane.b32.xlu0 %v2569, 127
        %v2581 = vpop.permute.xlu0 %2580
        %v2586 = vadd.f32 %v2394, %v2575
        %v2587 = vadd.f32 %v2395, %v2577
        %v2588 = vadd.f32 %v2396, %v2579
        %v2589 = vadd.f32 %v2397, %v2581
        %s2590 = sld [smem:[#allocation3 + $0x109]]
        %v2591 = vstv %s2590
        %v2592 = vmul.f32 %v2591, %v2324
        %v2593 = vmul.f32 %v2591, %v2325
        %v2594 = vmul.f32 %v2591, %v2326
        %v2595 = vmul.f32 %v2591, %v2327
        %2600 = vrot.lane.b32.xlu0 %v2592, 127
        %v2601 = vpop.permute.xlu0 %2600
        %2602 = vrot.lane.b32.xlu0 %v2593, 127
        %v2603 = vpop.permute.xlu0 %2602
        %2604 = vrot.lane.b32.xlu0 %v2594, 127
        %v2605 = vpop.permute.xlu0 %2604
        %2606 = vrot.lane.b32.xlu0 %v2595, 127
        %v2607 = vpop.permute.xlu0 %2606
        %v2612 = vadd.f32 %v2404, %v2601
        %v2613 = vadd.f32 %v2405, %v2603
        %v2614 = vadd.f32 %v2406, %v2605
        %v2615 = vadd.f32 %v2407, %v2607
        %s2616 = sld [smem:[#allocation3 + $0xe]]
        %v2617 = vstv %s2616
        %v2618 = vmul.f32 %v2617, %v2324
        %v2619 = vmul.f32 %v2617, %v2325
        %v2620 = vmul.f32 %v2617, %v2326
        %v2621 = vmul.f32 %v2617, %v2327
        %2626 = vrot.lane.b32.xlu0 %v2618, 126
        %v2627 = vpop.permute.xlu0 %2626
        %2628 = vrot.lane.b32.xlu0 %v2619, 126
        %v2629 = vpop.permute.xlu0 %2628
        %2630 = vrot.lane.b32.xlu0 %v2620, 126
        %v2631 = vpop.permute.xlu0 %2630
        %2632 = vrot.lane.b32.xlu0 %v2621, 126
        %v2633 = vpop.permute.xlu0 %2632
        %v2638 = vadd.f32 %v2430, %v2627
        %v2639 = vadd.f32 %v2431, %v2629
        %v2640 = vadd.f32 %v2432, %v2631
        %v2641 = vadd.f32 %v2433, %v2633
        %s2642 = sld [smem:[#allocation3 + $0x32]]
        %v2643 = vstv %s2642
        %v2644 = vmul.f32 %v2643, %v2324
        %v2645 = vmul.f32 %v2643, %v2325
        %v2646 = vmul.f32 %v2643, %v2326
        %v2647 = vmul.f32 %v2643, %v2327
        %2652 = vrot.lane.b32.xlu0 %v2644, 126
        %v2653 = vpop.permute.xlu0 %2652
        %2654 = vrot.lane.b32.xlu0 %v2645, 126
        %v2655 = vpop.permute.xlu0 %2654
        %2656 = vrot.lane.b32.xlu0 %v2646, 126
        %v2657 = vpop.permute.xlu0 %2656
        %2658 = vrot.lane.b32.xlu0 %v2647, 126
        %v2659 = vpop.permute.xlu0 %2658
        %v2664 = vadd.f32 %v2456, %v2653
        %v2665 = vadd.f32 %v2457, %v2655
        %v2666 = vadd.f32 %v2458, %v2657
        %v2667 = vadd.f32 %v2459, %v2659
        %s2668 = sld [smem:[#allocation3 + $0x56]]
        %v2669 = vstv %s2668
        %v2670 = vmul.f32 %v2669, %v2324
        %v2671 = vmul.f32 %v2669, %v2325
        %v2672 = vmul.f32 %v2669, %v2326
        %v2673 = vmul.f32 %v2669, %v2327
        %2678 = vrot.lane.b32.xlu0 %v2670, 126
        %v2679 = vpop.permute.xlu0 %2678
        %2680 = vrot.lane.b32.xlu0 %v2671, 126
        %v2681 = vpop.permute.xlu0 %2680
        %2682 = vrot.lane.b32.xlu0 %v2672, 126
        %v2683 = vpop.permute.xlu0 %2682
        %2684 = vrot.lane.b32.xlu0 %v2673, 126
        %v2685 = vpop.permute.xlu0 %2684
        %v2690 = vadd.f32 %v2482, %v2679
        %v2691 = vadd.f32 %v2483, %v2681
        %v2692 = vadd.f32 %v2484, %v2683
        %v2693 = vadd.f32 %v2485, %v2685
        %s2694 = sld [smem:[#allocation3 + $0x7a]]
        %v2695 = vstv %s2694
        %v2696 = vmul.f32 %v2695, %v2324
        %v2697 = vmul.f32 %v2695, %v2325
        %v2698 = vmul.f32 %v2695, %v2326
        %v2699 = vmul.f32 %v2695, %v2327
        %2704 = vrot.lane.b32.xlu0 %v2696, 126
        %v2705 = vpop.permute.xlu0 %2704
        %2706 = vrot.lane.b32.xlu0 %v2697, 126
        %v2707 = vpop.permute.xlu0 %2706
        %2708 = vrot.lane.b32.xlu0 %v2698, 126
        %v2709 = vpop.permute.xlu0 %2708
        %2710 = vrot.lane.b32.xlu0 %v2699, 126
        %v2711 = vpop.permute.xlu0 %2710
        %v2716 = vadd.f32 %v2508, %v2705
        %v2717 = vadd.f32 %v2509, %v2707
        %v2718 = vadd.f32 %v2510, %v2709
        %v2719 = vadd.f32 %v2511, %v2711
        %s2720 = sld [smem:[#allocation3 + $0x9e]]
        %v2721 = vstv %s2720
        %v2722 = vmul.f32 %v2721, %v2324
        %v2723 = vmul.f32 %v2721, %v2325
        %v2724 = vmul.f32 %v2721, %v2326
        %v2725 = vmul.f32 %v2721, %v2327
        %2730 = vrot.lane.b32.xlu0 %v2722, 126
        %v2731 = vpop.permute.xlu0 %2730
        %2732 = vrot.lane.b32.xlu0 %v2723, 126
        %v2733 = vpop.permute.xlu0 %2732
        %2734 = vrot.lane.b32.xlu0 %v2724, 126
        %v2735 = vpop.permute.xlu0 %2734
        %2736 = vrot.lane.b32.xlu0 %v2725, 126
        %v2737 = vpop.permute.xlu0 %2736
        %v2742 = vadd.f32 %v2534, %v2731
        %v2743 = vadd.f32 %v2535, %v2733
        %v2744 = vadd.f32 %v2536, %v2735
        %v2745 = vadd.f32 %v2537, %v2737
        %s2746 = sld [smem:[#allocation3 + $0xc2]]
        %v2747 = vstv %s2746
        %v2748 = vmul.f32 %v2747, %v2324
        %v2749 = vmul.f32 %v2747, %v2325
        %v2750 = vmul.f32 %v2747, %v2326
        %v2751 = vmul.f32 %v2747, %v2327
        %2756 = vrot.lane.b32.xlu0 %v2748, 126
        %v2757 = vpop.permute.xlu0 %2756
        %2758 = vrot.lane.b32.xlu0 %v2749, 126
        %v2759 = vpop.permute.xlu0 %2758
        %2760 = vrot.lane.b32.xlu0 %v2750, 126
        %v2761 = vpop.permute.xlu0 %2760
        %2762 = vrot.lane.b32.xlu0 %v2751, 126
        %v2763 = vpop.permute.xlu0 %2762
        %v2768 = vadd.f32 %v2560, %v2757
        %v2769 = vadd.f32 %v2561, %v2759
        %v2770 = vadd.f32 %v2562, %v2761
        %v2771 = vadd.f32 %v2563, %v2763
        %s2772 = sld [smem:[#allocation3 + $0xe6]]
        %v2773 = vstv %s2772
        %v2774 = vmul.f32 %v2773, %v2324
        %v2775 = vmul.f32 %v2773, %v2325
        %v2776 = vmul.f32 %v2773, %v2326
        %v2777 = vmul.f32 %v2773, %v2327
        %2782 = vrot.lane.b32.xlu0 %v2774, 126
        %v2783 = vpop.permute.xlu0 %2782
        %2784 = vrot.lane.b32.xlu0 %v2775, 126
        %v2785 = vpop.permute.xlu0 %2784
        %2786 = vrot.lane.b32.xlu0 %v2776, 126
        %v2787 = vpop.permute.xlu0 %2786
        %2788 = vrot.lane.b32.xlu0 %v2777, 126
        %v2789 = vpop.permute.xlu0 %2788
        %v2794 = vadd.f32 %v2586, %v2783
        %v2795 = vadd.f32 %v2587, %v2785
        %v2796 = vadd.f32 %v2588, %v2787
        %v2797 = vadd.f32 %v2589, %v2789
        %s2798 = sld [smem:[#allocation3 + $0x10a]]
        %v2799 = vstv %s2798
        %v2800 = vmul.f32 %v2799, %v2324
        %v2801 = vmul.f32 %v2799, %v2325
        %v2802 = vmul.f32 %v2799, %v2326
        %v2803 = vmul.f32 %v2799, %v2327
        %2808 = vrot.lane.b32.xlu0 %v2800, 126
        %v2809 = vpop.permute.xlu0 %2808
        %2810 = vrot.lane.b32.xlu0 %v2801, 126
        %v2811 = vpop.permute.xlu0 %2810
        %2812 = vrot.lane.b32.xlu0 %v2802, 126
        %v2813 = vpop.permute.xlu0 %2812
        %2814 = vrot.lane.b32.xlu0 %v2803, 126
        %v2815 = vpop.permute.xlu0 %2814
        %v2820 = vadd.f32 %v2612, %v2809
        %v2821 = vadd.f32 %v2613, %v2811
        %v2822 = vadd.f32 %v2614, %v2813
        %v2823 = vadd.f32 %v2615, %v2815
        %v2824 = vld [vmem:[%s1823 + $0x2] sm:$0xff]
        %v2825 = vld [vmem:[%s1823 + $0xa] sm:$0xff]
        %v2826 = vld [vmem:[%s1823 + $0x12] sm:$0xff]
        %v2827 = vld [vmem:[%s1823 + $0x1a] sm:$0xff]
        %s2828 = sld [smem:[#allocation3 + $0xf]]
        %v2829 = vstv %s2828
        %v2830 = vmul.f32 %v2829, %v2824
        %v2831 = vmul.f32 %v2829, %v2825
        %v2832 = vmul.f32 %v2829, %v2826
        %v2833 = vmul.f32 %v2829, %v2827
        %v2834 = vadd.f32 %v2638, %v2830
        %v2835 = vadd.f32 %v2639, %v2831
        %v2836 = vadd.f32 %v2640, %v2832
        %v2837 = vadd.f32 %v2641, %v2833
        %s2838 = sld [smem:[#allocation3 + $0x33]]
        %v2839 = vstv %s2838
        %v2840 = vmul.f32 %v2839, %v2824
        %v2841 = vmul.f32 %v2839, %v2825
        %v2842 = vmul.f32 %v2839, %v2826
        %v2843 = vmul.f32 %v2839, %v2827
        %v2844 = vadd.f32 %v2664, %v2840
        %v2845 = vadd.f32 %v2665, %v2841
        %v2846 = vadd.f32 %v2666, %v2842
        %v2847 = vadd.f32 %v2667, %v2843
        %s2848 = sld [smem:[#allocation3 + $0x57]]
        %v2849 = vstv %s2848
        %v2850 = vmul.f32 %v2849, %v2824
        %v2851 = vmul.f32 %v2849, %v2825
        %v2852 = vmul.f32 %v2849, %v2826
        %v2853 = vmul.f32 %v2849, %v2827
        %v2854 = vadd.f32 %v2690, %v2850
        %v2855 = vadd.f32 %v2691, %v2851
        %v2856 = vadd.f32 %v2692, %v2852
        %v2857 = vadd.f32 %v2693, %v2853
        %s2858 = sld [smem:[#allocation3 + $0x7b]]
        %v2859 = vstv %s2858
        %v2860 = vmul.f32 %v2859, %v2824
        %v2861 = vmul.f32 %v2859, %v2825
        %v2862 = vmul.f32 %v2859, %v2826
        %v2863 = vmul.f32 %v2859, %v2827
        %v2864 = vadd.f32 %v2716, %v2860
        %v2865 = vadd.f32 %v2717, %v2861
        %v2866 = vadd.f32 %v2718, %v2862
        %v2867 = vadd.f32 %v2719, %v2863
        %s2868 = sld [smem:[#allocation3 + $0x9f]]
        %v2869 = vstv %s2868
        %v2870 = vmul.f32 %v2869, %v2824
        %v2871 = vmul.f32 %v2869, %v2825
        %v2872 = vmul.f32 %v2869, %v2826
        %v2873 = vmul.f32 %v2869, %v2827
        %v2874 = vadd.f32 %v2742, %v2870
        %v2875 = vadd.f32 %v2743, %v2871
        %v2876 = vadd.f32 %v2744, %v2872
        %v2877 = vadd.f32 %v2745, %v2873
        %s2878 = sld [smem:[#allocation3 + $0xc3]]
        %v2879 = vstv %s2878
        %v2880 = vmul.f32 %v2879, %v2824
        %v2881 = vmul.f32 %v2879, %v2825
        %v2882 = vmul.f32 %v2879, %v2826
        %v2883 = vmul.f32 %v2879, %v2827
        %v2884 = vadd.f32 %v2768, %v2880
        %v2885 = vadd.f32 %v2769, %v2881
        %v2886 = vadd.f32 %v2770, %v2882
        %v2887 = vadd.f32 %v2771, %v2883
        %s2888 = sld [smem:[#allocation3 + $0xe7]]
        %v2889 = vstv %s2888
        %v2890 = vmul.f32 %v2889, %v2824
        %v2891 = vmul.f32 %v2889, %v2825
        %v2892 = vmul.f32 %v2889, %v2826
        %v2893 = vmul.f32 %v2889, %v2827
        %v2894 = vadd.f32 %v2794, %v2890
        %v2895 = vadd.f32 %v2795, %v2891
        %v2896 = vadd.f32 %v2796, %v2892
        %v2897 = vadd.f32 %v2797, %v2893
        %s2898 = sld [smem:[#allocation3 + $0x10b]]
        %v2899 = vstv %s2898
        %v2900 = vmul.f32 %v2899, %v2824
        %v2901 = vmul.f32 %v2899, %v2825
        %v2902 = vmul.f32 %v2899, %v2826
        %v2903 = vmul.f32 %v2899, %v2827
        %v2904 = vadd.f32 %v2820, %v2900
        %v2905 = vadd.f32 %v2821, %v2901
        %v2906 = vadd.f32 %v2822, %v2902
        %v2907 = vadd.f32 %v2823, %v2903
        %s2908 = sld [smem:[#allocation3 + $0x10]]
        %v2909 = vstv %s2908
        %v2910 = vmul.f32 %v2909, %v2824
        %v2911 = vmul.f32 %v2909, %v2825
        %v2912 = vmul.f32 %v2909, %v2826
        %v2913 = vmul.f32 %v2909, %v2827
        %2918 = vrot.lane.b32.xlu0 %v2910, 127
        %v2919 = vpop.permute.xlu0 %2918
        %2920 = vrot.lane.b32.xlu0 %v2911, 127
        %v2921 = vpop.permute.xlu0 %2920
        %2922 = vrot.lane.b32.xlu0 %v2912, 127
        %v2923 = vpop.permute.xlu0 %2922
        %2924 = vrot.lane.b32.xlu0 %v2913, 127
        %v2925 = vpop.permute.xlu0 %2924
        %v2930 = vadd.f32 %v2834, %v2919
        %v2931 = vadd.f32 %v2835, %v2921
        %v2932 = vadd.f32 %v2836, %v2923
        %v2933 = vadd.f32 %v2837, %v2925
        %s2934 = sld [smem:[#allocation3 + $0x34]]
        %v2935 = vstv %s2934
        %v2936 = vmul.f32 %v2935, %v2824
        %v2937 = vmul.f32 %v2935, %v2825
        %v2938 = vmul.f32 %v2935, %v2826
        %v2939 = vmul.f32 %v2935, %v2827
        %2944 = vrot.lane.b32.xlu0 %v2936, 127
        %v2945 = vpop.permute.xlu0 %2944
        %2946 = vrot.lane.b32.xlu0 %v2937, 127
        %v2947 = vpop.permute.xlu0 %2946
        %2948 = vrot.lane.b32.xlu0 %v2938, 127
        %v2949 = vpop.permute.xlu0 %2948
        %2950 = vrot.lane.b32.xlu0 %v2939, 127
        %v2951 = vpop.permute.xlu0 %2950
        %v2956 = vadd.f32 %v2844, %v2945
        %v2957 = vadd.f32 %v2845, %v2947
        %v2958 = vadd.f32 %v2846, %v2949
        %v2959 = vadd.f32 %v2847, %v2951
        %s2960 = sld [smem:[#allocation3 + $0x58]]
        %v2961 = vstv %s2960
        %v2962 = vmul.f32 %v2961, %v2824
        %v2963 = vmul.f32 %v2961, %v2825
        %v2964 = vmul.f32 %v2961, %v2826
        %v2965 = vmul.f32 %v2961, %v2827
        %2970 = vrot.lane.b32.xlu0 %v2962, 127
        %v2971 = vpop.permute.xlu0 %2970
        %2972 = vrot.lane.b32.xlu0 %v2963, 127
        %v2973 = vpop.permute.xlu0 %2972
        %2974 = vrot.lane.b32.xlu0 %v2964, 127
        %v2975 = vpop.permute.xlu0 %2974
        %2976 = vrot.lane.b32.xlu0 %v2965, 127
        %v2977 = vpop.permute.xlu0 %2976
        %v2982 = vadd.f32 %v2854, %v2971
        %v2983 = vadd.f32 %v2855, %v2973
        %v2984 = vadd.f32 %v2856, %v2975
        %v2985 = vadd.f32 %v2857, %v2977
        %s2986 = sld [smem:[#allocation3 + $0x7c]]
        %v2987 = vstv %s2986
        %v2988 = vmul.f32 %v2987, %v2824
        %v2989 = vmul.f32 %v2987, %v2825
        %v2990 = vmul.f32 %v2987, %v2826
        %v2991 = vmul.f32 %v2987, %v2827
        %2996 = vrot.lane.b32.xlu0 %v2988, 127
        %v2997 = vpop.permute.xlu0 %2996
        %2998 = vrot.lane.b32.xlu0 %v2989, 127
        %v2999 = vpop.permute.xlu0 %2998
        %3000 = vrot.lane.b32.xlu0 %v2990, 127
        %v3001 = vpop.permute.xlu0 %3000
        %3002 = vrot.lane.b32.xlu0 %v2991, 127
        %v3003 = vpop.permute.xlu0 %3002
        %v3008 = vadd.f32 %v2864, %v2997
        %v3009 = vadd.f32 %v2865, %v2999
        %v3010 = vadd.f32 %v2866, %v3001
        %v3011 = vadd.f32 %v2867, %v3003
        %s3012 = sld [smem:[#allocation3 + $0xa0]]
        %v3013 = vstv %s3012
        %v3014 = vmul.f32 %v3013, %v2824
        %v3015 = vmul.f32 %v3013, %v2825
        %v3016 = vmul.f32 %v3013, %v2826
        %v3017 = vmul.f32 %v3013, %v2827
        %3022 = vrot.lane.b32.xlu0 %v3014, 127
        %v3023 = vpop.permute.xlu0 %3022
        %3024 = vrot.lane.b32.xlu0 %v3015, 127
        %v3025 = vpop.permute.xlu0 %3024
        %3026 = vrot.lane.b32.xlu0 %v3016, 127
        %v3027 = vpop.permute.xlu0 %3026
        %3028 = vrot.lane.b32.xlu0 %v3017, 127
        %v3029 = vpop.permute.xlu0 %3028
        %v3034 = vadd.f32 %v2874, %v3023
        %v3035 = vadd.f32 %v2875, %v3025
        %v3036 = vadd.f32 %v2876, %v3027
        %v3037 = vadd.f32 %v2877, %v3029
        %s3038 = sld [smem:[#allocation3 + $0xc4]]
        %v3039 = vstv %s3038
        %v3040 = vmul.f32 %v3039, %v2824
        %v3041 = vmul.f32 %v3039, %v2825
        %v3042 = vmul.f32 %v3039, %v2826
        %v3043 = vmul.f32 %v3039, %v2827
        %3048 = vrot.lane.b32.xlu0 %v3040, 127
        %v3049 = vpop.permute.xlu0 %3048
        %3050 = vrot.lane.b32.xlu0 %v3041, 127
        %v3051 = vpop.permute.xlu0 %3050
        %3052 = vrot.lane.b32.xlu0 %v3042, 127
        %v3053 = vpop.permute.xlu0 %3052
        %3054 = vrot.lane.b32.xlu0 %v3043, 127
        %v3055 = vpop.permute.xlu0 %3054
        %v3060 = vadd.f32 %v2884, %v3049
        %v3061 = vadd.f32 %v2885, %v3051
        %v3062 = vadd.f32 %v2886, %v3053
        %v3063 = vadd.f32 %v2887, %v3055
        %s3064 = sld [smem:[#allocation3 + $0xe8]]
        %v3065 = vstv %s3064
        %v3066 = vmul.f32 %v3065, %v2824
        %v3067 = vmul.f32 %v3065, %v2825
        %v3068 = vmul.f32 %v3065, %v2826
        %v3069 = vmul.f32 %v3065, %v2827
        %3074 = vrot.lane.b32.xlu0 %v3066, 127
        %v3075 = vpop.permute.xlu0 %3074
        %3076 = vrot.lane.b32.xlu0 %v3067, 127
        %v3077 = vpop.permute.xlu0 %3076
        %3078 = vrot.lane.b32.xlu0 %v3068, 127
        %v3079 = vpop.permute.xlu0 %3078
        %3080 = vrot.lane.b32.xlu0 %v3069, 127
        %v3081 = vpop.permute.xlu0 %3080
        %v3086 = vadd.f32 %v2894, %v3075
        %v3087 = vadd.f32 %v2895, %v3077
        %v3088 = vadd.f32 %v2896, %v3079
        %v3089 = vadd.f32 %v2897, %v3081
        %s3090 = sld [smem:[#allocation3 + $0x10c]]
        %v3091 = vstv %s3090
        %v3092 = vmul.f32 %v3091, %v2824
        %v3093 = vmul.f32 %v3091, %v2825
        %v3094 = vmul.f32 %v3091, %v2826
        %v3095 = vmul.f32 %v3091, %v2827
        %3100 = vrot.lane.b32.xlu0 %v3092, 127
        %v3101 = vpop.permute.xlu0 %3100
        %3102 = vrot.lane.b32.xlu0 %v3093, 127
        %v3103 = vpop.permute.xlu0 %3102
        %3104 = vrot.lane.b32.xlu0 %v3094, 127
        %v3105 = vpop.permute.xlu0 %3104
        %3106 = vrot.lane.b32.xlu0 %v3095, 127
        %v3107 = vpop.permute.xlu0 %3106
        %v3112 = vadd.f32 %v2904, %v3101
        %v3113 = vadd.f32 %v2905, %v3103
        %v3114 = vadd.f32 %v2906, %v3105
        %v3115 = vadd.f32 %v2907, %v3107
        %s3116 = sld [smem:[#allocation3 + $0x11]]
        %v3117 = vstv %s3116
        %v3118 = vmul.f32 %v3117, %v2824
        %v3119 = vmul.f32 %v3117, %v2825
        %v3120 = vmul.f32 %v3117, %v2826
        %v3121 = vmul.f32 %v3117, %v2827
        %3126 = vrot.lane.b32.xlu0 %v3118, 126
        %v3127 = vpop.permute.xlu0 %3126
        %3128 = vrot.lane.b32.xlu0 %v3119, 126
        %v3129 = vpop.permute.xlu0 %3128
        %3130 = vrot.lane.b32.xlu0 %v3120, 126
        %v3131 = vpop.permute.xlu0 %3130
        %3132 = vrot.lane.b32.xlu0 %v3121, 126
        %v3133 = vpop.permute.xlu0 %3132
        %v3138 = vadd.f32 %v2930, %v3127
        %v3139 = vadd.f32 %v2931, %v3129
        %v3140 = vadd.f32 %v2932, %v3131
        %v3141 = vadd.f32 %v2933, %v3133
        %s3142 = sld [smem:[#allocation3 + $0x35]]
        %v3143 = vstv %s3142
        %v3144 = vmul.f32 %v3143, %v2824
        %v3145 = vmul.f32 %v3143, %v2825
        %v3146 = vmul.f32 %v3143, %v2826
        %v3147 = vmul.f32 %v3143, %v2827
        %3152 = vrot.lane.b32.xlu0 %v3144, 126
        %v3153 = vpop.permute.xlu0 %3152
        %3154 = vrot.lane.b32.xlu0 %v3145, 126
        %v3155 = vpop.permute.xlu0 %3154
        %3156 = vrot.lane.b32.xlu0 %v3146, 126
        %v3157 = vpop.permute.xlu0 %3156
        %3158 = vrot.lane.b32.xlu0 %v3147, 126
        %v3159 = vpop.permute.xlu0 %3158
        %v3164 = vadd.f32 %v2956, %v3153
        %v3165 = vadd.f32 %v2957, %v3155
        %v3166 = vadd.f32 %v2958, %v3157
        %v3167 = vadd.f32 %v2959, %v3159
        %s3168 = sld [smem:[#allocation3 + $0x59]]
        %v3169 = vstv %s3168
        %v3170 = vmul.f32 %v3169, %v2824
        %v3171 = vmul.f32 %v3169, %v2825
        %v3172 = vmul.f32 %v3169, %v2826
        %v3173 = vmul.f32 %v3169, %v2827
        %3178 = vrot.lane.b32.xlu0 %v3170, 126
        %v3179 = vpop.permute.xlu0 %3178
        %3180 = vrot.lane.b32.xlu0 %v3171, 126
        %v3181 = vpop.permute.xlu0 %3180
        %3182 = vrot.lane.b32.xlu0 %v3172, 126
        %v3183 = vpop.permute.xlu0 %3182
        %3184 = vrot.lane.b32.xlu0 %v3173, 126
        %v3185 = vpop.permute.xlu0 %3184
        %v3190 = vadd.f32 %v2982, %v3179
        %v3191 = vadd.f32 %v2983, %v3181
        %v3192 = vadd.f32 %v2984, %v3183
        %v3193 = vadd.f32 %v2985, %v3185
        %s3194 = sld [smem:[#allocation3 + $0x7d]]
        %v3195 = vstv %s3194
        %v3196 = vmul.f32 %v3195, %v2824
        %v3197 = vmul.f32 %v3195, %v2825
        %v3198 = vmul.f32 %v3195, %v2826
        %v3199 = vmul.f32 %v3195, %v2827
        %3204 = vrot.lane.b32.xlu0 %v3196, 126
        %v3205 = vpop.permute.xlu0 %3204
        %3206 = vrot.lane.b32.xlu0 %v3197, 126
        %v3207 = vpop.permute.xlu0 %3206
        %3208 = vrot.lane.b32.xlu0 %v3198, 126
        %v3209 = vpop.permute.xlu0 %3208
        %3210 = vrot.lane.b32.xlu0 %v3199, 126
        %v3211 = vpop.permute.xlu0 %3210
        %v3216 = vadd.f32 %v3008, %v3205
        %v3217 = vadd.f32 %v3009, %v3207
        %v3218 = vadd.f32 %v3010, %v3209
        %v3219 = vadd.f32 %v3011, %v3211
        %s3220 = sld [smem:[#allocation3 + $0xa1]]
        %v3221 = vstv %s3220
        %v3222 = vmul.f32 %v3221, %v2824
        %v3223 = vmul.f32 %v3221, %v2825
        %v3224 = vmul.f32 %v3221, %v2826
        %v3225 = vmul.f32 %v3221, %v2827
        %3230 = vrot.lane.b32.xlu0 %v3222, 126
        %v3231 = vpop.permute.xlu0 %3230
        %3232 = vrot.lane.b32.xlu0 %v3223, 126
        %v3233 = vpop.permute.xlu0 %3232
        %3234 = vrot.lane.b32.xlu0 %v3224, 126
        %v3235 = vpop.permute.xlu0 %3234
        %3236 = vrot.lane.b32.xlu0 %v3225, 126
        %v3237 = vpop.permute.xlu0 %3236
        %v3242 = vadd.f32 %v3034, %v3231
        %v3243 = vadd.f32 %v3035, %v3233
        %v3244 = vadd.f32 %v3036, %v3235
        %v3245 = vadd.f32 %v3037, %v3237
        %s3246 = sld [smem:[#allocation3 + $0xc5]]
        %v3247 = vstv %s3246
        %v3248 = vmul.f32 %v3247, %v2824
        %v3249 = vmul.f32 %v3247, %v2825
        %v3250 = vmul.f32 %v3247, %v2826
        %v3251 = vmul.f32 %v3247, %v2827
        %3256 = vrot.lane.b32.xlu0 %v3248, 126
        %v3257 = vpop.permute.xlu0 %3256
        %3258 = vrot.lane.b32.xlu0 %v3249, 126
        %v3259 = vpop.permute.xlu0 %3258
        %3260 = vrot.lane.b32.xlu0 %v3250, 126
        %v3261 = vpop.permute.xlu0 %3260
        %3262 = vrot.lane.b32.xlu0 %v3251, 126
        %v3263 = vpop.permute.xlu0 %3262
        %v3268 = vadd.f32 %v3060, %v3257
        %v3269 = vadd.f32 %v3061, %v3259
        %v3270 = vadd.f32 %v3062, %v3261
        %v3271 = vadd.f32 %v3063, %v3263
        %s3272 = sld [smem:[#allocation3 + $0xe9]]
        %v3273 = vstv %s3272
        %v3274 = vmul.f32 %v3273, %v2824
        %v3275 = vmul.f32 %v3273, %v2825
        %v3276 = vmul.f32 %v3273, %v2826
        %v3277 = vmul.f32 %v3273, %v2827
        %3282 = vrot.lane.b32.xlu0 %v3274, 126
        %v3283 = vpop.permute.xlu0 %3282
        %3284 = vrot.lane.b32.xlu0 %v3275, 126
        %v3285 = vpop.permute.xlu0 %3284
        %3286 = vrot.lane.b32.xlu0 %v3276, 126
        %v3287 = vpop.permute.xlu0 %3286
        %3288 = vrot.lane.b32.xlu0 %v3277, 126
        %v3289 = vpop.permute.xlu0 %3288
        %v3294 = vadd.f32 %v3086, %v3283
        %v3295 = vadd.f32 %v3087, %v3285
        %v3296 = vadd.f32 %v3088, %v3287
        %v3297 = vadd.f32 %v3089, %v3289
        %s3298 = sld [smem:[#allocation3 + $0x10d]]
        %v3299 = vstv %s3298
        %v3300 = vmul.f32 %v3299, %v2824
        %v3301 = vmul.f32 %v3299, %v2825
        %v3302 = vmul.f32 %v3299, %v2826
        %v3303 = vmul.f32 %v3299, %v2827
        %3308 = vrot.lane.b32.xlu0 %v3300, 126
        %v3309 = vpop.permute.xlu0 %3308
        %3310 = vrot.lane.b32.xlu0 %v3301, 126
        %v3311 = vpop.permute.xlu0 %3310
        %3312 = vrot.lane.b32.xlu0 %v3302, 126
        %v3313 = vpop.permute.xlu0 %3312
        %3314 = vrot.lane.b32.xlu0 %v3303, 126
        %v3315 = vpop.permute.xlu0 %3314
        %v3320 = vadd.f32 %v3112, %v3309
        %v3321 = vadd.f32 %v3113, %v3311
        %v3322 = vadd.f32 %v3114, %v3313
        %v3323 = vadd.f32 %v3115, %v3315
        %s3324 = scalar_lea.vmem [#allocation2], 80
        %v3325 = vld [vmem:[%s3324] sm:$0xff]
        %v3326 = vld [vmem:[%s3324 + $0x8] sm:$0xff]
        %v3327 = vld [vmem:[%s3324 + $0x10] sm:$0xff]
        %v3328 = vld [vmem:[%s3324 + $0x18] sm:$0xff]
        %s3329 = sld [smem:[#allocation3 + $0x12]]
        %v3330 = vstv %s3329
        %v3331 = vmul.f32 %v3330, %v3325
        %v3332 = vmul.f32 %v3330, %v3326
        %v3333 = vmul.f32 %v3330, %v3327
        %v3334 = vmul.f32 %v3330, %v3328
        %v3335 = vadd.f32 %v3138, %v3331
        %v3336 = vadd.f32 %v3139, %v3332
        %v3337 = vadd.f32 %v3140, %v3333
        %v3338 = vadd.f32 %v3141, %v3334
        %s3339 = sld [smem:[#allocation3 + $0x36]]
        %v3340 = vstv %s3339
        %v3341 = vmul.f32 %v3340, %v3325
        %v3342 = vmul.f32 %v3340, %v3326
        %v3343 = vmul.f32 %v3340, %v3327
        %v3344 = vmul.f32 %v3340, %v3328
        %v3345 = vadd.f32 %v3164, %v3341
        %v3346 = vadd.f32 %v3165, %v3342
        %v3347 = vadd.f32 %v3166, %v3343
        %v3348 = vadd.f32 %v3167, %v3344
        %s3349 = sld [smem:[#allocation3 + $0x5a]]
        %v3350 = vstv %s3349
        %v3351 = vmul.f32 %v3350, %v3325
        %v3352 = vmul.f32 %v3350, %v3326
        %v3353 = vmul.f32 %v3350, %v3327
        %v3354 = vmul.f32 %v3350, %v3328
        %v3355 = vadd.f32 %v3190, %v3351
        %v3356 = vadd.f32 %v3191, %v3352
        %v3357 = vadd.f32 %v3192, %v3353
        %v3358 = vadd.f32 %v3193, %v3354
        %s3359 = sld [smem:[#allocation3 + $0x7e]]
        %v3360 = vstv %s3359
        %v3361 = vmul.f32 %v3360, %v3325
        %v3362 = vmul.f32 %v3360, %v3326
        %v3363 = vmul.f32 %v3360, %v3327
        %v3364 = vmul.f32 %v3360, %v3328
        %v3365 = vadd.f32 %v3216, %v3361
        %v3366 = vadd.f32 %v3217, %v3362
        %v3367 = vadd.f32 %v3218, %v3363
        %v3368 = vadd.f32 %v3219, %v3364
        %s3369 = sld [smem:[#allocation3 + $0xa2]]
        %v3370 = vstv %s3369
        %v3371 = vmul.f32 %v3370, %v3325
        %v3372 = vmul.f32 %v3370, %v3326
        %v3373 = vmul.f32 %v3370, %v3327
        %v3374 = vmul.f32 %v3370, %v3328
        %v3375 = vadd.f32 %v3242, %v3371
        %v3376 = vadd.f32 %v3243, %v3372
        %v3377 = vadd.f32 %v3244, %v3373
        %v3378 = vadd.f32 %v3245, %v3374
        %s3379 = sld [smem:[#allocation3 + $0xc6]]
        %v3380 = vstv %s3379
        %v3381 = vmul.f32 %v3380, %v3325
        %v3382 = vmul.f32 %v3380, %v3326
        %v3383 = vmul.f32 %v3380, %v3327
        %v3384 = vmul.f32 %v3380, %v3328
        %v3385 = vadd.f32 %v3268, %v3381
        %v3386 = vadd.f32 %v3269, %v3382
        %v3387 = vadd.f32 %v3270, %v3383
        %v3388 = vadd.f32 %v3271, %v3384
        %s3389 = sld [smem:[#allocation3 + $0xea]]
        %v3390 = vstv %s3389
        %v3391 = vmul.f32 %v3390, %v3325
        %v3392 = vmul.f32 %v3390, %v3326
        %v3393 = vmul.f32 %v3390, %v3327
        %v3394 = vmul.f32 %v3390, %v3328
        %v3395 = vadd.f32 %v3294, %v3391
        %v3396 = vadd.f32 %v3295, %v3392
        %v3397 = vadd.f32 %v3296, %v3393
        %v3398 = vadd.f32 %v3297, %v3394
        %s3399 = sld [smem:[#allocation3 + $0x10e]]
        %v3400 = vstv %s3399
        %v3401 = vmul.f32 %v3400, %v3325
        %v3402 = vmul.f32 %v3400, %v3326
        %v3403 = vmul.f32 %v3400, %v3327
        %v3404 = vmul.f32 %v3400, %v3328
        %v3405 = vadd.f32 %v3320, %v3401
        %v3406 = vadd.f32 %v3321, %v3402
        %v3407 = vadd.f32 %v3322, %v3403
        %v3408 = vadd.f32 %v3323, %v3404
        %s3409 = sld [smem:[#allocation3 + $0x13]]
        %v3410 = vstv %s3409
        %v3411 = vmul.f32 %v3410, %v3325
        %v3412 = vmul.f32 %v3410, %v3326
        %v3413 = vmul.f32 %v3410, %v3327
        %v3414 = vmul.f32 %v3410, %v3328
        %3419 = vrot.lane.b32.xlu0 %v3411, 127
        %v3420 = vpop.permute.xlu0 %3419
        %3421 = vrot.lane.b32.xlu0 %v3412, 127
        %v3422 = vpop.permute.xlu0 %3421
        %3423 = vrot.lane.b32.xlu0 %v3413, 127
        %v3424 = vpop.permute.xlu0 %3423
        %3425 = vrot.lane.b32.xlu0 %v3414, 127
        %v3426 = vpop.permute.xlu0 %3425
        %v3431 = vadd.f32 %v3335, %v3420
        %v3432 = vadd.f32 %v3336, %v3422
        %v3433 = vadd.f32 %v3337, %v3424
        %v3434 = vadd.f32 %v3338, %v3426
        %s3435 = sld [smem:[#allocation3 + $0x37]]
        %v3436 = vstv %s3435
        %v3437 = vmul.f32 %v3436, %v3325
        %v3438 = vmul.f32 %v3436, %v3326
        %v3439 = vmul.f32 %v3436, %v3327
        %v3440 = vmul.f32 %v3436, %v3328
        %3445 = vrot.lane.b32.xlu0 %v3437, 127
        %v3446 = vpop.permute.xlu0 %3445
        %3447 = vrot.lane.b32.xlu0 %v3438, 127
        %v3448 = vpop.permute.xlu0 %3447
        %3449 = vrot.lane.b32.xlu0 %v3439, 127
        %v3450 = vpop.permute.xlu0 %3449
        %3451 = vrot.lane.b32.xlu0 %v3440, 127
        %v3452 = vpop.permute.xlu0 %3451
        %v3457 = vadd.f32 %v3345, %v3446
        %v3458 = vadd.f32 %v3346, %v3448
        %v3459 = vadd.f32 %v3347, %v3450
        %v3460 = vadd.f32 %v3348, %v3452
        %s3461 = sld [smem:[#allocation3 + $0x5b]]
        %v3462 = vstv %s3461
        %v3463 = vmul.f32 %v3462, %v3325
        %v3464 = vmul.f32 %v3462, %v3326
        %v3465 = vmul.f32 %v3462, %v3327
        %v3466 = vmul.f32 %v3462, %v3328
        %3471 = vrot.lane.b32.xlu0 %v3463, 127
        %v3472 = vpop.permute.xlu0 %3471
        %3473 = vrot.lane.b32.xlu0 %v3464, 127
        %v3474 = vpop.permute.xlu0 %3473
        %3475 = vrot.lane.b32.xlu0 %v3465, 127
        %v3476 = vpop.permute.xlu0 %3475
        %3477 = vrot.lane.b32.xlu0 %v3466, 127
        %v3478 = vpop.permute.xlu0 %3477
        %v3483 = vadd.f32 %v3355, %v3472
        %v3484 = vadd.f32 %v3356, %v3474
        %v3485 = vadd.f32 %v3357, %v3476
        %v3486 = vadd.f32 %v3358, %v3478
        %s3487 = sld [smem:[#allocation3 + $0x7f]]
        %v3488 = vstv %s3487
        %v3489 = vmul.f32 %v3488, %v3325
        %v3490 = vmul.f32 %v3488, %v3326
        %v3491 = vmul.f32 %v3488, %v3327
        %v3492 = vmul.f32 %v3488, %v3328
        %3497 = vrot.lane.b32.xlu0 %v3489, 127
        %v3498 = vpop.permute.xlu0 %3497
        %3499 = vrot.lane.b32.xlu0 %v3490, 127
        %v3500 = vpop.permute.xlu0 %3499
        %3501 = vrot.lane.b32.xlu0 %v3491, 127
        %v3502 = vpop.permute.xlu0 %3501
        %3503 = vrot.lane.b32.xlu0 %v3492, 127
        %v3504 = vpop.permute.xlu0 %3503
        %v3509 = vadd.f32 %v3365, %v3498
        %v3510 = vadd.f32 %v3366, %v3500
        %v3511 = vadd.f32 %v3367, %v3502
        %v3512 = vadd.f32 %v3368, %v3504
        %s3513 = sld [smem:[#allocation3 + $0xa3]]
        %v3514 = vstv %s3513
        %v3515 = vmul.f32 %v3514, %v3325
        %v3516 = vmul.f32 %v3514, %v3326
        %v3517 = vmul.f32 %v3514, %v3327
        %v3518 = vmul.f32 %v3514, %v3328
        %3523 = vrot.lane.b32.xlu0 %v3515, 127
        %v3524 = vpop.permute.xlu0 %3523
        %3525 = vrot.lane.b32.xlu0 %v3516, 127
        %v3526 = vpop.permute.xlu0 %3525
        %3527 = vrot.lane.b32.xlu0 %v3517, 127
        %v3528 = vpop.permute.xlu0 %3527
        %3529 = vrot.lane.b32.xlu0 %v3518, 127
        %v3530 = vpop.permute.xlu0 %3529
        %v3535 = vadd.f32 %v3375, %v3524
        %v3536 = vadd.f32 %v3376, %v3526
        %v3537 = vadd.f32 %v3377, %v3528
        %v3538 = vadd.f32 %v3378, %v3530
        %s3539 = sld [smem:[#allocation3 + $0xc7]]
        %v3540 = vstv %s3539
        %v3541 = vmul.f32 %v3540, %v3325
        %v3542 = vmul.f32 %v3540, %v3326
        %v3543 = vmul.f32 %v3540, %v3327
        %v3544 = vmul.f32 %v3540, %v3328
        %3549 = vrot.lane.b32.xlu0 %v3541, 127
        %v3550 = vpop.permute.xlu0 %3549
        %3551 = vrot.lane.b32.xlu0 %v3542, 127
        %v3552 = vpop.permute.xlu0 %3551
        %3553 = vrot.lane.b32.xlu0 %v3543, 127
        %v3554 = vpop.permute.xlu0 %3553
        %3555 = vrot.lane.b32.xlu0 %v3544, 127
        %v3556 = vpop.permute.xlu0 %3555
        %v3561 = vadd.f32 %v3385, %v3550
        %v3562 = vadd.f32 %v3386, %v3552
        %v3563 = vadd.f32 %v3387, %v3554
        %v3564 = vadd.f32 %v3388, %v3556
        %s3565 = sld [smem:[#allocation3 + $0xeb]]
        %v3566 = vstv %s3565
        %v3567 = vmul.f32 %v3566, %v3325
        %v3568 = vmul.f32 %v3566, %v3326
        %v3569 = vmul.f32 %v3566, %v3327
        %v3570 = vmul.f32 %v3566, %v3328
        %3575 = vrot.lane.b32.xlu0 %v3567, 127
        %v3576 = vpop.permute.xlu0 %3575
        %3577 = vrot.lane.b32.xlu0 %v3568, 127
        %v3578 = vpop.permute.xlu0 %3577
        %3579 = vrot.lane.b32.xlu0 %v3569, 127
        %v3580 = vpop.permute.xlu0 %3579
        %3581 = vrot.lane.b32.xlu0 %v3570, 127
        %v3582 = vpop.permute.xlu0 %3581
        %v3587 = vadd.f32 %v3395, %v3576
        %v3588 = vadd.f32 %v3396, %v3578
        %v3589 = vadd.f32 %v3397, %v3580
        %v3590 = vadd.f32 %v3398, %v3582
        %s3591 = sld [smem:[#allocation3 + $0x10f]]
        %v3592 = vstv %s3591
        %v3593 = vmul.f32 %v3592, %v3325
        %v3594 = vmul.f32 %v3592, %v3326
        %v3595 = vmul.f32 %v3592, %v3327
        %v3596 = vmul.f32 %v3592, %v3328
        %3601 = vrot.lane.b32.xlu0 %v3593, 127
        %v3602 = vpop.permute.xlu0 %3601
        %3603 = vrot.lane.b32.xlu0 %v3594, 127
        %v3604 = vpop.permute.xlu0 %3603
        %3605 = vrot.lane.b32.xlu0 %v3595, 127
        %v3606 = vpop.permute.xlu0 %3605
        %3607 = vrot.lane.b32.xlu0 %v3596, 127
        %v3608 = vpop.permute.xlu0 %3607
        %v3613 = vadd.f32 %v3405, %v3602
        %v3614 = vadd.f32 %v3406, %v3604
        %v3615 = vadd.f32 %v3407, %v3606
        %v3616 = vadd.f32 %v3408, %v3608
        %s3617 = sld [smem:[#allocation3 + $0x14]]
        %v3618 = vstv %s3617
        %v3619 = vmul.f32 %v3618, %v3325
        %v3620 = vmul.f32 %v3618, %v3326
        %v3621 = vmul.f32 %v3618, %v3327
        %v3622 = vmul.f32 %v3618, %v3328
        %3627 = vrot.lane.b32.xlu0 %v3619, 126
        %v3628 = vpop.permute.xlu0 %3627
        %3629 = vrot.lane.b32.xlu0 %v3620, 126
        %v3630 = vpop.permute.xlu0 %3629
        %3631 = vrot.lane.b32.xlu0 %v3621, 126
        %v3632 = vpop.permute.xlu0 %3631
        %3633 = vrot.lane.b32.xlu0 %v3622, 126
        %v3634 = vpop.permute.xlu0 %3633
        %v3639 = vadd.f32 %v3431, %v3628
        %v3640 = vadd.f32 %v3432, %v3630
        %v3641 = vadd.f32 %v3433, %v3632
        %v3642 = vadd.f32 %v3434, %v3634
        %s3643 = sld [smem:[#allocation3 + $0x38]]
        %v3644 = vstv %s3643
        %v3645 = vmul.f32 %v3644, %v3325
        %v3646 = vmul.f32 %v3644, %v3326
        %v3647 = vmul.f32 %v3644, %v3327
        %v3648 = vmul.f32 %v3644, %v3328
        %3653 = vrot.lane.b32.xlu0 %v3645, 126
        %v3654 = vpop.permute.xlu0 %3653
        %3655 = vrot.lane.b32.xlu0 %v3646, 126
        %v3656 = vpop.permute.xlu0 %3655
        %3657 = vrot.lane.b32.xlu0 %v3647, 126
        %v3658 = vpop.permute.xlu0 %3657
        %3659 = vrot.lane.b32.xlu0 %v3648, 126
        %v3660 = vpop.permute.xlu0 %3659
        %v3665 = vadd.f32 %v3457, %v3654
        %v3666 = vadd.f32 %v3458, %v3656
        %v3667 = vadd.f32 %v3459, %v3658
        %v3668 = vadd.f32 %v3460, %v3660
        %s3669 = sld [smem:[#allocation3 + $0x5c]]
        %v3670 = vstv %s3669
        %v3671 = vmul.f32 %v3670, %v3325
        %v3672 = vmul.f32 %v3670, %v3326
        %v3673 = vmul.f32 %v3670, %v3327
        %v3674 = vmul.f32 %v3670, %v3328
        %3679 = vrot.lane.b32.xlu0 %v3671, 126
        %v3680 = vpop.permute.xlu0 %3679
        %3681 = vrot.lane.b32.xlu0 %v3672, 126
        %v3682 = vpop.permute.xlu0 %3681
        %3683 = vrot.lane.b32.xlu0 %v3673, 126
        %v3684 = vpop.permute.xlu0 %3683
        %3685 = vrot.lane.b32.xlu0 %v3674, 126
        %v3686 = vpop.permute.xlu0 %3685
        %v3691 = vadd.f32 %v3483, %v3680
        %v3692 = vadd.f32 %v3484, %v3682
        %v3693 = vadd.f32 %v3485, %v3684
        %v3694 = vadd.f32 %v3486, %v3686
        %s3695 = sld [smem:[#allocation3 + $0x80]]
        %v3696 = vstv %s3695
        %v3697 = vmul.f32 %v3696, %v3325
        %v3698 = vmul.f32 %v3696, %v3326
        %v3699 = vmul.f32 %v3696, %v3327
        %v3700 = vmul.f32 %v3696, %v3328
        %3705 = vrot.lane.b32.xlu0 %v3697, 126
        %v3706 = vpop.permute.xlu0 %3705
        %3707 = vrot.lane.b32.xlu0 %v3698, 126
        %v3708 = vpop.permute.xlu0 %3707
        %3709 = vrot.lane.b32.xlu0 %v3699, 126
        %v3710 = vpop.permute.xlu0 %3709
        %3711 = vrot.lane.b32.xlu0 %v3700, 126
        %v3712 = vpop.permute.xlu0 %3711
        %v3717 = vadd.f32 %v3509, %v3706
        %v3718 = vadd.f32 %v3510, %v3708
        %v3719 = vadd.f32 %v3511, %v3710
        %v3720 = vadd.f32 %v3512, %v3712
        %s3721 = sld [smem:[#allocation3 + $0xa4]]
        %v3722 = vstv %s3721
        %v3723 = vmul.f32 %v3722, %v3325
        %v3724 = vmul.f32 %v3722, %v3326
        %v3725 = vmul.f32 %v3722, %v3327
        %v3726 = vmul.f32 %v3722, %v3328
        %3731 = vrot.lane.b32.xlu0 %v3723, 126
        %v3732 = vpop.permute.xlu0 %3731
        %3733 = vrot.lane.b32.xlu0 %v3724, 126
        %v3734 = vpop.permute.xlu0 %3733
        %3735 = vrot.lane.b32.xlu0 %v3725, 126
        %v3736 = vpop.permute.xlu0 %3735
        %3737 = vrot.lane.b32.xlu0 %v3726, 126
        %v3738 = vpop.permute.xlu0 %3737
        %v3743 = vadd.f32 %v3535, %v3732
        %v3744 = vadd.f32 %v3536, %v3734
        %v3745 = vadd.f32 %v3537, %v3736
        %v3746 = vadd.f32 %v3538, %v3738
        %s3747 = sld [smem:[#allocation3 + $0xc8]]
        %v3748 = vstv %s3747
        %v3749 = vmul.f32 %v3748, %v3325
        %v3750 = vmul.f32 %v3748, %v3326
        %v3751 = vmul.f32 %v3748, %v3327
        %v3752 = vmul.f32 %v3748, %v3328
        %3757 = vrot.lane.b32.xlu0 %v3749, 126
        %v3758 = vpop.permute.xlu0 %3757
        %3759 = vrot.lane.b32.xlu0 %v3750, 126
        %v3760 = vpop.permute.xlu0 %3759
        %3761 = vrot.lane.b32.xlu0 %v3751, 126
        %v3762 = vpop.permute.xlu0 %3761
        %3763 = vrot.lane.b32.xlu0 %v3752, 126
        %v3764 = vpop.permute.xlu0 %3763
        %v3769 = vadd.f32 %v3561, %v3758
        %v3770 = vadd.f32 %v3562, %v3760
        %v3771 = vadd.f32 %v3563, %v3762
        %v3772 = vadd.f32 %v3564, %v3764
        %s3773 = sld [smem:[#allocation3 + $0xec]]
        %v3774 = vstv %s3773
        %v3775 = vmul.f32 %v3774, %v3325
        %v3776 = vmul.f32 %v3774, %v3326
        %v3777 = vmul.f32 %v3774, %v3327
        %v3778 = vmul.f32 %v3774, %v3328
        %3783 = vrot.lane.b32.xlu0 %v3775, 126
        %v3784 = vpop.permute.xlu0 %3783
        %3785 = vrot.lane.b32.xlu0 %v3776, 126
        %v3786 = vpop.permute.xlu0 %3785
        %3787 = vrot.lane.b32.xlu0 %v3777, 126
        %v3788 = vpop.permute.xlu0 %3787
        %3789 = vrot.lane.b32.xlu0 %v3778, 126
        %v3790 = vpop.permute.xlu0 %3789
        %v3795 = vadd.f32 %v3587, %v3784
        %v3796 = vadd.f32 %v3588, %v3786
        %v3797 = vadd.f32 %v3589, %v3788
        %v3798 = vadd.f32 %v3590, %v3790
        %s3799 = sld [smem:[#allocation3 + $0x110]]
        %v3800 = vstv %s3799
        %v3801 = vmul.f32 %v3800, %v3325
        %v3802 = vmul.f32 %v3800, %v3326
        %v3803 = vmul.f32 %v3800, %v3327
        %v3804 = vmul.f32 %v3800, %v3328
        %3809 = vrot.lane.b32.xlu0 %v3801, 126
        %v3810 = vpop.permute.xlu0 %3809
        %3811 = vrot.lane.b32.xlu0 %v3802, 126
        %v3812 = vpop.permute.xlu0 %3811
        %3813 = vrot.lane.b32.xlu0 %v3803, 126
        %v3814 = vpop.permute.xlu0 %3813
        %3815 = vrot.lane.b32.xlu0 %v3804, 126
        %v3816 = vpop.permute.xlu0 %3815
        %v3821 = vadd.f32 %v3613, %v3810
        %v3822 = vadd.f32 %v3614, %v3812
        %v3823 = vadd.f32 %v3615, %v3814
        %v3824 = vadd.f32 %v3616, %v3816
        %v3825 = vld [vmem:[%s3324 + $0x1] sm:$0xff]
        %v3826 = vld [vmem:[%s3324 + $0x9] sm:$0xff]
        %v3827 = vld [vmem:[%s3324 + $0x11] sm:$0xff]
        %v3828 = vld [vmem:[%s3324 + $0x19] sm:$0xff]
        %s3829 = sld [smem:[#allocation3 + $0x15]]
        %v3830 = vstv %s3829
        %v3831 = vmul.f32 %v3830, %v3825
        %v3832 = vmul.f32 %v3830, %v3826
        %v3833 = vmul.f32 %v3830, %v3827
        %v3834 = vmul.f32 %v3830, %v3828
        %v3835 = vadd.f32 %v3639, %v3831
        %v3836 = vadd.f32 %v3640, %v3832
        %v3837 = vadd.f32 %v3641, %v3833
        %v3838 = vadd.f32 %v3642, %v3834
        %s3839 = sld [smem:[#allocation3 + $0x39]]
        %v3840 = vstv %s3839
        %v3841 = vmul.f32 %v3840, %v3825
        %v3842 = vmul.f32 %v3840, %v3826
        %v3843 = vmul.f32 %v3840, %v3827
        %v3844 = vmul.f32 %v3840, %v3828
        %v3845 = vadd.f32 %v3665, %v3841
        %v3846 = vadd.f32 %v3666, %v3842
        %v3847 = vadd.f32 %v3667, %v3843
        %v3848 = vadd.f32 %v3668, %v3844
        %s3849 = sld [smem:[#allocation3 + $0x5d]]
        %v3850 = vstv %s3849
        %v3851 = vmul.f32 %v3850, %v3825
        %v3852 = vmul.f32 %v3850, %v3826
        %v3853 = vmul.f32 %v3850, %v3827
        %v3854 = vmul.f32 %v3850, %v3828
        %v3855 = vadd.f32 %v3691, %v3851
        %v3856 = vadd.f32 %v3692, %v3852
        %v3857 = vadd.f32 %v3693, %v3853
        %v3858 = vadd.f32 %v3694, %v3854
        %s3859 = sld [smem:[#allocation3 + $0x81]]
        %v3860 = vstv %s3859
        %v3861 = vmul.f32 %v3860, %v3825
        %v3862 = vmul.f32 %v3860, %v3826
        %v3863 = vmul.f32 %v3860, %v3827
        %v3864 = vmul.f32 %v3860, %v3828
        %v3865 = vadd.f32 %v3717, %v3861
        %v3866 = vadd.f32 %v3718, %v3862
        %v3867 = vadd.f32 %v3719, %v3863
        %v3868 = vadd.f32 %v3720, %v3864
        %s3869 = sld [smem:[#allocation3 + $0xa5]]
        %v3870 = vstv %s3869
        %v3871 = vmul.f32 %v3870, %v3825
        %v3872 = vmul.f32 %v3870, %v3826
        %v3873 = vmul.f32 %v3870, %v3827
        %v3874 = vmul.f32 %v3870, %v3828
        %v3875 = vadd.f32 %v3743, %v3871
        %v3876 = vadd.f32 %v3744, %v3872
        %v3877 = vadd.f32 %v3745, %v3873
        %v3878 = vadd.f32 %v3746, %v3874
        %s3879 = sld [smem:[#allocation3 + $0xc9]]
        %v3880 = vstv %s3879
        %v3881 = vmul.f32 %v3880, %v3825
        %v3882 = vmul.f32 %v3880, %v3826
        %v3883 = vmul.f32 %v3880, %v3827
        %v3884 = vmul.f32 %v3880, %v3828
        %v3885 = vadd.f32 %v3769, %v3881
        %v3886 = vadd.f32 %v3770, %v3882
        %v3887 = vadd.f32 %v3771, %v3883
        %v3888 = vadd.f32 %v3772, %v3884
        %s3889 = sld [smem:[#allocation3 + $0xed]]
        %v3890 = vstv %s3889
        %v3891 = vmul.f32 %v3890, %v3825
        %v3892 = vmul.f32 %v3890, %v3826
        %v3893 = vmul.f32 %v3890, %v3827
        %v3894 = vmul.f32 %v3890, %v3828
        %v3895 = vadd.f32 %v3795, %v3891
        %v3896 = vadd.f32 %v3796, %v3892
        %v3897 = vadd.f32 %v3797, %v3893
        %v3898 = vadd.f32 %v3798, %v3894
        %s3899 = sld [smem:[#allocation3 + $0x111]]
        %v3900 = vstv %s3899
        %v3901 = vmul.f32 %v3900, %v3825
        %v3902 = vmul.f32 %v3900, %v3826
        %v3903 = vmul.f32 %v3900, %v3827
        %v3904 = vmul.f32 %v3900, %v3828
        %v3905 = vadd.f32 %v3821, %v3901
        %v3906 = vadd.f32 %v3822, %v3902
        %v3907 = vadd.f32 %v3823, %v3903
        %v3908 = vadd.f32 %v3824, %v3904
        %s3909 = sld [smem:[#allocation3 + $0x16]]
        %v3910 = vstv %s3909
        %v3911 = vmul.f32 %v3910, %v3825
        %v3912 = vmul.f32 %v3910, %v3826
        %v3913 = vmul.f32 %v3910, %v3827
        %v3914 = vmul.f32 %v3910, %v3828
        %3919 = vrot.lane.b32.xlu0 %v3911, 127
        %v3920 = vpop.permute.xlu0 %3919
        %3921 = vrot.lane.b32.xlu0 %v3912, 127
        %v3922 = vpop.permute.xlu0 %3921
        %3923 = vrot.lane.b32.xlu0 %v3913, 127
        %v3924 = vpop.permute.xlu0 %3923
        %3925 = vrot.lane.b32.xlu0 %v3914, 127
        %v3926 = vpop.permute.xlu0 %3925
        %v3931 = vadd.f32 %v3835, %v3920
        %v3932 = vadd.f32 %v3836, %v3922
        %v3933 = vadd.f32 %v3837, %v3924
        %v3934 = vadd.f32 %v3838, %v3926
        %s3935 = sld [smem:[#allocation3 + $0x3a]]
        %v3936 = vstv %s3935
        %v3937 = vmul.f32 %v3936, %v3825
        %v3938 = vmul.f32 %v3936, %v3826
        %v3939 = vmul.f32 %v3936, %v3827
        %v3940 = vmul.f32 %v3936, %v3828
        %3945 = vrot.lane.b32.xlu0 %v3937, 127
        %v3946 = vpop.permute.xlu0 %3945
        %3947 = vrot.lane.b32.xlu0 %v3938, 127
        %v3948 = vpop.permute.xlu0 %3947
        %3949 = vrot.lane.b32.xlu0 %v3939, 127
        %v3950 = vpop.permute.xlu0 %3949
        %3951 = vrot.lane.b32.xlu0 %v3940, 127
        %v3952 = vpop.permute.xlu0 %3951
        %v3957 = vadd.f32 %v3845, %v3946
        %v3958 = vadd.f32 %v3846, %v3948
        %v3959 = vadd.f32 %v3847, %v3950
        %v3960 = vadd.f32 %v3848, %v3952
        %s3961 = sld [smem:[#allocation3 + $0x5e]]
        %v3962 = vstv %s3961
        %v3963 = vmul.f32 %v3962, %v3825
        %v3964 = vmul.f32 %v3962, %v3826
        %v3965 = vmul.f32 %v3962, %v3827
        %v3966 = vmul.f32 %v3962, %v3828
        %3971 = vrot.lane.b32.xlu0 %v3963, 127
        %v3972 = vpop.permute.xlu0 %3971
        %3973 = vrot.lane.b32.xlu0 %v3964, 127
        %v3974 = vpop.permute.xlu0 %3973
        %3975 = vrot.lane.b32.xlu0 %v3965, 127
        %v3976 = vpop.permute.xlu0 %3975
        %3977 = vrot.lane.b32.xlu0 %v3966, 127
        %v3978 = vpop.permute.xlu0 %3977
        %v3983 = vadd.f32 %v3855, %v3972
        %v3984 = vadd.f32 %v3856, %v3974
        %v3985 = vadd.f32 %v3857, %v3976
        %v3986 = vadd.f32 %v3858, %v3978
        %s3987 = sld [smem:[#allocation3 + $0x82]]
        %v3988 = vstv %s3987
        %v3989 = vmul.f32 %v3988, %v3825
        %v3990 = vmul.f32 %v3988, %v3826
        %v3991 = vmul.f32 %v3988, %v3827
        %v3992 = vmul.f32 %v3988, %v3828
        %3997 = vrot.lane.b32.xlu0 %v3989, 127
        %v3998 = vpop.permute.xlu0 %3997
        %3999 = vrot.lane.b32.xlu0 %v3990, 127
        %v4000 = vpop.permute.xlu0 %3999
        %4001 = vrot.lane.b32.xlu0 %v3991, 127
        %v4002 = vpop.permute.xlu0 %4001
        %4003 = vrot.lane.b32.xlu0 %v3992, 127
        %v4004 = vpop.permute.xlu0 %4003
        %v4009 = vadd.f32 %v3865, %v3998
        %v4010 = vadd.f32 %v3866, %v4000
        %v4011 = vadd.f32 %v3867, %v4002
        %v4012 = vadd.f32 %v3868, %v4004
        %s4013 = sld [smem:[#allocation3 + $0xa6]]
        %v4014 = vstv %s4013
        %v4015 = vmul.f32 %v4014, %v3825
        %v4016 = vmul.f32 %v4014, %v3826
        %v4017 = vmul.f32 %v4014, %v3827
        %v4018 = vmul.f32 %v4014, %v3828
        %4023 = vrot.lane.b32.xlu0 %v4015, 127
        %v4024 = vpop.permute.xlu0 %4023
        %4025 = vrot.lane.b32.xlu0 %v4016, 127
        %v4026 = vpop.permute.xlu0 %4025
        %4027 = vrot.lane.b32.xlu0 %v4017, 127
        %v4028 = vpop.permute.xlu0 %4027
        %4029 = vrot.lane.b32.xlu0 %v4018, 127
        %v4030 = vpop.permute.xlu0 %4029
        %v4035 = vadd.f32 %v3875, %v4024
        %v4036 = vadd.f32 %v3876, %v4026
        %v4037 = vadd.f32 %v3877, %v4028
        %v4038 = vadd.f32 %v3878, %v4030
        %s4039 = sld [smem:[#allocation3 + $0xca]]
        %v4040 = vstv %s4039
        %v4041 = vmul.f32 %v4040, %v3825
        %v4042 = vmul.f32 %v4040, %v3826
        %v4043 = vmul.f32 %v4040, %v3827
        %v4044 = vmul.f32 %v4040, %v3828
        %4049 = vrot.lane.b32.xlu0 %v4041, 127
        %v4050 = vpop.permute.xlu0 %4049
        %4051 = vrot.lane.b32.xlu0 %v4042, 127
        %v4052 = vpop.permute.xlu0 %4051
        %4053 = vrot.lane.b32.xlu0 %v4043, 127
        %v4054 = vpop.permute.xlu0 %4053
        %4055 = vrot.lane.b32.xlu0 %v4044, 127
        %v4056 = vpop.permute.xlu0 %4055
        %v4061 = vadd.f32 %v3885, %v4050
        %v4062 = vadd.f32 %v3886, %v4052
        %v4063 = vadd.f32 %v3887, %v4054
        %v4064 = vadd.f32 %v3888, %v4056
        %s4065 = sld [smem:[#allocation3 + $0xee]]
        %v4066 = vstv %s4065
        %v4067 = vmul.f32 %v4066, %v3825
        %v4068 = vmul.f32 %v4066, %v3826
        %v4069 = vmul.f32 %v4066, %v3827
        %v4070 = vmul.f32 %v4066, %v3828
        %4075 = vrot.lane.b32.xlu0 %v4067, 127
        %v4076 = vpop.permute.xlu0 %4075
        %4077 = vrot.lane.b32.xlu0 %v4068, 127
        %v4078 = vpop.permute.xlu0 %4077
        %4079 = vrot.lane.b32.xlu0 %v4069, 127
        %v4080 = vpop.permute.xlu0 %4079
        %4081 = vrot.lane.b32.xlu0 %v4070, 127
        %v4082 = vpop.permute.xlu0 %4081
        %v4087 = vadd.f32 %v3895, %v4076
        %v4088 = vadd.f32 %v3896, %v4078
        %v4089 = vadd.f32 %v3897, %v4080
        %v4090 = vadd.f32 %v3898, %v4082
        %s4091 = sld [smem:[#allocation3 + $0x112]]
        %v4092 = vstv %s4091
        %v4093 = vmul.f32 %v4092, %v3825
        %v4094 = vmul.f32 %v4092, %v3826
        %v4095 = vmul.f32 %v4092, %v3827
        %v4096 = vmul.f32 %v4092, %v3828
        %4101 = vrot.lane.b32.xlu0 %v4093, 127
        %v4102 = vpop.permute.xlu0 %4101
        %4103 = vrot.lane.b32.xlu0 %v4094, 127
        %v4104 = vpop.permute.xlu0 %4103
        %4105 = vrot.lane.b32.xlu0 %v4095, 127
        %v4106 = vpop.permute.xlu0 %4105
        %4107 = vrot.lane.b32.xlu0 %v4096, 127
        %v4108 = vpop.permute.xlu0 %4107
        %v4113 = vadd.f32 %v3905, %v4102
        %v4114 = vadd.f32 %v3906, %v4104
        %v4115 = vadd.f32 %v3907, %v4106
        %v4116 = vadd.f32 %v3908, %v4108
        %s4117 = sld [smem:[#allocation3 + $0x17]]
        %v4118 = vstv %s4117
        %v4119 = vmul.f32 %v4118, %v3825
        %v4120 = vmul.f32 %v4118, %v3826
        %v4121 = vmul.f32 %v4118, %v3827
        %v4122 = vmul.f32 %v4118, %v3828
        %4127 = vrot.lane.b32.xlu0 %v4119, 126
        %v4128 = vpop.permute.xlu0 %4127
        %4129 = vrot.lane.b32.xlu0 %v4120, 126
        %v4130 = vpop.permute.xlu0 %4129
        %4131 = vrot.lane.b32.xlu0 %v4121, 126
        %v4132 = vpop.permute.xlu0 %4131
        %4133 = vrot.lane.b32.xlu0 %v4122, 126
        %v4134 = vpop.permute.xlu0 %4133
        %v4139 = vadd.f32 %v3931, %v4128
        %v4140 = vadd.f32 %v3932, %v4130
        %v4141 = vadd.f32 %v3933, %v4132
        %v4142 = vadd.f32 %v3934, %v4134
        %s4143 = sld [smem:[#allocation3 + $0x3b]]
        %v4144 = vstv %s4143
        %v4145 = vmul.f32 %v4144, %v3825
        %v4146 = vmul.f32 %v4144, %v3826
        %v4147 = vmul.f32 %v4144, %v3827
        %v4148 = vmul.f32 %v4144, %v3828
        %4153 = vrot.lane.b32.xlu0 %v4145, 126
        %v4154 = vpop.permute.xlu0 %4153
        %4155 = vrot.lane.b32.xlu0 %v4146, 126
        %v4156 = vpop.permute.xlu0 %4155
        %4157 = vrot.lane.b32.xlu0 %v4147, 126
        %v4158 = vpop.permute.xlu0 %4157
        %4159 = vrot.lane.b32.xlu0 %v4148, 126
        %v4160 = vpop.permute.xlu0 %4159
        %v4165 = vadd.f32 %v3957, %v4154
        %v4166 = vadd.f32 %v3958, %v4156
        %v4167 = vadd.f32 %v3959, %v4158
        %v4168 = vadd.f32 %v3960, %v4160
        %s4169 = sld [smem:[#allocation3 + $0x5f]]
        %v4170 = vstv %s4169
        %v4171 = vmul.f32 %v4170, %v3825
        %v4172 = vmul.f32 %v4170, %v3826
        %v4173 = vmul.f32 %v4170, %v3827
        %v4174 = vmul.f32 %v4170, %v3828
        %4179 = vrot.lane.b32.xlu0 %v4171, 126
        %v4180 = vpop.permute.xlu0 %4179
        %4181 = vrot.lane.b32.xlu0 %v4172, 126
        %v4182 = vpop.permute.xlu0 %4181
        %4183 = vrot.lane.b32.xlu0 %v4173, 126
        %v4184 = vpop.permute.xlu0 %4183
        %4185 = vrot.lane.b32.xlu0 %v4174, 126
        %v4186 = vpop.permute.xlu0 %4185
        %v4191 = vadd.f32 %v3983, %v4180
        %v4192 = vadd.f32 %v3984, %v4182
        %v4193 = vadd.f32 %v3985, %v4184
        %v4194 = vadd.f32 %v3986, %v4186
        %s4195 = sld [smem:[#allocation3 + $0x83]]
        %v4196 = vstv %s4195
        %v4197 = vmul.f32 %v4196, %v3825
        %v4198 = vmul.f32 %v4196, %v3826
        %v4199 = vmul.f32 %v4196, %v3827
        %v4200 = vmul.f32 %v4196, %v3828
        %4205 = vrot.lane.b32.xlu0 %v4197, 126
        %v4206 = vpop.permute.xlu0 %4205
        %4207 = vrot.lane.b32.xlu0 %v4198, 126
        %v4208 = vpop.permute.xlu0 %4207
        %4209 = vrot.lane.b32.xlu0 %v4199, 126
        %v4210 = vpop.permute.xlu0 %4209
        %4211 = vrot.lane.b32.xlu0 %v4200, 126
        %v4212 = vpop.permute.xlu0 %4211
        %v4217 = vadd.f32 %v4009, %v4206
        %v4218 = vadd.f32 %v4010, %v4208
        %v4219 = vadd.f32 %v4011, %v4210
        %v4220 = vadd.f32 %v4012, %v4212
        %s4221 = sld [smem:[#allocation3 + $0xa7]]
        %v4222 = vstv %s4221
        %v4223 = vmul.f32 %v4222, %v3825
        %v4224 = vmul.f32 %v4222, %v3826
        %v4225 = vmul.f32 %v4222, %v3827
        %v4226 = vmul.f32 %v4222, %v3828
        %4231 = vrot.lane.b32.xlu0 %v4223, 126
        %v4232 = vpop.permute.xlu0 %4231
        %4233 = vrot.lane.b32.xlu0 %v4224, 126
        %v4234 = vpop.permute.xlu0 %4233
        %4235 = vrot.lane.b32.xlu0 %v4225, 126
        %v4236 = vpop.permute.xlu0 %4235
        %4237 = vrot.lane.b32.xlu0 %v4226, 126
        %v4238 = vpop.permute.xlu0 %4237
        %v4243 = vadd.f32 %v4035, %v4232
        %v4244 = vadd.f32 %v4036, %v4234
        %v4245 = vadd.f32 %v4037, %v4236
        %v4246 = vadd.f32 %v4038, %v4238
        %s4247 = sld [smem:[#allocation3 + $0xcb]]
        %v4248 = vstv %s4247
        %v4249 = vmul.f32 %v4248, %v3825
        %v4250 = vmul.f32 %v4248, %v3826
        %v4251 = vmul.f32 %v4248, %v3827
        %v4252 = vmul.f32 %v4248, %v3828
        %4257 = vrot.lane.b32.xlu0 %v4249, 126
        %v4258 = vpop.permute.xlu0 %4257
        %4259 = vrot.lane.b32.xlu0 %v4250, 126
        %v4260 = vpop.permute.xlu0 %4259
        %4261 = vrot.lane.b32.xlu0 %v4251, 126
        %v4262 = vpop.permute.xlu0 %4261
        %4263 = vrot.lane.b32.xlu0 %v4252, 126
        %v4264 = vpop.permute.xlu0 %4263
        %v4269 = vadd.f32 %v4061, %v4258
        %v4270 = vadd.f32 %v4062, %v4260
        %v4271 = vadd.f32 %v4063, %v4262
        %v4272 = vadd.f32 %v4064, %v4264
        %s4273 = sld [smem:[#allocation3 + $0xef]]
        %v4274 = vstv %s4273
        %v4275 = vmul.f32 %v4274, %v3825
        %v4276 = vmul.f32 %v4274, %v3826
        %v4277 = vmul.f32 %v4274, %v3827
        %v4278 = vmul.f32 %v4274, %v3828
        %4283 = vrot.lane.b32.xlu0 %v4275, 126
        %v4284 = vpop.permute.xlu0 %4283
        %4285 = vrot.lane.b32.xlu0 %v4276, 126
        %v4286 = vpop.permute.xlu0 %4285
        %4287 = vrot.lane.b32.xlu0 %v4277, 126
        %v4288 = vpop.permute.xlu0 %4287
        %4289 = vrot.lane.b32.xlu0 %v4278, 126
        %v4290 = vpop.permute.xlu0 %4289
        %v4295 = vadd.f32 %v4087, %v4284
        %v4296 = vadd.f32 %v4088, %v4286
        %v4297 = vadd.f32 %v4089, %v4288
        %v4298 = vadd.f32 %v4090, %v4290
        %s4299 = sld [smem:[#allocation3 + $0x113]]
        %v4300 = vstv %s4299
        %v4301 = vmul.f32 %v4300, %v3825
        %v4302 = vmul.f32 %v4300, %v3826
        %v4303 = vmul.f32 %v4300, %v3827
        %v4304 = vmul.f32 %v4300, %v3828
        %4309 = vrot.lane.b32.xlu0 %v4301, 126
        %v4310 = vpop.permute.xlu0 %4309
        %4311 = vrot.lane.b32.xlu0 %v4302, 126
        %v4312 = vpop.permute.xlu0 %4311
        %4313 = vrot.lane.b32.xlu0 %v4303, 126
        %v4314 = vpop.permute.xlu0 %4313
        %4315 = vrot.lane.b32.xlu0 %v4304, 126
        %v4316 = vpop.permute.xlu0 %4315
        %v4321 = vadd.f32 %v4113, %v4310
        %v4322 = vadd.f32 %v4114, %v4312
        %v4323 = vadd.f32 %v4115, %v4314
        %v4324 = vadd.f32 %v4116, %v4316
        %v4325 = vld [vmem:[%s3324 + $0x2] sm:$0xff]
        %v4326 = vld [vmem:[%s3324 + $0xa] sm:$0xff]
        %v4327 = vld [vmem:[%s3324 + $0x12] sm:$0xff]
        %v4328 = vld [vmem:[%s3324 + $0x1a] sm:$0xff]
        %s4329 = sld [smem:[#allocation3 + $0x18]]
        %v4330 = vstv %s4329
        %v4331 = vmul.f32 %v4330, %v4325
        %v4332 = vmul.f32 %v4330, %v4326
        %v4333 = vmul.f32 %v4330, %v4327
        %v4334 = vmul.f32 %v4330, %v4328
        %v4335 = vadd.f32 %v4139, %v4331
        %v4336 = vadd.f32 %v4140, %v4332
        %v4337 = vadd.f32 %v4141, %v4333
        %v4338 = vadd.f32 %v4142, %v4334
        %s4339 = sld [smem:[#allocation3 + $0x3c]]
        %v4340 = vstv %s4339
        %v4341 = vmul.f32 %v4340, %v4325
        %v4342 = vmul.f32 %v4340, %v4326
        %v4343 = vmul.f32 %v4340, %v4327
        %v4344 = vmul.f32 %v4340, %v4328
        %v4345 = vadd.f32 %v4165, %v4341
        %v4346 = vadd.f32 %v4166, %v4342
        %v4347 = vadd.f32 %v4167, %v4343
        %v4348 = vadd.f32 %v4168, %v4344
        %s4349 = sld [smem:[#allocation3 + $0x60]]
        %v4350 = vstv %s4349
        %v4351 = vmul.f32 %v4350, %v4325
        %v4352 = vmul.f32 %v4350, %v4326
        %v4353 = vmul.f32 %v4350, %v4327
        %v4354 = vmul.f32 %v4350, %v4328
        %v4355 = vadd.f32 %v4191, %v4351
        %v4356 = vadd.f32 %v4192, %v4352
        %v4357 = vadd.f32 %v4193, %v4353
        %v4358 = vadd.f32 %v4194, %v4354
        %s4359 = sld [smem:[#allocation3 + $0x84]]
        %v4360 = vstv %s4359
        %v4361 = vmul.f32 %v4360, %v4325
        %v4362 = vmul.f32 %v4360, %v4326
        %v4363 = vmul.f32 %v4360, %v4327
        %v4364 = vmul.f32 %v4360, %v4328
        %v4365 = vadd.f32 %v4217, %v4361
        %v4366 = vadd.f32 %v4218, %v4362
        %v4367 = vadd.f32 %v4219, %v4363
        %v4368 = vadd.f32 %v4220, %v4364
        %s4369 = sld [smem:[#allocation3 + $0xa8]]
        %v4370 = vstv %s4369
        %v4371 = vmul.f32 %v4370, %v4325
        %v4372 = vmul.f32 %v4370, %v4326
        %v4373 = vmul.f32 %v4370, %v4327
        %v4374 = vmul.f32 %v4370, %v4328
        %v4375 = vadd.f32 %v4243, %v4371
        %v4376 = vadd.f32 %v4244, %v4372
        %v4377 = vadd.f32 %v4245, %v4373
        %v4378 = vadd.f32 %v4246, %v4374
        %s4379 = sld [smem:[#allocation3 + $0xcc]]
        %v4380 = vstv %s4379
        %v4381 = vmul.f32 %v4380, %v4325
        %v4382 = vmul.f32 %v4380, %v4326
        %v4383 = vmul.f32 %v4380, %v4327
        %v4384 = vmul.f32 %v4380, %v4328
        %v4385 = vadd.f32 %v4269, %v4381
        %v4386 = vadd.f32 %v4270, %v4382
        %v4387 = vadd.f32 %v4271, %v4383
        %v4388 = vadd.f32 %v4272, %v4384
        %s4389 = sld [smem:[#allocation3 + $0xf0]]
        %v4390 = vstv %s4389
        %v4391 = vmul.f32 %v4390, %v4325
        %v4392 = vmul.f32 %v4390, %v4326
        %v4393 = vmul.f32 %v4390, %v4327
        %v4394 = vmul.f32 %v4390, %v4328
        %v4395 = vadd.f32 %v4295, %v4391
        %v4396 = vadd.f32 %v4296, %v4392
        %v4397 = vadd.f32 %v4297, %v4393
        %v4398 = vadd.f32 %v4298, %v4394
        %s4399 = sld [smem:[#allocation3 + $0x114]]
        %v4400 = vstv %s4399
        %v4401 = vmul.f32 %v4400, %v4325
        %v4402 = vmul.f32 %v4400, %v4326
        %v4403 = vmul.f32 %v4400, %v4327
        %v4404 = vmul.f32 %v4400, %v4328
        %v4405 = vadd.f32 %v4321, %v4401
        %v4406 = vadd.f32 %v4322, %v4402
        %v4407 = vadd.f32 %v4323, %v4403
        %v4408 = vadd.f32 %v4324, %v4404
        %s4409 = sld [smem:[#allocation3 + $0x19]]
        %v4410 = vstv %s4409
        %v4411 = vmul.f32 %v4410, %v4325
        %v4412 = vmul.f32 %v4410, %v4326
        %v4413 = vmul.f32 %v4410, %v4327
        %v4414 = vmul.f32 %v4410, %v4328
        %4419 = vrot.lane.b32.xlu0 %v4411, 127
        %v4420 = vpop.permute.xlu0 %4419
        %4421 = vrot.lane.b32.xlu0 %v4412, 127
        %v4422 = vpop.permute.xlu0 %4421
        %4423 = vrot.lane.b32.xlu0 %v4413, 127
        %v4424 = vpop.permute.xlu0 %4423
        %4425 = vrot.lane.b32.xlu0 %v4414, 127
        %v4426 = vpop.permute.xlu0 %4425
        %v4431 = vadd.f32 %v4335, %v4420
        %v4432 = vadd.f32 %v4336, %v4422
        %v4433 = vadd.f32 %v4337, %v4424
        %v4434 = vadd.f32 %v4338, %v4426
        %s4435 = sld [smem:[#allocation3 + $0x3d]]
        %v4436 = vstv %s4435
        %v4437 = vmul.f32 %v4436, %v4325
        %v4438 = vmul.f32 %v4436, %v4326
        %v4439 = vmul.f32 %v4436, %v4327
        %v4440 = vmul.f32 %v4436, %v4328
        %4445 = vrot.lane.b32.xlu0 %v4437, 127
        %v4446 = vpop.permute.xlu0 %4445
        %4447 = vrot.lane.b32.xlu0 %v4438, 127
        %v4448 = vpop.permute.xlu0 %4447
        %4449 = vrot.lane.b32.xlu0 %v4439, 127
        %v4450 = vpop.permute.xlu0 %4449
        %4451 = vrot.lane.b32.xlu0 %v4440, 127
        %v4452 = vpop.permute.xlu0 %4451
        %v4457 = vadd.f32 %v4345, %v4446
        %v4458 = vadd.f32 %v4346, %v4448
        %v4459 = vadd.f32 %v4347, %v4450
        %v4460 = vadd.f32 %v4348, %v4452
        %s4461 = sld [smem:[#allocation3 + $0x61]]
        %v4462 = vstv %s4461
        %v4463 = vmul.f32 %v4462, %v4325
        %v4464 = vmul.f32 %v4462, %v4326
        %v4465 = vmul.f32 %v4462, %v4327
        %v4466 = vmul.f32 %v4462, %v4328
        %4471 = vrot.lane.b32.xlu0 %v4463, 127
        %v4472 = vpop.permute.xlu0 %4471
        %4473 = vrot.lane.b32.xlu0 %v4464, 127
        %v4474 = vpop.permute.xlu0 %4473
        %4475 = vrot.lane.b32.xlu0 %v4465, 127
        %v4476 = vpop.permute.xlu0 %4475
        %4477 = vrot.lane.b32.xlu0 %v4466, 127
        %v4478 = vpop.permute.xlu0 %4477
        %v4483 = vadd.f32 %v4355, %v4472
        %v4484 = vadd.f32 %v4356, %v4474
        %v4485 = vadd.f32 %v4357, %v4476
        %v4486 = vadd.f32 %v4358, %v4478
        %s4487 = sld [smem:[#allocation3 + $0x85]]
        %v4488 = vstv %s4487
        %v4489 = vmul.f32 %v4488, %v4325
        %v4490 = vmul.f32 %v4488, %v4326
        %v4491 = vmul.f32 %v4488, %v4327
        %v4492 = vmul.f32 %v4488, %v4328
        %4497 = vrot.lane.b32.xlu0 %v4489, 127
        %v4498 = vpop.permute.xlu0 %4497
        %4499 = vrot.lane.b32.xlu0 %v4490, 127
        %v4500 = vpop.permute.xlu0 %4499
        %4501 = vrot.lane.b32.xlu0 %v4491, 127
        %v4502 = vpop.permute.xlu0 %4501
        %4503 = vrot.lane.b32.xlu0 %v4492, 127
        %v4504 = vpop.permute.xlu0 %4503
        %v4509 = vadd.f32 %v4365, %v4498
        %v4510 = vadd.f32 %v4366, %v4500
        %v4511 = vadd.f32 %v4367, %v4502
        %v4512 = vadd.f32 %v4368, %v4504
        %s4513 = sld [smem:[#allocation3 + $0xa9]]
        %v4514 = vstv %s4513
        %v4515 = vmul.f32 %v4514, %v4325
        %v4516 = vmul.f32 %v4514, %v4326
        %v4517 = vmul.f32 %v4514, %v4327
        %v4518 = vmul.f32 %v4514, %v4328
        %4523 = vrot.lane.b32.xlu0 %v4515, 127
        %v4524 = vpop.permute.xlu0 %4523
        %4525 = vrot.lane.b32.xlu0 %v4516, 127
        %v4526 = vpop.permute.xlu0 %4525
        %4527 = vrot.lane.b32.xlu0 %v4517, 127
        %v4528 = vpop.permute.xlu0 %4527
        %4529 = vrot.lane.b32.xlu0 %v4518, 127
        %v4530 = vpop.permute.xlu0 %4529
        %v4535 = vadd.f32 %v4375, %v4524
        %v4536 = vadd.f32 %v4376, %v4526
        %v4537 = vadd.f32 %v4377, %v4528
        %v4538 = vadd.f32 %v4378, %v4530
        %s4539 = sld [smem:[#allocation3 + $0xcd]]
        %v4540 = vstv %s4539
        %v4541 = vmul.f32 %v4540, %v4325
        %v4542 = vmul.f32 %v4540, %v4326
        %v4543 = vmul.f32 %v4540, %v4327
        %v4544 = vmul.f32 %v4540, %v4328
        %4549 = vrot.lane.b32.xlu0 %v4541, 127
        %v4550 = vpop.permute.xlu0 %4549
        %4551 = vrot.lane.b32.xlu0 %v4542, 127
        %v4552 = vpop.permute.xlu0 %4551
        %4553 = vrot.lane.b32.xlu0 %v4543, 127
        %v4554 = vpop.permute.xlu0 %4553
        %4555 = vrot.lane.b32.xlu0 %v4544, 127
        %v4556 = vpop.permute.xlu0 %4555
        %v4561 = vadd.f32 %v4385, %v4550
        %v4562 = vadd.f32 %v4386, %v4552
        %v4563 = vadd.f32 %v4387, %v4554
        %v4564 = vadd.f32 %v4388, %v4556
        %s4565 = sld [smem:[#allocation3 + $0xf1]]
        %v4566 = vstv %s4565
        %v4567 = vmul.f32 %v4566, %v4325
        %v4568 = vmul.f32 %v4566, %v4326
        %v4569 = vmul.f32 %v4566, %v4327
        %v4570 = vmul.f32 %v4566, %v4328
        %4575 = vrot.lane.b32.xlu0 %v4567, 127
        %v4576 = vpop.permute.xlu0 %4575
        %4577 = vrot.lane.b32.xlu0 %v4568, 127
        %v4578 = vpop.permute.xlu0 %4577
        %4579 = vrot.lane.b32.xlu0 %v4569, 127
        %v4580 = vpop.permute.xlu0 %4579
        %4581 = vrot.lane.b32.xlu0 %v4570, 127
        %v4582 = vpop.permute.xlu0 %4581
        %v4587 = vadd.f32 %v4395, %v4576
        %v4588 = vadd.f32 %v4396, %v4578
        %v4589 = vadd.f32 %v4397, %v4580
        %v4590 = vadd.f32 %v4398, %v4582
        %s4591 = sld [smem:[#allocation3 + $0x115]]
        %v4592 = vstv %s4591
        %v4593 = vmul.f32 %v4592, %v4325
        %v4594 = vmul.f32 %v4592, %v4326
        %v4595 = vmul.f32 %v4592, %v4327
        %v4596 = vmul.f32 %v4592, %v4328
        %4601 = vrot.lane.b32.xlu0 %v4593, 127
        %v4602 = vpop.permute.xlu0 %4601
        %4603 = vrot.lane.b32.xlu0 %v4594, 127
        %v4604 = vpop.permute.xlu0 %4603
        %4605 = vrot.lane.b32.xlu0 %v4595, 127
        %v4606 = vpop.permute.xlu0 %4605
        %4607 = vrot.lane.b32.xlu0 %v4596, 127
        %v4608 = vpop.permute.xlu0 %4607
        %v4613 = vadd.f32 %v4405, %v4602
        %v4614 = vadd.f32 %v4406, %v4604
        %v4615 = vadd.f32 %v4407, %v4606
        %v4616 = vadd.f32 %v4408, %v4608
        %s4617 = sld [smem:[#allocation3 + $0x1a]]
        %v4618 = vstv %s4617
        %v4619 = vmul.f32 %v4618, %v4325
        %v4620 = vmul.f32 %v4618, %v4326
        %v4621 = vmul.f32 %v4618, %v4327
        %v4622 = vmul.f32 %v4618, %v4328
        %4627 = vrot.lane.b32.xlu0 %v4619, 126
        %v4628 = vpop.permute.xlu0 %4627
        %4629 = vrot.lane.b32.xlu0 %v4620, 126
        %v4630 = vpop.permute.xlu0 %4629
        %4631 = vrot.lane.b32.xlu0 %v4621, 126
        %v4632 = vpop.permute.xlu0 %4631
        %4633 = vrot.lane.b32.xlu0 %v4622, 126
        %v4634 = vpop.permute.xlu0 %4633
        %v4639 = vadd.f32 %v4431, %v4628
        %v4640 = vadd.f32 %v4432, %v4630
        %v4641 = vadd.f32 %v4433, %v4632
        %v4642 = vadd.f32 %v4434, %v4634
        %s4643 = sld [smem:[#allocation3 + $0x3e]]
        %v4644 = vstv %s4643
        %v4645 = vmul.f32 %v4644, %v4325
        %v4646 = vmul.f32 %v4644, %v4326
        %v4647 = vmul.f32 %v4644, %v4327
        %v4648 = vmul.f32 %v4644, %v4328
        %4653 = vrot.lane.b32.xlu0 %v4645, 126
        %v4654 = vpop.permute.xlu0 %4653
        %4655 = vrot.lane.b32.xlu0 %v4646, 126
        %v4656 = vpop.permute.xlu0 %4655
        %4657 = vrot.lane.b32.xlu0 %v4647, 126
        %v4658 = vpop.permute.xlu0 %4657
        %4659 = vrot.lane.b32.xlu0 %v4648, 126
        %v4660 = vpop.permute.xlu0 %4659
        %v4665 = vadd.f32 %v4457, %v4654
        %v4666 = vadd.f32 %v4458, %v4656
        %v4667 = vadd.f32 %v4459, %v4658
        %v4668 = vadd.f32 %v4460, %v4660
        %s4669 = sld [smem:[#allocation3 + $0x62]]
        %v4670 = vstv %s4669
        %v4671 = vmul.f32 %v4670, %v4325
        %v4672 = vmul.f32 %v4670, %v4326
        %v4673 = vmul.f32 %v4670, %v4327
        %v4674 = vmul.f32 %v4670, %v4328
        %4679 = vrot.lane.b32.xlu0 %v4671, 126
        %v4680 = vpop.permute.xlu0 %4679
        %4681 = vrot.lane.b32.xlu0 %v4672, 126
        %v4682 = vpop.permute.xlu0 %4681
        %4683 = vrot.lane.b32.xlu0 %v4673, 126
        %v4684 = vpop.permute.xlu0 %4683
        %4685 = vrot.lane.b32.xlu0 %v4674, 126
        %v4686 = vpop.permute.xlu0 %4685
        %v4691 = vadd.f32 %v4483, %v4680
        %v4692 = vadd.f32 %v4484, %v4682
        %v4693 = vadd.f32 %v4485, %v4684
        %v4694 = vadd.f32 %v4486, %v4686
        %s4695 = sld [smem:[#allocation3 + $0x86]]
        %v4696 = vstv %s4695
        %v4697 = vmul.f32 %v4696, %v4325
        %v4698 = vmul.f32 %v4696, %v4326
        %v4699 = vmul.f32 %v4696, %v4327
        %v4700 = vmul.f32 %v4696, %v4328
        %4705 = vrot.lane.b32.xlu0 %v4697, 126
        %v4706 = vpop.permute.xlu0 %4705
        %4707 = vrot.lane.b32.xlu0 %v4698, 126
        %v4708 = vpop.permute.xlu0 %4707
        %4709 = vrot.lane.b32.xlu0 %v4699, 126
        %v4710 = vpop.permute.xlu0 %4709
        %4711 = vrot.lane.b32.xlu0 %v4700, 126
        %v4712 = vpop.permute.xlu0 %4711
        %v4717 = vadd.f32 %v4509, %v4706
        %v4718 = vadd.f32 %v4510, %v4708
        %v4719 = vadd.f32 %v4511, %v4710
        %v4720 = vadd.f32 %v4512, %v4712
        %s4721 = sld [smem:[#allocation3 + $0xaa]]
        %v4722 = vstv %s4721
        %v4723 = vmul.f32 %v4722, %v4325
        %v4724 = vmul.f32 %v4722, %v4326
        %v4725 = vmul.f32 %v4722, %v4327
        %v4726 = vmul.f32 %v4722, %v4328
        %4731 = vrot.lane.b32.xlu0 %v4723, 126
        %v4732 = vpop.permute.xlu0 %4731
        %4733 = vrot.lane.b32.xlu0 %v4724, 126
        %v4734 = vpop.permute.xlu0 %4733
        %4735 = vrot.lane.b32.xlu0 %v4725, 126
        %v4736 = vpop.permute.xlu0 %4735
        %4737 = vrot.lane.b32.xlu0 %v4726, 126
        %v4738 = vpop.permute.xlu0 %4737
        %v4743 = vadd.f32 %v4535, %v4732
        %v4744 = vadd.f32 %v4536, %v4734
        %v4745 = vadd.f32 %v4537, %v4736
        %v4746 = vadd.f32 %v4538, %v4738
        %s4747 = sld [smem:[#allocation3 + $0xce]]
        %v4748 = vstv %s4747
        %v4749 = vmul.f32 %v4748, %v4325
        %v4750 = vmul.f32 %v4748, %v4326
        %v4751 = vmul.f32 %v4748, %v4327
        %v4752 = vmul.f32 %v4748, %v4328
        %4757 = vrot.lane.b32.xlu0 %v4749, 126
        %v4758 = vpop.permute.xlu0 %4757
        %4759 = vrot.lane.b32.xlu0 %v4750, 126
        %v4760 = vpop.permute.xlu0 %4759
        %4761 = vrot.lane.b32.xlu0 %v4751, 126
        %v4762 = vpop.permute.xlu0 %4761
        %4763 = vrot.lane.b32.xlu0 %v4752, 126
        %v4764 = vpop.permute.xlu0 %4763
        %v4769 = vadd.f32 %v4561, %v4758
        %v4770 = vadd.f32 %v4562, %v4760
        %v4771 = vadd.f32 %v4563, %v4762
        %v4772 = vadd.f32 %v4564, %v4764
        %s4773 = sld [smem:[#allocation3 + $0xf2]]
        %v4774 = vstv %s4773
        %v4775 = vmul.f32 %v4774, %v4325
        %v4776 = vmul.f32 %v4774, %v4326
        %v4777 = vmul.f32 %v4774, %v4327
        %v4778 = vmul.f32 %v4774, %v4328
        %4783 = vrot.lane.b32.xlu0 %v4775, 126
        %v4784 = vpop.permute.xlu0 %4783
        %4785 = vrot.lane.b32.xlu0 %v4776, 126
        %v4786 = vpop.permute.xlu0 %4785
        %4787 = vrot.lane.b32.xlu0 %v4777, 126
        %v4788 = vpop.permute.xlu0 %4787
        %4789 = vrot.lane.b32.xlu0 %v4778, 126
        %v4790 = vpop.permute.xlu0 %4789
        %v4795 = vadd.f32 %v4587, %v4784
        %v4796 = vadd.f32 %v4588, %v4786
        %v4797 = vadd.f32 %v4589, %v4788
        %v4798 = vadd.f32 %v4590, %v4790
        %s4799 = sld [smem:[#allocation3 + $0x116]]
        %v4800 = vstv %s4799
        %v4801 = vmul.f32 %v4800, %v4325
        %v4802 = vmul.f32 %v4800, %v4326
        %v4803 = vmul.f32 %v4800, %v4327
        %v4804 = vmul.f32 %v4800, %v4328
        %4809 = vrot.lane.b32.xlu0 %v4801, 126
        %v4810 = vpop.permute.xlu0 %4809
        %4811 = vrot.lane.b32.xlu0 %v4802, 126
        %v4812 = vpop.permute.xlu0 %4811
        %4813 = vrot.lane.b32.xlu0 %v4803, 126
        %v4814 = vpop.permute.xlu0 %4813
        %4815 = vrot.lane.b32.xlu0 %v4804, 126
        %v4816 = vpop.permute.xlu0 %4815
        %v4821 = vadd.f32 %v4613, %v4810
        %v4822 = vadd.f32 %v4614, %v4812
        %v4823 = vadd.f32 %v4615, %v4814
        %v4824 = vadd.f32 %v4616, %v4816
        %s4825 = scalar_lea.vmem [#allocation2], 120
        %v4826 = vld [vmem:[%s4825] sm:$0xff]
        %v4827 = vld [vmem:[%s4825 + $0x8] sm:$0xff]
        %v4828 = vld [vmem:[%s4825 + $0x10] sm:$0xff]
        %v4829 = vld [vmem:[%s4825 + $0x18] sm:$0xff]
        %s4830 = sld [smem:[#allocation3 + $0x1b]]
        %v4831 = vstv %s4830
        %v4832 = vmul.f32 %v4831, %v4826
        %v4833 = vmul.f32 %v4831, %v4827
        %v4834 = vmul.f32 %v4831, %v4828
        %v4835 = vmul.f32 %v4831, %v4829
        %v4836 = vadd.f32 %v4639, %v4832
        %v4837 = vadd.f32 %v4640, %v4833
        %v4838 = vadd.f32 %v4641, %v4834
        %v4839 = vadd.f32 %v4642, %v4835
        %s4840 = sld [smem:[#allocation3 + $0x3f]]
        %v4841 = vstv %s4840
        %v4842 = vmul.f32 %v4841, %v4826
        %v4843 = vmul.f32 %v4841, %v4827
        %v4844 = vmul.f32 %v4841, %v4828
        %v4845 = vmul.f32 %v4841, %v4829
        %v4846 = vadd.f32 %v4665, %v4842
        %v4847 = vadd.f32 %v4666, %v4843
        %v4848 = vadd.f32 %v4667, %v4844
        %v4849 = vadd.f32 %v4668, %v4845
        %s4850 = sld [smem:[#allocation3 + $0x63]]
        %v4851 = vstv %s4850
        %v4852 = vmul.f32 %v4851, %v4826
        %v4853 = vmul.f32 %v4851, %v4827
        %v4854 = vmul.f32 %v4851, %v4828
        %v4855 = vmul.f32 %v4851, %v4829
        %v4856 = vadd.f32 %v4691, %v4852
        %v4857 = vadd.f32 %v4692, %v4853
        %v4858 = vadd.f32 %v4693, %v4854
        %v4859 = vadd.f32 %v4694, %v4855
        %s4860 = sld [smem:[#allocation3 + $0x87]]
        %v4861 = vstv %s4860
        %v4862 = vmul.f32 %v4861, %v4826
        %v4863 = vmul.f32 %v4861, %v4827
        %v4864 = vmul.f32 %v4861, %v4828
        %v4865 = vmul.f32 %v4861, %v4829
        %v4866 = vadd.f32 %v4717, %v4862
        %v4867 = vadd.f32 %v4718, %v4863
        %v4868 = vadd.f32 %v4719, %v4864
        %v4869 = vadd.f32 %v4720, %v4865
        %s4870 = sld [smem:[#allocation3 + $0xab]]
        %v4871 = vstv %s4870
        %v4872 = vmul.f32 %v4871, %v4826
        %v4873 = vmul.f32 %v4871, %v4827
        %v4874 = vmul.f32 %v4871, %v4828
        %v4875 = vmul.f32 %v4871, %v4829
        %v4876 = vadd.f32 %v4743, %v4872
        %v4877 = vadd.f32 %v4744, %v4873
        %v4878 = vadd.f32 %v4745, %v4874
        %v4879 = vadd.f32 %v4746, %v4875
        %s4880 = sld [smem:[#allocation3 + $0xcf]]
        %v4881 = vstv %s4880
        %v4882 = vmul.f32 %v4881, %v4826
        %v4883 = vmul.f32 %v4881, %v4827
        %v4884 = vmul.f32 %v4881, %v4828
        %v4885 = vmul.f32 %v4881, %v4829
        %v4886 = vadd.f32 %v4769, %v4882
        %v4887 = vadd.f32 %v4770, %v4883
        %v4888 = vadd.f32 %v4771, %v4884
        %v4889 = vadd.f32 %v4772, %v4885
        %s4890 = sld [smem:[#allocation3 + $0xf3]]
        %v4891 = vstv %s4890
        %v4892 = vmul.f32 %v4891, %v4826
        %v4893 = vmul.f32 %v4891, %v4827
        %v4894 = vmul.f32 %v4891, %v4828
        %v4895 = vmul.f32 %v4891, %v4829
        %v4896 = vadd.f32 %v4795, %v4892
        %v4897 = vadd.f32 %v4796, %v4893
        %v4898 = vadd.f32 %v4797, %v4894
        %v4899 = vadd.f32 %v4798, %v4895
        %s4900 = sld [smem:[#allocation3 + $0x117]]
        %v4901 = vstv %s4900
        %v4902 = vmul.f32 %v4901, %v4826
        %v4903 = vmul.f32 %v4901, %v4827
        %v4904 = vmul.f32 %v4901, %v4828
        %v4905 = vmul.f32 %v4901, %v4829
        %v4906 = vadd.f32 %v4821, %v4902
        %v4907 = vadd.f32 %v4822, %v4903
        %v4908 = vadd.f32 %v4823, %v4904
        %v4909 = vadd.f32 %v4824, %v4905
        %s4910 = sld [smem:[#allocation3 + $0x1c]]
        %v4911 = vstv %s4910
        %v4912 = vmul.f32 %v4911, %v4826
        %v4913 = vmul.f32 %v4911, %v4827
        %v4914 = vmul.f32 %v4911, %v4828
        %v4915 = vmul.f32 %v4911, %v4829
        %4920 = vrot.lane.b32.xlu0 %v4912, 127
        %v4921 = vpop.permute.xlu0 %4920
        %4922 = vrot.lane.b32.xlu0 %v4913, 127
        %v4923 = vpop.permute.xlu0 %4922
        %4924 = vrot.lane.b32.xlu0 %v4914, 127
        %v4925 = vpop.permute.xlu0 %4924
        %4926 = vrot.lane.b32.xlu0 %v4915, 127
        %v4927 = vpop.permute.xlu0 %4926
        %v4932 = vadd.f32 %v4836, %v4921
        %v4933 = vadd.f32 %v4837, %v4923
        %v4934 = vadd.f32 %v4838, %v4925
        %v4935 = vadd.f32 %v4839, %v4927
        %s4936 = sld [smem:[#allocation3 + $0x40]]
        %v4937 = vstv %s4936
        %v4938 = vmul.f32 %v4937, %v4826
        %v4939 = vmul.f32 %v4937, %v4827
        %v4940 = vmul.f32 %v4937, %v4828
        %v4941 = vmul.f32 %v4937, %v4829
        %4946 = vrot.lane.b32.xlu0 %v4938, 127
        %v4947 = vpop.permute.xlu0 %4946
        %4948 = vrot.lane.b32.xlu0 %v4939, 127
        %v4949 = vpop.permute.xlu0 %4948
        %4950 = vrot.lane.b32.xlu0 %v4940, 127
        %v4951 = vpop.permute.xlu0 %4950
        %4952 = vrot.lane.b32.xlu0 %v4941, 127
        %v4953 = vpop.permute.xlu0 %4952
        %v4958 = vadd.f32 %v4846, %v4947
        %v4959 = vadd.f32 %v4847, %v4949
        %v4960 = vadd.f32 %v4848, %v4951
        %v4961 = vadd.f32 %v4849, %v4953
        %s4962 = sld [smem:[#allocation3 + $0x64]]
        %v4963 = vstv %s4962
        %v4964 = vmul.f32 %v4963, %v4826
        %v4965 = vmul.f32 %v4963, %v4827
        %v4966 = vmul.f32 %v4963, %v4828
        %v4967 = vmul.f32 %v4963, %v4829
        %4972 = vrot.lane.b32.xlu0 %v4964, 127
        %v4973 = vpop.permute.xlu0 %4972
        %4974 = vrot.lane.b32.xlu0 %v4965, 127
        %v4975 = vpop.permute.xlu0 %4974
        %4976 = vrot.lane.b32.xlu0 %v4966, 127
        %v4977 = vpop.permute.xlu0 %4976
        %4978 = vrot.lane.b32.xlu0 %v4967, 127
        %v4979 = vpop.permute.xlu0 %4978
        %v4984 = vadd.f32 %v4856, %v4973
        %v4985 = vadd.f32 %v4857, %v4975
        %v4986 = vadd.f32 %v4858, %v4977
        %v4987 = vadd.f32 %v4859, %v4979
        %s4988 = sld [smem:[#allocation3 + $0x88]]
        %v4989 = vstv %s4988
        %v4990 = vmul.f32 %v4989, %v4826
        %v4991 = vmul.f32 %v4989, %v4827
        %v4992 = vmul.f32 %v4989, %v4828
        %v4993 = vmul.f32 %v4989, %v4829
        %4998 = vrot.lane.b32.xlu0 %v4990, 127
        %v4999 = vpop.permute.xlu0 %4998
        %5000 = vrot.lane.b32.xlu0 %v4991, 127
        %v5001 = vpop.permute.xlu0 %5000
        %5002 = vrot.lane.b32.xlu0 %v4992, 127
        %v5003 = vpop.permute.xlu0 %5002
        %5004 = vrot.lane.b32.xlu0 %v4993, 127
        %v5005 = vpop.permute.xlu0 %5004
        %v5010 = vadd.f32 %v4866, %v4999
        %v5011 = vadd.f32 %v4867, %v5001
        %v5012 = vadd.f32 %v4868, %v5003
        %v5013 = vadd.f32 %v4869, %v5005
        %s5014 = sld [smem:[#allocation3 + $0xac]]
        %v5015 = vstv %s5014
        %v5016 = vmul.f32 %v5015, %v4826
        %v5017 = vmul.f32 %v5015, %v4827
        %v5018 = vmul.f32 %v5015, %v4828
        %v5019 = vmul.f32 %v5015, %v4829
        %5024 = vrot.lane.b32.xlu0 %v5016, 127
        %v5025 = vpop.permute.xlu0 %5024
        %5026 = vrot.lane.b32.xlu0 %v5017, 127
        %v5027 = vpop.permute.xlu0 %5026
        %5028 = vrot.lane.b32.xlu0 %v5018, 127
        %v5029 = vpop.permute.xlu0 %5028
        %5030 = vrot.lane.b32.xlu0 %v5019, 127
        %v5031 = vpop.permute.xlu0 %5030
        %v5036 = vadd.f32 %v4876, %v5025
        %v5037 = vadd.f32 %v4877, %v5027
        %v5038 = vadd.f32 %v4878, %v5029
        %v5039 = vadd.f32 %v4879, %v5031
        %s5040 = sld [smem:[#allocation3 + $0xd0]]
        %v5041 = vstv %s5040
        %v5042 = vmul.f32 %v5041, %v4826
        %v5043 = vmul.f32 %v5041, %v4827
        %v5044 = vmul.f32 %v5041, %v4828
        %v5045 = vmul.f32 %v5041, %v4829
        %5050 = vrot.lane.b32.xlu0 %v5042, 127
        %v5051 = vpop.permute.xlu0 %5050
        %5052 = vrot.lane.b32.xlu0 %v5043, 127
        %v5053 = vpop.permute.xlu0 %5052
        %5054 = vrot.lane.b32.xlu0 %v5044, 127
        %v5055 = vpop.permute.xlu0 %5054
        %5056 = vrot.lane.b32.xlu0 %v5045, 127
        %v5057 = vpop.permute.xlu0 %5056
        %v5062 = vadd.f32 %v4886, %v5051
        %v5063 = vadd.f32 %v4887, %v5053
        %v5064 = vadd.f32 %v4888, %v5055
        %v5065 = vadd.f32 %v4889, %v5057
        %s5066 = sld [smem:[#allocation3 + $0xf4]]
        %v5067 = vstv %s5066
        %v5068 = vmul.f32 %v5067, %v4826
        %v5069 = vmul.f32 %v5067, %v4827
        %v5070 = vmul.f32 %v5067, %v4828
        %v5071 = vmul.f32 %v5067, %v4829
        %5076 = vrot.lane.b32.xlu0 %v5068, 127
        %v5077 = vpop.permute.xlu0 %5076
        %5078 = vrot.lane.b32.xlu0 %v5069, 127
        %v5079 = vpop.permute.xlu0 %5078
        %5080 = vrot.lane.b32.xlu0 %v5070, 127
        %v5081 = vpop.permute.xlu0 %5080
        %5082 = vrot.lane.b32.xlu0 %v5071, 127
        %v5083 = vpop.permute.xlu0 %5082
        %v5088 = vadd.f32 %v4896, %v5077
        %v5089 = vadd.f32 %v4897, %v5079
        %v5090 = vadd.f32 %v4898, %v5081
        %v5091 = vadd.f32 %v4899, %v5083
        %s5092 = sld [smem:[#allocation3 + $0x118]]
        %v5093 = vstv %s5092
        %v5094 = vmul.f32 %v5093, %v4826
        %v5095 = vmul.f32 %v5093, %v4827
        %v5096 = vmul.f32 %v5093, %v4828
        %v5097 = vmul.f32 %v5093, %v4829
        %5102 = vrot.lane.b32.xlu0 %v5094, 127
        %v5103 = vpop.permute.xlu0 %5102
        %5104 = vrot.lane.b32.xlu0 %v5095, 127
        %v5105 = vpop.permute.xlu0 %5104
        %5106 = vrot.lane.b32.xlu0 %v5096, 127
        %v5107 = vpop.permute.xlu0 %5106
        %5108 = vrot.lane.b32.xlu0 %v5097, 127
        %v5109 = vpop.permute.xlu0 %5108
        %v5114 = vadd.f32 %v4906, %v5103
        %v5115 = vadd.f32 %v4907, %v5105
        %v5116 = vadd.f32 %v4908, %v5107
        %v5117 = vadd.f32 %v4909, %v5109
        %s5118 = sld [smem:[#allocation3 + $0x1d]]
        %v5119 = vstv %s5118
        %v5120 = vmul.f32 %v5119, %v4826
        %v5121 = vmul.f32 %v5119, %v4827
        %v5122 = vmul.f32 %v5119, %v4828
        %v5123 = vmul.f32 %v5119, %v4829
        %5128 = vrot.lane.b32.xlu0 %v5120, 126
        %v5129 = vpop.permute.xlu0 %5128
        %5130 = vrot.lane.b32.xlu0 %v5121, 126
        %v5131 = vpop.permute.xlu0 %5130
        %5132 = vrot.lane.b32.xlu0 %v5122, 126
        %v5133 = vpop.permute.xlu0 %5132
        %5134 = vrot.lane.b32.xlu0 %v5123, 126
        %v5135 = vpop.permute.xlu0 %5134
        %v5140 = vadd.f32 %v4932, %v5129
        %v5141 = vadd.f32 %v4933, %v5131
        %v5142 = vadd.f32 %v4934, %v5133
        %v5143 = vadd.f32 %v4935, %v5135
        %s5144 = sld [smem:[#allocation3 + $0x41]]
        %v5145 = vstv %s5144
        %v5146 = vmul.f32 %v5145, %v4826
        %v5147 = vmul.f32 %v5145, %v4827
        %v5148 = vmul.f32 %v5145, %v4828
        %v5149 = vmul.f32 %v5145, %v4829
        %5154 = vrot.lane.b32.xlu0 %v5146, 126
        %v5155 = vpop.permute.xlu0 %5154
        %5156 = vrot.lane.b32.xlu0 %v5147, 126
        %v5157 = vpop.permute.xlu0 %5156
        %5158 = vrot.lane.b32.xlu0 %v5148, 126
        %v5159 = vpop.permute.xlu0 %5158
        %5160 = vrot.lane.b32.xlu0 %v5149, 126
        %v5161 = vpop.permute.xlu0 %5160
        %v5166 = vadd.f32 %v4958, %v5155
        %v5167 = vadd.f32 %v4959, %v5157
        %v5168 = vadd.f32 %v4960, %v5159
        %v5169 = vadd.f32 %v4961, %v5161
        %s5170 = sld [smem:[#allocation3 + $0x65]]
        %v5171 = vstv %s5170
        %v5172 = vmul.f32 %v5171, %v4826
        %v5173 = vmul.f32 %v5171, %v4827
        %v5174 = vmul.f32 %v5171, %v4828
        %v5175 = vmul.f32 %v5171, %v4829
        %5180 = vrot.lane.b32.xlu0 %v5172, 126
        %v5181 = vpop.permute.xlu0 %5180
        %5182 = vrot.lane.b32.xlu0 %v5173, 126
        %v5183 = vpop.permute.xlu0 %5182
        %5184 = vrot.lane.b32.xlu0 %v5174, 126
        %v5185 = vpop.permute.xlu0 %5184
        %5186 = vrot.lane.b32.xlu0 %v5175, 126
        %v5187 = vpop.permute.xlu0 %5186
        %v5192 = vadd.f32 %v4984, %v5181
        %v5193 = vadd.f32 %v4985, %v5183
        %v5194 = vadd.f32 %v4986, %v5185
        %v5195 = vadd.f32 %v4987, %v5187
        %s5196 = sld [smem:[#allocation3 + $0x89]]
        %v5197 = vstv %s5196
        %v5198 = vmul.f32 %v5197, %v4826
        %v5199 = vmul.f32 %v5197, %v4827
        %v5200 = vmul.f32 %v5197, %v4828
        %v5201 = vmul.f32 %v5197, %v4829
        %5206 = vrot.lane.b32.xlu0 %v5198, 126
        %v5207 = vpop.permute.xlu0 %5206
        %5208 = vrot.lane.b32.xlu0 %v5199, 126
        %v5209 = vpop.permute.xlu0 %5208
        %5210 = vrot.lane.b32.xlu0 %v5200, 126
        %v5211 = vpop.permute.xlu0 %5210
        %5212 = vrot.lane.b32.xlu0 %v5201, 126
        %v5213 = vpop.permute.xlu0 %5212
        %v5218 = vadd.f32 %v5010, %v5207
        %v5219 = vadd.f32 %v5011, %v5209
        %v5220 = vadd.f32 %v5012, %v5211
        %v5221 = vadd.f32 %v5013, %v5213
        %s5222 = sld [smem:[#allocation3 + $0xad]]
        %v5223 = vstv %s5222
        %v5224 = vmul.f32 %v5223, %v4826
        %v5225 = vmul.f32 %v5223, %v4827
        %v5226 = vmul.f32 %v5223, %v4828
        %v5227 = vmul.f32 %v5223, %v4829
        %5232 = vrot.lane.b32.xlu0 %v5224, 126
        %v5233 = vpop.permute.xlu0 %5232
        %5234 = vrot.lane.b32.xlu0 %v5225, 126
        %v5235 = vpop.permute.xlu0 %5234
        %5236 = vrot.lane.b32.xlu0 %v5226, 126
        %v5237 = vpop.permute.xlu0 %5236
        %5238 = vrot.lane.b32.xlu0 %v5227, 126
        %v5239 = vpop.permute.xlu0 %5238
        %v5244 = vadd.f32 %v5036, %v5233
        %v5245 = vadd.f32 %v5037, %v5235
        %v5246 = vadd.f32 %v5038, %v5237
        %v5247 = vadd.f32 %v5039, %v5239
        %s5248 = sld [smem:[#allocation3 + $0xd1]]
        %v5249 = vstv %s5248
        %v5250 = vmul.f32 %v5249, %v4826
        %v5251 = vmul.f32 %v5249, %v4827
        %v5252 = vmul.f32 %v5249, %v4828
        %v5253 = vmul.f32 %v5249, %v4829
        %5258 = vrot.lane.b32.xlu0 %v5250, 126
        %v5259 = vpop.permute.xlu0 %5258
        %5260 = vrot.lane.b32.xlu0 %v5251, 126
        %v5261 = vpop.permute.xlu0 %5260
        %5262 = vrot.lane.b32.xlu0 %v5252, 126
        %v5263 = vpop.permute.xlu0 %5262
        %5264 = vrot.lane.b32.xlu0 %v5253, 126
        %v5265 = vpop.permute.xlu0 %5264
        %v5270 = vadd.f32 %v5062, %v5259
        %v5271 = vadd.f32 %v5063, %v5261
        %v5272 = vadd.f32 %v5064, %v5263
        %v5273 = vadd.f32 %v5065, %v5265
        %s5274 = sld [smem:[#allocation3 + $0xf5]]
        %v5275 = vstv %s5274
        %v5276 = vmul.f32 %v5275, %v4826
        %v5277 = vmul.f32 %v5275, %v4827
        %v5278 = vmul.f32 %v5275, %v4828
        %v5279 = vmul.f32 %v5275, %v4829
        %5284 = vrot.lane.b32.xlu0 %v5276, 126
        %v5285 = vpop.permute.xlu0 %5284
        %5286 = vrot.lane.b32.xlu0 %v5277, 126
        %v5287 = vpop.permute.xlu0 %5286
        %5288 = vrot.lane.b32.xlu0 %v5278, 126
        %v5289 = vpop.permute.xlu0 %5288
        %5290 = vrot.lane.b32.xlu0 %v5279, 126
        %v5291 = vpop.permute.xlu0 %5290
        %v5296 = vadd.f32 %v5088, %v5285
        %v5297 = vadd.f32 %v5089, %v5287
        %v5298 = vadd.f32 %v5090, %v5289
        %v5299 = vadd.f32 %v5091, %v5291
        %s5300 = sld [smem:[#allocation3 + $0x119]]
        %v5301 = vstv %s5300
        %v5302 = vmul.f32 %v5301, %v4826
        %v5303 = vmul.f32 %v5301, %v4827
        %v5304 = vmul.f32 %v5301, %v4828
        %v5305 = vmul.f32 %v5301, %v4829
        %5310 = vrot.lane.b32.xlu0 %v5302, 126
        %v5311 = vpop.permute.xlu0 %5310
        %5312 = vrot.lane.b32.xlu0 %v5303, 126
        %v5313 = vpop.permute.xlu0 %5312
        %5314 = vrot.lane.b32.xlu0 %v5304, 126
        %v5315 = vpop.permute.xlu0 %5314
        %5316 = vrot.lane.b32.xlu0 %v5305, 126
        %v5317 = vpop.permute.xlu0 %5316
        %v5322 = vadd.f32 %v5114, %v5311
        %v5323 = vadd.f32 %v5115, %v5313
        %v5324 = vadd.f32 %v5116, %v5315
        %v5325 = vadd.f32 %v5117, %v5317
        %v5326 = vld [vmem:[%s4825 + $0x1] sm:$0xff]
        %v5327 = vld [vmem:[%s4825 + $0x9] sm:$0xff]
        %v5328 = vld [vmem:[%s4825 + $0x11] sm:$0xff]
        %v5329 = vld [vmem:[%s4825 + $0x19] sm:$0xff]
        %s5330 = sld [smem:[#allocation3 + $0x1e]]
        %v5331 = vstv %s5330
        %v5332 = vmul.f32 %v5331, %v5326
        %v5333 = vmul.f32 %v5331, %v5327
        %v5334 = vmul.f32 %v5331, %v5328
        %v5335 = vmul.f32 %v5331, %v5329
        %v5336 = vadd.f32 %v5140, %v5332
        %v5337 = vadd.f32 %v5141, %v5333
        %v5338 = vadd.f32 %v5142, %v5334
        %v5339 = vadd.f32 %v5143, %v5335
        %s5340 = sld [smem:[#allocation3 + $0x42]]
        %v5341 = vstv %s5340
        %v5342 = vmul.f32 %v5341, %v5326
        %v5343 = vmul.f32 %v5341, %v5327
        %v5344 = vmul.f32 %v5341, %v5328
        %v5345 = vmul.f32 %v5341, %v5329
        %v5346 = vadd.f32 %v5166, %v5342
        %v5347 = vadd.f32 %v5167, %v5343
        %v5348 = vadd.f32 %v5168, %v5344
        %v5349 = vadd.f32 %v5169, %v5345
        %s5350 = sld [smem:[#allocation3 + $0x66]]
        %v5351 = vstv %s5350
        %v5352 = vmul.f32 %v5351, %v5326
        %v5353 = vmul.f32 %v5351, %v5327
        %v5354 = vmul.f32 %v5351, %v5328
        %v5355 = vmul.f32 %v5351, %v5329
        %v5356 = vadd.f32 %v5192, %v5352
        %v5357 = vadd.f32 %v5193, %v5353
        %v5358 = vadd.f32 %v5194, %v5354
        %v5359 = vadd.f32 %v5195, %v5355
        %s5360 = sld [smem:[#allocation3 + $0x8a]]
        %v5361 = vstv %s5360
        %v5362 = vmul.f32 %v5361, %v5326
        %v5363 = vmul.f32 %v5361, %v5327
        %v5364 = vmul.f32 %v5361, %v5328
        %v5365 = vmul.f32 %v5361, %v5329
        %v5366 = vadd.f32 %v5218, %v5362
        %v5367 = vadd.f32 %v5219, %v5363
        %v5368 = vadd.f32 %v5220, %v5364
        %v5369 = vadd.f32 %v5221, %v5365
        %s5370 = sld [smem:[#allocation3 + $0xae]]
        %v5371 = vstv %s5370
        %v5372 = vmul.f32 %v5371, %v5326
        %v5373 = vmul.f32 %v5371, %v5327
        %v5374 = vmul.f32 %v5371, %v5328
        %v5375 = vmul.f32 %v5371, %v5329
        %v5376 = vadd.f32 %v5244, %v5372
        %v5377 = vadd.f32 %v5245, %v5373
        %v5378 = vadd.f32 %v5246, %v5374
        %v5379 = vadd.f32 %v5247, %v5375
        %s5380 = sld [smem:[#allocation3 + $0xd2]]
        %v5381 = vstv %s5380
        %v5382 = vmul.f32 %v5381, %v5326
        %v5383 = vmul.f32 %v5381, %v5327
        %v5384 = vmul.f32 %v5381, %v5328
        %v5385 = vmul.f32 %v5381, %v5329
        %v5386 = vadd.f32 %v5270, %v5382
        %v5387 = vadd.f32 %v5271, %v5383
        %v5388 = vadd.f32 %v5272, %v5384
        %v5389 = vadd.f32 %v5273, %v5385
        %s5390 = sld [smem:[#allocation3 + $0xf6]]
        %v5391 = vstv %s5390
        %v5392 = vmul.f32 %v5391, %v5326
        %v5393 = vmul.f32 %v5391, %v5327
        %v5394 = vmul.f32 %v5391, %v5328
        %v5395 = vmul.f32 %v5391, %v5329
        %v5396 = vadd.f32 %v5296, %v5392
        %v5397 = vadd.f32 %v5297, %v5393
        %v5398 = vadd.f32 %v5298, %v5394
        %v5399 = vadd.f32 %v5299, %v5395
        %s5400 = sld [smem:[#allocation3 + $0x11a]]
        %v5401 = vstv %s5400
        %v5402 = vmul.f32 %v5401, %v5326
        %v5403 = vmul.f32 %v5401, %v5327
        %v5404 = vmul.f32 %v5401, %v5328
        %v5405 = vmul.f32 %v5401, %v5329
        %v5406 = vadd.f32 %v5322, %v5402
        %v5407 = vadd.f32 %v5323, %v5403
        %v5408 = vadd.f32 %v5324, %v5404
        %v5409 = vadd.f32 %v5325, %v5405
        %s5410 = sld [smem:[#allocation3 + $0x1f]]
        %v5411 = vstv %s5410
        %v5412 = vmul.f32 %v5411, %v5326
        %v5413 = vmul.f32 %v5411, %v5327
        %v5414 = vmul.f32 %v5411, %v5328
        %v5415 = vmul.f32 %v5411, %v5329
        %5420 = vrot.lane.b32.xlu0 %v5412, 127
        %v5421 = vpop.permute.xlu0 %5420
        %5422 = vrot.lane.b32.xlu0 %v5413, 127
        %v5423 = vpop.permute.xlu0 %5422
        %5424 = vrot.lane.b32.xlu0 %v5414, 127
        %v5425 = vpop.permute.xlu0 %5424
        %5426 = vrot.lane.b32.xlu0 %v5415, 127
        %v5427 = vpop.permute.xlu0 %5426
        %v5432 = vadd.f32 %v5336, %v5421
        %v5433 = vadd.f32 %v5337, %v5423
        %v5434 = vadd.f32 %v5338, %v5425
        %v5435 = vadd.f32 %v5339, %v5427
        %s5436 = sld [smem:[#allocation3 + $0x43]]
        %v5437 = vstv %s5436
        %v5438 = vmul.f32 %v5437, %v5326
        %v5439 = vmul.f32 %v5437, %v5327
        %v5440 = vmul.f32 %v5437, %v5328
        %v5441 = vmul.f32 %v5437, %v5329
        %5446 = vrot.lane.b32.xlu0 %v5438, 127
        %v5447 = vpop.permute.xlu0 %5446
        %5448 = vrot.lane.b32.xlu0 %v5439, 127
        %v5449 = vpop.permute.xlu0 %5448
        %5450 = vrot.lane.b32.xlu0 %v5440, 127
        %v5451 = vpop.permute.xlu0 %5450
        %5452 = vrot.lane.b32.xlu0 %v5441, 127
        %v5453 = vpop.permute.xlu0 %5452
        %v5458 = vadd.f32 %v5346, %v5447
        %v5459 = vadd.f32 %v5347, %v5449
        %v5460 = vadd.f32 %v5348, %v5451
        %v5461 = vadd.f32 %v5349, %v5453
        %s5462 = sld [smem:[#allocation3 + $0x67]]
        %v5463 = vstv %s5462
        %v5464 = vmul.f32 %v5463, %v5326
        %v5465 = vmul.f32 %v5463, %v5327
        %v5466 = vmul.f32 %v5463, %v5328
        %v5467 = vmul.f32 %v5463, %v5329
        %5472 = vrot.lane.b32.xlu0 %v5464, 127
        %v5473 = vpop.permute.xlu0 %5472
        %5474 = vrot.lane.b32.xlu0 %v5465, 127
        %v5475 = vpop.permute.xlu0 %5474
        %5476 = vrot.lane.b32.xlu0 %v5466, 127
        %v5477 = vpop.permute.xlu0 %5476
        %5478 = vrot.lane.b32.xlu0 %v5467, 127
        %v5479 = vpop.permute.xlu0 %5478
        %v5484 = vadd.f32 %v5356, %v5473
        %v5485 = vadd.f32 %v5357, %v5475
        %v5486 = vadd.f32 %v5358, %v5477
        %v5487 = vadd.f32 %v5359, %v5479
        %s5488 = sld [smem:[#allocation3 + $0x8b]]
        %v5489 = vstv %s5488
        %v5490 = vmul.f32 %v5489, %v5326
        %v5491 = vmul.f32 %v5489, %v5327
        %v5492 = vmul.f32 %v5489, %v5328
        %v5493 = vmul.f32 %v5489, %v5329
        %5498 = vrot.lane.b32.xlu0 %v5490, 127
        %v5499 = vpop.permute.xlu0 %5498
        %5500 = vrot.lane.b32.xlu0 %v5491, 127
        %v5501 = vpop.permute.xlu0 %5500
        %5502 = vrot.lane.b32.xlu0 %v5492, 127
        %v5503 = vpop.permute.xlu0 %5502
        %5504 = vrot.lane.b32.xlu0 %v5493, 127
        %v5505 = vpop.permute.xlu0 %5504
        %v5510 = vadd.f32 %v5366, %v5499
        %v5511 = vadd.f32 %v5367, %v5501
        %v5512 = vadd.f32 %v5368, %v5503
        %v5513 = vadd.f32 %v5369, %v5505
        %s5514 = sld [smem:[#allocation3 + $0xaf]]
        %v5515 = vstv %s5514
        %v5516 = vmul.f32 %v5515, %v5326
        %v5517 = vmul.f32 %v5515, %v5327
        %v5518 = vmul.f32 %v5515, %v5328
        %v5519 = vmul.f32 %v5515, %v5329
        %5524 = vrot.lane.b32.xlu0 %v5516, 127
        %v5525 = vpop.permute.xlu0 %5524
        %5526 = vrot.lane.b32.xlu0 %v5517, 127
        %v5527 = vpop.permute.xlu0 %5526
        %5528 = vrot.lane.b32.xlu0 %v5518, 127
        %v5529 = vpop.permute.xlu0 %5528
        %5530 = vrot.lane.b32.xlu0 %v5519, 127
        %v5531 = vpop.permute.xlu0 %5530
        %v5536 = vadd.f32 %v5376, %v5525
        %v5537 = vadd.f32 %v5377, %v5527
        %v5538 = vadd.f32 %v5378, %v5529
        %v5539 = vadd.f32 %v5379, %v5531
        %s5540 = sld [smem:[#allocation3 + $0xd3]]
        %v5541 = vstv %s5540
        %v5542 = vmul.f32 %v5541, %v5326
        %v5543 = vmul.f32 %v5541, %v5327
        %v5544 = vmul.f32 %v5541, %v5328
        %v5545 = vmul.f32 %v5541, %v5329
        %5550 = vrot.lane.b32.xlu0 %v5542, 127
        %v5551 = vpop.permute.xlu0 %5550
        %5552 = vrot.lane.b32.xlu0 %v5543, 127
        %v5553 = vpop.permute.xlu0 %5552
        %5554 = vrot.lane.b32.xlu0 %v5544, 127
        %v5555 = vpop.permute.xlu0 %5554
        %5556 = vrot.lane.b32.xlu0 %v5545, 127
        %v5557 = vpop.permute.xlu0 %5556
        %v5562 = vadd.f32 %v5386, %v5551
        %v5563 = vadd.f32 %v5387, %v5553
        %v5564 = vadd.f32 %v5388, %v5555
        %v5565 = vadd.f32 %v5389, %v5557
        %s5566 = sld [smem:[#allocation3 + $0xf7]]
        %v5567 = vstv %s5566
        %v5568 = vmul.f32 %v5567, %v5326
        %v5569 = vmul.f32 %v5567, %v5327
        %v5570 = vmul.f32 %v5567, %v5328
        %v5571 = vmul.f32 %v5567, %v5329
        %5576 = vrot.lane.b32.xlu0 %v5568, 127
        %v5577 = vpop.permute.xlu0 %5576
        %5578 = vrot.lane.b32.xlu0 %v5569, 127
        %v5579 = vpop.permute.xlu0 %5578
        %5580 = vrot.lane.b32.xlu0 %v5570, 127
        %v5581 = vpop.permute.xlu0 %5580
        %5582 = vrot.lane.b32.xlu0 %v5571, 127
        %v5583 = vpop.permute.xlu0 %5582
        %v5588 = vadd.f32 %v5396, %v5577
        %v5589 = vadd.f32 %v5397, %v5579
        %v5590 = vadd.f32 %v5398, %v5581
        %v5591 = vadd.f32 %v5399, %v5583
        %s5592 = sld [smem:[#allocation3 + $0x11b]]
        %v5593 = vstv %s5592
        %v5594 = vmul.f32 %v5593, %v5326
        %v5595 = vmul.f32 %v5593, %v5327
        %v5596 = vmul.f32 %v5593, %v5328
        %v5597 = vmul.f32 %v5593, %v5329
        %5602 = vrot.lane.b32.xlu0 %v5594, 127
        %v5603 = vpop.permute.xlu0 %5602
        %5604 = vrot.lane.b32.xlu0 %v5595, 127
        %v5605 = vpop.permute.xlu0 %5604
        %5606 = vrot.lane.b32.xlu0 %v5596, 127
        %v5607 = vpop.permute.xlu0 %5606
        %5608 = vrot.lane.b32.xlu0 %v5597, 127
        %v5609 = vpop.permute.xlu0 %5608
        %v5614 = vadd.f32 %v5406, %v5603
        %v5615 = vadd.f32 %v5407, %v5605
        %v5616 = vadd.f32 %v5408, %v5607
        %v5617 = vadd.f32 %v5409, %v5609
        %s5618 = sld [smem:[#allocation3 + $0x20]]
        %v5619 = vstv %s5618
        %v5620 = vmul.f32 %v5619, %v5326
        %v5621 = vmul.f32 %v5619, %v5327
        %v5622 = vmul.f32 %v5619, %v5328
        %v5623 = vmul.f32 %v5619, %v5329
        %5628 = vrot.lane.b32.xlu0 %v5620, 126
        %v5629 = vpop.permute.xlu0 %5628
        %5630 = vrot.lane.b32.xlu0 %v5621, 126
        %v5631 = vpop.permute.xlu0 %5630
        %5632 = vrot.lane.b32.xlu0 %v5622, 126
        %v5633 = vpop.permute.xlu0 %5632
        %5634 = vrot.lane.b32.xlu0 %v5623, 126
        %v5635 = vpop.permute.xlu0 %5634
        %v5640 = vadd.f32 %v5432, %v5629
        %v5641 = vadd.f32 %v5433, %v5631
        %v5642 = vadd.f32 %v5434, %v5633
        %v5643 = vadd.f32 %v5435, %v5635
        %s5644 = sld [smem:[#allocation3 + $0x44]]
        %v5645 = vstv %s5644
        %v5646 = vmul.f32 %v5645, %v5326
        %v5647 = vmul.f32 %v5645, %v5327
        %v5648 = vmul.f32 %v5645, %v5328
        %v5649 = vmul.f32 %v5645, %v5329
        %5654 = vrot.lane.b32.xlu0 %v5646, 126
        %v5655 = vpop.permute.xlu0 %5654
        %5656 = vrot.lane.b32.xlu0 %v5647, 126
        %v5657 = vpop.permute.xlu0 %5656
        %5658 = vrot.lane.b32.xlu0 %v5648, 126
        %v5659 = vpop.permute.xlu0 %5658
        %5660 = vrot.lane.b32.xlu0 %v5649, 126
        %v5661 = vpop.permute.xlu0 %5660
        %v5666 = vadd.f32 %v5458, %v5655
        %v5667 = vadd.f32 %v5459, %v5657
        %v5668 = vadd.f32 %v5460, %v5659
        %v5669 = vadd.f32 %v5461, %v5661
        %s5670 = sld [smem:[#allocation3 + $0x68]]
        %v5671 = vstv %s5670
        %v5672 = vmul.f32 %v5671, %v5326
        %v5673 = vmul.f32 %v5671, %v5327
        %v5674 = vmul.f32 %v5671, %v5328
        %v5675 = vmul.f32 %v5671, %v5329
        %5680 = vrot.lane.b32.xlu0 %v5672, 126
        %v5681 = vpop.permute.xlu0 %5680
        %5682 = vrot.lane.b32.xlu0 %v5673, 126
        %v5683 = vpop.permute.xlu0 %5682
        %5684 = vrot.lane.b32.xlu0 %v5674, 126
        %v5685 = vpop.permute.xlu0 %5684
        %5686 = vrot.lane.b32.xlu0 %v5675, 126
        %v5687 = vpop.permute.xlu0 %5686
        %v5692 = vadd.f32 %v5484, %v5681
        %v5693 = vadd.f32 %v5485, %v5683
        %v5694 = vadd.f32 %v5486, %v5685
        %v5695 = vadd.f32 %v5487, %v5687
        %s5696 = sld [smem:[#allocation3 + $0x8c]]
        %v5697 = vstv %s5696
        %v5698 = vmul.f32 %v5697, %v5326
        %v5699 = vmul.f32 %v5697, %v5327
        %v5700 = vmul.f32 %v5697, %v5328
        %v5701 = vmul.f32 %v5697, %v5329
        %5706 = vrot.lane.b32.xlu0 %v5698, 126
        %v5707 = vpop.permute.xlu0 %5706
        %5708 = vrot.lane.b32.xlu0 %v5699, 126
        %v5709 = vpop.permute.xlu0 %5708
        %5710 = vrot.lane.b32.xlu0 %v5700, 126
        %v5711 = vpop.permute.xlu0 %5710
        %5712 = vrot.lane.b32.xlu0 %v5701, 126
        %v5713 = vpop.permute.xlu0 %5712
        %v5718 = vadd.f32 %v5510, %v5707
        %v5719 = vadd.f32 %v5511, %v5709
        %v5720 = vadd.f32 %v5512, %v5711
        %v5721 = vadd.f32 %v5513, %v5713
        %s5722 = sld [smem:[#allocation3 + $0xb0]]
        %v5723 = vstv %s5722
        %v5724 = vmul.f32 %v5723, %v5326
        %v5725 = vmul.f32 %v5723, %v5327
        %v5726 = vmul.f32 %v5723, %v5328
        %v5727 = vmul.f32 %v5723, %v5329
        %5732 = vrot.lane.b32.xlu0 %v5724, 126
        %v5733 = vpop.permute.xlu0 %5732
        %5734 = vrot.lane.b32.xlu0 %v5725, 126
        %v5735 = vpop.permute.xlu0 %5734
        %5736 = vrot.lane.b32.xlu0 %v5726, 126
        %v5737 = vpop.permute.xlu0 %5736
        %5738 = vrot.lane.b32.xlu0 %v5727, 126
        %v5739 = vpop.permute.xlu0 %5738
        %v5744 = vadd.f32 %v5536, %v5733
        %v5745 = vadd.f32 %v5537, %v5735
        %v5746 = vadd.f32 %v5538, %v5737
        %v5747 = vadd.f32 %v5539, %v5739
        %s5748 = sld [smem:[#allocation3 + $0xd4]]
        %v5749 = vstv %s5748
        %v5750 = vmul.f32 %v5749, %v5326
        %v5751 = vmul.f32 %v5749, %v5327
        %v5752 = vmul.f32 %v5749, %v5328
        %v5753 = vmul.f32 %v5749, %v5329
        %5758 = vrot.lane.b32.xlu0 %v5750, 126
        %v5759 = vpop.permute.xlu0 %5758
        %5760 = vrot.lane.b32.xlu0 %v5751, 126
        %v5761 = vpop.permute.xlu0 %5760
        %5762 = vrot.lane.b32.xlu0 %v5752, 126
        %v5763 = vpop.permute.xlu0 %5762
        %5764 = vrot.lane.b32.xlu0 %v5753, 126
        %v5765 = vpop.permute.xlu0 %5764
        %v5770 = vadd.f32 %v5562, %v5759
        %v5771 = vadd.f32 %v5563, %v5761
        %v5772 = vadd.f32 %v5564, %v5763
        %v5773 = vadd.f32 %v5565, %v5765
        %s5774 = sld [smem:[#allocation3 + $0xf8]]
        %v5775 = vstv %s5774
        %v5776 = vmul.f32 %v5775, %v5326
        %v5777 = vmul.f32 %v5775, %v5327
        %v5778 = vmul.f32 %v5775, %v5328
        %v5779 = vmul.f32 %v5775, %v5329
        %5784 = vrot.lane.b32.xlu0 %v5776, 126
        %v5785 = vpop.permute.xlu0 %5784
        %5786 = vrot.lane.b32.xlu0 %v5777, 126
        %v5787 = vpop.permute.xlu0 %5786
        %5788 = vrot.lane.b32.xlu0 %v5778, 126
        %v5789 = vpop.permute.xlu0 %5788
        %5790 = vrot.lane.b32.xlu0 %v5779, 126
        %v5791 = vpop.permute.xlu0 %5790
        %v5796 = vadd.f32 %v5588, %v5785
        %v5797 = vadd.f32 %v5589, %v5787
        %v5798 = vadd.f32 %v5590, %v5789
        %v5799 = vadd.f32 %v5591, %v5791
        %s5800 = sld [smem:[#allocation3 + $0x11c]]
        %v5801 = vstv %s5800
        %v5802 = vmul.f32 %v5801, %v5326
        %v5803 = vmul.f32 %v5801, %v5327
        %v5804 = vmul.f32 %v5801, %v5328
        %v5805 = vmul.f32 %v5801, %v5329
        %5810 = vrot.lane.b32.xlu0 %v5802, 126
        %v5811 = vpop.permute.xlu0 %5810
        %5812 = vrot.lane.b32.xlu0 %v5803, 126
        %v5813 = vpop.permute.xlu0 %5812
        %5814 = vrot.lane.b32.xlu0 %v5804, 126
        %v5815 = vpop.permute.xlu0 %5814
        %5816 = vrot.lane.b32.xlu0 %v5805, 126
        %v5817 = vpop.permute.xlu0 %5816
        %v5822 = vadd.f32 %v5614, %v5811
        %v5823 = vadd.f32 %v5615, %v5813
        %v5824 = vadd.f32 %v5616, %v5815
        %v5825 = vadd.f32 %v5617, %v5817
        %v5826 = vld [vmem:[%s4825 + $0x2] sm:$0xff]
        %v5827 = vld [vmem:[%s4825 + $0xa] sm:$0xff]
        %v5828 = vld [vmem:[%s4825 + $0x12] sm:$0xff]
        %v5829 = vld [vmem:[%s4825 + $0x1a] sm:$0xff]
        %s5830 = sld [smem:[#allocation3 + $0x21]]
        %v5831 = vstv %s5830
        %v5832 = vmul.f32 %v5831, %v5826
        %v5833 = vmul.f32 %v5831, %v5827
        %v5834 = vmul.f32 %v5831, %v5828
        %v5835 = vmul.f32 %v5831, %v5829
        %v5836 = vadd.f32 %v5640, %v5832
        %v5837 = vadd.f32 %v5641, %v5833
        %v5838 = vadd.f32 %v5642, %v5834
        %v5839 = vadd.f32 %v5643, %v5835
        %s5840 = sld [smem:[#allocation3 + $0x45]]
        %v5841 = vstv %s5840
        %v5842 = vmul.f32 %v5841, %v5826
        %v5843 = vmul.f32 %v5841, %v5827
        %v5844 = vmul.f32 %v5841, %v5828
        %v5845 = vmul.f32 %v5841, %v5829
        %v5846 = vadd.f32 %v5666, %v5842
        %v5847 = vadd.f32 %v5667, %v5843
        %v5848 = vadd.f32 %v5668, %v5844
        %v5849 = vadd.f32 %v5669, %v5845
        %s5850 = sld [smem:[#allocation3 + $0x69]]
        %v5851 = vstv %s5850
        %v5852 = vmul.f32 %v5851, %v5826
        %v5853 = vmul.f32 %v5851, %v5827
        %v5854 = vmul.f32 %v5851, %v5828
        %v5855 = vmul.f32 %v5851, %v5829
        %v5856 = vadd.f32 %v5692, %v5852
        %v5857 = vadd.f32 %v5693, %v5853
        %v5858 = vadd.f32 %v5694, %v5854
        %v5859 = vadd.f32 %v5695, %v5855
        %s5860 = sld [smem:[#allocation3 + $0x8d]]
        %v5861 = vstv %s5860
        %v5862 = vmul.f32 %v5861, %v5826
        %v5863 = vmul.f32 %v5861, %v5827
        %v5864 = vmul.f32 %v5861, %v5828
        %v5865 = vmul.f32 %v5861, %v5829
        %v5866 = vadd.f32 %v5718, %v5862
        %v5867 = vadd.f32 %v5719, %v5863
        %v5868 = vadd.f32 %v5720, %v5864
        %v5869 = vadd.f32 %v5721, %v5865
        %s5870 = sld [smem:[#allocation3 + $0xb1]]
        %v5871 = vstv %s5870
        %v5872 = vmul.f32 %v5871, %v5826
        %v5873 = vmul.f32 %v5871, %v5827
        %v5874 = vmul.f32 %v5871, %v5828
        %v5875 = vmul.f32 %v5871, %v5829
        %v5876 = vadd.f32 %v5744, %v5872
        %v5877 = vadd.f32 %v5745, %v5873
        %v5878 = vadd.f32 %v5746, %v5874
        %v5879 = vadd.f32 %v5747, %v5875
        %s5880 = sld [smem:[#allocation3 + $0xd5]]
        %v5881 = vstv %s5880
        %v5882 = vmul.f32 %v5881, %v5826
        %v5883 = vmul.f32 %v5881, %v5827
        %v5884 = vmul.f32 %v5881, %v5828
        %v5885 = vmul.f32 %v5881, %v5829
        %v5886 = vadd.f32 %v5770, %v5882
        %v5887 = vadd.f32 %v5771, %v5883
        %v5888 = vadd.f32 %v5772, %v5884
        %v5889 = vadd.f32 %v5773, %v5885
        %s5890 = sld [smem:[#allocation3 + $0xf9]]
        %v5891 = vstv %s5890
        %v5892 = vmul.f32 %v5891, %v5826
        %v5893 = vmul.f32 %v5891, %v5827
        %v5894 = vmul.f32 %v5891, %v5828
        %v5895 = vmul.f32 %v5891, %v5829
        %v5896 = vadd.f32 %v5796, %v5892
        %v5897 = vadd.f32 %v5797, %v5893
        %v5898 = vadd.f32 %v5798, %v5894
        %v5899 = vadd.f32 %v5799, %v5895
        %s5900 = sld [smem:[#allocation3 + $0x11d]]
        %v5901 = vstv %s5900
        %v5902 = vmul.f32 %v5901, %v5826
        %v5903 = vmul.f32 %v5901, %v5827
        %v5904 = vmul.f32 %v5901, %v5828
        %v5905 = vmul.f32 %v5901, %v5829
        %v5906 = vadd.f32 %v5822, %v5902
        %v5907 = vadd.f32 %v5823, %v5903
        %v5908 = vadd.f32 %v5824, %v5904
        %v5909 = vadd.f32 %v5825, %v5905
        %s5910 = sld [smem:[#allocation3 + $0x22]]
        %v5911 = vstv %s5910
        %v5912 = vmul.f32 %v5911, %v5826
        %v5913 = vmul.f32 %v5911, %v5827
        %v5914 = vmul.f32 %v5911, %v5828
        %v5915 = vmul.f32 %v5911, %v5829
        %5920 = vrot.lane.b32.xlu0 %v5912, 127
        %v5921 = vpop.permute.xlu0 %5920
        %5922 = vrot.lane.b32.xlu0 %v5913, 127
        %v5923 = vpop.permute.xlu0 %5922
        %5924 = vrot.lane.b32.xlu0 %v5914, 127
        %v5925 = vpop.permute.xlu0 %5924
        %5926 = vrot.lane.b32.xlu0 %v5915, 127
        %v5927 = vpop.permute.xlu0 %5926
        %v5932 = vadd.f32 %v5836, %v5921
        %v5933 = vadd.f32 %v5837, %v5923
        %v5934 = vadd.f32 %v5838, %v5925
        %v5935 = vadd.f32 %v5839, %v5927
        %s5936 = sld [smem:[#allocation3 + $0x46]]
        %v5937 = vstv %s5936
        %v5938 = vmul.f32 %v5937, %v5826
        %v5939 = vmul.f32 %v5937, %v5827
        %v5940 = vmul.f32 %v5937, %v5828
        %v5941 = vmul.f32 %v5937, %v5829
        %5946 = vrot.lane.b32.xlu0 %v5938, 127
        %v5947 = vpop.permute.xlu0 %5946
        %5948 = vrot.lane.b32.xlu0 %v5939, 127
        %v5949 = vpop.permute.xlu0 %5948
        %5950 = vrot.lane.b32.xlu0 %v5940, 127
        %v5951 = vpop.permute.xlu0 %5950
        %5952 = vrot.lane.b32.xlu0 %v5941, 127
        %v5953 = vpop.permute.xlu0 %5952
        %v5958 = vadd.f32 %v5846, %v5947
        %v5959 = vadd.f32 %v5847, %v5949
        %v5960 = vadd.f32 %v5848, %v5951
        %v5961 = vadd.f32 %v5849, %v5953
        %s5962 = sld [smem:[#allocation3 + $0x6a]]
        %v5963 = vstv %s5962
        %v5964 = vmul.f32 %v5963, %v5826
        %v5965 = vmul.f32 %v5963, %v5827
        %v5966 = vmul.f32 %v5963, %v5828
        %v5967 = vmul.f32 %v5963, %v5829
        %5972 = vrot.lane.b32.xlu0 %v5964, 127
        %v5973 = vpop.permute.xlu0 %5972
        %5974 = vrot.lane.b32.xlu0 %v5965, 127
        %v5975 = vpop.permute.xlu0 %5974
        %5976 = vrot.lane.b32.xlu0 %v5966, 127
        %v5977 = vpop.permute.xlu0 %5976
        %5978 = vrot.lane.b32.xlu0 %v5967, 127
        %v5979 = vpop.permute.xlu0 %5978
        %v5984 = vadd.f32 %v5856, %v5973
        %v5985 = vadd.f32 %v5857, %v5975
        %v5986 = vadd.f32 %v5858, %v5977
        %v5987 = vadd.f32 %v5859, %v5979
        %s5988 = sld [smem:[#allocation3 + $0x8e]]
        %v5989 = vstv %s5988
        %v5990 = vmul.f32 %v5989, %v5826
        %v5991 = vmul.f32 %v5989, %v5827
        %v5992 = vmul.f32 %v5989, %v5828
        %v5993 = vmul.f32 %v5989, %v5829
        %5998 = vrot.lane.b32.xlu0 %v5990, 127
        %v5999 = vpop.permute.xlu0 %5998
        %6000 = vrot.lane.b32.xlu0 %v5991, 127
        %v6001 = vpop.permute.xlu0 %6000
        %6002 = vrot.lane.b32.xlu0 %v5992, 127
        %v6003 = vpop.permute.xlu0 %6002
        %6004 = vrot.lane.b32.xlu0 %v5993, 127
        %v6005 = vpop.permute.xlu0 %6004
        %v6010 = vadd.f32 %v5866, %v5999
        %v6011 = vadd.f32 %v5867, %v6001
        %v6012 = vadd.f32 %v5868, %v6003
        %v6013 = vadd.f32 %v5869, %v6005
        %s6014 = sld [smem:[#allocation3 + $0xb2]]
        %v6015 = vstv %s6014
        %v6016 = vmul.f32 %v6015, %v5826
        %v6017 = vmul.f32 %v6015, %v5827
        %v6018 = vmul.f32 %v6015, %v5828
        %v6019 = vmul.f32 %v6015, %v5829
        %6024 = vrot.lane.b32.xlu0 %v6016, 127
        %v6025 = vpop.permute.xlu0 %6024
        %6026 = vrot.lane.b32.xlu0 %v6017, 127
        %v6027 = vpop.permute.xlu0 %6026
        %6028 = vrot.lane.b32.xlu0 %v6018, 127
        %v6029 = vpop.permute.xlu0 %6028
        %6030 = vrot.lane.b32.xlu0 %v6019, 127
        %v6031 = vpop.permute.xlu0 %6030
        %v6036 = vadd.f32 %v5876, %v6025
        %v6037 = vadd.f32 %v5877, %v6027
        %v6038 = vadd.f32 %v5878, %v6029
        %v6039 = vadd.f32 %v5879, %v6031
        %s6040 = sld [smem:[#allocation3 + $0xd6]]
        %v6041 = vstv %s6040
        %v6042 = vmul.f32 %v6041, %v5826
        %v6043 = vmul.f32 %v6041, %v5827
        %v6044 = vmul.f32 %v6041, %v5828
        %v6045 = vmul.f32 %v6041, %v5829
        %6050 = vrot.lane.b32.xlu0 %v6042, 127
        %v6051 = vpop.permute.xlu0 %6050
        %6052 = vrot.lane.b32.xlu0 %v6043, 127
        %v6053 = vpop.permute.xlu0 %6052
        %6054 = vrot.lane.b32.xlu0 %v6044, 127
        %v6055 = vpop.permute.xlu0 %6054
        %6056 = vrot.lane.b32.xlu0 %v6045, 127
        %v6057 = vpop.permute.xlu0 %6056
        %v6062 = vadd.f32 %v5886, %v6051
        %v6063 = vadd.f32 %v5887, %v6053
        %v6064 = vadd.f32 %v5888, %v6055
        %v6065 = vadd.f32 %v5889, %v6057
        %s6066 = sld [smem:[#allocation3 + $0xfa]]
        %v6067 = vstv %s6066
        %v6068 = vmul.f32 %v6067, %v5826
        %v6069 = vmul.f32 %v6067, %v5827
        %v6070 = vmul.f32 %v6067, %v5828
        %v6071 = vmul.f32 %v6067, %v5829
        %6076 = vrot.lane.b32.xlu0 %v6068, 127
        %v6077 = vpop.permute.xlu0 %6076
        %6078 = vrot.lane.b32.xlu0 %v6069, 127
        %v6079 = vpop.permute.xlu0 %6078
        %6080 = vrot.lane.b32.xlu0 %v6070, 127
        %v6081 = vpop.permute.xlu0 %6080
        %6082 = vrot.lane.b32.xlu0 %v6071, 127
        %v6083 = vpop.permute.xlu0 %6082
        %v6088 = vadd.f32 %v5896, %v6077
        %v6089 = vadd.f32 %v5897, %v6079
        %v6090 = vadd.f32 %v5898, %v6081
        %v6091 = vadd.f32 %v5899, %v6083
        %s6092 = sld [smem:[#allocation3 + $0x11e]]
        %v6093 = vstv %s6092
        %v6094 = vmul.f32 %v6093, %v5826
        %v6095 = vmul.f32 %v6093, %v5827
        %v6096 = vmul.f32 %v6093, %v5828
        %v6097 = vmul.f32 %v6093, %v5829
        %6102 = vrot.lane.b32.xlu0 %v6094, 127
        %v6103 = vpop.permute.xlu0 %6102
        %6104 = vrot.lane.b32.xlu0 %v6095, 127
        %v6105 = vpop.permute.xlu0 %6104
        %6106 = vrot.lane.b32.xlu0 %v6096, 127
        %v6107 = vpop.permute.xlu0 %6106
        %6108 = vrot.lane.b32.xlu0 %v6097, 127
        %v6109 = vpop.permute.xlu0 %6108
        %v6114 = vadd.f32 %v5906, %v6103
        %v6115 = vadd.f32 %v5907, %v6105
        %v6116 = vadd.f32 %v5908, %v6107
        %v6117 = vadd.f32 %v5909, %v6109
        %s6118 = sld [smem:[#allocation3 + $0x23]]
        %v6119 = vstv %s6118
        %v6120 = vmul.f32 %v6119, %v5826
        %v6121 = vmul.f32 %v6119, %v5827
        %v6122 = vmul.f32 %v6119, %v5828
        %v6123 = vmul.f32 %v6119, %v5829
        %6128 = vrot.lane.b32.xlu0 %v6120, 126
        %v6129 = vpop.permute.xlu0 %6128
        %6130 = vrot.lane.b32.xlu0 %v6121, 126
        %v6131 = vpop.permute.xlu0 %6130
        %6132 = vrot.lane.b32.xlu0 %v6122, 126
        %v6133 = vpop.permute.xlu0 %6132
        %6134 = vrot.lane.b32.xlu0 %v6123, 126
        %v6135 = vpop.permute.xlu0 %6134
        %v6140 = vadd.f32 %v5932, %v6129
        %v6141 = vadd.f32 %v5933, %v6131
        %v6142 = vadd.f32 %v5934, %v6133
        %v6143 = vadd.f32 %v5935, %v6135
        %s6144 = sld [smem:[#allocation3 + $0x47]]
        %v6145 = vstv %s6144
        %v6146 = vmul.f32 %v6145, %v5826
        %v6147 = vmul.f32 %v6145, %v5827
        %v6148 = vmul.f32 %v6145, %v5828
        %v6149 = vmul.f32 %v6145, %v5829
        %6154 = vrot.lane.b32.xlu0 %v6146, 126
        %v6155 = vpop.permute.xlu0 %6154
        %6156 = vrot.lane.b32.xlu0 %v6147, 126
        %v6157 = vpop.permute.xlu0 %6156
        %6158 = vrot.lane.b32.xlu0 %v6148, 126
        %v6159 = vpop.permute.xlu0 %6158
        %6160 = vrot.lane.b32.xlu0 %v6149, 126
        %v6161 = vpop.permute.xlu0 %6160
        %v6166 = vadd.f32 %v5958, %v6155
        %v6167 = vadd.f32 %v5959, %v6157
        %v6168 = vadd.f32 %v5960, %v6159
        %v6169 = vadd.f32 %v5961, %v6161
        %s6170 = sld [smem:[#allocation3 + $0x6b]]
        %v6171 = vstv %s6170
        %v6172 = vmul.f32 %v6171, %v5826
        %v6173 = vmul.f32 %v6171, %v5827
        %v6174 = vmul.f32 %v6171, %v5828
        %v6175 = vmul.f32 %v6171, %v5829
        %6180 = vrot.lane.b32.xlu0 %v6172, 126
        %v6181 = vpop.permute.xlu0 %6180
        %6182 = vrot.lane.b32.xlu0 %v6173, 126
        %v6183 = vpop.permute.xlu0 %6182
        %6184 = vrot.lane.b32.xlu0 %v6174, 126
        %v6185 = vpop.permute.xlu0 %6184
        %6186 = vrot.lane.b32.xlu0 %v6175, 126
        %v6187 = vpop.permute.xlu0 %6186
        %v6192 = vadd.f32 %v5984, %v6181
        %v6193 = vadd.f32 %v5985, %v6183
        %v6194 = vadd.f32 %v5986, %v6185
        %v6195 = vadd.f32 %v5987, %v6187
        %s6196 = sld [smem:[#allocation3 + $0x8f]]
        %v6197 = vstv %s6196
        %v6198 = vmul.f32 %v6197, %v5826
        %v6199 = vmul.f32 %v6197, %v5827
        %v6200 = vmul.f32 %v6197, %v5828
        %v6201 = vmul.f32 %v6197, %v5829
        %6206 = vrot.lane.b32.xlu0 %v6198, 126
        %v6207 = vpop.permute.xlu0 %6206
        %6208 = vrot.lane.b32.xlu0 %v6199, 126
        %v6209 = vpop.permute.xlu0 %6208
        %6210 = vrot.lane.b32.xlu0 %v6200, 126
        %v6211 = vpop.permute.xlu0 %6210
        %6212 = vrot.lane.b32.xlu0 %v6201, 126
        %v6213 = vpop.permute.xlu0 %6212
        %v6218 = vadd.f32 %v6010, %v6207
        %v6219 = vadd.f32 %v6011, %v6209
        %v6220 = vadd.f32 %v6012, %v6211
        %v6221 = vadd.f32 %v6013, %v6213
        %s6222 = sld [smem:[#allocation3 + $0xb3]]
        %v6223 = vstv %s6222
        %v6224 = vmul.f32 %v6223, %v5826
        %v6225 = vmul.f32 %v6223, %v5827
        %v6226 = vmul.f32 %v6223, %v5828
        %v6227 = vmul.f32 %v6223, %v5829
        %6232 = vrot.lane.b32.xlu0 %v6224, 126
        %v6233 = vpop.permute.xlu0 %6232
        %6234 = vrot.lane.b32.xlu0 %v6225, 126
        %v6235 = vpop.permute.xlu0 %6234
        %6236 = vrot.lane.b32.xlu0 %v6226, 126
        %v6237 = vpop.permute.xlu0 %6236
        %6238 = vrot.lane.b32.xlu0 %v6227, 126
        %v6239 = vpop.permute.xlu0 %6238
        %v6244 = vadd.f32 %v6036, %v6233
        %v6245 = vadd.f32 %v6037, %v6235
        %v6246 = vadd.f32 %v6038, %v6237
        %v6247 = vadd.f32 %v6039, %v6239
        %s6248 = sld [smem:[#allocation3 + $0xd7]]
        %v6249 = vstv %s6248
        %v6250 = vmul.f32 %v6249, %v5826
        %v6251 = vmul.f32 %v6249, %v5827
        %v6252 = vmul.f32 %v6249, %v5828
        %v6253 = vmul.f32 %v6249, %v5829
        %6258 = vrot.lane.b32.xlu0 %v6250, 126
        %v6259 = vpop.permute.xlu0 %6258
        %6260 = vrot.lane.b32.xlu0 %v6251, 126
        %v6261 = vpop.permute.xlu0 %6260
        %6262 = vrot.lane.b32.xlu0 %v6252, 126
        %v6263 = vpop.permute.xlu0 %6262
        %6264 = vrot.lane.b32.xlu0 %v6253, 126
        %v6265 = vpop.permute.xlu0 %6264
        %v6270 = vadd.f32 %v6062, %v6259
        %v6271 = vadd.f32 %v6063, %v6261
        %v6272 = vadd.f32 %v6064, %v6263
        %v6273 = vadd.f32 %v6065, %v6265
        %s6274 = sld [smem:[#allocation3 + $0xfb]]
        %v6275 = vstv %s6274
        %v6276 = vmul.f32 %v6275, %v5826
        %v6277 = vmul.f32 %v6275, %v5827
        %v6278 = vmul.f32 %v6275, %v5828
        %v6279 = vmul.f32 %v6275, %v5829
        %6284 = vrot.lane.b32.xlu0 %v6276, 126
        %v6285 = vpop.permute.xlu0 %6284
        %6286 = vrot.lane.b32.xlu0 %v6277, 126
        %v6287 = vpop.permute.xlu0 %6286
        %6288 = vrot.lane.b32.xlu0 %v6278, 126
        %v6289 = vpop.permute.xlu0 %6288
        %6290 = vrot.lane.b32.xlu0 %v6279, 126
        %v6291 = vpop.permute.xlu0 %6290
        %v6296 = vadd.f32 %v6088, %v6285
        %v6297 = vadd.f32 %v6089, %v6287
        %v6298 = vadd.f32 %v6090, %v6289
        %v6299 = vadd.f32 %v6091, %v6291
        %s6300 = sld [smem:[#allocation3 + $0x11f]]
        %v6301 = vstv %s6300
        %v6302 = vmul.f32 %v6301, %v5826
        %v6303 = vmul.f32 %v6301, %v5827
        %v6304 = vmul.f32 %v6301, %v5828
        %v6305 = vmul.f32 %v6301, %v5829
        %6310 = vrot.lane.b32.xlu0 %v6302, 126
        %v6311 = vpop.permute.xlu0 %6310
        %6312 = vrot.lane.b32.xlu0 %v6303, 126
        %v6313 = vpop.permute.xlu0 %6312
        %6314 = vrot.lane.b32.xlu0 %v6304, 126
        %v6315 = vpop.permute.xlu0 %6314
        %6316 = vrot.lane.b32.xlu0 %v6305, 126
        %v6317 = vpop.permute.xlu0 %6316
        %v6322 = vadd.f32 %v6114, %v6311
        %v6323 = vadd.f32 %v6115, %v6313
        %v6324 = vadd.f32 %v6116, %v6315
        %v6325 = vadd.f32 %v6117, %v6317
        %vm6326 = vcmask 261120
        %6327 = vst.msk [vmem:[%s150] sm:$0xff] %vm6326, %v6140
        %6328 = vst.msk [vmem:[%s150 + $0x8] sm:$0xff] %vm6326, %v6141
        %6329 = vst.msk [vmem:[%s150 + $0x10] sm:$0xff] %vm6326, %v6142
        %6330 = vst.msk [vmem:[%s150 + $0x18] sm:$0xff] %vm6326, %v6143
        %s6331 = scalar_lea.vmem %s150, 32 [#allocation6]
        %6332 = vst.msk [vmem:[%s6331] sm:$0xff] %vm6326, %v6166
        %6333 = vst.msk [vmem:[%s6331 + $0x8] sm:$0xff] %vm6326, %v6167
        %6334 = vst.msk [vmem:[%s6331 + $0x10] sm:$0xff] %vm6326, %v6168
        %6335 = vst.msk [vmem:[%s6331 + $0x18] sm:$0xff] %vm6326, %v6169
        %s6336 = scalar_lea.vmem %s150, 64 [#allocation6]
        %6337 = vst.msk [vmem:[%s6336] sm:$0xff] %vm6326, %v6192
        %6338 = vst.msk [vmem:[%s6336 + $0x8] sm:$0xff] %vm6326, %v6193
        %6339 = vst.msk [vmem:[%s6336 + $0x10] sm:$0xff] %vm6326, %v6194
        %6340 = vst.msk [vmem:[%s6336 + $0x18] sm:$0xff] %vm6326, %v6195
        %s6341 = scalar_lea.vmem %s150, 96 [#allocation6]
        %6342 = vst.msk [vmem:[%s6341] sm:$0xff] %vm6326, %v6218
        %6343 = vst.msk [vmem:[%s6341 + $0x8] sm:$0xff] %vm6326, %v6219
        %6344 = vst.msk [vmem:[%s6341 + $0x10] sm:$0xff] %vm6326, %v6220
        %6345 = vst.msk [vmem:[%s6341 + $0x18] sm:$0xff] %vm6326, %v6221
        %s6346 = scalar_lea.vmem %s150, 128 [#allocation6]
        %6347 = vst.msk [vmem:[%s6346] sm:$0xff] %vm6326, %v6244
        %6348 = vst.msk [vmem:[%s6346 + $0x8] sm:$0xff] %vm6326, %v6245
        %6349 = vst.msk [vmem:[%s6346 + $0x10] sm:$0xff] %vm6326, %v6246
        %6350 = vst.msk [vmem:[%s6346 + $0x18] sm:$0xff] %vm6326, %v6247
        %s6351 = scalar_lea.vmem %s150, 160 [#allocation6]
        %6352 = vst.msk [vmem:[%s6351] sm:$0xff] %vm6326, %v6270
        %6353 = vst.msk [vmem:[%s6351 + $0x8] sm:$0xff] %vm6326, %v6271
        %6354 = vst.msk [vmem:[%s6351 + $0x10] sm:$0xff] %vm6326, %v6272
        %6355 = vst.msk [vmem:[%s6351 + $0x18] sm:$0xff] %vm6326, %v6273
        %s6356 = scalar_lea.vmem %s150, 192 [#allocation6]
        %6357 = vst.msk [vmem:[%s6356] sm:$0xff] %vm6326, %v6296
        %6358 = vst.msk [vmem:[%s6356 + $0x8] sm:$0xff] %vm6326, %v6297
        %6359 = vst.msk [vmem:[%s6356 + $0x10] sm:$0xff] %vm6326, %v6298
        %6360 = vst.msk [vmem:[%s6356 + $0x18] sm:$0xff] %vm6326, %v6299
        %s6361 = scalar_lea.vmem %s150, 224 [#allocation6]
        %6362 = vst.msk [vmem:[%s6361] sm:$0xff] %vm6326, %v6322
        %6363 = vst.msk [vmem:[%s6361 + $0x8] sm:$0xff] %vm6326, %v6323
        %6364 = vst.msk [vmem:[%s6361 + $0x10] sm:$0xff] %vm6326, %v6324
        %6365 = vst.msk [vmem:[%s6361 + $0x18] sm:$0xff] %vm6326, %v6325
        %s6366 = sand.u32 %s72, 1
        %s6367 = scalar_lea.sflag [#allocation4], %s6366
        %s6368 = sand.u32 %s72, 1
        %s6369 = smul.addr %s6368, 256
        %s6370 = scalar_lea.vmem [#allocation6], %s6369
        // Predicated region
        $region33: #{upblock_forward.1} parent=27 // pred_check
          %p6371 = pneg %p82
        $region34: #{upblock_forward.1} parent=27 // pred_check_branch
          %6373 = sbr.rel (%p6371) target = $region36
        $region35: #{upblock_forward.1} parent=27 // pred_region
          %6375 = vsyncadd %s6367, 0
          %s6376 = smul.addr %s17, 32
          %s6377 = smul.addr %s6376, 8
          %s6378 = scalar_lea.hbm %s2, %s6377
          %s6379 = sshll.u32 %s6370, 4
          %s6380 = int_to_ptr.vmem [resolvable:$true] %s6379
          %s6381 = sshll.u32 %s6378, 4
          %s6382 = int_to_ptr.hbm [resolvable:$true] %s6381
          %6387 = dma.vmem_to_hbm [thread:$0]  %s6380, 4096, %s6382, %s6367, 128, 128, 8
        $region36: #{upblock_forward.1} parent=27 // pred_fallthru
          _
      $region28: #{upblock_forward.1} parent=5 // pred_fallthru
        _
      %p6388 = scmp.le.s32.totalorder 2, %s12
      // Predicated region
      $region37: #{upblock_forward.1} parent=5 // pred_check
        %p6389 = pneg %p6388
      $region38: #{upblock_forward.1} parent=5 // pred_check_branch
        %6391 = sbr.rel (%p6389) target = $region40
      $region39: #{upblock_forward.1} parent=5 // pred_region
        %s6392 = ssub.s32 %s12, 2
        // Predicated region
        $region41: #{upblock_forward.1} parent=39 // pred_check
          %p6393 = pneg %p88
        $region42: #{upblock_forward.1} parent=39 // pred_check_branch
          %6395 = sbr.rel (%p6393) target = $region44
        $region43: #{upblock_forward.1} parent=39 // pred_region
          %s6396 = sand.u32 %s73, 1
          %s6397 = scalar_lea.sflag [#allocation4], %s6396
          %s6398 = sand.u32 %s73, 1
          %s6399 = smul.addr %s6398, 256
          %s6400 = scalar_lea.vmem [#allocation6], %s6399
          %6402 = dma.done %s6397, 4096
        $region44: #{upblock_forward.1} parent=39 // pred_fallthru
          _
      $region40: #{upblock_forward.1} parent=5 // pred_fallthru
        _
    $region6: #{upblock_forward.1} parent=1 // loop_footer
      %s16 = sadd.s32 1, %s12
    $region7: #{upblock_forward.1} parent=1 // loop_footer_branch
      %11 = sbr.rel target = $region3
    $region8: #{upblock_forward.1} parent=1 // loop_exit
      _
    %6403 = vsyncpa [#allocation4], 1
    %s6404 = scalar_lea.sflag [#allocation4], 1
    %6405 = vsyncpa %s6404, 1
    %6406 = vsyncpa [#allocation5], 1
    %s6407 = scalar_lea.sflag [#allocation5], 1
    %6408 = vsyncpa %s6407, 1

</llo_original>
